<compile_context>
chip_gen: v5e
topology: v5e:2x2
jax: 0.10.0
libtpu: 0.0.40
codegen_flags: <defaults>
</compile_context>

<pallas_src>
import functools

import jax
import jax.numpy as jnp
import numpy as np
from jax.experimental import pallas as pl
from jax.experimental.pallas import tpu as pltpu

_BN_EPS = 1e-5
_LEAKY_SLOPE = 0.2
_LANE = 128
_SUBLANE = 8
_KW = 3          # kernel_size=3, padding=1 in the reference module
_PAD = 1
_KTAPS = _KW * _KW


def _round_up(x, m):
    return (x + m - 1) // m * m


def _make_fused_kernel(cfgs, N):
    """Build the fused whole-network kernel body.  All shapes/indices static."""
    n_layers = len(cfgs)

    def kernel(*refs):
        idx = 0
        x_ref = refs[idx]; idx += 1                               # (N*Hp*Wp, 128) f32
        w_refs = refs[idx:idx + n_layers]; idx += n_layers        # (1152, 128) bf16 each
        ep_refs = []
        for cfg in cfgs:                                          # per-layer epilogue params
            if cfg["bn"]:
                ep_refs.append((refs[idx], refs[idx + 1])); idx += 2   # gamma, beta
            else:
                ep_refs.append((refs[idx],)); idx += 1                 # bias
        out_refs = refs[idx:idx + n_layers]; idx += n_layers
        act_refs = refs[idx:idx + n_layers - 1]; idx += n_layers - 1
        patch_ref = refs[idx]                                     # (maxM, 1152) f32 scratch

        cur_act = x_ref      # padded activation, rows=(n,h,w), 128 zero-padded lanes
        for l, cfg in enumerate(cfgs):
            Hp, Wp = cfg["Hin"] + 2 * _PAD, cfg["Win"] + 2 * _PAD
            Ho, Wo, s = cfg["Ho"], cfg["Wo"], cfg["stride"]
            M = N * Ho * Wo

            # ---- in-kernel im2col: gather the 9 taps into the patch scratch ----
            # patch[m, t*128 + c] = x_pad[n, kh + s*ho, kw + s*wo, c],  m=(n,ho,wo)
            for kh in range(_KW):
                for kw in range(_KW):
                    t = kh * _KW + kw
                    for n in range(N):
                        for ho in range(Ho):
                            src = n * Hp * Wp + (kh + s * ho) * Wp + kw
                            dst = n * Ho * Wo + ho * Wo
                            rows = (cur_act[pl.ds(src, Wo), :] if s == 1
                                    else cur_act[pl.ds(src, Wo, s), :])
                            patch_ref[pl.ds(dst, Wo),
                                      pl.ds(t * _LANE, _LANE)] = rows

            # ---- conv as GEMM on the MXU: bf16 operands, f32 accumulation ----
            p = patch_ref[pl.ds(0, M), :].astype(jnp.bfloat16)
            y = jnp.dot(p, w_refs[l][...], preferred_element_type=jnp.float32)

            # ---- epilogue: (bias | BatchNorm with batch stats) + LeakyReLU ----
            if cfg["bn"]:
                g_ref, beta_ref = ep_refs[l]
                # Two-pass batch statistics (numerically safe).  Conv bias is
                # skipped entirely: it cancels under mean subtraction.
                inv_m = jnp.float32(1.0 / M)
                mean = jnp.sum(y, axis=0, keepdims=True) * inv_m
                yc = y - mean
                var = jnp.sum(yc * yc, axis=0, keepdims=True) * inv_m
                y = yc * jax.lax.rsqrt(jnp.maximum(var, 0.0) + _BN_EPS)   # rsqrt -> EUP
                y = y * g_ref[...] + beta_ref[...]
            else:
                (b_ref,) = ep_refs[l]
                y = y + b_ref[...]
            if cfg["act"]:
                y = jnp.maximum(y, _LEAKY_SLOPE * y)

            out_refs[l][...] = y                    # lane-dense (M, 128) f32 store

            # ---- scatter into the next layer's padded activation scratch ----
            # Padded lanes (c >= Co) of y are exactly zero (zero weight columns
            # and zero-padded bias/gamma/beta), so full-128-lane row copies
            # preserve the zero-channel invariant; the scratch is zeroed first
            # so spatial border rows provide the conv zero padding.
            if l + 1 < n_layers:
                nref = act_refs[l]
                Hp2, Wp2 = Ho + 2 * _PAD, Wo + 2 * _PAD
                nref[...] = jnp.zeros(nref.shape, nref.dtype)
                for n in range(N):
                    for ho in range(Ho):
                        src = n * Ho * Wo + ho * Wo
                        dst = n * Hp2 * Wp2 + (ho + _PAD) * Wp2 + _PAD
                        nref[pl.ds(dst, Wo), :] = out_refs[l][pl.ds(src, Wo), :]
                cur_act = nref

    return kernel


def nlayer_mask_discriminator_forward(params, x_nchw):
    """Returns res[1:] (n_layers + 2 tensors), each NCHW, like the PyTorch module."""
    N, C, H, W = x_nchw.shape
    x = jnp.transpose(x_nchw, (0, 2, 3, 1)).astype(jnp.float32)   # NCHW -> NHWC

    # Static per-layer geometry.
    cfgs = []
    Hin, Win, Cin = H, W, C
    for p in params:
        s = p["stride"]
        Ho = (Hin + 2 * _PAD - _KW) // s + 1
        Wo = (Win + 2 * _PAD - _KW) // s + 1
        cfgs.append(dict(Hin=Hin, Win=Win, Ho=Ho, Wo=Wo, stride=s,
                         Ci=Cin, Co=p["w"].shape[-1], bn=p["bn"], act=p["act"]))
        Hin, Win, Cin = Ho, Wo, p["w"].shape[-1]
    assert all(c["Ci"] <= _LANE and c["Co"] <= _LANE for c in cfgs), \
        "toy fused kernel keeps channels within a single 128-lane tile"

    # Network input: zero-pad spatially (conv padding) and channels to 128
    # lanes, flatten to rows=(n,h,w).  Only HBM activation read of the net.
    xp = jnp.pad(x, ((0, 0), (_PAD, _PAD), (_PAD, _PAD), (0, _LANE - C)))
    x_flat = xp.reshape(N * (H + 2 * _PAD) * (W + 2 * _PAD), _LANE)

    args = [x_flat]
    # Flattened weights: rows ordered (kh, kw, ci padded to 128), cols padded to 128.
    for p, cfg in zip(params, cfgs):
        wp = jnp.pad(p["w"], ((0, 0), (0, 0),
                              (0, _LANE - cfg["Ci"]), (0, _LANE - cfg["Co"])))
        args.append(wp.reshape(_KTAPS * _LANE, _LANE).astype(jnp.bfloat16))
    # Per-layer epilogue params -- only what each layer actually reads.
    for p, cfg in zip(params, cfgs):
        padc = _LANE - cfg["Co"]
        if cfg["bn"]:
            args.append(jnp.pad(p["gamma"], (0, padc)).reshape(1, _LANE).astype(jnp.float32))
            args.append(jnp.pad(p["beta"], (0, padc)).reshape(1, _LANE).astype(jnp.float32))
        else:
            args.append(jnp.pad(p["b"], (0, padc)).reshape(1, _LANE).astype(jnp.float32))

    out_shape = tuple(jax.ShapeDtypeStruct((N * c["Ho"] * c["Wo"], _LANE), jnp.float32)
                      for c in cfgs)
    scratch_shapes = [pltpu.VMEM((N * (c["Ho"] + 2 * _PAD) * (c["Wo"] + 2 * _PAD), _LANE),
                                 jnp.float32) for c in cfgs[:-1]]
    max_m = _round_up(max(N * c["Ho"] * c["Wo"] for c in cfgs), _SUBLANE)
    scratch_shapes.append(pltpu.VMEM((max_m, _KTAPS * _LANE), jnp.float32))

    vmem = pl.BlockSpec(memory_space=pltpu.MemorySpace.VMEM)
    flops = sum(2 * N * c["Ho"] * c["Wo"] * _KTAPS * _LANE * _LANE for c in cfgs)
    bytes_accessed = (int(np.prod(x_flat.shape)) * 4
                      + sum(int(np.prod(a.shape)) * a.dtype.itemsize for a in args[1:])
                      + sum(N * c["Ho"] * c["Wo"] * _LANE * 4 for c in cfgs))

    outs = pl.pallas_call(
        _make_fused_kernel(cfgs, N),
        out_shape=out_shape,
        in_specs=[vmem] * len(args),
        out_specs=tuple([vmem] * len(cfgs)),
        scratch_shapes=scratch_shapes,
        compiler_params=pltpu.CompilerParams(vmem_limit_bytes=32 * 1024 * 1024),
        cost_estimate=pl.CostEstimate(
            flops=flops,
            transcendentals=_LANE * sum(1 for c in cfgs if c["bn"]),
            bytes_accessed=bytes_accessed),
    )(*args)

    results = []
    for o, c in zip(outs, cfgs):
        y = o[:N * c["Ho"] * c["Wo"], :c["Co"]].reshape(N, c["Ho"], c["Wo"], c["Co"])
        results.append(jnp.transpose(y, (0, 3, 1, 2)))            # NHWC -> NCHW
    return results


def make_layer_configs(input_nc, ndf=64, n_layers=3, num_objects=0):
    """Mirror of NLayerMaskDiscriminator.__init__ layer construction (kw=3, padw=1)."""
    cfgs = [dict(cin=input_nc, cout=ndf, stride=2, bn=False, act=True)]
    nf = ndf
    for _ in range(1, n_layers):
        nf_prev, nf = nf, min(nf * 2, 512)
        cfgs.append(dict(cin=nf_prev, cout=nf, stride=2, bn=True, act=True))
    nf_prev, nf = nf, min(nf * 2, 512)
    # TODO(synk): the reference __init__ adds num_objects input channels here,
    # but forward() never concatenates them, so only num_objects=0 is
    # shape-consistent; we fix it to 0.
    nf_prev += num_objects
    cfgs.append(dict(cin=nf_prev, cout=nf, stride=1, bn=True, act=True))
    cfgs.append(dict(cin=nf, cout=1, stride=1, bn=False, act=False))
    return cfgs


def init_params(key, cfgs):
    params = []
    for cfg in cfgs:
        key, kw_, kb_ = jax.random.split(key, 3)
        cin, cout = cfg["cin"], cfg["cout"]
        fan_in = _KW * _KW * cin
        bound = 1.0 / float(np.sqrt(fan_in))
        w = jax.random.uniform(kw_, (_KW, _KW, cin, cout), jnp.float32, -bound, bound)
        b = jax.random.uniform(kb_, (cout,), jnp.float32, -bound, bound)
        params.append(dict(w=w, b=b,
                           gamma=jnp.ones((cout,), jnp.float32),
                           beta=jnp.zeros((cout,), jnp.float32),
                           stride=cfg["stride"], bn=cfg["bn"], act=cfg["act"]))
    return params


def _reference_forward(params, x_nchw):
    """Pure-XLA reference with matched bf16 conv operands / f32 accumulation."""
    x = jnp.transpose(x_nchw, (0, 2, 3, 1)).astype(jnp.float32)
    outs = []
    for p in params:
        y = jax.lax.conv_general_dilated(
            x.astype(jnp.bfloat16), p["w"].astype(jnp.bfloat16),
            window_strides=(p["stride"], p["stride"]),
            padding=((1, 1), (1, 1)),
            dimension_numbers=("NHWC", "HWIO", "NHWC"),
            preferred_element_type=jnp.float32)
        y = y + p["b"]
        if p["bn"]:
            mean = jnp.mean(y, axis=(0, 1, 2), keepdims=True)
            var = jnp.mean(jnp.square(y - mean), axis=(0, 1, 2), keepdims=True)
            y = (y - mean) * jax.lax.rsqrt(var + _BN_EPS)
            y = y * p["gamma"] + p["beta"]
        if p["act"]:
            y = jnp.where(y >= 0.0, y, _LEAKY_SLOPE * y)
        x = y
        outs.append(jnp.transpose(y, (0, 3, 1, 2)))
    return outs


if __name__ == "__main__":
    # Small shapes consistent with the module: batch=2, input_nc=4, 16x16,
    # ndf=8, n_layers=3, num_objects=0.
    N, C, H, W = 2, 4, 16, 16
    ndf, n_layers, num_objects = 8, 3, 0

    key = jax.random.PRNGKey(0)
    kx, kp = jax.random.split(key)
    x = jax.random.normal(kx, (N, C, H, W), jnp.float32)

    cfgs = make_layer_configs(C, ndf=ndf, n_layers=n_layers,
                              num_objects=num_objects)
    params = init_params(kp, cfgs)

    outs = nlayer_mask_discriminator_forward(params, x)
    outs = jax.block_until_ready(outs)

    expected_shapes = [(2, 8, 8, 8), (2, 16, 4, 4), (2, 32, 2, 2),
                       (2, 64, 2, 2), (2, 1, 2, 2)]
    assert len(outs) == n_layers + 2
    for o, s in zip(outs, expected_shapes):
        assert o.shape == s, (o.shape, s)
        assert bool(jnp.all(jnp.isfinite(o)))

    # Numerical check against the XLA reference (same bf16 quantization points).
    refs = jax.block_until_ready(_reference_forward(params, x))
    for o, r in zip(outs, refs):
        np.testing.assert_allclose(np.asarray(o), np.asarray(r),
                                   rtol=5e-2, atol=5e-2)

    print("KERNEL_OK")
</pallas_src>

<mosaic_0001>
module attributes {stable_mosaic.version = 11 : i64} {
  func.func @kernel(%arg0: memref<648x128xf32, #tpu.memory_space<vmem>>, %arg1: memref<1152x128xbf16, #tpu.memory_space<vmem>>, %arg2: memref<1152x128xbf16, #tpu.memory_space<vmem>>, %arg3: memref<1152x128xbf16, #tpu.memory_space<vmem>>, %arg4: memref<1152x128xbf16, #tpu.memory_space<vmem>>, %arg5: memref<1152x128xbf16, #tpu.memory_space<vmem>>, %arg6: memref<1x128xf32, #tpu.memory_space<vmem>>, %arg7: memref<1x128xf32, #tpu.memory_space<vmem>>, %arg8: memref<1x128xf32, #tpu.memory_space<vmem>>, %arg9: memref<1x128xf32, #tpu.memory_space<vmem>>, %arg10: memref<1x128xf32, #tpu.memory_space<vmem>>, %arg11: memref<1x128xf32, #tpu.memory_space<vmem>>, %arg12: memref<1x128xf32, #tpu.memory_space<vmem>>, %arg13: memref<1x128xf32, #tpu.memory_space<vmem>>, %arg14: memref<128x128xf32, #tpu.memory_space<vmem>>, %arg15: memref<32x128xf32, #tpu.memory_space<vmem>>, %arg16: memref<8x128xf32, #tpu.memory_space<vmem>>, %arg17: memref<8x128xf32, #tpu.memory_space<vmem>>, %arg18: memref<8x128xf32, #tpu.memory_space<vmem>>, %arg19: memref<200x128xf32, #tpu.memory_space<vmem>>, %arg20: memref<72x128xf32, #tpu.memory_space<vmem>>, %arg21: memref<32x128xf32, #tpu.memory_space<vmem>>, %arg22: memref<32x128xf32, #tpu.memory_space<vmem>>, %arg23: memref<128x1152xf32, #tpu.memory_space<vmem>>) attributes {dimension_semantics = [], scalar_prefetch = 0 : i64, scratch_operands = 5 : i64, tpu.core_type = #tpu.core_type<tc>} {
    %c0 = arith.constant 0 : index
    %c0_0 = arith.constant 0 : index
    %0 = tpu.strided_load %arg0[%c0, %c0_0] {strides = array<i32: 2, 1>} : memref<648x128xf32, #tpu.memory_space<vmem>>, vector<8x128xf32>
    %c0_1 = arith.constant 0 : index
    %c0_2 = arith.constant 0 : index
    %1 = vector.load %arg23[%c0_1, %c0_2] : memref<128x1152xf32, #tpu.memory_space<vmem>>, vector<8x128xf32>
    tpu.vector_store %arg23[%c0_1, %c0_2], %0 {strides = array<i32>} : memref<128x1152xf32, #tpu.memory_space<vmem>>, vector<8x128xf32>,
    %c36 = arith.constant 36 : index
    %c0_3 = arith.constant 0 : index
    %2 = tpu.strided_load %arg0[%c36, %c0_3] {strides = array<i32: 2, 1>} : memref<648x128xf32, #tpu.memory_space<vmem>>, vector<8x128xf32>
    %c8 = arith.constant 8 : index
    %c0_4 = arith.constant 0 : index
    %3 = vector.load %arg23[%c8, %c0_4] : memref<128x1152xf32, #tpu.memory_space<vmem>>, vector<8x128xf32>
    tpu.vector_store %arg23[%c8, %c0_4], %2 {strides = array<i32>} : memref<128x1152xf32, #tpu.memory_space<vmem>>, vector<8x128xf32>,
    %c72 = arith.constant 72 : index
    %c0_5 = arith.constant 0 : index
    %4 = tpu.strided_load %arg0[%c72, %c0_5] {strides = array<i32: 2, 1>} : memref<648x128xf32, #tpu.memory_space<vmem>>, vector<8x128xf32>
    %c16 = arith.constant 16 : index
    %c0_6 = arith.constant 0 : index
    %5 = vector.load %arg23[%c16, %c0_6] : memref<128x1152xf32, #tpu.memory_space<vmem>>, vector<8x128xf32>
    tpu.vector_store %arg23[%c16, %c0_6], %4 {strides = array<i32>} : memref<128x1152xf32, #tpu.memory_space<vmem>>, vector<8x128xf32>,
    %c108 = arith.constant 108 : index
    %c0_7 = arith.constant 0 : index
    %6 = tpu.strided_load %arg0[%c108, %c0_7] {strides = array<i32: 2, 1>} : memref<648x128xf32, #tpu.memory_space<vmem>>, vector<8x128xf32>
    %c24 = arith.constant 24 : index
    %c0_8 = arith.constant 0 : index
    %7 = vector.load %arg23[%c24, %c0_8] : memref<128x1152xf32, #tpu.memory_space<vmem>>, vector<8x128xf32>
    tpu.vector_store %arg23[%c24, %c0_8], %6 {strides = array<i32>} : memref<128x1152xf32, #tpu.memory_space<vmem>>, vector<8x128xf32>,
    %c144 = arith.constant 144 : index
    %c0_9 = arith.constant 0 : index
    %8 = tpu.strided_load %arg0[%c144, %c0_9] {strides = array<i32: 2, 1>} : memref<648x128xf32, #tpu.memory_space<vmem>>, vector<8x128xf32>
    %c32 = arith.constant 32 : index
    %c0_10 = arith.constant 0 : index
    %9 = vector.load %arg23[%c32, %c0_10] : memref<128x1152xf32, #tpu.memory_space<vmem>>, vector<8x128xf32>
    tpu.vector_store %arg23[%c32, %c0_10], %8 {strides = array<i32>} : memref<128x1152xf32, #tpu.memory_space<vmem>>, vector<8x128xf32>,
    %c180 = arith.constant 180 : index
    %c0_11 = arith.constant 0 : index
    %10 = tpu.strided_load %arg0[%c180, %c0_11] {strides = array<i32: 2, 1>} : memref<648x128xf32, #tpu.memory_space<vmem>>, vector<8x128xf32>
    %c40 = arith.constant 40 : index
    %c0_12 = arith.constant 0 : index
    %11 = vector.load %arg23[%c40, %c0_12] : memref<128x1152xf32, #tpu.memory_space<vmem>>, vector<8x128xf32>
    tpu.vector_store %arg23[%c40, %c0_12], %10 {strides = array<i32>} : memref<128x1152xf32, #tpu.memory_space<vmem>>, vector<8x128xf32>,
    %c216 = arith.constant 216 : index
    %c0_13 = arith.constant 0 : index
    %12 = tpu.strided_load %arg0[%c216, %c0_13] {strides = array<i32: 2, 1>} : memref<648x128xf32, #tpu.memory_space<vmem>>, vector<8x128xf32>
    %c48 = arith.constant 48 : index
    %c0_14 = arith.constant 0 : index
    %13 = vector.load %arg23[%c48, %c0_14] : memref<128x1152xf32, #tpu.memory_space<vmem>>, vector<8x128xf32>
    tpu.vector_store %arg23[%c48, %c0_14], %12 {strides = array<i32>} : memref<128x1152xf32, #tpu.memory_space<vmem>>, vector<8x128xf32>,
    %c252 = arith.constant 252 : index
    %c0_15 = arith.constant 0 : index
    %14 = tpu.strided_load %arg0[%c252, %c0_15] {strides = array<i32: 2, 1>} : memref<648x128xf32, #tpu.memory_space<vmem>>, vector<8x128xf32>
    %c56 = arith.constant 56 : index
    %c0_16 = arith.constant 0 : index
    %15 = vector.load %arg23[%c56, %c0_16] : memref<128x1152xf32, #tpu.memory_space<vmem>>, vector<8x128xf32>
    tpu.vector_store %arg23[%c56, %c0_16], %14 {strides = array<i32>} : memref<128x1152xf32, #tpu.memory_space<vmem>>, vector<8x128xf32>,
    %c324 = arith.constant 324 : index
    %c0_17 = arith.constant 0 : index
    %16 = tpu.strided_load %arg0[%c324, %c0_17] {strides = array<i32: 2, 1>} : memref<648x128xf32, #tpu.memory_space<vmem>>, vector<8x128xf32>
    %c64 = arith.constant 64 : index
    %c0_18 = arith.constant 0 : index
    %17 = vector.load %arg23[%c64, %c0_18] : memref<128x1152xf32, #tpu.memory_space<vmem>>, vector<8x128xf32>
    tpu.vector_store %arg23[%c64, %c0_18], %16 {strides = array<i32>} : memref<128x1152xf32, #tpu.memory_space<vmem>>, vector<8x128xf32>,
    %c360 = arith.constant 360 : index
    %c0_19 = arith.constant 0 : index
    %18 = tpu.strided_load %arg0[%c360, %c0_19] {strides = array<i32: 2, 1>} : memref<648x128xf32, #tpu.memory_space<vmem>>, vector<8x128xf32>
    %c72_20 = arith.constant 72 : index
    %c0_21 = arith.constant 0 : index
    %19 = vector.load %arg23[%c72_20, %c0_21] : memref<128x1152xf32, #tpu.memory_space<vmem>>, vector<8x128xf32>
    tpu.vector_store %arg23[%c72_20, %c0_21], %18 {strides = array<i32>} : memref<128x1152xf32, #tpu.memory_space<vmem>>, vector<8x128xf32>,
    %c396 = arith.constant 396 : index
    %c0_22 = arith.constant 0 : index
    %20 = tpu.strided_load %arg0[%c396, %c0_22] {strides = array<i32: 2, 1>} : memref<648x128xf32, #tpu.memory_space<vmem>>, vector<8x128xf32>
    %c80 = arith.constant 80 : index
    %c0_23 = arith.constant 0 : index
    %21 = vector.load %arg23[%c80, %c0_23] : memref<128x1152xf32, #tpu.memory_space<vmem>>, vector<8x128xf32>
    tpu.vector_store %arg23[%c80, %c0_23], %20 {strides = array<i32>} : memref<128x1152xf32, #tpu.memory_space<vmem>>, vector<8x128xf32>,
    %c432 = arith.constant 432 : index
    %c0_24 = arith.constant 0 : index
    %22 = tpu.strided_load %arg0[%c432, %c0_24] {strides = array<i32: 2, 1>} : memref<648x128xf32, #tpu.memory_space<vmem>>, vector<8x128xf32>
    %c88 = arith.constant 88 : index
    %c0_25 = arith.constant 0 : index
    %23 = vector.load %arg23[%c88, %c0_25] : memref<128x1152xf32, #tpu.memory_space<vmem>>, vector<8x128xf32>
    tpu.vector_store %arg23[%c88, %c0_25], %22 {strides = array<i32>} : memref<128x1152xf32, #tpu.memory_space<vmem>>, vector<8x128xf32>,
    %c468 = arith.constant 468 : index
    %c0_26 = arith.constant 0 : index
    %24 = tpu.strided_load %arg0[%c468, %c0_26] {strides = array<i32: 2, 1>} : memref<648x128xf32, #tpu.memory_space<vmem>>, vector<8x128xf32>
    %c96 = arith.constant 96 : index
    %c0_27 = arith.constant 0 : index
    %25 = vector.load %arg23[%c96, %c0_27] : memref<128x1152xf32, #tpu.memory_space<vmem>>, vector<8x128xf32>
    tpu.vector_store %arg23[%c96, %c0_27], %24 {strides = array<i32>} : memref<128x1152xf32, #tpu.memory_space<vmem>>, vector<8x128xf32>,
    %c504 = arith.constant 504 : index
    %c0_28 = arith.constant 0 : index
    %26 = tpu.strided_load %arg0[%c504, %c0_28] {strides = array<i32: 2, 1>} : memref<648x128xf32, #tpu.memory_space<vmem>>, vector<8x128xf32>
    %c104 = arith.constant 104 : index
    %c0_29 = arith.constant 0 : index
    %27 = vector.load %arg23[%c104, %c0_29] : memref<128x1152xf32, #tpu.memory_space<vmem>>, vector<8x128xf32>
    tpu.vector_store %arg23[%c104, %c0_29], %26 {strides = array<i32>} : memref<128x1152xf32, #tpu.memory_space<vmem>>, vector<8x128xf32>,
    %c540 = arith.constant 540 : index
    %c0_30 = arith.constant 0 : index
    %28 = tpu.strided_load %arg0[%c540, %c0_30] {strides = array<i32: 2, 1>} : memref<648x128xf32, #tpu.memory_space<vmem>>, vector<8x128xf32>
    %c112 = arith.constant 112 : index
    %c0_31 = arith.constant 0 : index
    %29 = vector.load %arg23[%c112, %c0_31] : memref<128x1152xf32, #tpu.memory_space<vmem>>, vector<8x128xf32>
    tpu.vector_store %arg23[%c112, %c0_31], %28 {strides = array<i32>} : memref<128x1152xf32, #tpu.memory_space<vmem>>, vector<8x128xf32>,
    %c576 = arith.constant 576 : index
    %c0_32 = arith.constant 0 : index
    %30 = tpu.strided_load %arg0[%c576, %c0_32] {strides = array<i32: 2, 1>} : memref<648x128xf32, #tpu.memory_space<vmem>>, vector<8x128xf32>
    %c120 = arith.constant 120 : index
    %c0_33 = arith.constant 0 : index
    %31 = vector.load %arg23[%c120, %c0_33] : memref<128x1152xf32, #tpu.memory_space<vmem>>, vector<8x128xf32>
    tpu.vector_store %arg23[%c120, %c0_33], %30 {strides = array<i32>} : memref<128x1152xf32, #tpu.memory_space<vmem>>, vector<8x128xf32>,
    %c1 = arith.constant 1 : index
    %c0_34 = arith.constant 0 : index
    %32 = tpu.strided_load %arg0[%c1, %c0_34] {strides = array<i32: 2, 1>} : memref<648x128xf32, #tpu.memory_space<vmem>>, vector<8x128xf32>
    %c0_35 = arith.constant 0 : index
    %c128 = arith.constant 128 : index
    %33 = vector.load %arg23[%c0_35, %c128] : memref<128x1152xf32, #tpu.memory_space<vmem>>, vector<8x128xf32>
    tpu.vector_store %arg23[%c0_35, %c128], %32 {strides = array<i32>} : memref<128x1152xf32, #tpu.memory_space<vmem>>, vector<8x128xf32>,
    %c37 = arith.constant 37 : index
    %c0_36 = arith.constant 0 : index
    %34 = tpu.strided_load %arg0[%c37, %c0_36] {strides = array<i32: 2, 1>} : memref<648x128xf32, #tpu.memory_space<vmem>>, vector<8x128xf32>
    %c8_37 = arith.constant 8 : index
    %c128_38 = arith.constant 128 : index
    %35 = vector.load %arg23[%c8_37, %c128_38] : memref<128x1152xf32, #tpu.memory_space<vmem>>, vector<8x128xf32>
    tpu.vector_store %arg23[%c8_37, %c128_38], %34 {strides = array<i32>} : memref<128x1152xf32, #tpu.memory_space<vmem>>, vector<8x128xf32>,
    %c73 = arith.constant 73 : index
    %c0_39 = arith.constant 0 : index
    %36 = tpu.strided_load %arg0[%c73, %c0_39] {strides = array<i32: 2, 1>} : memref<648x128xf32, #tpu.memory_space<vmem>>, vector<8x128xf32>
    %c16_40 = arith.constant 16 : index
    %c128_41 = arith.constant 128 : index
    %37 = vector.load %arg23[%c16_40, %c128_41] : memref<128x1152xf32, #tpu.memory_space<vmem>>, vector<8x128xf32>
    tpu.vector_store %arg23[%c16_40, %c128_41], %36 {strides = array<i32>} : memref<128x1152xf32, #tpu.memory_space<vmem>>, vector<8x128xf32>,
    %c109 = arith.constant 109 : index
    %c0_42 = arith.constant 0 : index
    %38 = tpu.strided_load %arg0[%c109, %c0_42] {strides = array<i32: 2, 1>} : memref<648x128xf32, #tpu.memory_space<vmem>>, vector<8x128xf32>
    %c24_43 = arith.constant 24 : index
    %c128_44 = arith.constant 128 : index
    %39 = vector.load %arg23[%c24_43, %c128_44] : memref<128x1152xf32, #tpu.memory_space<vmem>>, vector<8x128xf32>
    tpu.vector_store %arg23[%c24_43, %c128_44], %38 {strides = array<i32>} : memref<128x1152xf32, #tpu.memory_space<vmem>>, vector<8x128xf32>,
    %c145 = arith.constant 145 : index
    %c0_45 = arith.constant 0 : index
    %40 = tpu.strided_load %arg0[%c145, %c0_45] {strides = array<i32: 2, 1>} : memref<648x128xf32, #tpu.memory_space<vmem>>, vector<8x128xf32>
    %c32_46 = arith.constant 32 : index
    %c128_47 = arith.constant 128 : index
    %41 = vector.load %arg23[%c32_46, %c128_47] : memref<128x1152xf32, #tpu.memory_space<vmem>>, vector<8x128xf32>
    tpu.vector_store %arg23[%c32_46, %c128_47], %40 {strides = array<i32>} : memref<128x1152xf32, #tpu.memory_space<vmem>>, vector<8x128xf32>,
    %c181 = arith.constant 181 : index
    %c0_48 = arith.constant 0 : index
    %42 = tpu.strided_load %arg0[%c181, %c0_48] {strides = array<i32: 2, 1>} : memref<648x128xf32, #tpu.memory_space<vmem>>, vector<8x128xf32>
    %c40_49 = arith.constant 40 : index
    %c128_50 = arith.constant 128 : index
    %43 = vector.load %arg23[%c40_49, %c128_50] : memref<128x1152xf32, #tpu.memory_space<vmem>>, vector<8x128xf32>
    tpu.vector_store %arg23[%c40_49, %c128_50], %42 {strides = array<i32>} : memref<128x1152xf32, #tpu.memory_space<vmem>>, vector<8x128xf32>,
    %c217 = arith.constant 217 : index
    %c0_51 = arith.constant 0 : index
    %44 = tpu.strided_load %arg0[%c217, %c0_51] {strides = array<i32: 2, 1>} : memref<648x128xf32, #tpu.memory_space<vmem>>, vector<8x128xf32>
    %c48_52 = arith.constant 48 : index
    %c128_53 = arith.constant 128 : index
    %45 = vector.load %arg23[%c48_52, %c128_53] : memref<128x1152xf32, #tpu.memory_space<vmem>>, vector<8x128xf32>
    tpu.vector_store %arg23[%c48_52, %c128_53], %44 {strides = array<i32>} : memref<128x1152xf32, #tpu.memory_space<vmem>>, vector<8x128xf32>,
    %c253 = arith.constant 253 : index
    %c0_54 = arith.constant 0 : index
    %46 = tpu.strided_load %arg0[%c253, %c0_54] {strides = array<i32: 2, 1>} : memref<648x128xf32, #tpu.memory_space<vmem>>, vector<8x128xf32>
    %c56_55 = arith.constant 56 : index
    %c128_56 = arith.constant 128 : index
    %47 = vector.load %arg23[%c56_55, %c128_56] : memref<128x1152xf32, #tpu.memory_space<vmem>>, vector<8x128xf32>
    tpu.vector_store %arg23[%c56_55, %c128_56], %46 {strides = array<i32>} : memref<128x1152xf32, #tpu.memory_space<vmem>>, vector<8x128xf32>,
    %c325 = arith.constant 325 : index
    %c0_57 = arith.constant 0 : index
    %48 = tpu.strided_load %arg0[%c325, %c0_57] {strides = array<i32: 2, 1>} : memref<648x128xf32, #tpu.memory_space<vmem>>, vector<8x128xf32>
    %c64_58 = arith.constant 64 : index
    %c128_59 = arith.constant 128 : index
    %49 = vector.load %arg23[%c64_58, %c128_59] : memref<128x1152xf32, #tpu.memory_space<vmem>>, vector<8x128xf32>
    tpu.vector_store %arg23[%c64_58, %c128_59], %48 {strides = array<i32>} : memref<128x1152xf32, #tpu.memory_space<vmem>>, vector<8x128xf32>,
    %c361 = arith.constant 361 : index
    %c0_60 = arith.constant 0 : index
    %50 = tpu.strided_load %arg0[%c361, %c0_60] {strides = array<i32: 2, 1>} : memref<648x128xf32, #tpu.memory_space<vmem>>, vector<8x128xf32>
    %c72_61 = arith.constant 72 : index
    %c128_62 = arith.constant 128 : index
    %51 = vector.load %arg23[%c72_61, %c128_62] : memref<128x1152xf32, #tpu.memory_space<vmem>>, vector<8x128xf32>
    tpu.vector_store %arg23[%c72_61, %c128_62], %50 {strides = array<i32>} : memref<128x1152xf32, #tpu.memory_space<vmem>>, vector<8x128xf32>,
    %c397 = arith.constant 397 : index
    %c0_63 = arith.constant 0 : index
    %52 = tpu.strided_load %arg0[%c397, %c0_63] {strides = array<i32: 2, 1>} : memref<648x128xf32, #tpu.memory_space<vmem>>, vector<8x128xf32>
    %c80_64 = arith.constant 80 : index
    %c128_65 = arith.constant 128 : index
    %53 = vector.load %arg23[%c80_64, %c128_65] : memref<128x1152xf32, #tpu.memory_space<vmem>>, vector<8x128xf32>
    tpu.vector_store %arg23[%c80_64, %c128_65], %52 {strides = array<i32>} : memref<128x1152xf32, #tpu.memory_space<vmem>>, vector<8x128xf32>,
    %c433 = arith.constant 433 : index
    %c0_66 = arith.constant 0 : index
    %54 = tpu.strided_load %arg0[%c433, %c0_66] {strides = array<i32: 2, 1>} : memref<648x128xf32, #tpu.memory_space<vmem>>, vector<8x128xf32>
    %c88_67 = arith.constant 88 : index
    %c128_68 = arith.constant 128 : index
    %55 = vector.load %arg23[%c88_67, %c128_68] : memref<128x1152xf32, #tpu.memory_space<vmem>>, vector<8x128xf32>
    tpu.vector_store %arg23[%c88_67, %c128_68], %54 {strides = array<i32>} : memref<128x1152xf32, #tpu.memory_space<vmem>>, vector<8x128xf32>,
    %c469 = arith.constant 469 : index
    %c0_69 = arith.constant 0 : index
    %56 = tpu.strided_load %arg0[%c469, %c0_69] {strides = array<i32: 2, 1>} : memref<648x128xf32, #tpu.memory_space<vmem>>, vector<8x128xf32>
    %c96_70 = arith.constant 96 : index
    %c128_71 = arith.constant 128 : index
    %57 = vector.load %arg23[%c96_70, %c128_71] : memref<128x1152xf32, #tpu.memory_space<vmem>>, vector<8x128xf32>
    tpu.vector_store %arg23[%c96_70, %c128_71], %56 {strides = array<i32>} : memref<128x1152xf32, #tpu.memory_space<vmem>>, vector<8x128xf32>,
    %c505 = arith.constant 505 : index
    %c0_72 = arith.constant 0 : index
    %58 = tpu.strided_load %arg0[%c505, %c0_72] {strides = array<i32: 2, 1>} : memref<648x128xf32, #tpu.memory_space<vmem>>, vector<8x128xf32>
    %c104_73 = arith.constant 104 : index
    %c128_74 = arith.constant 128 : index
    %59 = vector.load %arg23[%c104_73, %c128_74] : memref<128x1152xf32, #tpu.memory_space<vmem>>, vector<8x128xf32>
    tpu.vector_store %arg23[%c104_73, %c128_74], %58 {strides = array<i32>} : memref<128x1152xf32, #tpu.memory_space<vmem>>, vector<8x128xf32>,
    %c541 = arith.constant 541 : index
    %c0_75 = arith.constant 0 : index
    %60 = tpu.strided_load %arg0[%c541, %c0_75] {strides = array<i32: 2, 1>} : memref<648x128xf32, #tpu.memory_space<vmem>>, vector<8x128xf32>
    %c112_76 = arith.constant 112 : index
    %c128_77 = arith.constant 128 : index
    %61 = vector.load %arg23[%c112_76, %c128_77] : memref<128x1152xf32, #tpu.memory_space<vmem>>, vector<8x128xf32>
    tpu.vector_store %arg23[%c112_76, %c128_77], %60 {strides = array<i32>} : memref<128x1152xf32, #tpu.memory_space<vmem>>, vector<8x128xf32>,
    %c577 = arith.constant 577 : index
    %c0_78 = arith.constant 0 : index
    %62 = tpu.strided_load %arg0[%c577, %c0_78] {strides = array<i32: 2, 1>} : memref<648x128xf32, #tpu.memory_space<vmem>>, vector<8x128xf32>
    %c120_79 = arith.constant 120 : index
    %c128_80 = arith.constant 128 : index
    %63 = vector.load %arg23[%c120_79, %c128_80] : memref<128x1152xf32, #tpu.memory_space<vmem>>, vector<8x128xf32>
    tpu.vector_store %arg23[%c120_79, %c128_80], %62 {strides = array<i32>} : memref<128x1152xf32, #tpu.memory_space<vmem>>, vector<8x128xf32>,
    %c2 = arith.constant 2 : index
    %c0_81 = arith.constant 0 : index
    %64 = tpu.strided_load %arg0[%c2, %c0_81] {strides = array<i32: 2, 1>} : memref<648x128xf32, #tpu.memory_space<vmem>>, vector<8x128xf32>
    %c0_82 = arith.constant 0 : index
    %c256 = arith.constant 256 : index
    %65 = vector.load %arg23[%c0_82, %c256] : memref<128x1152xf32, #tpu.memory_space<vmem>>, vector<8x128xf32>
    tpu.vector_store %arg23[%c0_82, %c256], %64 {strides = array<i32>} : memref<128x1152xf32, #tpu.memory_space<vmem>>, vector<8x128xf32>,
    %c38 = arith.constant 38 : index
    %c0_83 = arith.constant 0 : index
    %66 = tpu.strided_load %arg0[%c38, %c0_83] {strides = array<i32: 2, 1>} : memref<648x128xf32, #tpu.memory_space<vmem>>, vector<8x128xf32>
    %c8_84 = arith.constant 8 : index
    %c256_85 = arith.constant 256 : index
    %67 = vector.load %arg23[%c8_84, %c256_85] : memref<128x1152xf32, #tpu.memory_space<vmem>>, vector<8x128xf32>
    tpu.vector_store %arg23[%c8_84, %c256_85], %66 {strides = array<i32>} : memref<128x1152xf32, #tpu.memory_space<vmem>>, vector<8x128xf32>,
    %c74 = arith.constant 74 : index
    %c0_86 = arith.constant 0 : index
    %68 = tpu.strided_load %arg0[%c74, %c0_86] {strides = array<i32: 2, 1>} : memref<648x128xf32, #tpu.memory_space<vmem>>, vector<8x128xf32>
    %c16_87 = arith.constant 16 : index
    %c256_88 = arith.constant 256 : index
    %69 = vector.load %arg23[%c16_87, %c256_88] : memref<128x1152xf32, #tpu.memory_space<vmem>>, vector<8x128xf32>
    tpu.vector_store %arg23[%c16_87, %c256_88], %68 {strides = array<i32>} : memref<128x1152xf32, #tpu.memory_space<vmem>>, vector<8x128xf32>,
    %c110 = arith.constant 110 : index
    %c0_89 = arith.constant 0 : index
    %70 = tpu.strided_load %arg0[%c110, %c0_89] {strides = array<i32: 2, 1>} : memref<648x128xf32, #tpu.memory_space<vmem>>, vector<8x128xf32>
    %c24_90 = arith.constant 24 : index
    %c256_91 = arith.constant 256 : index
    %71 = vector.load %arg23[%c24_90, %c256_91] : memref<128x1152xf32, #tpu.memory_space<vmem>>, vector<8x128xf32>
    tpu.vector_store %arg23[%c24_90, %c256_91], %70 {strides = array<i32>} : memref<128x1152xf32, #tpu.memory_space<vmem>>, vector<8x128xf32>,
    %c146 = arith.constant 146 : index
    %c0_92 = arith.constant 0 : index
    %72 = tpu.strided_load %arg0[%c146, %c0_92] {strides = array<i32: 2, 1>} : memref<648x128xf32, #tpu.memory_space<vmem>>, vector<8x128xf32>
    %c32_93 = arith.constant 32 : index
    %c256_94 = arith.constant 256 : index
    %73 = vector.load %arg23[%c32_93, %c256_94] : memref<128x1152xf32, #tpu.memory_space<vmem>>, vector<8x128xf32>
    tpu.vector_store %arg23[%c32_93, %c256_94], %72 {strides = array<i32>} : memref<128x1152xf32, #tpu.memory_space<vmem>>, vector<8x128xf32>,
    %c182 = arith.constant 182 : index
    %c0_95 = arith.constant 0 : index
    %74 = tpu.strided_load %arg0[%c182, %c0_95] {strides = array<i32: 2, 1>} : memref<648x128xf32, #tpu.memory_space<vmem>>, vector<8x128xf32>
    %c40_96 = arith.constant 40 : index
    %c256_97 = arith.constant 256 : index
    %75 = vector.load %arg23[%c40_96, %c256_97] : memref<128x1152xf32, #tpu.memory_space<vmem>>, vector<8x128xf32>
    tpu.vector_store %arg23[%c40_96, %c256_97], %74 {strides = array<i32>} : memref<128x1152xf32, #tpu.memory_space<vmem>>, vector<8x128xf32>,
    %c218 = arith.constant 218 : index
    %c0_98 = arith.constant 0 : index
    %76 = tpu.strided_load %arg0[%c218, %c0_98] {strides = array<i32: 2, 1>} : memref<648x128xf32, #tpu.memory_space<vmem>>, vector<8x128xf32>
    %c48_99 = arith.constant 48 : index
    %c256_100 = arith.constant 256 : index
    %77 = vector.load %arg23[%c48_99, %c256_100] : memref<128x1152xf32, #tpu.memory_space<vmem>>, vector<8x128xf32>
    tpu.vector_store %arg23[%c48_99, %c256_100], %76 {strides = array<i32>} : memref<128x1152xf32, #tpu.memory_space<vmem>>, vector<8x128xf32>,
    %c254 = arith.constant 254 : index
    %c0_101 = arith.constant 0 : index
    %78 = tpu.strided_load %arg0[%c254, %c0_101] {strides = array<i32: 2, 1>} : memref<648x128xf32, #tpu.memory_space<vmem>>, vector<8x128xf32>
    %c56_102 = arith.constant 56 : index
    %c256_103 = arith.constant 256 : index
    %79 = vector.load %arg23[%c56_102, %c256_103] : memref<128x1152xf32, #tpu.memory_space<vmem>>, vector<8x128xf32>
    tpu.vector_store %arg23[%c56_102, %c256_103], %78 {strides = array<i32>} : memref<128x1152xf32, #tpu.memory_space<vmem>>, vector<8x128xf32>,
    %c326 = arith.constant 326 : index
    %c0_104 = arith.constant 0 : index
    %80 = tpu.strided_load %arg0[%c326, %c0_104] {strides = array<i32: 2, 1>} : memref<648x128xf32, #tpu.memory_space<vmem>>, vector<8x128xf32>
    %c64_105 = arith.constant 64 : index
    %c256_106 = arith.constant 256 : index
    %81 = vector.load %arg23[%c64_105, %c256_106] : memref<128x1152xf32, #tpu.memory_space<vmem>>, vector<8x128xf32>
    tpu.vector_store %arg23[%c64_105, %c256_106], %80 {strides = array<i32>} : memref<128x1152xf32, #tpu.memory_space<vmem>>, vector<8x128xf32>,
    %c362 = arith.constant 362 : index
    %c0_107 = arith.constant 0 : index
    %82 = tpu.strided_load %arg0[%c362, %c0_107] {strides = array<i32: 2, 1>} : memref<648x128xf32, #tpu.memory_space<vmem>>, vector<8x128xf32>
    %c72_108 = arith.constant 72 : index
    %c256_109 = arith.constant 256 : index
    %83 = vector.load %arg23[%c72_108, %c256_109] : memref<128x1152xf32, #tpu.memory_space<vmem>>, vector<8x128xf32>
    tpu.vector_store %arg23[%c72_108, %c256_109], %82 {strides = array<i32>} : memref<128x1152xf32, #tpu.memory_space<vmem>>, vector<8x128xf32>,
    %c398 = arith.constant 398 : index
    %c0_110 = arith.constant 0 : index
    %84 = tpu.strided_load %arg0[%c398, %c0_110] {strides = array<i32: 2, 1>} : memref<648x128xf32, #tpu.memory_space<vmem>>, vector<8x128xf32>
    %c80_111 = arith.constant 80 : index
    %c256_112 = arith.constant 256 : index
    %85 = vector.load %arg23[%c80_111, %c256_112] : memref<128x1152xf32, #tpu.memory_space<vmem>>, vector<8x128xf32>
    tpu.vector_store %arg23[%c80_111, %c256_112], %84 {strides = array<i32>} : memref<128x1152xf32, #tpu.memory_space<vmem>>, vector<8x128xf32>,
    %c434 = arith.constant 434 : index
    %c0_113 = arith.constant 0 : index
    %86 = tpu.strided_load %arg0[%c434, %c0_113] {strides = array<i32: 2, 1>} : memref<648x128xf32, #tpu.memory_space<vmem>>, vector<8x128xf32>
    %c88_114 = arith.constant 88 : index
    %c256_115 = arith.constant 256 : index
    %87 = vector.load %arg23[%c88_114, %c256_115] : memref<128x1152xf32, #tpu.memory_space<vmem>>, vector<8x128xf32>
    tpu.vector_store %arg23[%c88_114, %c256_115], %86 {strides = array<i32>} : memref<128x1152xf32, #tpu.memory_space<vmem>>, vector<8x128xf32>,
    %c470 = arith.constant 470 : index
    %c0_116 = arith.constant 0 : index
    %88 = tpu.strided_load %arg0[%c470, %c0_116] {strides = array<i32: 2, 1>} : memref<648x128xf32, #tpu.memory_space<vmem>>, vector<8x128xf32>
    %c96_117 = arith.constant 96 : index
    %c256_118 = arith.constant 256 : index
    %89 = vector.load %arg23[%c96_117, %c256_118] : memref<128x1152xf32, #tpu.memory_space<vmem>>, vector<8x128xf32>
    tpu.vector_store %arg23[%c96_117, %c256_118], %88 {strides = array<i32>} : memref<128x1152xf32, #tpu.memory_space<vmem>>, vector<8x128xf32>,
    %c506 = arith.constant 506 : index
    %c0_119 = arith.constant 0 : index
    %90 = tpu.strided_load %arg0[%c506, %c0_119] {strides = array<i32: 2, 1>} : memref<648x128xf32, #tpu.memory_space<vmem>>, vector<8x128xf32>
    %c104_120 = arith.constant 104 : index
    %c256_121 = arith.constant 256 : index
    %91 = vector.load %arg23[%c104_120, %c256_121] : memref<128x1152xf32, #tpu.memory_space<vmem>>, vector<8x128xf32>
    tpu.vector_store %arg23[%c104_120, %c256_121], %90 {strides = array<i32>} : memref<128x1152xf32, #tpu.memory_space<vmem>>, vector<8x128xf32>,
    %c542 = arith.constant 542 : index
    %c0_122 = arith.constant 0 : index
    %92 = tpu.strided_load %arg0[%c542, %c0_122] {strides = array<i32: 2, 1>} : memref<648x128xf32, #tpu.memory_space<vmem>>, vector<8x128xf32>
    %c112_123 = arith.constant 112 : index
    %c256_124 = arith.constant 256 : index
    %93 = vector.load %arg23[%c112_123, %c256_124] : memref<128x1152xf32, #tpu.memory_space<vmem>>, vector<8x128xf32>
    tpu.vector_store %arg23[%c112_123, %c256_124], %92 {strides = array<i32>} : memref<128x1152xf32, #tpu.memory_space<vmem>>, vector<8x128xf32>,
    %c578 = arith.constant 578 : index
    %c0_125 = arith.constant 0 : index
    %94 = tpu.strided_load %arg0[%c578, %c0_125] {strides = array<i32: 2, 1>} : memref<648x128xf32, #tpu.memory_space<vmem>>, vector<8x128xf32>
    %c120_126 = arith.constant 120 : index
    %c256_127 = arith.constant 256 : index
    %95 = vector.load %arg23[%c120_126, %c256_127] : memref<128x1152xf32, #tpu.memory_space<vmem>>, vector<8x128xf32>
    tpu.vector_store %arg23[%c120_126, %c256_127], %94 {strides = array<i32>} : memref<128x1152xf32, #tpu.memory_space<vmem>>, vector<8x128xf32>,
    %c18 = arith.constant 18 : index
    %c0_128 = arith.constant 0 : index
    %96 = tpu.strided_load %arg0[%c18, %c0_128] {strides = array<i32: 2, 1>} : memref<648x128xf32, #tpu.memory_space<vmem>>, vector<8x128xf32>
    %c0_129 = arith.constant 0 : index
    %c384 = arith.constant 384 : index
    %97 = vector.load %arg23[%c0_129, %c384] : memref<128x1152xf32, #tpu.memory_space<vmem>>, vector<8x128xf32>
    tpu.vector_store %arg23[%c0_129, %c384], %96 {strides = array<i32>} : memref<128x1152xf32, #tpu.memory_space<vmem>>, vector<8x128xf32>,
    %c54 = arith.constant 54 : index
    %c0_130 = arith.constant 0 : index
    %98 = tpu.strided_load %arg0[%c54, %c0_130] {strides = array<i32: 2, 1>} : memref<648x128xf32, #tpu.memory_space<vmem>>, vector<8x128xf32>
    %c8_131 = arith.constant 8 : index
    %c384_132 = arith.constant 384 : index
    %99 = vector.load %arg23[%c8_131, %c384_132] : memref<128x1152xf32, #tpu.memory_space<vmem>>, vector<8x128xf32>
    tpu.vector_store %arg23[%c8_131, %c384_132], %98 {strides = array<i32>} : memref<128x1152xf32, #tpu.memory_space<vmem>>, vector<8x128xf32>,
    %c90 = arith.constant 90 : index
    %c0_133 = arith.constant 0 : index
    %100 = tpu.strided_load %arg0[%c90, %c0_133] {strides = array<i32: 2, 1>} : memref<648x128xf32, #tpu.memory_space<vmem>>, vector<8x128xf32>
    %c16_134 = arith.constant 16 : index
    %c384_135 = arith.constant 384 : index
    %101 = vector.load %arg23[%c16_134, %c384_135] : memref<128x1152xf32, #tpu.memory_space<vmem>>, vector<8x128xf32>
    tpu.vector_store %arg23[%c16_134, %c384_135], %100 {strides = array<i32>} : memref<128x1152xf32, #tpu.memory_space<vmem>>, vector<8x128xf32>,
    %c126 = arith.constant 126 : index
    %c0_136 = arith.constant 0 : index
    %102 = tpu.strided_load %arg0[%c126, %c0_136] {strides = array<i32: 2, 1>} : memref<648x128xf32, #tpu.memory_space<vmem>>, vector<8x128xf32>
    %c24_137 = arith.constant 24 : index
    %c384_138 = arith.constant 384 : index
    %103 = vector.load %arg23[%c24_137, %c384_138] : memref<128x1152xf32, #tpu.memory_space<vmem>>, vector<8x128xf32>
    tpu.vector_store %arg23[%c24_137, %c384_138], %102 {strides = array<i32>} : memref<128x1152xf32, #tpu.memory_space<vmem>>, vector<8x128xf32>,
    %c162 = arith.constant 162 : index
    %c0_139 = arith.constant 0 : index
    %104 = tpu.strided_load %arg0[%c162, %c0_139] {strides = array<i32: 2, 1>} : memref<648x128xf32, #tpu.memory_space<vmem>>, vector<8x128xf32>
    %c32_140 = arith.constant 32 : index
    %c384_141 = arith.constant 384 : index
    %105 = vector.load %arg23[%c32_140, %c384_141] : memref<128x1152xf32, #tpu.memory_space<vmem>>, vector<8x128xf32>
    tpu.vector_store %arg23[%c32_140, %c384_141], %104 {strides = array<i32>} : memref<128x1152xf32, #tpu.memory_space<vmem>>, vector<8x128xf32>,
    %c198 = arith.constant 198 : index
    %c0_142 = arith.constant 0 : index
    %106 = tpu.strided_load %arg0[%c198, %c0_142] {strides = array<i32: 2, 1>} : memref<648x128xf32, #tpu.memory_space<vmem>>, vector<8x128xf32>
    %c40_143 = arith.constant 40 : index
    %c384_144 = arith.constant 384 : index
    %107 = vector.load %arg23[%c40_143, %c384_144] : memref<128x1152xf32, #tpu.memory_space<vmem>>, vector<8x128xf32>
    tpu.vector_store %arg23[%c40_143, %c384_144], %106 {strides = array<i32>} : memref<128x1152xf32, #tpu.memory_space<vmem>>, vector<8x128xf32>,
    %c234 = arith.constant 234 : index
    %c0_145 = arith.constant 0 : index
    %108 = tpu.strided_load %arg0[%c234, %c0_145] {strides = array<i32: 2, 1>} : memref<648x128xf32, #tpu.memory_space<vmem>>, vector<8x128xf32>
    %c48_146 = arith.constant 48 : index
    %c384_147 = arith.constant 384 : index
    %109 = vector.load %arg23[%c48_146, %c384_147] : memref<128x1152xf32, #tpu.memory_space<vmem>>, vector<8x128xf32>
    tpu.vector_store %arg23[%c48_146, %c384_147], %108 {strides = array<i32>} : memref<128x1152xf32, #tpu.memory_space<vmem>>, vector<8x128xf32>,
    %c270 = arith.constant 270 : index
    %c0_148 = arith.constant 0 : index
    %110 = tpu.strided_load %arg0[%c270, %c0_148] {strides = array<i32: 2, 1>} : memref<648x128xf32, #tpu.memory_space<vmem>>, vector<8x128xf32>
    %c56_149 = arith.constant 56 : index
    %c384_150 = arith.constant 384 : index
    %111 = vector.load %arg23[%c56_149, %c384_150] : memref<128x1152xf32, #tpu.memory_space<vmem>>, vector<8x128xf32>
    tpu.vector_store %arg23[%c56_149, %c384_150], %110 {strides = array<i32>} : memref<128x1152xf32, #tpu.memory_space<vmem>>, vector<8x128xf32>,
    %c342 = arith.constant 342 : index
    %c0_151 = arith.constant 0 : index
    %112 = tpu.strided_load %arg0[%c342, %c0_151] {strides = array<i32: 2, 1>} : memref<648x128xf32, #tpu.memory_space<vmem>>, vector<8x128xf32>
    %c64_152 = arith.constant 64 : index
    %c384_153 = arith.constant 384 : index
    %113 = vector.load %arg23[%c64_152, %c384_153] : memref<128x1152xf32, #tpu.memory_space<vmem>>, vector<8x128xf32>
    tpu.vector_store %arg23[%c64_152, %c384_153], %112 {strides = array<i32>} : memref<128x1152xf32, #tpu.memory_space<vmem>>, vector<8x128xf32>,
    %c378 = arith.constant 378 : index
    %c0_154 = arith.constant 0 : index
    %114 = tpu.strided_load %arg0[%c378, %c0_154] {strides = array<i32: 2, 1>} : memref<648x128xf32, #tpu.memory_space<vmem>>, vector<8x128xf32>
    %c72_155 = arith.constant 72 : index
    %c384_156 = arith.constant 384 : index
    %115 = vector.load %arg23[%c72_155, %c384_156] : memref<128x1152xf32, #tpu.memory_space<vmem>>, vector<8x128xf32>
    tpu.vector_store %arg23[%c72_155, %c384_156], %114 {strides = array<i32>} : memref<128x1152xf32, #tpu.memory_space<vmem>>, vector<8x128xf32>,
    %c414 = arith.constant 414 : index
    %c0_157 = arith.constant 0 : index
    %116 = tpu.strided_load %arg0[%c414, %c0_157] {strides = array<i32: 2, 1>} : memref<648x128xf32, #tpu.memory_space<vmem>>, vector<8x128xf32>
    %c80_158 = arith.constant 80 : index
    %c384_159 = arith.constant 384 : index
    %117 = vector.load %arg23[%c80_158, %c384_159] : memref<128x1152xf32, #tpu.memory_space<vmem>>, vector<8x128xf32>
    tpu.vector_store %arg23[%c80_158, %c384_159], %116 {strides = array<i32>} : memref<128x1152xf32, #tpu.memory_space<vmem>>, vector<8x128xf32>,
    %c450 = arith.constant 450 : index
    %c0_160 = arith.constant 0 : index
    %118 = tpu.strided_load %arg0[%c450, %c0_160] {strides = array<i32: 2, 1>} : memref<648x128xf32, #tpu.memory_space<vmem>>, vector<8x128xf32>
    %c88_161 = arith.constant 88 : index
    %c384_162 = arith.constant 384 : index
    %119 = vector.load %arg23[%c88_161, %c384_162] : memref<128x1152xf32, #tpu.memory_space<vmem>>, vector<8x128xf32>
    tpu.vector_store %arg23[%c88_161, %c384_162], %118 {strides = array<i32>} : memref<128x1152xf32, #tpu.memory_space<vmem>>, vector<8x128xf32>,
    %c486 = arith.constant 486 : index
    %c0_163 = arith.constant 0 : index
    %120 = tpu.strided_load %arg0[%c486, %c0_163] {strides = array<i32: 2, 1>} : memref<648x128xf32, #tpu.memory_space<vmem>>, vector<8x128xf32>
    %c96_164 = arith.constant 96 : index
    %c384_165 = arith.constant 384 : index
    %121 = vector.load %arg23[%c96_164, %c384_165] : memref<128x1152xf32, #tpu.memory_space<vmem>>, vector<8x128xf32>
    tpu.vector_store %arg23[%c96_164, %c384_165], %120 {strides = array<i32>} : memref<128x1152xf32, #tpu.memory_space<vmem>>, vector<8x128xf32>,
    %c522 = arith.constant 522 : index
    %c0_166 = arith.constant 0 : index
    %122 = tpu.strided_load %arg0[%c522, %c0_166] {strides = array<i32: 2, 1>} : memref<648x128xf32, #tpu.memory_space<vmem>>, vector<8x128xf32>
    %c104_167 = arith.constant 104 : index
    %c384_168 = arith.constant 384 : index
    %123 = vector.load %arg23[%c104_167, %c384_168] : memref<128x1152xf32, #tpu.memory_space<vmem>>, vector<8x128xf32>
    tpu.vector_store %arg23[%c104_167, %c384_168], %122 {strides = array<i32>} : memref<128x1152xf32, #tpu.memory_space<vmem>>, vector<8x128xf32>,
    %c558 = arith.constant 558 : index
    %c0_169 = arith.constant 0 : index
    %124 = tpu.strided_load %arg0[%c558, %c0_169] {strides = array<i32: 2, 1>} : memref<648x128xf32, #tpu.memory_space<vmem>>, vector<8x128xf32>
    %c112_170 = arith.constant 112 : index
    %c384_171 = arith.constant 384 : index
    %125 = vector.load %arg23[%c112_170, %c384_171] : memref<128x1152xf32, #tpu.memory_space<vmem>>, vector<8x128xf32>
    tpu.vector_store %arg23[%c112_170, %c384_171], %124 {strides = array<i32>} : memref<128x1152xf32, #tpu.memory_space<vmem>>, vector<8x128xf32>,
    %c594 = arith.constant 594 : index
    %c0_172 = arith.constant 0 : index
    %126 = tpu.strided_load %arg0[%c594, %c0_172] {strides = array<i32: 2, 1>} : memref<648x128xf32, #tpu.memory_space<vmem>>, vector<8x128xf32>
    %c120_173 = arith.constant 120 : index
    %c384_174 = arith.constant 384 : index
    %127 = vector.load %arg23[%c120_173, %c384_174] : memref<128x1152xf32, #tpu.memory_space<vmem>>, vector<8x128xf32>
    tpu.vector_store %arg23[%c120_173, %c384_174], %126 {strides = array<i32>} : memref<128x1152xf32, #tpu.memory_space<vmem>>, vector<8x128xf32>,
    %c19 = arith.constant 19 : index
    %c0_175 = arith.constant 0 : index
    %128 = tpu.strided_load %arg0[%c19, %c0_175] {strides = array<i32: 2, 1>} : memref<648x128xf32, #tpu.memory_space<vmem>>, vector<8x128xf32>
    %c0_176 = arith.constant 0 : index
    %c512 = arith.constant 512 : index
    %129 = vector.load %arg23[%c0_176, %c512] : memref<128x1152xf32, #tpu.memory_space<vmem>>, vector<8x128xf32>
    tpu.vector_store %arg23[%c0_176, %c512], %128 {strides = array<i32>} : memref<128x1152xf32, #tpu.memory_space<vmem>>, vector<8x128xf32>,
    %c55 = arith.constant 55 : index
    %c0_177 = arith.constant 0 : index
    %130 = tpu.strided_load %arg0[%c55, %c0_177] {strides = array<i32: 2, 1>} : memref<648x128xf32, #tpu.memory_space<vmem>>, vector<8x128xf32>
    %c8_178 = arith.constant 8 : index
    %c512_179 = arith.constant 512 : index
    %131 = vector.load %arg23[%c8_178, %c512_179] : memref<128x1152xf32, #tpu.memory_space<vmem>>, vector<8x128xf32>
    tpu.vector_store %arg23[%c8_178, %c512_179], %130 {strides = array<i32>} : memref<128x1152xf32, #tpu.memory_space<vmem>>, vector<8x128xf32>,
    %c91 = arith.constant 91 : index
    %c0_180 = arith.constant 0 : index
    %132 = tpu.strided_load %arg0[%c91, %c0_180] {strides = array<i32: 2, 1>} : memref<648x128xf32, #tpu.memory_space<vmem>>, vector<8x128xf32>
    %c16_181 = arith.constant 16 : index
    %c512_182 = arith.constant 512 : index
    %133 = vector.load %arg23[%c16_181, %c512_182] : memref<128x1152xf32, #tpu.memory_space<vmem>>, vector<8x128xf32>
    tpu.vector_store %arg23[%c16_181, %c512_182], %132 {strides = array<i32>} : memref<128x1152xf32, #tpu.memory_space<vmem>>, vector<8x128xf32>,
    %c127 = arith.constant 127 : index
    %c0_183 = arith.constant 0 : index
    %134 = tpu.strided_load %arg0[%c127, %c0_183] {strides = array<i32: 2, 1>} : memref<648x128xf32, #tpu.memory_space<vmem>>, vector<8x128xf32>
    %c24_184 = arith.constant 24 : index
    %c512_185 = arith.constant 512 : index
    %135 = vector.load %arg23[%c24_184, %c512_185] : memref<128x1152xf32, #tpu.memory_space<vmem>>, vector<8x128xf32>
    tpu.vector_store %arg23[%c24_184, %c512_185], %134 {strides = array<i32>} : memref<128x1152xf32, #tpu.memory_space<vmem>>, vector<8x128xf32>,
    %c163 = arith.constant 163 : index
    %c0_186 = arith.constant 0 : index
    %136 = tpu.strided_load %arg0[%c163, %c0_186] {strides = array<i32: 2, 1>} : memref<648x128xf32, #tpu.memory_space<vmem>>, vector<8x128xf32>
    %c32_187 = arith.constant 32 : index
    %c512_188 = arith.constant 512 : index
    %137 = vector.load %arg23[%c32_187, %c512_188] : memref<128x1152xf32, #tpu.memory_space<vmem>>, vector<8x128xf32>
    tpu.vector_store %arg23[%c32_187, %c512_188], %136 {strides = array<i32>} : memref<128x1152xf32, #tpu.memory_space<vmem>>, vector<8x128xf32>,
    %c199 = arith.constant 199 : index
    %c0_189 = arith.constant 0 : index
    %138 = tpu.strided_load %arg0[%c199, %c0_189] {strides = array<i32: 2, 1>} : memref<648x128xf32, #tpu.memory_space<vmem>>, vector<8x128xf32>
    %c40_190 = arith.constant 40 : index
    %c512_191 = arith.constant 512 : index
    %139 = vector.load %arg23[%c40_190, %c512_191] : memref<128x1152xf32, #tpu.memory_space<vmem>>, vector<8x128xf32>
    tpu.vector_store %arg23[%c40_190, %c512_191], %138 {strides = array<i32>} : memref<128x1152xf32, #tpu.memory_space<vmem>>, vector<8x128xf32>,
    %c235 = arith.constant 235 : index
    %c0_192 = arith.constant 0 : index
    %140 = tpu.strided_load %arg0[%c235, %c0_192] {strides = array<i32: 2, 1>} : memref<648x128xf32, #tpu.memory_space<vmem>>, vector<8x128xf32>
    %c48_193 = arith.constant 48 : index
    %c512_194 = arith.constant 512 : index
    %141 = vector.load %arg23[%c48_193, %c512_194] : memref<128x1152xf32, #tpu.memory_space<vmem>>, vector<8x128xf32>
    tpu.vector_store %arg23[%c48_193, %c512_194], %140 {strides = array<i32>} : memref<128x1152xf32, #tpu.memory_space<vmem>>, vector<8x128xf32>,
    %c271 = arith.constant 271 : index
    %c0_195 = arith.constant 0 : index
    %142 = tpu.strided_load %arg0[%c271, %c0_195] {strides = array<i32: 2, 1>} : memref<648x128xf32, #tpu.memory_space<vmem>>, vector<8x128xf32>
    %c56_196 = arith.constant 56 : index
    %c512_197 = arith.constant 512 : index
    %143 = vector.load %arg23[%c56_196, %c512_197] : memref<128x1152xf32, #tpu.memory_space<vmem>>, vector<8x128xf32>
    tpu.vector_store %arg23[%c56_196, %c512_197], %142 {strides = array<i32>} : memref<128x1152xf32, #tpu.memory_space<vmem>>, vector<8x128xf32>,
    %c343 = arith.constant 343 : index
    %c0_198 = arith.constant 0 : index
    %144 = tpu.strided_load %arg0[%c343, %c0_198] {strides = array<i32: 2, 1>} : memref<648x128xf32, #tpu.memory_space<vmem>>, vector<8x128xf32>
    %c64_199 = arith.constant 64 : index
    %c512_200 = arith.constant 512 : index
    %145 = vector.load %arg23[%c64_199, %c512_200] : memref<128x1152xf32, #tpu.memory_space<vmem>>, vector<8x128xf32>
    tpu.vector_store %arg23[%c64_199, %c512_200], %144 {strides = array<i32>} : memref<128x1152xf32, #tpu.memory_space<vmem>>, vector<8x128xf32>,
    %c379 = arith.constant 379 : index
    %c0_201 = arith.constant 0 : index
    %146 = tpu.strided_load %arg0[%c379, %c0_201] {strides = array<i32: 2, 1>} : memref<648x128xf32, #tpu.memory_space<vmem>>, vector<8x128xf32>
    %c72_202 = arith.constant 72 : index
    %c512_203 = arith.constant 512 : index
    %147 = vector.load %arg23[%c72_202, %c512_203] : memref<128x1152xf32, #tpu.memory_space<vmem>>, vector<8x128xf32>
    tpu.vector_store %arg23[%c72_202, %c512_203], %146 {strides = array<i32>} : memref<128x1152xf32, #tpu.memory_space<vmem>>, vector<8x128xf32>,
    %c415 = arith.constant 415 : index
    %c0_204 = arith.constant 0 : index
    %148 = tpu.strided_load %arg0[%c415, %c0_204] {strides = array<i32: 2, 1>} : memref<648x128xf32, #tpu.memory_space<vmem>>, vector<8x128xf32>
    %c80_205 = arith.constant 80 : index
    %c512_206 = arith.constant 512 : index
    %149 = vector.load %arg23[%c80_205, %c512_206] : memref<128x1152xf32, #tpu.memory_space<vmem>>, vector<8x128xf32>
    tpu.vector_store %arg23[%c80_205, %c512_206], %148 {strides = array<i32>} : memref<128x1152xf32, #tpu.memory_space<vmem>>, vector<8x128xf32>,
    %c451 = arith.constant 451 : index
    %c0_207 = arith.constant 0 : index
    %150 = tpu.strided_load %arg0[%c451, %c0_207] {strides = array<i32: 2, 1>} : memref<648x128xf32, #tpu.memory_space<vmem>>, vector<8x128xf32>
    %c88_208 = arith.constant 88 : index
    %c512_209 = arith.constant 512 : index
    %151 = vector.load %arg23[%c88_208, %c512_209] : memref<128x1152xf32, #tpu.memory_space<vmem>>, vector<8x128xf32>
    tpu.vector_store %arg23[%c88_208, %c512_209], %150 {strides = array<i32>} : memref<128x1152xf32, #tpu.memory_space<vmem>>, vector<8x128xf32>,
    %c487 = arith.constant 487 : index
    %c0_210 = arith.constant 0 : index
    %152 = tpu.strided_load %arg0[%c487, %c0_210] {strides = array<i32: 2, 1>} : memref<648x128xf32, #tpu.memory_space<vmem>>, vector<8x128xf32>
    %c96_211 = arith.constant 96 : index
    %c512_212 = arith.constant 512 : index
    %153 = vector.load %arg23[%c96_211, %c512_212] : memref<128x1152xf32, #tpu.memory_space<vmem>>, vector<8x128xf32>
    tpu.vector_store %arg23[%c96_211, %c512_212], %152 {strides = array<i32>} : memref<128x1152xf32, #tpu.memory_space<vmem>>, vector<8x128xf32>,
    %c523 = arith.constant 523 : index
    %c0_213 = arith.constant 0 : index
    %154 = tpu.strided_load %arg0[%c523, %c0_213] {strides = array<i32: 2, 1>} : memref<648x128xf32, #tpu.memory_space<vmem>>, vector<8x128xf32>
    %c104_214 = arith.constant 104 : index
    %c512_215 = arith.constant 512 : index
    %155 = vector.load %arg23[%c104_214, %c512_215] : memref<128x1152xf32, #tpu.memory_space<vmem>>, vector<8x128xf32>
    tpu.vector_store %arg23[%c104_214, %c512_215], %154 {strides = array<i32>} : memref<128x1152xf32, #tpu.memory_space<vmem>>, vector<8x128xf32>,
    %c559 = arith.constant 559 : index
    %c0_216 = arith.constant 0 : index
    %156 = tpu.strided_load %arg0[%c559, %c0_216] {strides = array<i32: 2, 1>} : memref<648x128xf32, #tpu.memory_space<vmem>>, vector<8x128xf32>
    %c112_217 = arith.constant 112 : index
    %c512_218 = arith.constant 512 : index
    %157 = vector.load %arg23[%c112_217, %c512_218] : memref<128x1152xf32, #tpu.memory_space<vmem>>, vector<8x128xf32>
    tpu.vector_store %arg23[%c112_217, %c512_218], %156 {strides = array<i32>} : memref<128x1152xf32, #tpu.memory_space<vmem>>, vector<8x128xf32>,
    %c595 = arith.constant 595 : index
    %c0_219 = arith.constant 0 : index
    %158 = tpu.strided_load %arg0[%c595, %c0_219] {strides = array<i32: 2, 1>} : memref<648x128xf32, #tpu.memory_space<vmem>>, vector<8x128xf32>
    %c120_220 = arith.constant 120 : index
    %c512_221 = arith.constant 512 : index
    %159 = vector.load %arg23[%c120_220, %c512_221] : memref<128x1152xf32, #tpu.memory_space<vmem>>, vector<8x128xf32>
    tpu.vector_store %arg23[%c120_220, %c512_221], %158 {strides = array<i32>} : memref<128x1152xf32, #tpu.memory_space<vmem>>, vector<8x128xf32>,
    %c20 = arith.constant 20 : index
    %c0_222 = arith.constant 0 : index
    %160 = tpu.strided_load %arg0[%c20, %c0_222] {strides = array<i32: 2, 1>} : memref<648x128xf32, #tpu.memory_space<vmem>>, vector<8x128xf32>
    %c0_223 = arith.constant 0 : index
    %c640 = arith.constant 640 : index
    %161 = vector.load %arg23[%c0_223, %c640] : memref<128x1152xf32, #tpu.memory_space<vmem>>, vector<8x128xf32>
    tpu.vector_store %arg23[%c0_223, %c640], %160 {strides = array<i32>} : memref<128x1152xf32, #tpu.memory_space<vmem>>, vector<8x128xf32>,
    %c56_224 = arith.constant 56 : index
    %c0_225 = arith.constant 0 : index
    %162 = tpu.strided_load %arg0[%c56_224, %c0_225] {strides = array<i32: 2, 1>} : memref<648x128xf32, #tpu.memory_space<vmem>>, vector<8x128xf32>
    %c8_226 = arith.constant 8 : index
    %c640_227 = arith.constant 640 : index
    %163 = vector.load %arg23[%c8_226, %c640_227] : memref<128x1152xf32, #tpu.memory_space<vmem>>, vector<8x128xf32>
    tpu.vector_store %arg23[%c8_226, %c640_227], %162 {strides = array<i32>} : memref<128x1152xf32, #tpu.memory_space<vmem>>, vector<8x128xf32>,
    %c92 = arith.constant 92 : index
    %c0_228 = arith.constant 0 : index
    %164 = tpu.strided_load %arg0[%c92, %c0_228] {strides = array<i32: 2, 1>} : memref<648x128xf32, #tpu.memory_space<vmem>>, vector<8x128xf32>
    %c16_229 = arith.constant 16 : index
    %c640_230 = arith.constant 640 : index
    %165 = vector.load %arg23[%c16_229, %c640_230] : memref<128x1152xf32, #tpu.memory_space<vmem>>, vector<8x128xf32>
    tpu.vector_store %arg23[%c16_229, %c640_230], %164 {strides = array<i32>} : memref<128x1152xf32, #tpu.memory_space<vmem>>, vector<8x128xf32>,
    %c128_231 = arith.constant 128 : index
    %c0_232 = arith.constant 0 : index
    %166 = tpu.strided_load %arg0[%c128_231, %c0_232] {strides = array<i32: 2, 1>} : memref<648x128xf32, #tpu.memory_space<vmem>>, vector<8x128xf32>
    %c24_233 = arith.constant 24 : index
    %c640_234 = arith.constant 640 : index
    %167 = vector.load %arg23[%c24_233, %c640_234] : memref<128x1152xf32, #tpu.memory_space<vmem>>, vector<8x128xf32>
    tpu.vector_store %arg23[%c24_233, %c640_234], %166 {strides = array<i32>} : memref<128x1152xf32, #tpu.memory_space<vmem>>, vector<8x128xf32>,
    %c164 = arith.constant 164 : index
    %c0_235 = arith.constant 0 : index
    %168 = tpu.strided_load %arg0[%c164, %c0_235] {strides = array<i32: 2, 1>} : memref<648x128xf32, #tpu.memory_space<vmem>>, vector<8x128xf32>
    %c32_236 = arith.constant 32 : index
    %c640_237 = arith.constant 640 : index
    %169 = vector.load %arg23[%c32_236, %c640_237] : memref<128x1152xf32, #tpu.memory_space<vmem>>, vector<8x128xf32>
    tpu.vector_store %arg23[%c32_236, %c640_237], %168 {strides = array<i32>} : memref<128x1152xf32, #tpu.memory_space<vmem>>, vector<8x128xf32>,
    %c200 = arith.constant 200 : index
    %c0_238 = arith.constant 0 : index
    %170 = tpu.strided_load %arg0[%c200, %c0_238] {strides = array<i32: 2, 1>} : memref<648x128xf32, #tpu.memory_space<vmem>>, vector<8x128xf32>
    %c40_239 = arith.constant 40 : index
    %c640_240 = arith.constant 640 : index
    %171 = vector.load %arg23[%c40_239, %c640_240] : memref<128x1152xf32, #tpu.memory_space<vmem>>, vector<8x128xf32>
    tpu.vector_store %arg23[%c40_239, %c640_240], %170 {strides = array<i32>} : memref<128x1152xf32, #tpu.memory_space<vmem>>, vector<8x128xf32>,
    %c236 = arith.constant 236 : index
    %c0_241 = arith.constant 0 : index
    %172 = tpu.strided_load %arg0[%c236, %c0_241] {strides = array<i32: 2, 1>} : memref<648x128xf32, #tpu.memory_space<vmem>>, vector<8x128xf32>
    %c48_242 = arith.constant 48 : index
    %c640_243 = arith.constant 640 : index
    %173 = vector.load %arg23[%c48_242, %c640_243] : memref<128x1152xf32, #tpu.memory_space<vmem>>, vector<8x128xf32>
    tpu.vector_store %arg23[%c48_242, %c640_243], %172 {strides = array<i32>} : memref<128x1152xf32, #tpu.memory_space<vmem>>, vector<8x128xf32>,
    %c272 = arith.constant 272 : index
    %c0_244 = arith.constant 0 : index
    %174 = tpu.strided_load %arg0[%c272, %c0_244] {strides = array<i32: 2, 1>} : memref<648x128xf32, #tpu.memory_space<vmem>>, vector<8x128xf32>
    %c56_245 = arith.constant 56 : index
    %c640_246 = arith.constant 640 : index
    %175 = vector.load %arg23[%c56_245, %c640_246] : memref<128x1152xf32, #tpu.memory_space<vmem>>, vector<8x128xf32>
    tpu.vector_store %arg23[%c56_245, %c640_246], %174 {strides = array<i32>} : memref<128x1152xf32, #tpu.memory_space<vmem>>, vector<8x128xf32>,
    %c344 = arith.constant 344 : index
    %c0_247 = arith.constant 0 : index
    %176 = tpu.strided_load %arg0[%c344, %c0_247] {strides = array<i32: 2, 1>} : memref<648x128xf32, #tpu.memory_space<vmem>>, vector<8x128xf32>
    %c64_248 = arith.constant 64 : index
    %c640_249 = arith.constant 640 : index
    %177 = vector.load %arg23[%c64_248, %c640_249] : memref<128x1152xf32, #tpu.memory_space<vmem>>, vector<8x128xf32>
    tpu.vector_store %arg23[%c64_248, %c640_249], %176 {strides = array<i32>} : memref<128x1152xf32, #tpu.memory_space<vmem>>, vector<8x128xf32>,
    %c380 = arith.constant 380 : index
    %c0_250 = arith.constant 0 : index
    %178 = tpu.strided_load %arg0[%c380, %c0_250] {strides = array<i32: 2, 1>} : memref<648x128xf32, #tpu.memory_space<vmem>>, vector<8x128xf32>
    %c72_251 = arith.constant 72 : index
    %c640_252 = arith.constant 640 : index
    %179 = vector.load %arg23[%c72_251, %c640_252] : memref<128x1152xf32, #tpu.memory_space<vmem>>, vector<8x128xf32>
    tpu.vector_store %arg23[%c72_251, %c640_252], %178 {strides = array<i32>} : memref<128x1152xf32, #tpu.memory_space<vmem>>, vector<8x128xf32>,
    %c416 = arith.constant 416 : index
    %c0_253 = arith.constant 0 : index
    %180 = tpu.strided_load %arg0[%c416, %c0_253] {strides = array<i32: 2, 1>} : memref<648x128xf32, #tpu.memory_space<vmem>>, vector<8x128xf32>
    %c80_254 = arith.constant 80 : index
    %c640_255 = arith.constant 640 : index
    %181 = vector.load %arg23[%c80_254, %c640_255] : memref<128x1152xf32, #tpu.memory_space<vmem>>, vector<8x128xf32>
    tpu.vector_store %arg23[%c80_254, %c640_255], %180 {strides = array<i32>} : memref<128x1152xf32, #tpu.memory_space<vmem>>, vector<8x128xf32>,
    %c452 = arith.constant 452 : index
    %c0_256 = arith.constant 0 : index
    %182 = tpu.strided_load %arg0[%c452, %c0_256] {strides = array<i32: 2, 1>} : memref<648x128xf32, #tpu.memory_space<vmem>>, vector<8x128xf32>
    %c88_257 = arith.constant 88 : index
    %c640_258 = arith.constant 640 : index
    %183 = vector.load %arg23[%c88_257, %c640_258] : memref<128x1152xf32, #tpu.memory_space<vmem>>, vector<8x128xf32>
    tpu.vector_store %arg23[%c88_257, %c640_258], %182 {strides = array<i32>} : memref<128x1152xf32, #tpu.memory_space<vmem>>, vector<8x128xf32>,
    %c488 = arith.constant 488 : index
    %c0_259 = arith.constant 0 : index
    %184 = tpu.strided_load %arg0[%c488, %c0_259] {strides = array<i32: 2, 1>} : memref<648x128xf32, #tpu.memory_space<vmem>>, vector<8x128xf32>
    %c96_260 = arith.constant 96 : index
    %c640_261 = arith.constant 640 : index
    %185 = vector.load %arg23[%c96_260, %c640_261] : memref<128x1152xf32, #tpu.memory_space<vmem>>, vector<8x128xf32>
    tpu.vector_store %arg23[%c96_260, %c640_261], %184 {strides = array<i32>} : memref<128x1152xf32, #tpu.memory_space<vmem>>, vector<8x128xf32>,
    %c524 = arith.constant 524 : index
    %c0_262 = arith.constant 0 : index
    %186 = tpu.strided_load %arg0[%c524, %c0_262] {strides = array<i32: 2, 1>} : memref<648x128xf32, #tpu.memory_space<vmem>>, vector<8x128xf32>
    %c104_263 = arith.constant 104 : index
    %c640_264 = arith.constant 640 : index
    %187 = vector.load %arg23[%c104_263, %c640_264] : memref<128x1152xf32, #tpu.memory_space<vmem>>, vector<8x128xf32>
    tpu.vector_store %arg23[%c104_263, %c640_264], %186 {strides = array<i32>} : memref<128x1152xf32, #tpu.memory_space<vmem>>, vector<8x128xf32>,
    %c560 = arith.constant 560 : index
    %c0_265 = arith.constant 0 : index
    %188 = tpu.strided_load %arg0[%c560, %c0_265] {strides = array<i32: 2, 1>} : memref<648x128xf32, #tpu.memory_space<vmem>>, vector<8x128xf32>
    %c112_266 = arith.constant 112 : index
    %c640_267 = arith.constant 640 : index
    %189 = vector.load %arg23[%c112_266, %c640_267] : memref<128x1152xf32, #tpu.memory_space<vmem>>, vector<8x128xf32>
    tpu.vector_store %arg23[%c112_266, %c640_267], %188 {strides = array<i32>} : memref<128x1152xf32, #tpu.memory_space<vmem>>, vector<8x128xf32>,
    %c596 = arith.constant 596 : index
    %c0_268 = arith.constant 0 : index
    %190 = tpu.strided_load %arg0[%c596, %c0_268] {strides = array<i32: 2, 1>} : memref<648x128xf32, #tpu.memory_space<vmem>>, vector<8x128xf32>
    %c120_269 = arith.constant 120 : index
    %c640_270 = arith.constant 640 : index
    %191 = vector.load %arg23[%c120_269, %c640_270] : memref<128x1152xf32, #tpu.memory_space<vmem>>, vector<8x128xf32>
    tpu.vector_store %arg23[%c120_269, %c640_270], %190 {strides = array<i32>} : memref<128x1152xf32, #tpu.memory_space<vmem>>, vector<8x128xf32>,
    %c36_271 = arith.constant 36 : index
    %c0_272 = arith.constant 0 : index
    %192 = tpu.strided_load %arg0[%c36_271, %c0_272] {strides = array<i32: 2, 1>} : memref<648x128xf32, #tpu.memory_space<vmem>>, vector<8x128xf32>
    %c0_273 = arith.constant 0 : index
    %c768 = arith.constant 768 : index
    %193 = vector.load %arg23[%c0_273, %c768] : memref<128x1152xf32, #tpu.memory_space<vmem>>, vector<8x128xf32>
    tpu.vector_store %arg23[%c0_273, %c768], %192 {strides = array<i32>} : memref<128x1152xf32, #tpu.memory_space<vmem>>, vector<8x128xf32>,
    %c72_274 = arith.constant 72 : index
    %c0_275 = arith.constant 0 : index
    %194 = tpu.strided_load %arg0[%c72_274, %c0_275] {strides = array<i32: 2, 1>} : memref<648x128xf32, #tpu.memory_space<vmem>>, vector<8x128xf32>
    %c8_276 = arith.constant 8 : index
    %c768_277 = arith.constant 768 : index
    %195 = vector.load %arg23[%c8_276, %c768_277] : memref<128x1152xf32, #tpu.memory_space<vmem>>, vector<8x128xf32>
    tpu.vector_store %arg23[%c8_276, %c768_277], %194 {strides = array<i32>} : memref<128x1152xf32, #tpu.memory_space<vmem>>, vector<8x128xf32>,
    %c108_278 = arith.constant 108 : index
    %c0_279 = arith.constant 0 : index
    %196 = tpu.strided_load %arg0[%c108_278, %c0_279] {strides = array<i32: 2, 1>} : memref<648x128xf32, #tpu.memory_space<vmem>>, vector<8x128xf32>
    %c16_280 = arith.constant 16 : index
    %c768_281 = arith.constant 768 : index
    %197 = vector.load %arg23[%c16_280, %c768_281] : memref<128x1152xf32, #tpu.memory_space<vmem>>, vector<8x128xf32>
    tpu.vector_store %arg23[%c16_280, %c768_281], %196 {strides = array<i32>} : memref<128x1152xf32, #tpu.memory_space<vmem>>, vector<8x128xf32>,
    %c144_282 = arith.constant 144 : index
    %c0_283 = arith.constant 0 : index
    %198 = tpu.strided_load %arg0[%c144_282, %c0_283] {strides = array<i32: 2, 1>} : memref<648x128xf32, #tpu.memory_space<vmem>>, vector<8x128xf32>
    %c24_284 = arith.constant 24 : index
    %c768_285 = arith.constant 768 : index
    %199 = vector.load %arg23[%c24_284, %c768_285] : memref<128x1152xf32, #tpu.memory_space<vmem>>, vector<8x128xf32>
    tpu.vector_store %arg23[%c24_284, %c768_285], %198 {strides = array<i32>} : memref<128x1152xf32, #tpu.memory_space<vmem>>, vector<8x128xf32>,
    %c180_286 = arith.constant 180 : index
    %c0_287 = arith.constant 0 : index
    %200 = tpu.strided_load %arg0[%c180_286, %c0_287] {strides = array<i32: 2, 1>} : memref<648x128xf32, #tpu.memory_space<vmem>>, vector<8x128xf32>
    %c32_288 = arith.constant 32 : index
    %c768_289 = arith.constant 768 : index
    %201 = vector.load %arg23[%c32_288, %c768_289] : memref<128x1152xf32, #tpu.memory_space<vmem>>, vector<8x128xf32>
    tpu.vector_store %arg23[%c32_288, %c768_289], %200 {strides = array<i32>} : memref<128x1152xf32, #tpu.memory_space<vmem>>, vector<8x128xf32>,
    %c216_290 = arith.constant 216 : index
    %c0_291 = arith.constant 0 : index
    %202 = tpu.strided_load %arg0[%c216_290, %c0_291] {strides = array<i32: 2, 1>} : memref<648x128xf32, #tpu.memory_space<vmem>>, vector<8x128xf32>
    %c40_292 = arith.constant 40 : index
    %c768_293 = arith.constant 768 : index
    %203 = vector.load %arg23[%c40_292, %c768_293] : memref<128x1152xf32, #tpu.memory_space<vmem>>, vector<8x128xf32>
    tpu.vector_store %arg23[%c40_292, %c768_293], %202 {strides = array<i32>} : memref<128x1152xf32, #tpu.memory_space<vmem>>, vector<8x128xf32>,
    %c252_294 = arith.constant 252 : index
    %c0_295 = arith.constant 0 : index
    %204 = tpu.strided_load %arg0[%c252_294, %c0_295] {strides = array<i32: 2, 1>} : memref<648x128xf32, #tpu.memory_space<vmem>>, vector<8x128xf32>
    %c48_296 = arith.constant 48 : index
    %c768_297 = arith.constant 768 : index
    %205 = vector.load %arg23[%c48_296, %c768_297] : memref<128x1152xf32, #tpu.memory_space<vmem>>, vector<8x128xf32>
    tpu.vector_store %arg23[%c48_296, %c768_297], %204 {strides = array<i32>} : memref<128x1152xf32, #tpu.memory_space<vmem>>, vector<8x128xf32>,
    %c288 = arith.constant 288 : index
    %c0_298 = arith.constant 0 : index
    %206 = tpu.strided_load %arg0[%c288, %c0_298] {strides = array<i32: 2, 1>} : memref<648x128xf32, #tpu.memory_space<vmem>>, vector<8x128xf32>
    %c56_299 = arith.constant 56 : index
    %c768_300 = arith.constant 768 : index
    %207 = vector.load %arg23[%c56_299, %c768_300] : memref<128x1152xf32, #tpu.memory_space<vmem>>, vector<8x128xf32>
    tpu.vector_store %arg23[%c56_299, %c768_300], %206 {strides = array<i32>} : memref<128x1152xf32, #tpu.memory_space<vmem>>, vector<8x128xf32>,
    %c360_301 = arith.constant 360 : index
    %c0_302 = arith.constant 0 : index
    %208 = tpu.strided_load %arg0[%c360_301, %c0_302] {strides = array<i32: 2, 1>} : memref<648x128xf32, #tpu.memory_space<vmem>>, vector<8x128xf32>
    %c64_303 = arith.constant 64 : index
    %c768_304 = arith.constant 768 : index
    %209 = vector.load %arg23[%c64_303, %c768_304] : memref<128x1152xf32, #tpu.memory_space<vmem>>, vector<8x128xf32>
    tpu.vector_store %arg23[%c64_303, %c768_304], %208 {strides = array<i32>} : memref<128x1152xf32, #tpu.memory_space<vmem>>, vector<8x128xf32>,
    %c396_305 = arith.constant 396 : index
    %c0_306 = arith.constant 0 : index
    %210 = tpu.strided_load %arg0[%c396_305, %c0_306] {strides = array<i32: 2, 1>} : memref<648x128xf32, #tpu.memory_space<vmem>>, vector<8x128xf32>
    %c72_307 = arith.constant 72 : index
    %c768_308 = arith.constant 768 : index
    %211 = vector.load %arg23[%c72_307, %c768_308] : memref<128x1152xf32, #tpu.memory_space<vmem>>, vector<8x128xf32>
    tpu.vector_store %arg23[%c72_307, %c768_308], %210 {strides = array<i32>} : memref<128x1152xf32, #tpu.memory_space<vmem>>, vector<8x128xf32>,
    %c432_309 = arith.constant 432 : index
    %c0_310 = arith.constant 0 : index
    %212 = tpu.strided_load %arg0[%c432_309, %c0_310] {strides = array<i32: 2, 1>} : memref<648x128xf32, #tpu.memory_space<vmem>>, vector<8x128xf32>
    %c80_311 = arith.constant 80 : index
    %c768_312 = arith.constant 768 : index
    %213 = vector.load %arg23[%c80_311, %c768_312] : memref<128x1152xf32, #tpu.memory_space<vmem>>, vector<8x128xf32>
    tpu.vector_store %arg23[%c80_311, %c768_312], %212 {strides = array<i32>} : memref<128x1152xf32, #tpu.memory_space<vmem>>, vector<8x128xf32>,
    %c468_313 = arith.constant 468 : index
    %c0_314 = arith.constant 0 : index
    %214 = tpu.strided_load %arg0[%c468_313, %c0_314] {strides = array<i32: 2, 1>} : memref<648x128xf32, #tpu.memory_space<vmem>>, vector<8x128xf32>
    %c88_315 = arith.constant 88 : index
    %c768_316 = arith.constant 768 : index
    %215 = vector.load %arg23[%c88_315, %c768_316] : memref<128x1152xf32, #tpu.memory_space<vmem>>, vector<8x128xf32>
    tpu.vector_store %arg23[%c88_315, %c768_316], %214 {strides = array<i32>} : memref<128x1152xf32, #tpu.memory_space<vmem>>, vector<8x128xf32>,
    %c504_317 = arith.constant 504 : index
    %c0_318 = arith.constant 0 : index
    %216 = tpu.strided_load %arg0[%c504_317, %c0_318] {strides = array<i32: 2, 1>} : memref<648x128xf32, #tpu.memory_space<vmem>>, vector<8x128xf32>
    %c96_319 = arith.constant 96 : index
    %c768_320 = arith.constant 768 : index
    %217 = vector.load %arg23[%c96_319, %c768_320] : memref<128x1152xf32, #tpu.memory_space<vmem>>, vector<8x128xf32>
    tpu.vector_store %arg23[%c96_319, %c768_320], %216 {strides = array<i32>} : memref<128x1152xf32, #tpu.memory_space<vmem>>, vector<8x128xf32>,
    %c540_321 = arith.constant 540 : index
    %c0_322 = arith.constant 0 : index
    %218 = tpu.strided_load %arg0[%c540_321, %c0_322] {strides = array<i32: 2, 1>} : memref<648x128xf32, #tpu.memory_space<vmem>>, vector<8x128xf32>
    %c104_323 = arith.constant 104 : index
    %c768_324 = arith.constant 768 : index
    %219 = vector.load %arg23[%c104_323, %c768_324] : memref<128x1152xf32, #tpu.memory_space<vmem>>, vector<8x128xf32>
    tpu.vector_store %arg23[%c104_323, %c768_324], %218 {strides = array<i32>} : memref<128x1152xf32, #tpu.memory_space<vmem>>, vector<8x128xf32>,
    %c576_325 = arith.constant 576 : index
    %c0_326 = arith.constant 0 : index
    %220 = tpu.strided_load %arg0[%c576_325, %c0_326] {strides = array<i32: 2, 1>} : memref<648x128xf32, #tpu.memory_space<vmem>>, vector<8x128xf32>
    %c112_327 = arith.constant 112 : index
    %c768_328 = arith.constant 768 : index
    %221 = vector.load %arg23[%c112_327, %c768_328] : memref<128x1152xf32, #tpu.memory_space<vmem>>, vector<8x128xf32>
    tpu.vector_store %arg23[%c112_327, %c768_328], %220 {strides = array<i32>} : memref<128x1152xf32, #tpu.memory_space<vmem>>, vector<8x128xf32>,
    %c612 = arith.constant 612 : index
    %c0_329 = arith.constant 0 : index
    %222 = tpu.strided_load %arg0[%c612, %c0_329] {strides = array<i32: 2, 1>} : memref<648x128xf32, #tpu.memory_space<vmem>>, vector<8x128xf32>
    %c120_330 = arith.constant 120 : index
    %c768_331 = arith.constant 768 : index
    %223 = vector.load %arg23[%c120_330, %c768_331] : memref<128x1152xf32, #tpu.memory_space<vmem>>, vector<8x128xf32>
    tpu.vector_store %arg23[%c120_330, %c768_331], %222 {strides = array<i32>} : memref<128x1152xf32, #tpu.memory_space<vmem>>, vector<8x128xf32>,
    %c37_332 = arith.constant 37 : index
    %c0_333 = arith.constant 0 : index
    %224 = tpu.strided_load %arg0[%c37_332, %c0_333] {strides = array<i32: 2, 1>} : memref<648x128xf32, #tpu.memory_space<vmem>>, vector<8x128xf32>
    %c0_334 = arith.constant 0 : index
    %c896 = arith.constant 896 : index
    %225 = vector.load %arg23[%c0_334, %c896] : memref<128x1152xf32, #tpu.memory_space<vmem>>, vector<8x128xf32>
    tpu.vector_store %arg23[%c0_334, %c896], %224 {strides = array<i32>} : memref<128x1152xf32, #tpu.memory_space<vmem>>, vector<8x128xf32>,
    %c73_335 = arith.constant 73 : index
    %c0_336 = arith.constant 0 : index
    %226 = tpu.strided_load %arg0[%c73_335, %c0_336] {strides = array<i32: 2, 1>} : memref<648x128xf32, #tpu.memory_space<vmem>>, vector<8x128xf32>
    %c8_337 = arith.constant 8 : index
    %c896_338 = arith.constant 896 : index
    %227 = vector.load %arg23[%c8_337, %c896_338] : memref<128x1152xf32, #tpu.memory_space<vmem>>, vector<8x128xf32>
    tpu.vector_store %arg23[%c8_337, %c896_338], %226 {strides = array<i32>} : memref<128x1152xf32, #tpu.memory_space<vmem>>, vector<8x128xf32>,
    %c109_339 = arith.constant 109 : index
    %c0_340 = arith.constant 0 : index
    %228 = tpu.strided_load %arg0[%c109_339, %c0_340] {strides = array<i32: 2, 1>} : memref<648x128xf32, #tpu.memory_space<vmem>>, vector<8x128xf32>
    %c16_341 = arith.constant 16 : index
    %c896_342 = arith.constant 896 : index
    %229 = vector.load %arg23[%c16_341, %c896_342] : memref<128x1152xf32, #tpu.memory_space<vmem>>, vector<8x128xf32>
    tpu.vector_store %arg23[%c16_341, %c896_342], %228 {strides = array<i32>} : memref<128x1152xf32, #tpu.memory_space<vmem>>, vector<8x128xf32>,
    %c145_343 = arith.constant 145 : index
    %c0_344 = arith.constant 0 : index
    %230 = tpu.strided_load %arg0[%c145_343, %c0_344] {strides = array<i32: 2, 1>} : memref<648x128xf32, #tpu.memory_space<vmem>>, vector<8x128xf32>
    %c24_345 = arith.constant 24 : index
    %c896_346 = arith.constant 896 : index
    %231 = vector.load %arg23[%c24_345, %c896_346] : memref<128x1152xf32, #tpu.memory_space<vmem>>, vector<8x128xf32>
    tpu.vector_store %arg23[%c24_345, %c896_346], %230 {strides = array<i32>} : memref<128x1152xf32, #tpu.memory_space<vmem>>, vector<8x128xf32>,
    %c181_347 = arith.constant 181 : index
    %c0_348 = arith.constant 0 : index
    %232 = tpu.strided_load %arg0[%c181_347, %c0_348] {strides = array<i32: 2, 1>} : memref<648x128xf32, #tpu.memory_space<vmem>>, vector<8x128xf32>
    %c32_349 = arith.constant 32 : index
    %c896_350 = arith.constant 896 : index
    %233 = vector.load %arg23[%c32_349, %c896_350] : memref<128x1152xf32, #tpu.memory_space<vmem>>, vector<8x128xf32>
    tpu.vector_store %arg23[%c32_349, %c896_350], %232 {strides = array<i32>} : memref<128x1152xf32, #tpu.memory_space<vmem>>, vector<8x128xf32>,
    %c217_351 = arith.constant 217 : index
    %c0_352 = arith.constant 0 : index
    %234 = tpu.strided_load %arg0[%c217_351, %c0_352] {strides = array<i32: 2, 1>} : memref<648x128xf32, #tpu.memory_space<vmem>>, vector<8x128xf32>
    %c40_353 = arith.constant 40 : index
    %c896_354 = arith.constant 896 : index
    %235 = vector.load %arg23[%c40_353, %c896_354] : memref<128x1152xf32, #tpu.memory_space<vmem>>, vector<8x128xf32>
    tpu.vector_store %arg23[%c40_353, %c896_354], %234 {strides = array<i32>} : memref<128x1152xf32, #tpu.memory_space<vmem>>, vector<8x128xf32>,
    %c253_355 = arith.constant 253 : index
    %c0_356 = arith.constant 0 : index
    %236 = tpu.strided_load %arg0[%c253_355, %c0_356] {strides = array<i32: 2, 1>} : memref<648x128xf32, #tpu.memory_space<vmem>>, vector<8x128xf32>
    %c48_357 = arith.constant 48 : index
    %c896_358 = arith.constant 896 : index
    %237 = vector.load %arg23[%c48_357, %c896_358] : memref<128x1152xf32, #tpu.memory_space<vmem>>, vector<8x128xf32>
    tpu.vector_store %arg23[%c48_357, %c896_358], %236 {strides = array<i32>} : memref<128x1152xf32, #tpu.memory_space<vmem>>, vector<8x128xf32>,
    %c289 = arith.constant 289 : index
    %c0_359 = arith.constant 0 : index
    %238 = tpu.strided_load %arg0[%c289, %c0_359] {strides = array<i32: 2, 1>} : memref<648x128xf32, #tpu.memory_space<vmem>>, vector<8x128xf32>
    %c56_360 = arith.constant 56 : index
    %c896_361 = arith.constant 896 : index
    %239 = vector.load %arg23[%c56_360, %c896_361] : memref<128x1152xf32, #tpu.memory_space<vmem>>, vector<8x128xf32>
    tpu.vector_store %arg23[%c56_360, %c896_361], %238 {strides = array<i32>} : memref<128x1152xf32, #tpu.memory_space<vmem>>, vector<8x128xf32>,
    %c361_362 = arith.constant 361 : index
    %c0_363 = arith.constant 0 : index
    %240 = tpu.strided_load %arg0[%c361_362, %c0_363] {strides = array<i32: 2, 1>} : memref<648x128xf32, #tpu.memory_space<vmem>>, vector<8x128xf32>
    %c64_364 = arith.constant 64 : index
    %c896_365 = arith.constant 896 : index
    %241 = vector.load %arg23[%c64_364, %c896_365] : memref<128x1152xf32, #tpu.memory_space<vmem>>, vector<8x128xf32>
    tpu.vector_store %arg23[%c64_364, %c896_365], %240 {strides = array<i32>} : memref<128x1152xf32, #tpu.memory_space<vmem>>, vector<8x128xf32>,
    %c397_366 = arith.constant 397 : index
    %c0_367 = arith.constant 0 : index
    %242 = tpu.strided_load %arg0[%c397_366, %c0_367] {strides = array<i32: 2, 1>} : memref<648x128xf32, #tpu.memory_space<vmem>>, vector<8x128xf32>
    %c72_368 = arith.constant 72 : index
    %c896_369 = arith.constant 896 : index
    %243 = vector.load %arg23[%c72_368, %c896_369] : memref<128x1152xf32, #tpu.memory_space<vmem>>, vector<8x128xf32>
    tpu.vector_store %arg23[%c72_368, %c896_369], %242 {strides = array<i32>} : memref<128x1152xf32, #tpu.memory_space<vmem>>, vector<8x128xf32>,
    %c433_370 = arith.constant 433 : index
    %c0_371 = arith.constant 0 : index
    %244 = tpu.strided_load %arg0[%c433_370, %c0_371] {strides = array<i32: 2, 1>} : memref<648x128xf32, #tpu.memory_space<vmem>>, vector<8x128xf32>
    %c80_372 = arith.constant 80 : index
    %c896_373 = arith.constant 896 : index
    %245 = vector.load %arg23[%c80_372, %c896_373] : memref<128x1152xf32, #tpu.memory_space<vmem>>, vector<8x128xf32>
    tpu.vector_store %arg23[%c80_372, %c896_373], %244 {strides = array<i32>} : memref<128x1152xf32, #tpu.memory_space<vmem>>, vector<8x128xf32>,
    %c469_374 = arith.constant 469 : index
    %c0_375 = arith.constant 0 : index
    %246 = tpu.strided_load %arg0[%c469_374, %c0_375] {strides = array<i32: 2, 1>} : memref<648x128xf32, #tpu.memory_space<vmem>>, vector<8x128xf32>
    %c88_376 = arith.constant 88 : index
    %c896_377 = arith.constant 896 : index
    %247 = vector.load %arg23[%c88_376, %c896_377] : memref<128x1152xf32, #tpu.memory_space<vmem>>, vector<8x128xf32>
    tpu.vector_store %arg23[%c88_376, %c896_377], %246 {strides = array<i32>} : memref<128x1152xf32, #tpu.memory_space<vmem>>, vector<8x128xf32>,
    %c505_378 = arith.constant 505 : index
    %c0_379 = arith.constant 0 : index
    %248 = tpu.strided_load %arg0[%c505_378, %c0_379] {strides = array<i32: 2, 1>} : memref<648x128xf32, #tpu.memory_space<vmem>>, vector<8x128xf32>
    %c96_380 = arith.constant 96 : index
    %c896_381 = arith.constant 896 : index
    %249 = vector.load %arg23[%c96_380, %c896_381] : memref<128x1152xf32, #tpu.memory_space<vmem>>, vector<8x128xf32>
    tpu.vector_store %arg23[%c96_380, %c896_381], %248 {strides = array<i32>} : memref<128x1152xf32, #tpu.memory_space<vmem>>, vector<8x128xf32>,
    %c541_382 = arith.constant 541 : index
    %c0_383 = arith.constant 0 : index
    %250 = tpu.strided_load %arg0[%c541_382, %c0_383] {strides = array<i32: 2, 1>} : memref<648x128xf32, #tpu.memory_space<vmem>>, vector<8x128xf32>
    %c104_384 = arith.constant 104 : index
    %c896_385 = arith.constant 896 : index
    %251 = vector.load %arg23[%c104_384, %c896_385] : memref<128x1152xf32, #tpu.memory_space<vmem>>, vector<8x128xf32>
    tpu.vector_store %arg23[%c104_384, %c896_385], %250 {strides = array<i32>} : memref<128x1152xf32, #tpu.memory_space<vmem>>, vector<8x128xf32>,
    %c577_386 = arith.constant 577 : index
    %c0_387 = arith.constant 0 : index
    %252 = tpu.strided_load %arg0[%c577_386, %c0_387] {strides = array<i32: 2, 1>} : memref<648x128xf32, #tpu.memory_space<vmem>>, vector<8x128xf32>
    %c112_388 = arith.constant 112 : index
    %c896_389 = arith.constant 896 : index
    %253 = vector.load %arg23[%c112_388, %c896_389] : memref<128x1152xf32, #tpu.memory_space<vmem>>, vector<8x128xf32>
    tpu.vector_store %arg23[%c112_388, %c896_389], %252 {strides = array<i32>} : memref<128x1152xf32, #tpu.memory_space<vmem>>, vector<8x128xf32>,
    %c613 = arith.constant 613 : index
    %c0_390 = arith.constant 0 : index
    %254 = tpu.strided_load %arg0[%c613, %c0_390] {strides = array<i32: 2, 1>} : memref<648x128xf32, #tpu.memory_space<vmem>>, vector<8x128xf32>
    %c120_391 = arith.constant 120 : index
    %c896_392 = arith.constant 896 : index
    %255 = vector.load %arg23[%c120_391, %c896_392] : memref<128x1152xf32, #tpu.memory_space<vmem>>, vector<8x128xf32>
    tpu.vector_store %arg23[%c120_391, %c896_392], %254 {strides = array<i32>} : memref<128x1152xf32, #tpu.memory_space<vmem>>, vector<8x128xf32>,
    %c38_393 = arith.constant 38 : index
    %c0_394 = arith.constant 0 : index
    %256 = tpu.strided_load %arg0[%c38_393, %c0_394] {strides = array<i32: 2, 1>} : memref<648x128xf32, #tpu.memory_space<vmem>>, vector<8x128xf32>
    %c0_395 = arith.constant 0 : index
    %c1024 = arith.constant 1024 : index
    %257 = vector.load %arg23[%c0_395, %c1024] : memref<128x1152xf32, #tpu.memory_space<vmem>>, vector<8x128xf32>
    tpu.vector_store %arg23[%c0_395, %c1024], %256 {strides = array<i32>} : memref<128x1152xf32, #tpu.memory_space<vmem>>, vector<8x128xf32>,
    %c74_396 = arith.constant 74 : index
    %c0_397 = arith.constant 0 : index
    %258 = tpu.strided_load %arg0[%c74_396, %c0_397] {strides = array<i32: 2, 1>} : memref<648x128xf32, #tpu.memory_space<vmem>>, vector<8x128xf32>
    %c8_398 = arith.constant 8 : index
    %c1024_399 = arith.constant 1024 : index
    %259 = vector.load %arg23[%c8_398, %c1024_399] : memref<128x1152xf32, #tpu.memory_space<vmem>>, vector<8x128xf32>
    tpu.vector_store %arg23[%c8_398, %c1024_399], %258 {strides = array<i32>} : memref<128x1152xf32, #tpu.memory_space<vmem>>, vector<8x128xf32>,
    %c110_400 = arith.constant 110 : index
    %c0_401 = arith.constant 0 : index
    %260 = tpu.strided_load %arg0[%c110_400, %c0_401] {strides = array<i32: 2, 1>} : memref<648x128xf32, #tpu.memory_space<vmem>>, vector<8x128xf32>
    %c16_402 = arith.constant 16 : index
    %c1024_403 = arith.constant 1024 : index
    %261 = vector.load %arg23[%c16_402, %c1024_403] : memref<128x1152xf32, #tpu.memory_space<vmem>>, vector<8x128xf32>
    tpu.vector_store %arg23[%c16_402, %c1024_403], %260 {strides = array<i32>} : memref<128x1152xf32, #tpu.memory_space<vmem>>, vector<8x128xf32>,
    %c146_404 = arith.constant 146 : index
    %c0_405 = arith.constant 0 : index
    %262 = tpu.strided_load %arg0[%c146_404, %c0_405] {strides = array<i32: 2, 1>} : memref<648x128xf32, #tpu.memory_space<vmem>>, vector<8x128xf32>
    %c24_406 = arith.constant 24 : index
    %c1024_407 = arith.constant 1024 : index
    %263 = vector.load %arg23[%c24_406, %c1024_407] : memref<128x1152xf32, #tpu.memory_space<vmem>>, vector<8x128xf32>
    tpu.vector_store %arg23[%c24_406, %c1024_407], %262 {strides = array<i32>} : memref<128x1152xf32, #tpu.memory_space<vmem>>, vector<8x128xf32>,
    %c182_408 = arith.constant 182 : index
    %c0_409 = arith.constant 0 : index
    %264 = tpu.strided_load %arg0[%c182_408, %c0_409] {strides = array<i32: 2, 1>} : memref<648x128xf32, #tpu.memory_space<vmem>>, vector<8x128xf32>
    %c32_410 = arith.constant 32 : index
    %c1024_411 = arith.constant 1024 : index
    %265 = vector.load %arg23[%c32_410, %c1024_411] : memref<128x1152xf32, #tpu.memory_space<vmem>>, vector<8x128xf32>
    tpu.vector_store %arg23[%c32_410, %c1024_411], %264 {strides = array<i32>} : memref<128x1152xf32, #tpu.memory_space<vmem>>, vector<8x128xf32>,
    %c218_412 = arith.constant 218 : index
    %c0_413 = arith.constant 0 : index
    %266 = tpu.strided_load %arg0[%c218_412, %c0_413] {strides = array<i32: 2, 1>} : memref<648x128xf32, #tpu.memory_space<vmem>>, vector<8x128xf32>
    %c40_414 = arith.constant 40 : index
    %c1024_415 = arith.constant 1024 : index
    %267 = vector.load %arg23[%c40_414, %c1024_415] : memref<128x1152xf32, #tpu.memory_space<vmem>>, vector<8x128xf32>
    tpu.vector_store %arg23[%c40_414, %c1024_415], %266 {strides = array<i32>} : memref<128x1152xf32, #tpu.memory_space<vmem>>, vector<8x128xf32>,
    %c254_416 = arith.constant 254 : index
    %c0_417 = arith.constant 0 : index
    %268 = tpu.strided_load %arg0[%c254_416, %c0_417] {strides = array<i32: 2, 1>} : memref<648x128xf32, #tpu.memory_space<vmem>>, vector<8x128xf32>
    %c48_418 = arith.constant 48 : index
    %c1024_419 = arith.constant 1024 : index
    %269 = vector.load %arg23[%c48_418, %c1024_419] : memref<128x1152xf32, #tpu.memory_space<vmem>>, vector<8x128xf32>
    tpu.vector_store %arg23[%c48_418, %c1024_419], %268 {strides = array<i32>} : memref<128x1152xf32, #tpu.memory_space<vmem>>, vector<8x128xf32>,
    %c290 = arith.constant 290 : index
    %c0_420 = arith.constant 0 : index
    %270 = tpu.strided_load %arg0[%c290, %c0_420] {strides = array<i32: 2, 1>} : memref<648x128xf32, #tpu.memory_space<vmem>>, vector<8x128xf32>
    %c56_421 = arith.constant 56 : index
    %c1024_422 = arith.constant 1024 : index
    %271 = vector.load %arg23[%c56_421, %c1024_422] : memref<128x1152xf32, #tpu.memory_space<vmem>>, vector<8x128xf32>
    tpu.vector_store %arg23[%c56_421, %c1024_422], %270 {strides = array<i32>} : memref<128x1152xf32, #tpu.memory_space<vmem>>, vector<8x128xf32>,
    %c362_423 = arith.constant 362 : index
    %c0_424 = arith.constant 0 : index
    %272 = tpu.strided_load %arg0[%c362_423, %c0_424] {strides = array<i32: 2, 1>} : memref<648x128xf32, #tpu.memory_space<vmem>>, vector<8x128xf32>
    %c64_425 = arith.constant 64 : index
    %c1024_426 = arith.constant 1024 : index
    %273 = vector.load %arg23[%c64_425, %c1024_426] : memref<128x1152xf32, #tpu.memory_space<vmem>>, vector<8x128xf32>
    tpu.vector_store %arg23[%c64_425, %c1024_426], %272 {strides = array<i32>} : memref<128x1152xf32, #tpu.memory_space<vmem>>, vector<8x128xf32>,
    %c398_427 = arith.constant 398 : index
    %c0_428 = arith.constant 0 : index
    %274 = tpu.strided_load %arg0[%c398_427, %c0_428] {strides = array<i32: 2, 1>} : memref<648x128xf32, #tpu.memory_space<vmem>>, vector<8x128xf32>
    %c72_429 = arith.constant 72 : index
    %c1024_430 = arith.constant 1024 : index
    %275 = vector.load %arg23[%c72_429, %c1024_430] : memref<128x1152xf32, #tpu.memory_space<vmem>>, vector<8x128xf32>
    tpu.vector_store %arg23[%c72_429, %c1024_430], %274 {strides = array<i32>} : memref<128x1152xf32, #tpu.memory_space<vmem>>, vector<8x128xf32>,
    %c434_431 = arith.constant 434 : index
    %c0_432 = arith.constant 0 : index
    %276 = tpu.strided_load %arg0[%c434_431, %c0_432] {strides = array<i32: 2, 1>} : memref<648x128xf32, #tpu.memory_space<vmem>>, vector<8x128xf32>
    %c80_433 = arith.constant 80 : index
    %c1024_434 = arith.constant 1024 : index
    %277 = vector.load %arg23[%c80_433, %c1024_434] : memref<128x1152xf32, #tpu.memory_space<vmem>>, vector<8x128xf32>
    tpu.vector_store %arg23[%c80_433, %c1024_434], %276 {strides = array<i32>} : memref<128x1152xf32, #tpu.memory_space<vmem>>, vector<8x128xf32>,
    %c470_435 = arith.constant 470 : index
    %c0_436 = arith.constant 0 : index
    %278 = tpu.strided_load %arg0[%c470_435, %c0_436] {strides = array<i32: 2, 1>} : memref<648x128xf32, #tpu.memory_space<vmem>>, vector<8x128xf32>
    %c88_437 = arith.constant 88 : index
    %c1024_438 = arith.constant 1024 : index
    %279 = vector.load %arg23[%c88_437, %c1024_438] : memref<128x1152xf32, #tpu.memory_space<vmem>>, vector<8x128xf32>
    tpu.vector_store %arg23[%c88_437, %c1024_438], %278 {strides = array<i32>} : memref<128x1152xf32, #tpu.memory_space<vmem>>, vector<8x128xf32>,
    %c506_439 = arith.constant 506 : index
    %c0_440 = arith.constant 0 : index
    %280 = tpu.strided_load %arg0[%c506_439, %c0_440] {strides = array<i32: 2, 1>} : memref<648x128xf32, #tpu.memory_space<vmem>>, vector<8x128xf32>
    %c96_441 = arith.constant 96 : index
    %c1024_442 = arith.constant 1024 : index
    %281 = vector.load %arg23[%c96_441, %c1024_442] : memref<128x1152xf32, #tpu.memory_space<vmem>>, vector<8x128xf32>
    tpu.vector_store %arg23[%c96_441, %c1024_442], %280 {strides = array<i32>} : memref<128x1152xf32, #tpu.memory_space<vmem>>, vector<8x128xf32>,
    %c542_443 = arith.constant 542 : index
    %c0_444 = arith.constant 0 : index
    %282 = tpu.strided_load %arg0[%c542_443, %c0_444] {strides = array<i32: 2, 1>} : memref<648x128xf32, #tpu.memory_space<vmem>>, vector<8x128xf32>
    %c104_445 = arith.constant 104 : index
    %c1024_446 = arith.constant 1024 : index
    %283 = vector.load %arg23[%c104_445, %c1024_446] : memref<128x1152xf32, #tpu.memory_space<vmem>>, vector<8x128xf32>
    tpu.vector_store %arg23[%c104_445, %c1024_446], %282 {strides = array<i32>} : memref<128x1152xf32, #tpu.memory_space<vmem>>, vector<8x128xf32>,
    %c578_447 = arith.constant 578 : index
    %c0_448 = arith.constant 0 : index
    %284 = tpu.strided_load %arg0[%c578_447, %c0_448] {strides = array<i32: 2, 1>} : memref<648x128xf32, #tpu.memory_space<vmem>>, vector<8x128xf32>
    %c112_449 = arith.constant 112 : index
    %c1024_450 = arith.constant 1024 : index
    %285 = vector.load %arg23[%c112_449, %c1024_450] : memref<128x1152xf32, #tpu.memory_space<vmem>>, vector<8x128xf32>
    tpu.vector_store %arg23[%c112_449, %c1024_450], %284 {strides = array<i32>} : memref<128x1152xf32, #tpu.memory_space<vmem>>, vector<8x128xf32>,
    %c614 = arith.constant 614 : index
    %c0_451 = arith.constant 0 : index
    %286 = tpu.strided_load %arg0[%c614, %c0_451] {strides = array<i32: 2, 1>} : memref<648x128xf32, #tpu.memory_space<vmem>>, vector<8x128xf32>
    %c120_452 = arith.constant 120 : index
    %c1024_453 = arith.constant 1024 : index
    %287 = vector.load %arg23[%c120_452, %c1024_453] : memref<128x1152xf32, #tpu.memory_space<vmem>>, vector<8x128xf32>
    tpu.vector_store %arg23[%c120_452, %c1024_453], %286 {strides = array<i32>} : memref<128x1152xf32, #tpu.memory_space<vmem>>, vector<8x128xf32>,
    %c0_454 = arith.constant 0 : index
    %c0_455 = arith.constant 0 : index
    %288 = vector.load %arg23[%c0_454, %c0_455] : memref<128x1152xf32, #tpu.memory_space<vmem>>, vector<128x1152xf32>
    %289 = arith.truncf %288 : vector<128x1152xf32> to vector<128x1152xbf16>
    %c0_456 = arith.constant 0 : index
    %c0_457 = arith.constant 0 : index
    %290 = vector.load %arg1[%c0_456, %c0_457] : memref<1152x128xbf16, #tpu.memory_space<vmem>>, vector<1152x128xbf16>
    %cst = arith.constant dense<0.000000e+00> : vector<128x128xf32>
    %291 = tpu.matmul %289, %290, %cst {dimension_numbers = #tpu.dot_dimension_numbers<[1], [0], [0], [1], [0, 0, 1, 1], [], []>} : vector<128x1152xbf16>, vector<1152x128xbf16>, vector<128x128xf32> -> vector<128x128xf32>
    %c0_458 = arith.constant 0 : index
    %c0_459 = arith.constant 0 : index
    %292 = vector.load %arg6[%c0_458, %c0_459] : memref<1x128xf32, #tpu.memory_space<vmem>>, vector<1x128xf32>
    %293 = vector.broadcast %292 : vector<1x128xf32> to vector<128x128xf32>
    %294 = arith.addf %291, %293 : vector<128x128xf32>
    %cst_460 = arith.constant 2.000000e-01 : f32
    %295 = vector.broadcast %cst_460 : f32 to vector<128x128xf32>
    %296 = arith.mulf %295, %294 : vector<128x128xf32>
    %297 = arith.maximumf %294, %296 : vector<128x128xf32>
    %c0_461 = arith.constant 0 : index
    %c0_462 = arith.constant 0 : index
    %298 = vector.load %arg14[%c0_461, %c0_462] : memref<128x128xf32, #tpu.memory_space<vmem>>, vector<128x128xf32>
    tpu.vector_store %arg14[%c0_461, %c0_462], %297 {strides = array<i32>} : memref<128x128xf32, #tpu.memory_space<vmem>>, vector<128x128xf32>,
    %cst_463 = arith.constant 0.000000e+00 : f32
    %299 = vector.broadcast %cst_463 : f32 to vector<200x128xf32>
    %c0_464 = arith.constant 0 : index
    %c0_465 = arith.constant 0 : index
    %300 = vector.load %arg19[%c0_464, %c0_465] : memref<200x128xf32, #tpu.memory_space<vmem>>, vector<200x128xf32>
    tpu.vector_store %arg19[%c0_464, %c0_465], %299 {strides = array<i32>} : memref<200x128xf32, #tpu.memory_space<vmem>>, vector<200x128xf32>,
    %c0_466 = arith.constant 0 : index
    %c0_467 = arith.constant 0 : index
    %301 = vector.load %arg14[%c0_466, %c0_467] : memref<128x128xf32, #tpu.memory_space<vmem>>, vector<8x128xf32>
    %c11 = arith.constant 11 : index
    %c0_468 = arith.constant 0 : index
    %302 = vector.load %arg19[%c11, %c0_468] : memref<200x128xf32, #tpu.memory_space<vmem>>, vector<8x128xf32>
    tpu.vector_store %arg19[%c11, %c0_468], %301 {strides = array<i32>} : memref<200x128xf32, #tpu.memory_space<vmem>>, vector<8x128xf32>,
    %c8_469 = arith.constant 8 : index
    %c0_470 = arith.constant 0 : index
    %303 = vector.load %arg14[%c8_469, %c0_470] : memref<128x128xf32, #tpu.memory_space<vmem>>, vector<8x128xf32>
    %c21 = arith.constant 21 : index
    %c0_471 = arith.constant 0 : index
    %304 = vector.load %arg19[%c21, %c0_471] : memref<200x128xf32, #tpu.memory_space<vmem>>, vector<8x128xf32>
    tpu.vector_store %arg19[%c21, %c0_471], %303 {strides = array<i32>} : memref<200x128xf32, #tpu.memory_space<vmem>>, vector<8x128xf32>,
    %c16_472 = arith.constant 16 : index
    %c0_473 = arith.constant 0 : index
    %305 = vector.load %arg14[%c16_472, %c0_473] : memref<128x128xf32, #tpu.memory_space<vmem>>, vector<8x128xf32>
    %c31 = arith.constant 31 : index
    %c0_474 = arith.constant 0 : index
    %306 = vector.load %arg19[%c31, %c0_474] : memref<200x128xf32, #tpu.memory_space<vmem>>, vector<8x128xf32>
    tpu.vector_store %arg19[%c31, %c0_474], %305 {strides = array<i32>} : memref<200x128xf32, #tpu.memory_space<vmem>>, vector<8x128xf32>,
    %c24_475 = arith.constant 24 : index
    %c0_476 = arith.constant 0 : index
    %307 = vector.load %arg14[%c24_475, %c0_476] : memref<128x128xf32, #tpu.memory_space<vmem>>, vector<8x128xf32>
    %c41 = arith.constant 41 : index
    %c0_477 = arith.constant 0 : index
    %308 = vector.load %arg19[%c41, %c0_477] : memref<200x128xf32, #tpu.memory_space<vmem>>, vector<8x128xf32>
    tpu.vector_store %arg19[%c41, %c0_477], %307 {strides = array<i32>} : memref<200x128xf32, #tpu.memory_space<vmem>>, vector<8x128xf32>,
    %c32_478 = arith.constant 32 : index
    %c0_479 = arith.constant 0 : index
    %309 = vector.load %arg14[%c32_478, %c0_479] : memref<128x128xf32, #tpu.memory_space<vmem>>, vector<8x128xf32>
    %c51 = arith.constant 51 : index
    %c0_480 = arith.constant 0 : index
    %310 = vector.load %arg19[%c51, %c0_480] : memref<200x128xf32, #tpu.memory_space<vmem>>, vector<8x128xf32>
    tpu.vector_store %arg19[%c51, %c0_480], %309 {strides = array<i32>} : memref<200x128xf32, #tpu.memory_space<vmem>>, vector<8x128xf32>,
    %c40_481 = arith.constant 40 : index
    %c0_482 = arith.constant 0 : index
    %311 = vector.load %arg14[%c40_481, %c0_482] : memref<128x128xf32, #tpu.memory_space<vmem>>, vector<8x128xf32>
    %c61 = arith.constant 61 : index
    %c0_483 = arith.constant 0 : index
    %312 = vector.load %arg19[%c61, %c0_483] : memref<200x128xf32, #tpu.memory_space<vmem>>, vector<8x128xf32>
    tpu.vector_store %arg19[%c61, %c0_483], %311 {strides = array<i32>} : memref<200x128xf32, #tpu.memory_space<vmem>>, vector<8x128xf32>,
    %c48_484 = arith.constant 48 : index
    %c0_485 = arith.constant 0 : index
    %313 = vector.load %arg14[%c48_484, %c0_485] : memref<128x128xf32, #tpu.memory_space<vmem>>, vector<8x128xf32>
    %c71 = arith.constant 71 : index
    %c0_486 = arith.constant 0 : index
    %314 = vector.load %arg19[%c71, %c0_486] : memref<200x128xf32, #tpu.memory_space<vmem>>, vector<8x128xf32>
    tpu.vector_store %arg19[%c71, %c0_486], %313 {strides = array<i32>} : memref<200x128xf32, #tpu.memory_space<vmem>>, vector<8x128xf32>,
    %c56_487 = arith.constant 56 : index
    %c0_488 = arith.constant 0 : index
    %315 = vector.load %arg14[%c56_487, %c0_488] : memref<128x128xf32, #tpu.memory_space<vmem>>, vector<8x128xf32>
    %c81 = arith.constant 81 : index
    %c0_489 = arith.constant 0 : index
    %316 = vector.load %arg19[%c81, %c0_489] : memref<200x128xf32, #tpu.memory_space<vmem>>, vector<8x128xf32>
    tpu.vector_store %arg19[%c81, %c0_489], %315 {strides = array<i32>} : memref<200x128xf32, #tpu.memory_space<vmem>>, vector<8x128xf32>,
    %c64_490 = arith.constant 64 : index
    %c0_491 = arith.constant 0 : index
    %317 = vector.load %arg14[%c64_490, %c0_491] : memref<128x128xf32, #tpu.memory_space<vmem>>, vector<8x128xf32>
    %c111 = arith.constant 111 : index
    %c0_492 = arith.constant 0 : index
    %318 = vector.load %arg19[%c111, %c0_492] : memref<200x128xf32, #tpu.memory_space<vmem>>, vector<8x128xf32>
    tpu.vector_store %arg19[%c111, %c0_492], %317 {strides = array<i32>} : memref<200x128xf32, #tpu.memory_space<vmem>>, vector<8x128xf32>,
    %c72_493 = arith.constant 72 : index
    %c0_494 = arith.constant 0 : index
    %319 = vector.load %arg14[%c72_493, %c0_494] : memref<128x128xf32, #tpu.memory_space<vmem>>, vector<8x128xf32>
    %c121 = arith.constant 121 : index
    %c0_495 = arith.constant 0 : index
    %320 = vector.load %arg19[%c121, %c0_495] : memref<200x128xf32, #tpu.memory_space<vmem>>, vector<8x128xf32>
    tpu.vector_store %arg19[%c121, %c0_495], %319 {strides = array<i32>} : memref<200x128xf32, #tpu.memory_space<vmem>>, vector<8x128xf32>,
    %c80_496 = arith.constant 80 : index
    %c0_497 = arith.constant 0 : index
    %321 = vector.load %arg14[%c80_496, %c0_497] : memref<128x128xf32, #tpu.memory_space<vmem>>, vector<8x128xf32>
    %c131 = arith.constant 131 : index
    %c0_498 = arith.constant 0 : index
    %322 = vector.load %arg19[%c131, %c0_498] : memref<200x128xf32, #tpu.memory_space<vmem>>, vector<8x128xf32>
    tpu.vector_store %arg19[%c131, %c0_498], %321 {strides = array<i32>} : memref<200x128xf32, #tpu.memory_space<vmem>>, vector<8x128xf32>,
    %c88_499 = arith.constant 88 : index
    %c0_500 = arith.constant 0 : index
    %323 = vector.load %arg14[%c88_499, %c0_500] : memref<128x128xf32, #tpu.memory_space<vmem>>, vector<8x128xf32>
    %c141 = arith.constant 141 : index
    %c0_501 = arith.constant 0 : index
    %324 = vector.load %arg19[%c141, %c0_501] : memref<200x128xf32, #tpu.memory_space<vmem>>, vector<8x128xf32>
    tpu.vector_store %arg19[%c141, %c0_501], %323 {strides = array<i32>} : memref<200x128xf32, #tpu.memory_space<vmem>>, vector<8x128xf32>,
    %c96_502 = arith.constant 96 : index
    %c0_503 = arith.constant 0 : index
    %325 = vector.load %arg14[%c96_502, %c0_503] : memref<128x128xf32, #tpu.memory_space<vmem>>, vector<8x128xf32>
    %c151 = arith.constant 151 : index
    %c0_504 = arith.constant 0 : index
    %326 = vector.load %arg19[%c151, %c0_504] : memref<200x128xf32, #tpu.memory_space<vmem>>, vector<8x128xf32>
    tpu.vector_store %arg19[%c151, %c0_504], %325 {strides = array<i32>} : memref<200x128xf32, #tpu.memory_space<vmem>>, vector<8x128xf32>,
    %c104_505 = arith.constant 104 : index
    %c0_506 = arith.constant 0 : index
    %327 = vector.load %arg14[%c104_505, %c0_506] : memref<128x128xf32, #tpu.memory_space<vmem>>, vector<8x128xf32>
    %c161 = arith.constant 161 : index
    %c0_507 = arith.constant 0 : index
    %328 = vector.load %arg19[%c161, %c0_507] : memref<200x128xf32, #tpu.memory_space<vmem>>, vector<8x128xf32>
    tpu.vector_store %arg19[%c161, %c0_507], %327 {strides = array<i32>} : memref<200x128xf32, #tpu.memory_space<vmem>>, vector<8x128xf32>,
    %c112_508 = arith.constant 112 : index
    %c0_509 = arith.constant 0 : index
    %329 = vector.load %arg14[%c112_508, %c0_509] : memref<128x128xf32, #tpu.memory_space<vmem>>, vector<8x128xf32>
    %c171 = arith.constant 171 : index
    %c0_510 = arith.constant 0 : index
    %330 = vector.load %arg19[%c171, %c0_510] : memref<200x128xf32, #tpu.memory_space<vmem>>, vector<8x128xf32>
    tpu.vector_store %arg19[%c171, %c0_510], %329 {strides = array<i32>} : memref<200x128xf32, #tpu.memory_space<vmem>>, vector<8x128xf32>,
    %c120_511 = arith.constant 120 : index
    %c0_512 = arith.constant 0 : index
    %331 = vector.load %arg14[%c120_511, %c0_512] : memref<128x128xf32, #tpu.memory_space<vmem>>, vector<8x128xf32>
    %c181_513 = arith.constant 181 : index
    %c0_514 = arith.constant 0 : index
    %332 = vector.load %arg19[%c181_513, %c0_514] : memref<200x128xf32, #tpu.memory_space<vmem>>, vector<8x128xf32>
    tpu.vector_store %arg19[%c181_513, %c0_514], %331 {strides = array<i32>} : memref<200x128xf32, #tpu.memory_space<vmem>>, vector<8x128xf32>,
    %c0_515 = arith.constant 0 : index
    %c0_516 = arith.constant 0 : index
    %333 = tpu.strided_load %arg19[%c0_515, %c0_516] {strides = array<i32: 2, 1>} : memref<200x128xf32, #tpu.memory_space<vmem>>, vector<4x128xf32>
    %c0_517 = arith.constant 0 : index
    %c0_518 = arith.constant 0 : index
    %334 = vector.load %arg23[%c0_517, %c0_518] : memref<128x1152xf32, #tpu.memory_space<vmem>>, vector<4x128xf32>
    tpu.vector_store %arg23[%c0_517, %c0_518], %333 {strides = array<i32>} : memref<128x1152xf32, #tpu.memory_space<vmem>>, vector<4x128xf32>,
    %c20_519 = arith.constant 20 : index
    %c0_520 = arith.constant 0 : index
    %335 = tpu.strided_load %arg19[%c20_519, %c0_520] {strides = array<i32: 2, 1>} : memref<200x128xf32, #tpu.memory_space<vmem>>, vector<4x128xf32>
    %c4 = arith.constant 4 : index
    %c0_521 = arith.constant 0 : index
    %336 = vector.load %arg23[%c4, %c0_521] : memref<128x1152xf32, #tpu.memory_space<vmem>>, vector<4x128xf32>
    tpu.vector_store %arg23[%c4, %c0_521], %335 {strides = array<i32>} : memref<128x1152xf32, #tpu.memory_space<vmem>>, vector<4x128xf32>,
    %c40_522 = arith.constant 40 : index
    %c0_523 = arith.constant 0 : index
    %337 = tpu.strided_load %arg19[%c40_522, %c0_523] {strides = array<i32: 2, 1>} : memref<200x128xf32, #tpu.memory_space<vmem>>, vector<4x128xf32>
    %c8_524 = arith.constant 8 : index
    %c0_525 = arith.constant 0 : index
    %338 = vector.load %arg23[%c8_524, %c0_525] : memref<128x1152xf32, #tpu.memory_space<vmem>>, vector<4x128xf32>
    tpu.vector_store %arg23[%c8_524, %c0_525], %337 {strides = array<i32>} : memref<128x1152xf32, #tpu.memory_space<vmem>>, vector<4x128xf32>,
    %c60 = arith.constant 60 : index
    %c0_526 = arith.constant 0 : index
    %339 = tpu.strided_load %arg19[%c60, %c0_526] {strides = array<i32: 2, 1>} : memref<200x128xf32, #tpu.memory_space<vmem>>, vector<4x128xf32>
    %c12 = arith.constant 12 : index
    %c0_527 = arith.constant 0 : index
    %340 = vector.load %arg23[%c12, %c0_527] : memref<128x1152xf32, #tpu.memory_space<vmem>>, vector<4x128xf32>
    tpu.vector_store %arg23[%c12, %c0_527], %339 {strides = array<i32>} : memref<128x1152xf32, #tpu.memory_space<vmem>>, vector<4x128xf32>,
    %c100 = arith.constant 100 : index
    %c0_528 = arith.constant 0 : index
    %341 = tpu.strided_load %arg19[%c100, %c0_528] {strides = array<i32: 2, 1>} : memref<200x128xf32, #tpu.memory_space<vmem>>, vector<4x128xf32>
    %c16_529 = arith.constant 16 : index
    %c0_530 = arith.constant 0 : index
    %342 = vector.load %arg23[%c16_529, %c0_530] : memref<128x1152xf32, #tpu.memory_space<vmem>>, vector<4x128xf32>
    tpu.vector_store %arg23[%c16_529, %c0_530], %341 {strides = array<i32>} : memref<128x1152xf32, #tpu.memory_space<vmem>>, vector<4x128xf32>,
    %c120_531 = arith.constant 120 : index
    %c0_532 = arith.constant 0 : index
    %343 = tpu.strided_load %arg19[%c120_531, %c0_532] {strides = array<i32: 2, 1>} : memref<200x128xf32, #tpu.memory_space<vmem>>, vector<4x128xf32>
    %c20_533 = arith.constant 20 : index
    %c0_534 = arith.constant 0 : index
    %344 = vector.load %arg23[%c20_533, %c0_534] : memref<128x1152xf32, #tpu.memory_space<vmem>>, vector<4x128xf32>
    tpu.vector_store %arg23[%c20_533, %c0_534], %343 {strides = array<i32>} : memref<128x1152xf32, #tpu.memory_space<vmem>>, vector<4x128xf32>,
    %c140 = arith.constant 140 : index
    %c0_535 = arith.constant 0 : index
    %345 = tpu.strided_load %arg19[%c140, %c0_535] {strides = array<i32: 2, 1>} : memref<200x128xf32, #tpu.memory_space<vmem>>, vector<4x128xf32>
    %c24_536 = arith.constant 24 : index
    %c0_537 = arith.constant 0 : index
    %346 = vector.load %arg23[%c24_536, %c0_537] : memref<128x1152xf32, #tpu.memory_space<vmem>>, vector<4x128xf32>
    tpu.vector_store %arg23[%c24_536, %c0_537], %345 {strides = array<i32>} : memref<128x1152xf32, #tpu.memory_space<vmem>>, vector<4x128xf32>,
    %c160 = arith.constant 160 : index
    %c0_538 = arith.constant 0 : index
    %347 = tpu.strided_load %arg19[%c160, %c0_538] {strides = array<i32: 2, 1>} : memref<200x128xf32, #tpu.memory_space<vmem>>, vector<4x128xf32>
    %c28 = arith.constant 28 : index
    %c0_539 = arith.constant 0 : index
    %348 = vector.load %arg23[%c28, %c0_539] : memref<128x1152xf32, #tpu.memory_space<vmem>>, vector<4x128xf32>
    tpu.vector_store %arg23[%c28, %c0_539], %347 {strides = array<i32>} : memref<128x1152xf32, #tpu.memory_space<vmem>>, vector<4x128xf32>,
    %c1_540 = arith.constant 1 : index
    %c0_541 = arith.constant 0 : index
    %349 = tpu.strided_load %arg19[%c1_540, %c0_541] {strides = array<i32: 2, 1>} : memref<200x128xf32, #tpu.memory_space<vmem>>, vector<4x128xf32>
    %c0_542 = arith.constant 0 : index
    %c128_543 = arith.constant 128 : index
    %350 = vector.load %arg23[%c0_542, %c128_543] : memref<128x1152xf32, #tpu.memory_space<vmem>>, vector<4x128xf32>
    tpu.vector_store %arg23[%c0_542, %c128_543], %349 {strides = array<i32>} : memref<128x1152xf32, #tpu.memory_space<vmem>>, vector<4x128xf32>,
    %c21_544 = arith.constant 21 : index
    %c0_545 = arith.constant 0 : index
    %351 = tpu.strided_load %arg19[%c21_544, %c0_545] {strides = array<i32: 2, 1>} : memref<200x128xf32, #tpu.memory_space<vmem>>, vector<4x128xf32>
    %c4_546 = arith.constant 4 : index
    %c128_547 = arith.constant 128 : index
    %352 = vector.load %arg23[%c4_546, %c128_547] : memref<128x1152xf32, #tpu.memory_space<vmem>>, vector<4x128xf32>
    tpu.vector_store %arg23[%c4_546, %c128_547], %351 {strides = array<i32>} : memref<128x1152xf32, #tpu.memory_space<vmem>>, vector<4x128xf32>,
    %c41_548 = arith.constant 41 : index
    %c0_549 = arith.constant 0 : index
    %353 = tpu.strided_load %arg19[%c41_548, %c0_549] {strides = array<i32: 2, 1>} : memref<200x128xf32, #tpu.memory_space<vmem>>, vector<4x128xf32>
    %c8_550 = arith.constant 8 : index
    %c128_551 = arith.constant 128 : index
    %354 = vector.load %arg23[%c8_550, %c128_551] : memref<128x1152xf32, #tpu.memory_space<vmem>>, vector<4x128xf32>
    tpu.vector_store %arg23[%c8_550, %c128_551], %353 {strides = array<i32>} : memref<128x1152xf32, #tpu.memory_space<vmem>>, vector<4x128xf32>,
    %c61_552 = arith.constant 61 : index
    %c0_553 = arith.constant 0 : index
    %355 = tpu.strided_load %arg19[%c61_552, %c0_553] {strides = array<i32: 2, 1>} : memref<200x128xf32, #tpu.memory_space<vmem>>, vector<4x128xf32>
    %c12_554 = arith.constant 12 : index
    %c128_555 = arith.constant 128 : index
    %356 = vector.load %arg23[%c12_554, %c128_555] : memref<128x1152xf32, #tpu.memory_space<vmem>>, vector<4x128xf32>
    tpu.vector_store %arg23[%c12_554, %c128_555], %355 {strides = array<i32>} : memref<128x1152xf32, #tpu.memory_space<vmem>>, vector<4x128xf32>,
    %c101 = arith.constant 101 : index
    %c0_556 = arith.constant 0 : index
    %357 = tpu.strided_load %arg19[%c101, %c0_556] {strides = array<i32: 2, 1>} : memref<200x128xf32, #tpu.memory_space<vmem>>, vector<4x128xf32>
    %c16_557 = arith.constant 16 : index
    %c128_558 = arith.constant 128 : index
    %358 = vector.load %arg23[%c16_557, %c128_558] : memref<128x1152xf32, #tpu.memory_space<vmem>>, vector<4x128xf32>
    tpu.vector_store %arg23[%c16_557, %c128_558], %357 {strides = array<i32>} : memref<128x1152xf32, #tpu.memory_space<vmem>>, vector<4x128xf32>,
    %c121_559 = arith.constant 121 : index
    %c0_560 = arith.constant 0 : index
    %359 = tpu.strided_load %arg19[%c121_559, %c0_560] {strides = array<i32: 2, 1>} : memref<200x128xf32, #tpu.memory_space<vmem>>, vector<4x128xf32>
    %c20_561 = arith.constant 20 : index
    %c128_562 = arith.constant 128 : index
    %360 = vector.load %arg23[%c20_561, %c128_562] : memref<128x1152xf32, #tpu.memory_space<vmem>>, vector<4x128xf32>
    tpu.vector_store %arg23[%c20_561, %c128_562], %359 {strides = array<i32>} : memref<128x1152xf32, #tpu.memory_space<vmem>>, vector<4x128xf32>,
    %c141_563 = arith.constant 141 : index
    %c0_564 = arith.constant 0 : index
    %361 = tpu.strided_load %arg19[%c141_563, %c0_564] {strides = array<i32: 2, 1>} : memref<200x128xf32, #tpu.memory_space<vmem>>, vector<4x128xf32>
    %c24_565 = arith.constant 24 : index
    %c128_566 = arith.constant 128 : index
    %362 = vector.load %arg23[%c24_565, %c128_566] : memref<128x1152xf32, #tpu.memory_space<vmem>>, vector<4x128xf32>
    tpu.vector_store %arg23[%c24_565, %c128_566], %361 {strides = array<i32>} : memref<128x1152xf32, #tpu.memory_space<vmem>>, vector<4x128xf32>,
    %c161_567 = arith.constant 161 : index
    %c0_568 = arith.constant 0 : index
    %363 = tpu.strided_load %arg19[%c161_567, %c0_568] {strides = array<i32: 2, 1>} : memref<200x128xf32, #tpu.memory_space<vmem>>, vector<4x128xf32>
    %c28_569 = arith.constant 28 : index
    %c128_570 = arith.constant 128 : index
    %364 = vector.load %arg23[%c28_569, %c128_570] : memref<128x1152xf32, #tpu.memory_space<vmem>>, vector<4x128xf32>
    tpu.vector_store %arg23[%c28_569, %c128_570], %363 {strides = array<i32>} : memref<128x1152xf32, #tpu.memory_space<vmem>>, vector<4x128xf32>,
    %c2_571 = arith.constant 2 : index
    %c0_572 = arith.constant 0 : index
    %365 = tpu.strided_load %arg19[%c2_571, %c0_572] {strides = array<i32: 2, 1>} : memref<200x128xf32, #tpu.memory_space<vmem>>, vector<4x128xf32>
    %c0_573 = arith.constant 0 : index
    %c256_574 = arith.constant 256 : index
    %366 = vector.load %arg23[%c0_573, %c256_574] : memref<128x1152xf32, #tpu.memory_space<vmem>>, vector<4x128xf32>
    tpu.vector_store %arg23[%c0_573, %c256_574], %365 {strides = array<i32>} : memref<128x1152xf32, #tpu.memory_space<vmem>>, vector<4x128xf32>,
    %c22 = arith.constant 22 : index
    %c0_575 = arith.constant 0 : index
    %367 = tpu.strided_load %arg19[%c22, %c0_575] {strides = array<i32: 2, 1>} : memref<200x128xf32, #tpu.memory_space<vmem>>, vector<4x128xf32>
    %c4_576 = arith.constant 4 : index
    %c256_577 = arith.constant 256 : index
    %368 = vector.load %arg23[%c4_576, %c256_577] : memref<128x1152xf32, #tpu.memory_space<vmem>>, vector<4x128xf32>
    tpu.vector_store %arg23[%c4_576, %c256_577], %367 {strides = array<i32>} : memref<128x1152xf32, #tpu.memory_space<vmem>>, vector<4x128xf32>,
    %c42 = arith.constant 42 : index
    %c0_578 = arith.constant 0 : index
    %369 = tpu.strided_load %arg19[%c42, %c0_578] {strides = array<i32: 2, 1>} : memref<200x128xf32, #tpu.memory_space<vmem>>, vector<4x128xf32>
    %c8_579 = arith.constant 8 : index
    %c256_580 = arith.constant 256 : index
    %370 = vector.load %arg23[%c8_579, %c256_580] : memref<128x1152xf32, #tpu.memory_space<vmem>>, vector<4x128xf32>
    tpu.vector_store %arg23[%c8_579, %c256_580], %369 {strides = array<i32>} : memref<128x1152xf32, #tpu.memory_space<vmem>>, vector<4x128xf32>,
    %c62 = arith.constant 62 : index
    %c0_581 = arith.constant 0 : index
    %371 = tpu.strided_load %arg19[%c62, %c0_581] {strides = array<i32: 2, 1>} : memref<200x128xf32, #tpu.memory_space<vmem>>, vector<4x128xf32>
    %c12_582 = arith.constant 12 : index
    %c256_583 = arith.constant 256 : index
    %372 = vector.load %arg23[%c12_582, %c256_583] : memref<128x1152xf32, #tpu.memory_space<vmem>>, vector<4x128xf32>
    tpu.vector_store %arg23[%c12_582, %c256_583], %371 {strides = array<i32>} : memref<128x1152xf32, #tpu.memory_space<vmem>>, vector<4x128xf32>,
    %c102 = arith.constant 102 : index
    %c0_584 = arith.constant 0 : index
    %373 = tpu.strided_load %arg19[%c102, %c0_584] {strides = array<i32: 2, 1>} : memref<200x128xf32, #tpu.memory_space<vmem>>, vector<4x128xf32>
    %c16_585 = arith.constant 16 : index
    %c256_586 = arith.constant 256 : index
    %374 = vector.load %arg23[%c16_585, %c256_586] : memref<128x1152xf32, #tpu.memory_space<vmem>>, vector<4x128xf32>
    tpu.vector_store %arg23[%c16_585, %c256_586], %373 {strides = array<i32>} : memref<128x1152xf32, #tpu.memory_space<vmem>>, vector<4x128xf32>,
    %c122 = arith.constant 122 : index
    %c0_587 = arith.constant 0 : index
    %375 = tpu.strided_load %arg19[%c122, %c0_587] {strides = array<i32: 2, 1>} : memref<200x128xf32, #tpu.memory_space<vmem>>, vector<4x128xf32>
    %c20_588 = arith.constant 20 : index
    %c256_589 = arith.constant 256 : index
    %376 = vector.load %arg23[%c20_588, %c256_589] : memref<128x1152xf32, #tpu.memory_space<vmem>>, vector<4x128xf32>
    tpu.vector_store %arg23[%c20_588, %c256_589], %375 {strides = array<i32>} : memref<128x1152xf32, #tpu.memory_space<vmem>>, vector<4x128xf32>,
    %c142 = arith.constant 142 : index
    %c0_590 = arith.constant 0 : index
    %377 = tpu.strided_load %arg19[%c142, %c0_590] {strides = array<i32: 2, 1>} : memref<200x128xf32, #tpu.memory_space<vmem>>, vector<4x128xf32>
    %c24_591 = arith.constant 24 : index
    %c256_592 = arith.constant 256 : index
    %378 = vector.load %arg23[%c24_591, %c256_592] : memref<128x1152xf32, #tpu.memory_space<vmem>>, vector<4x128xf32>
    tpu.vector_store %arg23[%c24_591, %c256_592], %377 {strides = array<i32>} : memref<128x1152xf32, #tpu.memory_space<vmem>>, vector<4x128xf32>,
    %c162_593 = arith.constant 162 : index
    %c0_594 = arith.constant 0 : index
    %379 = tpu.strided_load %arg19[%c162_593, %c0_594] {strides = array<i32: 2, 1>} : memref<200x128xf32, #tpu.memory_space<vmem>>, vector<4x128xf32>
    %c28_595 = arith.constant 28 : index
    %c256_596 = arith.constant 256 : index
    %380 = vector.load %arg23[%c28_595, %c256_596] : memref<128x1152xf32, #tpu.memory_space<vmem>>, vector<4x128xf32>
    tpu.vector_store %arg23[%c28_595, %c256_596], %379 {strides = array<i32>} : memref<128x1152xf32, #tpu.memory_space<vmem>>, vector<4x128xf32>,
    %c10 = arith.constant 10 : index
    %c0_597 = arith.constant 0 : index
    %381 = tpu.strided_load %arg19[%c10, %c0_597] {strides = array<i32: 2, 1>} : memref<200x128xf32, #tpu.memory_space<vmem>>, vector<4x128xf32>
    %c0_598 = arith.constant 0 : index
    %c384_599 = arith.constant 384 : index
    %382 = vector.load %arg23[%c0_598, %c384_599] : memref<128x1152xf32, #tpu.memory_space<vmem>>, vector<4x128xf32>
    tpu.vector_store %arg23[%c0_598, %c384_599], %381 {strides = array<i32>} : memref<128x1152xf32, #tpu.memory_space<vmem>>, vector<4x128xf32>,
    %c30 = arith.constant 30 : index
    %c0_600 = arith.constant 0 : index
    %383 = tpu.strided_load %arg19[%c30, %c0_600] {strides = array<i32: 2, 1>} : memref<200x128xf32, #tpu.memory_space<vmem>>, vector<4x128xf32>
    %c4_601 = arith.constant 4 : index
    %c384_602 = arith.constant 384 : index
    %384 = vector.load %arg23[%c4_601, %c384_602] : memref<128x1152xf32, #tpu.memory_space<vmem>>, vector<4x128xf32>
    tpu.vector_store %arg23[%c4_601, %c384_602], %383 {strides = array<i32>} : memref<128x1152xf32, #tpu.memory_space<vmem>>, vector<4x128xf32>,
    %c50 = arith.constant 50 : index
    %c0_603 = arith.constant 0 : index
    %385 = tpu.strided_load %arg19[%c50, %c0_603] {strides = array<i32: 2, 1>} : memref<200x128xf32, #tpu.memory_space<vmem>>, vector<4x128xf32>
    %c8_604 = arith.constant 8 : index
    %c384_605 = arith.constant 384 : index
    %386 = vector.load %arg23[%c8_604, %c384_605] : memref<128x1152xf32, #tpu.memory_space<vmem>>, vector<4x128xf32>
    tpu.vector_store %arg23[%c8_604, %c384_605], %385 {strides = array<i32>} : memref<128x1152xf32, #tpu.memory_space<vmem>>, vector<4x128xf32>,
    %c70 = arith.constant 70 : index
    %c0_606 = arith.constant 0 : index
    %387 = tpu.strided_load %arg19[%c70, %c0_606] {strides = array<i32: 2, 1>} : memref<200x128xf32, #tpu.memory_space<vmem>>, vector<4x128xf32>
    %c12_607 = arith.constant 12 : index
    %c384_608 = arith.constant 384 : index
    %388 = vector.load %arg23[%c12_607, %c384_608] : memref<128x1152xf32, #tpu.memory_space<vmem>>, vector<4x128xf32>
    tpu.vector_store %arg23[%c12_607, %c384_608], %387 {strides = array<i32>} : memref<128x1152xf32, #tpu.memory_space<vmem>>, vector<4x128xf32>,
    %c110_609 = arith.constant 110 : index
    %c0_610 = arith.constant 0 : index
    %389 = tpu.strided_load %arg19[%c110_609, %c0_610] {strides = array<i32: 2, 1>} : memref<200x128xf32, #tpu.memory_space<vmem>>, vector<4x128xf32>
    %c16_611 = arith.constant 16 : index
    %c384_612 = arith.constant 384 : index
    %390 = vector.load %arg23[%c16_611, %c384_612] : memref<128x1152xf32, #tpu.memory_space<vmem>>, vector<4x128xf32>
    tpu.vector_store %arg23[%c16_611, %c384_612], %389 {strides = array<i32>} : memref<128x1152xf32, #tpu.memory_space<vmem>>, vector<4x128xf32>,
    %c130 = arith.constant 130 : index
    %c0_613 = arith.constant 0 : index
    %391 = tpu.strided_load %arg19[%c130, %c0_613] {strides = array<i32: 2, 1>} : memref<200x128xf32, #tpu.memory_space<vmem>>, vector<4x128xf32>
    %c20_614 = arith.constant 20 : index
    %c384_615 = arith.constant 384 : index
    %392 = vector.load %arg23[%c20_614, %c384_615] : memref<128x1152xf32, #tpu.memory_space<vmem>>, vector<4x128xf32>
    tpu.vector_store %arg23[%c20_614, %c384_615], %391 {strides = array<i32>} : memref<128x1152xf32, #tpu.memory_space<vmem>>, vector<4x128xf32>,
    %c150 = arith.constant 150 : index
    %c0_616 = arith.constant 0 : index
    %393 = tpu.strided_load %arg19[%c150, %c0_616] {strides = array<i32: 2, 1>} : memref<200x128xf32, #tpu.memory_space<vmem>>, vector<4x128xf32>
    %c24_617 = arith.constant 24 : index
    %c384_618 = arith.constant 384 : index
    %394 = vector.load %arg23[%c24_617, %c384_618] : memref<128x1152xf32, #tpu.memory_space<vmem>>, vector<4x128xf32>
    tpu.vector_store %arg23[%c24_617, %c384_618], %393 {strides = array<i32>} : memref<128x1152xf32, #tpu.memory_space<vmem>>, vector<4x128xf32>,
    %c170 = arith.constant 170 : index
    %c0_619 = arith.constant 0 : index
    %395 = tpu.strided_load %arg19[%c170, %c0_619] {strides = array<i32: 2, 1>} : memref<200x128xf32, #tpu.memory_space<vmem>>, vector<4x128xf32>
    %c28_620 = arith.constant 28 : index
    %c384_621 = arith.constant 384 : index
    %396 = vector.load %arg23[%c28_620, %c384_621] : memref<128x1152xf32, #tpu.memory_space<vmem>>, vector<4x128xf32>
    tpu.vector_store %arg23[%c28_620, %c384_621], %395 {strides = array<i32>} : memref<128x1152xf32, #tpu.memory_space<vmem>>, vector<4x128xf32>,
    %c11_622 = arith.constant 11 : index
    %c0_623 = arith.constant 0 : index
    %397 = tpu.strided_load %arg19[%c11_622, %c0_623] {strides = array<i32: 2, 1>} : memref<200x128xf32, #tpu.memory_space<vmem>>, vector<4x128xf32>
    %c0_624 = arith.constant 0 : index
    %c512_625 = arith.constant 512 : index
    %398 = vector.load %arg23[%c0_624, %c512_625] : memref<128x1152xf32, #tpu.memory_space<vmem>>, vector<4x128xf32>
    tpu.vector_store %arg23[%c0_624, %c512_625], %397 {strides = array<i32>} : memref<128x1152xf32, #tpu.memory_space<vmem>>, vector<4x128xf32>,
    %c31_626 = arith.constant 31 : index
    %c0_627 = arith.constant 0 : index
    %399 = tpu.strided_load %arg19[%c31_626, %c0_627] {strides = array<i32: 2, 1>} : memref<200x128xf32, #tpu.memory_space<vmem>>, vector<4x128xf32>
    %c4_628 = arith.constant 4 : index
    %c512_629 = arith.constant 512 : index
    %400 = vector.load %arg23[%c4_628, %c512_629] : memref<128x1152xf32, #tpu.memory_space<vmem>>, vector<4x128xf32>
    tpu.vector_store %arg23[%c4_628, %c512_629], %399 {strides = array<i32>} : memref<128x1152xf32, #tpu.memory_space<vmem>>, vector<4x128xf32>,
    %c51_630 = arith.constant 51 : index
    %c0_631 = arith.constant 0 : index
    %401 = tpu.strided_load %arg19[%c51_630, %c0_631] {strides = array<i32: 2, 1>} : memref<200x128xf32, #tpu.memory_space<vmem>>, vector<4x128xf32>
    %c8_632 = arith.constant 8 : index
    %c512_633 = arith.constant 512 : index
    %402 = vector.load %arg23[%c8_632, %c512_633] : memref<128x1152xf32, #tpu.memory_space<vmem>>, vector<4x128xf32>
    tpu.vector_store %arg23[%c8_632, %c512_633], %401 {strides = array<i32>} : memref<128x1152xf32, #tpu.memory_space<vmem>>, vector<4x128xf32>,
    %c71_634 = arith.constant 71 : index
    %c0_635 = arith.constant 0 : index
    %403 = tpu.strided_load %arg19[%c71_634, %c0_635] {strides = array<i32: 2, 1>} : memref<200x128xf32, #tpu.memory_space<vmem>>, vector<4x128xf32>
    %c12_636 = arith.constant 12 : index
    %c512_637 = arith.constant 512 : index
    %404 = vector.load %arg23[%c12_636, %c512_637] : memref<128x1152xf32, #tpu.memory_space<vmem>>, vector<4x128xf32>
    tpu.vector_store %arg23[%c12_636, %c512_637], %403 {strides = array<i32>} : memref<128x1152xf32, #tpu.memory_space<vmem>>, vector<4x128xf32>,
    %c111_638 = arith.constant 111 : index
    %c0_639 = arith.constant 0 : index
    %405 = tpu.strided_load %arg19[%c111_638, %c0_639] {strides = array<i32: 2, 1>} : memref<200x128xf32, #tpu.memory_space<vmem>>, vector<4x128xf32>
    %c16_640 = arith.constant 16 : index
    %c512_641 = arith.constant 512 : index
    %406 = vector.load %arg23[%c16_640, %c512_641] : memref<128x1152xf32, #tpu.memory_space<vmem>>, vector<4x128xf32>
    tpu.vector_store %arg23[%c16_640, %c512_641], %405 {strides = array<i32>} : memref<128x1152xf32, #tpu.memory_space<vmem>>, vector<4x128xf32>,
    %c131_642 = arith.constant 131 : index
    %c0_643 = arith.constant 0 : index
    %407 = tpu.strided_load %arg19[%c131_642, %c0_643] {strides = array<i32: 2, 1>} : memref<200x128xf32, #tpu.memory_space<vmem>>, vector<4x128xf32>
    %c20_644 = arith.constant 20 : index
    %c512_645 = arith.constant 512 : index
    %408 = vector.load %arg23[%c20_644, %c512_645] : memref<128x1152xf32, #tpu.memory_space<vmem>>, vector<4x128xf32>
    tpu.vector_store %arg23[%c20_644, %c512_645], %407 {strides = array<i32>} : memref<128x1152xf32, #tpu.memory_space<vmem>>, vector<4x128xf32>,
    %c151_646 = arith.constant 151 : index
    %c0_647 = arith.constant 0 : index
    %409 = tpu.strided_load %arg19[%c151_646, %c0_647] {strides = array<i32: 2, 1>} : memref<200x128xf32, #tpu.memory_space<vmem>>, vector<4x128xf32>
    %c24_648 = arith.constant 24 : index
    %c512_649 = arith.constant 512 : index
    %410 = vector.load %arg23[%c24_648, %c512_649] : memref<128x1152xf32, #tpu.memory_space<vmem>>, vector<4x128xf32>
    tpu.vector_store %arg23[%c24_648, %c512_649], %409 {strides = array<i32>} : memref<128x1152xf32, #tpu.memory_space<vmem>>, vector<4x128xf32>,
    %c171_650 = arith.constant 171 : index
    %c0_651 = arith.constant 0 : index
    %411 = tpu.strided_load %arg19[%c171_650, %c0_651] {strides = array<i32: 2, 1>} : memref<200x128xf32, #tpu.memory_space<vmem>>, vector<4x128xf32>
    %c28_652 = arith.constant 28 : index
    %c512_653 = arith.constant 512 : index
    %412 = vector.load %arg23[%c28_652, %c512_653] : memref<128x1152xf32, #tpu.memory_space<vmem>>, vector<4x128xf32>
    tpu.vector_store %arg23[%c28_652, %c512_653], %411 {strides = array<i32>} : memref<128x1152xf32, #tpu.memory_space<vmem>>, vector<4x128xf32>,
    %c12_654 = arith.constant 12 : index
    %c0_655 = arith.constant 0 : index
    %413 = tpu.strided_load %arg19[%c12_654, %c0_655] {strides = array<i32: 2, 1>} : memref<200x128xf32, #tpu.memory_space<vmem>>, vector<4x128xf32>
    %c0_656 = arith.constant 0 : index
    %c640_657 = arith.constant 640 : index
    %414 = vector.load %arg23[%c0_656, %c640_657] : memref<128x1152xf32, #tpu.memory_space<vmem>>, vector<4x128xf32>
    tpu.vector_store %arg23[%c0_656, %c640_657], %413 {strides = array<i32>} : memref<128x1152xf32, #tpu.memory_space<vmem>>, vector<4x128xf32>,
    %c32_658 = arith.constant 32 : index
    %c0_659 = arith.constant 0 : index
    %415 = tpu.strided_load %arg19[%c32_658, %c0_659] {strides = array<i32: 2, 1>} : memref<200x128xf32, #tpu.memory_space<vmem>>, vector<4x128xf32>
    %c4_660 = arith.constant 4 : index
    %c640_661 = arith.constant 640 : index
    %416 = vector.load %arg23[%c4_660, %c640_661] : memref<128x1152xf32, #tpu.memory_space<vmem>>, vector<4x128xf32>
    tpu.vector_store %arg23[%c4_660, %c640_661], %415 {strides = array<i32>} : memref<128x1152xf32, #tpu.memory_space<vmem>>, vector<4x128xf32>,
    %c52 = arith.constant 52 : index
    %c0_662 = arith.constant 0 : index
    %417 = tpu.strided_load %arg19[%c52, %c0_662] {strides = array<i32: 2, 1>} : memref<200x128xf32, #tpu.memory_space<vmem>>, vector<4x128xf32>
    %c8_663 = arith.constant 8 : index
    %c640_664 = arith.constant 640 : index
    %418 = vector.load %arg23[%c8_663, %c640_664] : memref<128x1152xf32, #tpu.memory_space<vmem>>, vector<4x128xf32>
    tpu.vector_store %arg23[%c8_663, %c640_664], %417 {strides = array<i32>} : memref<128x1152xf32, #tpu.memory_space<vmem>>, vector<4x128xf32>,
    %c72_665 = arith.constant 72 : index
    %c0_666 = arith.constant 0 : index
    %419 = tpu.strided_load %arg19[%c72_665, %c0_666] {strides = array<i32: 2, 1>} : memref<200x128xf32, #tpu.memory_space<vmem>>, vector<4x128xf32>
    %c12_667 = arith.constant 12 : index
    %c640_668 = arith.constant 640 : index
    %420 = vector.load %arg23[%c12_667, %c640_668] : memref<128x1152xf32, #tpu.memory_space<vmem>>, vector<4x128xf32>
    tpu.vector_store %arg23[%c12_667, %c640_668], %419 {strides = array<i32>} : memref<128x1152xf32, #tpu.memory_space<vmem>>, vector<4x128xf32>,
    %c112_669 = arith.constant 112 : index
    %c0_670 = arith.constant 0 : index
    %421 = tpu.strided_load %arg19[%c112_669, %c0_670] {strides = array<i32: 2, 1>} : memref<200x128xf32, #tpu.memory_space<vmem>>, vector<4x128xf32>
    %c16_671 = arith.constant 16 : index
    %c640_672 = arith.constant 640 : index
    %422 = vector.load %arg23[%c16_671, %c640_672] : memref<128x1152xf32, #tpu.memory_space<vmem>>, vector<4x128xf32>
    tpu.vector_store %arg23[%c16_671, %c640_672], %421 {strides = array<i32>} : memref<128x1152xf32, #tpu.memory_space<vmem>>, vector<4x128xf32>,
    %c132 = arith.constant 132 : index
    %c0_673 = arith.constant 0 : index
    %423 = tpu.strided_load %arg19[%c132, %c0_673] {strides = array<i32: 2, 1>} : memref<200x128xf32, #tpu.memory_space<vmem>>, vector<4x128xf32>
    %c20_674 = arith.constant 20 : index
    %c640_675 = arith.constant 640 : index
    %424 = vector.load %arg23[%c20_674, %c640_675] : memref<128x1152xf32, #tpu.memory_space<vmem>>, vector<4x128xf32>
    tpu.vector_store %arg23[%c20_674, %c640_675], %423 {strides = array<i32>} : memref<128x1152xf32, #tpu.memory_space<vmem>>, vector<4x128xf32>,
    %c152 = arith.constant 152 : index
    %c0_676 = arith.constant 0 : index
    %425 = tpu.strided_load %arg19[%c152, %c0_676] {strides = array<i32: 2, 1>} : memref<200x128xf32, #tpu.memory_space<vmem>>, vector<4x128xf32>
    %c24_677 = arith.constant 24 : index
    %c640_678 = arith.constant 640 : index
    %426 = vector.load %arg23[%c24_677, %c640_678] : memref<128x1152xf32, #tpu.memory_space<vmem>>, vector<4x128xf32>
    tpu.vector_store %arg23[%c24_677, %c640_678], %425 {strides = array<i32>} : memref<128x1152xf32, #tpu.memory_space<vmem>>, vector<4x128xf32>,
    %c172 = arith.constant 172 : index
    %c0_679 = arith.constant 0 : index
    %427 = tpu.strided_load %arg19[%c172, %c0_679] {strides = array<i32: 2, 1>} : memref<200x128xf32, #tpu.memory_space<vmem>>, vector<4x128xf32>
    %c28_680 = arith.constant 28 : index
    %c640_681 = arith.constant 640 : index
    %428 = vector.load %arg23[%c28_680, %c640_681] : memref<128x1152xf32, #tpu.memory_space<vmem>>, vector<4x128xf32>
    tpu.vector_store %arg23[%c28_680, %c640_681], %427 {strides = array<i32>} : memref<128x1152xf32, #tpu.memory_space<vmem>>, vector<4x128xf32>,
    %c20_682 = arith.constant 20 : index
    %c0_683 = arith.constant 0 : index
    %429 = tpu.strided_load %arg19[%c20_682, %c0_683] {strides = array<i32: 2, 1>} : memref<200x128xf32, #tpu.memory_space<vmem>>, vector<4x128xf32>
    %c0_684 = arith.constant 0 : index
    %c768_685 = arith.constant 768 : index
    %430 = vector.load %arg23[%c0_684, %c768_685] : memref<128x1152xf32, #tpu.memory_space<vmem>>, vector<4x128xf32>
    tpu.vector_store %arg23[%c0_684, %c768_685], %429 {strides = array<i32>} : memref<128x1152xf32, #tpu.memory_space<vmem>>, vector<4x128xf32>,
    %c40_686 = arith.constant 40 : index
    %c0_687 = arith.constant 0 : index
    %431 = tpu.strided_load %arg19[%c40_686, %c0_687] {strides = array<i32: 2, 1>} : memref<200x128xf32, #tpu.memory_space<vmem>>, vector<4x128xf32>
    %c4_688 = arith.constant 4 : index
    %c768_689 = arith.constant 768 : index
    %432 = vector.load %arg23[%c4_688, %c768_689] : memref<128x1152xf32, #tpu.memory_space<vmem>>, vector<4x128xf32>
    tpu.vector_store %arg23[%c4_688, %c768_689], %431 {strides = array<i32>} : memref<128x1152xf32, #tpu.memory_space<vmem>>, vector<4x128xf32>,
    %c60_690 = arith.constant 60 : index
    %c0_691 = arith.constant 0 : index
    %433 = tpu.strided_load %arg19[%c60_690, %c0_691] {strides = array<i32: 2, 1>} : memref<200x128xf32, #tpu.memory_space<vmem>>, vector<4x128xf32>
    %c8_692 = arith.constant 8 : index
    %c768_693 = arith.constant 768 : index
    %434 = vector.load %arg23[%c8_692, %c768_693] : memref<128x1152xf32, #tpu.memory_space<vmem>>, vector<4x128xf32>
    tpu.vector_store %arg23[%c8_692, %c768_693], %433 {strides = array<i32>} : memref<128x1152xf32, #tpu.memory_space<vmem>>, vector<4x128xf32>,
    %c80_694 = arith.constant 80 : index
    %c0_695 = arith.constant 0 : index
    %435 = tpu.strided_load %arg19[%c80_694, %c0_695] {strides = array<i32: 2, 1>} : memref<200x128xf32, #tpu.memory_space<vmem>>, vector<4x128xf32>
    %c12_696 = arith.constant 12 : index
    %c768_697 = arith.constant 768 : index
    %436 = vector.load %arg23[%c12_696, %c768_697] : memref<128x1152xf32, #tpu.memory_space<vmem>>, vector<4x128xf32>
    tpu.vector_store %arg23[%c12_696, %c768_697], %435 {strides = array<i32>} : memref<128x1152xf32, #tpu.memory_space<vmem>>, vector<4x128xf32>,
    %c120_698 = arith.constant 120 : index
    %c0_699 = arith.constant 0 : index
    %437 = tpu.strided_load %arg19[%c120_698, %c0_699] {strides = array<i32: 2, 1>} : memref<200x128xf32, #tpu.memory_space<vmem>>, vector<4x128xf32>
    %c16_700 = arith.constant 16 : index
    %c768_701 = arith.constant 768 : index
    %438 = vector.load %arg23[%c16_700, %c768_701] : memref<128x1152xf32, #tpu.memory_space<vmem>>, vector<4x128xf32>
    tpu.vector_store %arg23[%c16_700, %c768_701], %437 {strides = array<i32>} : memref<128x1152xf32, #tpu.memory_space<vmem>>, vector<4x128xf32>,
    %c140_702 = arith.constant 140 : index
    %c0_703 = arith.constant 0 : index
    %439 = tpu.strided_load %arg19[%c140_702, %c0_703] {strides = array<i32: 2, 1>} : memref<200x128xf32, #tpu.memory_space<vmem>>, vector<4x128xf32>
    %c20_704 = arith.constant 20 : index
    %c768_705 = arith.constant 768 : index
    %440 = vector.load %arg23[%c20_704, %c768_705] : memref<128x1152xf32, #tpu.memory_space<vmem>>, vector<4x128xf32>
    tpu.vector_store %arg23[%c20_704, %c768_705], %439 {strides = array<i32>} : memref<128x1152xf32, #tpu.memory_space<vmem>>, vector<4x128xf32>,
    %c160_706 = arith.constant 160 : index
    %c0_707 = arith.constant 0 : index
    %441 = tpu.strided_load %arg19[%c160_706, %c0_707] {strides = array<i32: 2, 1>} : memref<200x128xf32, #tpu.memory_space<vmem>>, vector<4x128xf32>
    %c24_708 = arith.constant 24 : index
    %c768_709 = arith.constant 768 : index
    %442 = vector.load %arg23[%c24_708, %c768_709] : memref<128x1152xf32, #tpu.memory_space<vmem>>, vector<4x128xf32>
    tpu.vector_store %arg23[%c24_708, %c768_709], %441 {strides = array<i32>} : memref<128x1152xf32, #tpu.memory_space<vmem>>, vector<4x128xf32>,
    %c180_710 = arith.constant 180 : index
    %c0_711 = arith.constant 0 : index
    %443 = tpu.strided_load %arg19[%c180_710, %c0_711] {strides = array<i32: 2, 1>} : memref<200x128xf32, #tpu.memory_space<vmem>>, vector<4x128xf32>
    %c28_712 = arith.constant 28 : index
    %c768_713 = arith.constant 768 : index
    %444 = vector.load %arg23[%c28_712, %c768_713] : memref<128x1152xf32, #tpu.memory_space<vmem>>, vector<4x128xf32>
    tpu.vector_store %arg23[%c28_712, %c768_713], %443 {strides = array<i32>} : memref<128x1152xf32, #tpu.memory_space<vmem>>, vector<4x128xf32>,
    %c21_714 = arith.constant 21 : index
    %c0_715 = arith.constant 0 : index
    %445 = tpu.strided_load %arg19[%c21_714, %c0_715] {strides = array<i32: 2, 1>} : memref<200x128xf32, #tpu.memory_space<vmem>>, vector<4x128xf32>
    %c0_716 = arith.constant 0 : index
    %c896_717 = arith.constant 896 : index
    %446 = vector.load %arg23[%c0_716, %c896_717] : memref<128x1152xf32, #tpu.memory_space<vmem>>, vector<4x128xf32>
    tpu.vector_store %arg23[%c0_716, %c896_717], %445 {strides = array<i32>} : memref<128x1152xf32, #tpu.memory_space<vmem>>, vector<4x128xf32>,
    %c41_718 = arith.constant 41 : index
    %c0_719 = arith.constant 0 : index
    %447 = tpu.strided_load %arg19[%c41_718, %c0_719] {strides = array<i32: 2, 1>} : memref<200x128xf32, #tpu.memory_space<vmem>>, vector<4x128xf32>
    %c4_720 = arith.constant 4 : index
    %c896_721 = arith.constant 896 : index
    %448 = vector.load %arg23[%c4_720, %c896_721] : memref<128x1152xf32, #tpu.memory_space<vmem>>, vector<4x128xf32>
    tpu.vector_store %arg23[%c4_720, %c896_721], %447 {strides = array<i32>} : memref<128x1152xf32, #tpu.memory_space<vmem>>, vector<4x128xf32>,
    %c61_722 = arith.constant 61 : index
    %c0_723 = arith.constant 0 : index
    %449 = tpu.strided_load %arg19[%c61_722, %c0_723] {strides = array<i32: 2, 1>} : memref<200x128xf32, #tpu.memory_space<vmem>>, vector<4x128xf32>
    %c8_724 = arith.constant 8 : index
    %c896_725 = arith.constant 896 : index
    %450 = vector.load %arg23[%c8_724, %c896_725] : memref<128x1152xf32, #tpu.memory_space<vmem>>, vector<4x128xf32>
    tpu.vector_store %arg23[%c8_724, %c896_725], %449 {strides = array<i32>} : memref<128x1152xf32, #tpu.memory_space<vmem>>, vector<4x128xf32>,
    %c81_726 = arith.constant 81 : index
    %c0_727 = arith.constant 0 : index
    %451 = tpu.strided_load %arg19[%c81_726, %c0_727] {strides = array<i32: 2, 1>} : memref<200x128xf32, #tpu.memory_space<vmem>>, vector<4x128xf32>
    %c12_728 = arith.constant 12 : index
    %c896_729 = arith.constant 896 : index
    %452 = vector.load %arg23[%c12_728, %c896_729] : memref<128x1152xf32, #tpu.memory_space<vmem>>, vector<4x128xf32>
    tpu.vector_store %arg23[%c12_728, %c896_729], %451 {strides = array<i32>} : memref<128x1152xf32, #tpu.memory_space<vmem>>, vector<4x128xf32>,
    %c121_730 = arith.constant 121 : index
    %c0_731 = arith.constant 0 : index
    %453 = tpu.strided_load %arg19[%c121_730, %c0_731] {strides = array<i32: 2, 1>} : memref<200x128xf32, #tpu.memory_space<vmem>>, vector<4x128xf32>
    %c16_732 = arith.constant 16 : index
    %c896_733 = arith.constant 896 : index
    %454 = vector.load %arg23[%c16_732, %c896_733] : memref<128x1152xf32, #tpu.memory_space<vmem>>, vector<4x128xf32>
    tpu.vector_store %arg23[%c16_732, %c896_733], %453 {strides = array<i32>} : memref<128x1152xf32, #tpu.memory_space<vmem>>, vector<4x128xf32>,
    %c141_734 = arith.constant 141 : index
    %c0_735 = arith.constant 0 : index
    %455 = tpu.strided_load %arg19[%c141_734, %c0_735] {strides = array<i32: 2, 1>} : memref<200x128xf32, #tpu.memory_space<vmem>>, vector<4x128xf32>
    %c20_736 = arith.constant 20 : index
    %c896_737 = arith.constant 896 : index
    %456 = vector.load %arg23[%c20_736, %c896_737] : memref<128x1152xf32, #tpu.memory_space<vmem>>, vector<4x128xf32>
    tpu.vector_store %arg23[%c20_736, %c896_737], %455 {strides = array<i32>} : memref<128x1152xf32, #tpu.memory_space<vmem>>, vector<4x128xf32>,
    %c161_738 = arith.constant 161 : index
    %c0_739 = arith.constant 0 : index
    %457 = tpu.strided_load %arg19[%c161_738, %c0_739] {strides = array<i32: 2, 1>} : memref<200x128xf32, #tpu.memory_space<vmem>>, vector<4x128xf32>
    %c24_740 = arith.constant 24 : index
    %c896_741 = arith.constant 896 : index
    %458 = vector.load %arg23[%c24_740, %c896_741] : memref<128x1152xf32, #tpu.memory_space<vmem>>, vector<4x128xf32>
    tpu.vector_store %arg23[%c24_740, %c896_741], %457 {strides = array<i32>} : memref<128x1152xf32, #tpu.memory_space<vmem>>, vector<4x128xf32>,
    %c181_742 = arith.constant 181 : index
    %c0_743 = arith.constant 0 : index
    %459 = tpu.strided_load %arg19[%c181_742, %c0_743] {strides = array<i32: 2, 1>} : memref<200x128xf32, #tpu.memory_space<vmem>>, vector<4x128xf32>
    %c28_744 = arith.constant 28 : index
    %c896_745 = arith.constant 896 : index
    %460 = vector.load %arg23[%c28_744, %c896_745] : memref<128x1152xf32, #tpu.memory_space<vmem>>, vector<4x128xf32>
    tpu.vector_store %arg23[%c28_744, %c896_745], %459 {strides = array<i32>} : memref<128x1152xf32, #tpu.memory_space<vmem>>, vector<4x128xf32>,
    %c22_746 = arith.constant 22 : index
    %c0_747 = arith.constant 0 : index
    %461 = tpu.strided_load %arg19[%c22_746, %c0_747] {strides = array<i32: 2, 1>} : memref<200x128xf32, #tpu.memory_space<vmem>>, vector<4x128xf32>
    %c0_748 = arith.constant 0 : index
    %c1024_749 = arith.constant 1024 : index
    %462 = vector.load %arg23[%c0_748, %c1024_749] : memref<128x1152xf32, #tpu.memory_space<vmem>>, vector<4x128xf32>
    tpu.vector_store %arg23[%c0_748, %c1024_749], %461 {strides = array<i32>} : memref<128x1152xf32, #tpu.memory_space<vmem>>, vector<4x128xf32>,
    %c42_750 = arith.constant 42 : index
    %c0_751 = arith.constant 0 : index
    %463 = tpu.strided_load %arg19[%c42_750, %c0_751] {strides = array<i32: 2, 1>} : memref<200x128xf32, #tpu.memory_space<vmem>>, vector<4x128xf32>
    %c4_752 = arith.constant 4 : index
    %c1024_753 = arith.constant 1024 : index
    %464 = vector.load %arg23[%c4_752, %c1024_753] : memref<128x1152xf32, #tpu.memory_space<vmem>>, vector<4x128xf32>
    tpu.vector_store %arg23[%c4_752, %c1024_753], %463 {strides = array<i32>} : memref<128x1152xf32, #tpu.memory_space<vmem>>, vector<4x128xf32>,
    %c62_754 = arith.constant 62 : index
    %c0_755 = arith.constant 0 : index
    %465 = tpu.strided_load %arg19[%c62_754, %c0_755] {strides = array<i32: 2, 1>} : memref<200x128xf32, #tpu.memory_space<vmem>>, vector<4x128xf32>
    %c8_756 = arith.constant 8 : index
    %c1024_757 = arith.constant 1024 : index
    %466 = vector.load %arg23[%c8_756, %c1024_757] : memref<128x1152xf32, #tpu.memory_space<vmem>>, vector<4x128xf32>
    tpu.vector_store %arg23[%c8_756, %c1024_757], %465 {strides = array<i32>} : memref<128x1152xf32, #tpu.memory_space<vmem>>, vector<4x128xf32>,
    %c82 = arith.constant 82 : index
    %c0_758 = arith.constant 0 : index
    %467 = tpu.strided_load %arg19[%c82, %c0_758] {strides = array<i32: 2, 1>} : memref<200x128xf32, #tpu.memory_space<vmem>>, vector<4x128xf32>
    %c12_759 = arith.constant 12 : index
    %c1024_760 = arith.constant 1024 : index
    %468 = vector.load %arg23[%c12_759, %c1024_760] : memref<128x1152xf32, #tpu.memory_space<vmem>>, vector<4x128xf32>
    tpu.vector_store %arg23[%c12_759, %c1024_760], %467 {strides = array<i32>} : memref<128x1152xf32, #tpu.memory_space<vmem>>, vector<4x128xf32>,
    %c122_761 = arith.constant 122 : index
    %c0_762 = arith.constant 0 : index
    %469 = tpu.strided_load %arg19[%c122_761, %c0_762] {strides = array<i32: 2, 1>} : memref<200x128xf32, #tpu.memory_space<vmem>>, vector<4x128xf32>
    %c16_763 = arith.constant 16 : index
    %c1024_764 = arith.constant 1024 : index
    %470 = vector.load %arg23[%c16_763, %c1024_764] : memref<128x1152xf32, #tpu.memory_space<vmem>>, vector<4x128xf32>
    tpu.vector_store %arg23[%c16_763, %c1024_764], %469 {strides = array<i32>} : memref<128x1152xf32, #tpu.memory_space<vmem>>, vector<4x128xf32>,
    %c142_765 = arith.constant 142 : index
    %c0_766 = arith.constant 0 : index
    %471 = tpu.strided_load %arg19[%c142_765, %c0_766] {strides = array<i32: 2, 1>} : memref<200x128xf32, #tpu.memory_space<vmem>>, vector<4x128xf32>
    %c20_767 = arith.constant 20 : index
    %c1024_768 = arith.constant 1024 : index
    %472 = vector.load %arg23[%c20_767, %c1024_768] : memref<128x1152xf32, #tpu.memory_space<vmem>>, vector<4x128xf32>
    tpu.vector_store %arg23[%c20_767, %c1024_768], %471 {strides = array<i32>} : memref<128x1152xf32, #tpu.memory_space<vmem>>, vector<4x128xf32>,
    %c162_769 = arith.constant 162 : index
    %c0_770 = arith.constant 0 : index
    %473 = tpu.strided_load %arg19[%c162_769, %c0_770] {strides = array<i32: 2, 1>} : memref<200x128xf32, #tpu.memory_space<vmem>>, vector<4x128xf32>
    %c24_771 = arith.constant 24 : index
    %c1024_772 = arith.constant 1024 : index
    %474 = vector.load %arg23[%c24_771, %c1024_772] : memref<128x1152xf32, #tpu.memory_space<vmem>>, vector<4x128xf32>
    tpu.vector_store %arg23[%c24_771, %c1024_772], %473 {strides = array<i32>} : memref<128x1152xf32, #tpu.memory_space<vmem>>, vector<4x128xf32>,
    %c182_773 = arith.constant 182 : index
    %c0_774 = arith.constant 0 : index
    %475 = tpu.strided_load %arg19[%c182_773, %c0_774] {strides = array<i32: 2, 1>} : memref<200x128xf32, #tpu.memory_space<vmem>>, vector<4x128xf32>
    %c28_775 = arith.constant 28 : index
    %c1024_776 = arith.constant 1024 : index
    %476 = vector.load %arg23[%c28_775, %c1024_776] : memref<128x1152xf32, #tpu.memory_space<vmem>>, vector<4x128xf32>
    tpu.vector_store %arg23[%c28_775, %c1024_776], %475 {strides = array<i32>} : memref<128x1152xf32, #tpu.memory_space<vmem>>, vector<4x128xf32>,
    %c0_777 = arith.constant 0 : index
    %c0_778 = arith.constant 0 : index
    %477 = vector.load %arg23[%c0_777, %c0_778] : memref<128x1152xf32, #tpu.memory_space<vmem>>, vector<32x1152xf32>
    %478 = arith.truncf %477 : vector<32x1152xf32> to vector<32x1152xbf16>
    %c0_779 = arith.constant 0 : index
    %c0_780 = arith.constant 0 : index
    %479 = vector.load %arg2[%c0_779, %c0_780] : memref<1152x128xbf16, #tpu.memory_space<vmem>>, vector<1152x128xbf16>
    %cst_781 = arith.constant dense<0.000000e+00> : vector<32x128xf32>
    %480 = tpu.matmul %478, %479, %cst_781 {dimension_numbers = #tpu.dot_dimension_numbers<[1], [0], [0], [1], [0, 0, 1, 1], [], []>} : vector<32x1152xbf16>, vector<1152x128xbf16>, vector<32x128xf32> -> vector<32x128xf32>
    %cst_782 = arith.constant dense<0.000000e+00> : vector<128xf32>
    %481 = vector.multi_reduction <add>, %480, %cst_782 [0] : vector<32x128xf32> to vector<128xf32>
    %482 = vector.shape_cast %481 : vector<128xf32> to vector<1x128xf32>
    %cst_783 = arith.constant 3.125000e-02 : f32
    %483 = vector.broadcast %cst_783 : f32 to vector<1x128xf32>
    %484 = arith.mulf %482, %483 : vector<1x128xf32>
    %485 = vector.broadcast %484 : vector<1x128xf32> to vector<32x128xf32>
    %486 = arith.subf %480, %485 : vector<32x128xf32>
    %487 = arith.mulf %486, %486 : vector<32x128xf32>
    %cst_784 = arith.constant dense<0.000000e+00> : vector<128xf32>
    %488 = vector.multi_reduction <add>, %487, %cst_784 [0] : vector<32x128xf32> to vector<128xf32>
    %489 = vector.shape_cast %488 : vector<128xf32> to vector<1x128xf32>
    %cst_785 = arith.constant 3.125000e-02 : f32
    %490 = vector.broadcast %cst_785 : f32 to vector<1x128xf32>
    %491 = arith.mulf %489, %490 : vector<1x128xf32>
    %cst_786 = arith.constant 0.000000e+00 : f32
    %492 = vector.broadcast %cst_786 : f32 to vector<1x128xf32>
    %493 = arith.maximumf %491, %492 : vector<1x128xf32>
    %cst_787 = arith.constant 9.99999974E-6 : f32
    %494 = vector.broadcast %cst_787 : f32 to vector<1x128xf32>
    %495 = arith.addf %493, %494 : vector<1x128xf32>
    %496 = math.rsqrt %495 : vector<1x128xf32>
    %497 = vector.broadcast %496 : vector<1x128xf32> to vector<32x128xf32>
    %498 = arith.mulf %486, %497 : vector<32x128xf32>
    %c0_788 = arith.constant 0 : index
    %c0_789 = arith.constant 0 : index
    %499 = vector.load %arg7[%c0_788, %c0_789] : memref<1x128xf32, #tpu.memory_space<vmem>>, vector<1x128xf32>
    %500 = vector.broadcast %499 : vector<1x128xf32> to vector<32x128xf32>
    %501 = arith.mulf %498, %500 : vector<32x128xf32>
    %c0_790 = arith.constant 0 : index
    %c0_791 = arith.constant 0 : index
    %502 = vector.load %arg8[%c0_790, %c0_791] : memref<1x128xf32, #tpu.memory_space<vmem>>, vector<1x128xf32>
    %503 = vector.broadcast %502 : vector<1x128xf32> to vector<32x128xf32>
    %504 = arith.addf %501, %503 : vector<32x128xf32>
    %cst_792 = arith.constant 2.000000e-01 : f32
    %505 = vector.broadcast %cst_792 : f32 to vector<32x128xf32>
    %506 = arith.mulf %505, %504 : vector<32x128xf32>
    %507 = arith.maximumf %504, %506 : vector<32x128xf32>
    %c0_793 = arith.constant 0 : index
    %c0_794 = arith.constant 0 : index
    %508 = vector.load %arg15[%c0_793, %c0_794] : memref<32x128xf32, #tpu.memory_space<vmem>>, vector<32x128xf32>
    tpu.vector_store %arg15[%c0_793, %c0_794], %507 {strides = array<i32>} : memref<32x128xf32, #tpu.memory_space<vmem>>, vector<32x128xf32>,
    %cst_795 = arith.constant 0.000000e+00 : f32
    %509 = vector.broadcast %cst_795 : f32 to vector<72x128xf32>
    %c0_796 = arith.constant 0 : index
    %c0_797 = arith.constant 0 : index
    %510 = vector.load %arg20[%c0_796, %c0_797] : memref<72x128xf32, #tpu.memory_space<vmem>>, vector<72x128xf32>
    tpu.vector_store %arg20[%c0_796, %c0_797], %509 {strides = array<i32>} : memref<72x128xf32, #tpu.memory_space<vmem>>, vector<72x128xf32>,
    %c0_798 = arith.constant 0 : index
    %c0_799 = arith.constant 0 : index
    %511 = vector.load %arg15[%c0_798, %c0_799] : memref<32x128xf32, #tpu.memory_space<vmem>>, vector<4x128xf32>
    %c7 = arith.constant 7 : index
    %c0_800 = arith.constant 0 : index
    %512 = vector.load %arg20[%c7, %c0_800] : memref<72x128xf32, #tpu.memory_space<vmem>>, vector<4x128xf32>
    tpu.vector_store %arg20[%c7, %c0_800], %511 {strides = array<i32>} : memref<72x128xf32, #tpu.memory_space<vmem>>, vector<4x128xf32>,
    %c4_801 = arith.constant 4 : index
    %c0_802 = arith.constant 0 : index
    %513 = vector.load %arg15[%c4_801, %c0_802] : memref<32x128xf32, #tpu.memory_space<vmem>>, vector<4x128xf32>
    %c13 = arith.constant 13 : index
    %c0_803 = arith.constant 0 : index
    %514 = vector.load %arg20[%c13, %c0_803] : memref<72x128xf32, #tpu.memory_space<vmem>>, vector<4x128xf32>
    tpu.vector_store %arg20[%c13, %c0_803], %513 {strides = array<i32>} : memref<72x128xf32, #tpu.memory_space<vmem>>, vector<4x128xf32>,
    %c8_804 = arith.constant 8 : index
    %c0_805 = arith.constant 0 : index
    %515 = vector.load %arg15[%c8_804, %c0_805] : memref<32x128xf32, #tpu.memory_space<vmem>>, vector<4x128xf32>
    %c19_806 = arith.constant 19 : index
    %c0_807 = arith.constant 0 : index
    %516 = vector.load %arg20[%c19_806, %c0_807] : memref<72x128xf32, #tpu.memory_space<vmem>>, vector<4x128xf32>
    tpu.vector_store %arg20[%c19_806, %c0_807], %515 {strides = array<i32>} : memref<72x128xf32, #tpu.memory_space<vmem>>, vector<4x128xf32>,
    %c12_808 = arith.constant 12 : index
    %c0_809 = arith.constant 0 : index
    %517 = vector.load %arg15[%c12_808, %c0_809] : memref<32x128xf32, #tpu.memory_space<vmem>>, vector<4x128xf32>
    %c25 = arith.constant 25 : index
    %c0_810 = arith.constant 0 : index
    %518 = vector.load %arg20[%c25, %c0_810] : memref<72x128xf32, #tpu.memory_space<vmem>>, vector<4x128xf32>
    tpu.vector_store %arg20[%c25, %c0_810], %517 {strides = array<i32>} : memref<72x128xf32, #tpu.memory_space<vmem>>, vector<4x128xf32>,
    %c16_811 = arith.constant 16 : index
    %c0_812 = arith.constant 0 : index
    %519 = vector.load %arg15[%c16_811, %c0_812] : memref<32x128xf32, #tpu.memory_space<vmem>>, vector<4x128xf32>
    %c43 = arith.constant 43 : index
    %c0_813 = arith.constant 0 : index
    %520 = vector.load %arg20[%c43, %c0_813] : memref<72x128xf32, #tpu.memory_space<vmem>>, vector<4x128xf32>
    tpu.vector_store %arg20[%c43, %c0_813], %519 {strides = array<i32>} : memref<72x128xf32, #tpu.memory_space<vmem>>, vector<4x128xf32>,
    %c20_814 = arith.constant 20 : index
    %c0_815 = arith.constant 0 : index
    %521 = vector.load %arg15[%c20_814, %c0_815] : memref<32x128xf32, #tpu.memory_space<vmem>>, vector<4x128xf32>
    %c49 = arith.constant 49 : index
    %c0_816 = arith.constant 0 : index
    %522 = vector.load %arg20[%c49, %c0_816] : memref<72x128xf32, #tpu.memory_space<vmem>>, vector<4x128xf32>
    tpu.vector_store %arg20[%c49, %c0_816], %521 {strides = array<i32>} : memref<72x128xf32, #tpu.memory_space<vmem>>, vector<4x128xf32>,
    %c24_817 = arith.constant 24 : index
    %c0_818 = arith.constant 0 : index
    %523 = vector.load %arg15[%c24_817, %c0_818] : memref<32x128xf32, #tpu.memory_space<vmem>>, vector<4x128xf32>
    %c55_819 = arith.constant 55 : index
    %c0_820 = arith.constant 0 : index
    %524 = vector.load %arg20[%c55_819, %c0_820] : memref<72x128xf32, #tpu.memory_space<vmem>>, vector<4x128xf32>
    tpu.vector_store %arg20[%c55_819, %c0_820], %523 {strides = array<i32>} : memref<72x128xf32, #tpu.memory_space<vmem>>, vector<4x128xf32>,
    %c28_821 = arith.constant 28 : index
    %c0_822 = arith.constant 0 : index
    %525 = vector.load %arg15[%c28_821, %c0_822] : memref<32x128xf32, #tpu.memory_space<vmem>>, vector<4x128xf32>
    %c61_823 = arith.constant 61 : index
    %c0_824 = arith.constant 0 : index
    %526 = vector.load %arg20[%c61_823, %c0_824] : memref<72x128xf32, #tpu.memory_space<vmem>>, vector<4x128xf32>
    tpu.vector_store %arg20[%c61_823, %c0_824], %525 {strides = array<i32>} : memref<72x128xf32, #tpu.memory_space<vmem>>, vector<4x128xf32>,
    %c0_825 = arith.constant 0 : index
    %c0_826 = arith.constant 0 : index
    %527 = tpu.strided_load %arg20[%c0_825, %c0_826] {strides = array<i32: 2, 1>} : memref<72x128xf32, #tpu.memory_space<vmem>>, vector<2x128xf32>
    %c0_827 = arith.constant 0 : index
    %c0_828 = arith.constant 0 : index
    %528 = vector.load %arg23[%c0_827, %c0_828] : memref<128x1152xf32, #tpu.memory_space<vmem>>, vector<2x128xf32>
    tpu.vector_store %arg23[%c0_827, %c0_828], %527 {strides = array<i32>} : memref<128x1152xf32, #tpu.memory_space<vmem>>, vector<2x128xf32>,
    %c12_829 = arith.constant 12 : index
    %c0_830 = arith.constant 0 : index
    %529 = tpu.strided_load %arg20[%c12_829, %c0_830] {strides = array<i32: 2, 1>} : memref<72x128xf32, #tpu.memory_space<vmem>>, vector<2x128xf32>
    %c2_831 = arith.constant 2 : index
    %c0_832 = arith.constant 0 : index
    %530 = vector.load %arg23[%c2_831, %c0_832] : memref<128x1152xf32, #tpu.memory_space<vmem>>, vector<2x128xf32>
    tpu.vector_store %arg23[%c2_831, %c0_832], %529 {strides = array<i32>} : memref<128x1152xf32, #tpu.memory_space<vmem>>, vector<2x128xf32>,
    %c36_833 = arith.constant 36 : index
    %c0_834 = arith.constant 0 : index
    %531 = tpu.strided_load %arg20[%c36_833, %c0_834] {strides = array<i32: 2, 1>} : memref<72x128xf32, #tpu.memory_space<vmem>>, vector<2x128xf32>
    %c4_835 = arith.constant 4 : index
    %c0_836 = arith.constant 0 : index
    %532 = vector.load %arg23[%c4_835, %c0_836] : memref<128x1152xf32, #tpu.memory_space<vmem>>, vector<2x128xf32>
    tpu.vector_store %arg23[%c4_835, %c0_836], %531 {strides = array<i32>} : memref<128x1152xf32, #tpu.memory_space<vmem>>, vector<2x128xf32>,
    %c48_837 = arith.constant 48 : index
    %c0_838 = arith.constant 0 : index
    %533 = tpu.strided_load %arg20[%c48_837, %c0_838] {strides = array<i32: 2, 1>} : memref<72x128xf32, #tpu.memory_space<vmem>>, vector<2x128xf32>
    %c6 = arith.constant 6 : index
    %c0_839 = arith.constant 0 : index
    %534 = vector.load %arg23[%c6, %c0_839] : memref<128x1152xf32, #tpu.memory_space<vmem>>, vector<2x128xf32>
    tpu.vector_store %arg23[%c6, %c0_839], %533 {strides = array<i32>} : memref<128x1152xf32, #tpu.memory_space<vmem>>, vector<2x128xf32>,
    %c1_840 = arith.constant 1 : index
    %c0_841 = arith.constant 0 : index
    %535 = tpu.strided_load %arg20[%c1_840, %c0_841] {strides = array<i32: 2, 1>} : memref<72x128xf32, #tpu.memory_space<vmem>>, vector<2x128xf32>
    %c0_842 = arith.constant 0 : index
    %c128_843 = arith.constant 128 : index
    %536 = vector.load %arg23[%c0_842, %c128_843] : memref<128x1152xf32, #tpu.memory_space<vmem>>, vector<2x128xf32>
    tpu.vector_store %arg23[%c0_842, %c128_843], %535 {strides = array<i32>} : memref<128x1152xf32, #tpu.memory_space<vmem>>, vector<2x128xf32>,
    %c13_844 = arith.constant 13 : index
    %c0_845 = arith.constant 0 : index
    %537 = tpu.strided_load %arg20[%c13_844, %c0_845] {strides = array<i32: 2, 1>} : memref<72x128xf32, #tpu.memory_space<vmem>>, vector<2x128xf32>
    %c2_846 = arith.constant 2 : index
    %c128_847 = arith.constant 128 : index
    %538 = vector.load %arg23[%c2_846, %c128_847] : memref<128x1152xf32, #tpu.memory_space<vmem>>, vector<2x128xf32>
    tpu.vector_store %arg23[%c2_846, %c128_847], %537 {strides = array<i32>} : memref<128x1152xf32, #tpu.memory_space<vmem>>, vector<2x128xf32>,
    %c37_848 = arith.constant 37 : index
    %c0_849 = arith.constant 0 : index
    %539 = tpu.strided_load %arg20[%c37_848, %c0_849] {strides = array<i32: 2, 1>} : memref<72x128xf32, #tpu.memory_space<vmem>>, vector<2x128xf32>
    %c4_850 = arith.constant 4 : index
    %c128_851 = arith.constant 128 : index
    %540 = vector.load %arg23[%c4_850, %c128_851] : memref<128x1152xf32, #tpu.memory_space<vmem>>, vector<2x128xf32>
    tpu.vector_store %arg23[%c4_850, %c128_851], %539 {strides = array<i32>} : memref<128x1152xf32, #tpu.memory_space<vmem>>, vector<2x128xf32>,
    %c49_852 = arith.constant 49 : index
    %c0_853 = arith.constant 0 : index
    %541 = tpu.strided_load %arg20[%c49_852, %c0_853] {strides = array<i32: 2, 1>} : memref<72x128xf32, #tpu.memory_space<vmem>>, vector<2x128xf32>
    %c6_854 = arith.constant 6 : index
    %c128_855 = arith.constant 128 : index
    %542 = vector.load %arg23[%c6_854, %c128_855] : memref<128x1152xf32, #tpu.memory_space<vmem>>, vector<2x128xf32>
    tpu.vector_store %arg23[%c6_854, %c128_855], %541 {strides = array<i32>} : memref<128x1152xf32, #tpu.memory_space<vmem>>, vector<2x128xf32>,
    %c2_856 = arith.constant 2 : index
    %c0_857 = arith.constant 0 : index
    %543 = tpu.strided_load %arg20[%c2_856, %c0_857] {strides = array<i32: 2, 1>} : memref<72x128xf32, #tpu.memory_space<vmem>>, vector<2x128xf32>
    %c0_858 = arith.constant 0 : index
    %c256_859 = arith.constant 256 : index
    %544 = vector.load %arg23[%c0_858, %c256_859] : memref<128x1152xf32, #tpu.memory_space<vmem>>, vector<2x128xf32>
    tpu.vector_store %arg23[%c0_858, %c256_859], %543 {strides = array<i32>} : memref<128x1152xf32, #tpu.memory_space<vmem>>, vector<2x128xf32>,
    %c14 = arith.constant 14 : index
    %c0_860 = arith.constant 0 : index
    %545 = tpu.strided_load %arg20[%c14, %c0_860] {strides = array<i32: 2, 1>} : memref<72x128xf32, #tpu.memory_space<vmem>>, vector<2x128xf32>
    %c2_861 = arith.constant 2 : index
    %c256_862 = arith.constant 256 : index
    %546 = vector.load %arg23[%c2_861, %c256_862] : memref<128x1152xf32, #tpu.memory_space<vmem>>, vector<2x128xf32>
    tpu.vector_store %arg23[%c2_861, %c256_862], %545 {strides = array<i32>} : memref<128x1152xf32, #tpu.memory_space<vmem>>, vector<2x128xf32>,
    %c38_863 = arith.constant 38 : index
    %c0_864 = arith.constant 0 : index
    %547 = tpu.strided_load %arg20[%c38_863, %c0_864] {strides = array<i32: 2, 1>} : memref<72x128xf32, #tpu.memory_space<vmem>>, vector<2x128xf32>
    %c4_865 = arith.constant 4 : index
    %c256_866 = arith.constant 256 : index
    %548 = vector.load %arg23[%c4_865, %c256_866] : memref<128x1152xf32, #tpu.memory_space<vmem>>, vector<2x128xf32>
    tpu.vector_store %arg23[%c4_865, %c256_866], %547 {strides = array<i32>} : memref<128x1152xf32, #tpu.memory_space<vmem>>, vector<2x128xf32>,
    %c50_867 = arith.constant 50 : index
    %c0_868 = arith.constant 0 : index
    %549 = tpu.strided_load %arg20[%c50_867, %c0_868] {strides = array<i32: 2, 1>} : memref<72x128xf32, #tpu.memory_space<vmem>>, vector<2x128xf32>
    %c6_869 = arith.constant 6 : index
    %c256_870 = arith.constant 256 : index
    %550 = vector.load %arg23[%c6_869, %c256_870] : memref<128x1152xf32, #tpu.memory_space<vmem>>, vector<2x128xf32>
    tpu.vector_store %arg23[%c6_869, %c256_870], %549 {strides = array<i32>} : memref<128x1152xf32, #tpu.memory_space<vmem>>, vector<2x128xf32>,
    %c6_871 = arith.constant 6 : index
    %c0_872 = arith.constant 0 : index
    %551 = tpu.strided_load %arg20[%c6_871, %c0_872] {strides = array<i32: 2, 1>} : memref<72x128xf32, #tpu.memory_space<vmem>>, vector<2x128xf32>
    %c0_873 = arith.constant 0 : index
    %c384_874 = arith.constant 384 : index
    %552 = vector.load %arg23[%c0_873, %c384_874] : memref<128x1152xf32, #tpu.memory_space<vmem>>, vector<2x128xf32>
    tpu.vector_store %arg23[%c0_873, %c384_874], %551 {strides = array<i32>} : memref<128x1152xf32, #tpu.memory_space<vmem>>, vector<2x128xf32>,
    %c18_875 = arith.constant 18 : index
    %c0_876 = arith.constant 0 : index
    %553 = tpu.strided_load %arg20[%c18_875, %c0_876] {strides = array<i32: 2, 1>} : memref<72x128xf32, #tpu.memory_space<vmem>>, vector<2x128xf32>
    %c2_877 = arith.constant 2 : index
    %c384_878 = arith.constant 384 : index
    %554 = vector.load %arg23[%c2_877, %c384_878] : memref<128x1152xf32, #tpu.memory_space<vmem>>, vector<2x128xf32>
    tpu.vector_store %arg23[%c2_877, %c384_878], %553 {strides = array<i32>} : memref<128x1152xf32, #tpu.memory_space<vmem>>, vector<2x128xf32>,
    %c42_879 = arith.constant 42 : index
    %c0_880 = arith.constant 0 : index
    %555 = tpu.strided_load %arg20[%c42_879, %c0_880] {strides = array<i32: 2, 1>} : memref<72x128xf32, #tpu.memory_space<vmem>>, vector<2x128xf32>
    %c4_881 = arith.constant 4 : index
    %c384_882 = arith.constant 384 : index
    %556 = vector.load %arg23[%c4_881, %c384_882] : memref<128x1152xf32, #tpu.memory_space<vmem>>, vector<2x128xf32>
    tpu.vector_store %arg23[%c4_881, %c384_882], %555 {strides = array<i32>} : memref<128x1152xf32, #tpu.memory_space<vmem>>, vector<2x128xf32>,
    %c54_883 = arith.constant 54 : index
    %c0_884 = arith.constant 0 : index
    %557 = tpu.strided_load %arg20[%c54_883, %c0_884] {strides = array<i32: 2, 1>} : memref<72x128xf32, #tpu.memory_space<vmem>>, vector<2x128xf32>
    %c6_885 = arith.constant 6 : index
    %c384_886 = arith.constant 384 : index
    %558 = vector.load %arg23[%c6_885, %c384_886] : memref<128x1152xf32, #tpu.memory_space<vmem>>, vector<2x128xf32>
    tpu.vector_store %arg23[%c6_885, %c384_886], %557 {strides = array<i32>} : memref<128x1152xf32, #tpu.memory_space<vmem>>, vector<2x128xf32>,
    %c7_887 = arith.constant 7 : index
    %c0_888 = arith.constant 0 : index
    %559 = tpu.strided_load %arg20[%c7_887, %c0_888] {strides = array<i32: 2, 1>} : memref<72x128xf32, #tpu.memory_space<vmem>>, vector<2x128xf32>
    %c0_889 = arith.constant 0 : index
    %c512_890 = arith.constant 512 : index
    %560 = vector.load %arg23[%c0_889, %c512_890] : memref<128x1152xf32, #tpu.memory_space<vmem>>, vector<2x128xf32>
    tpu.vector_store %arg23[%c0_889, %c512_890], %559 {strides = array<i32>} : memref<128x1152xf32, #tpu.memory_space<vmem>>, vector<2x128xf32>,
    %c19_891 = arith.constant 19 : index
    %c0_892 = arith.constant 0 : index
    %561 = tpu.strided_load %arg20[%c19_891, %c0_892] {strides = array<i32: 2, 1>} : memref<72x128xf32, #tpu.memory_space<vmem>>, vector<2x128xf32>
    %c2_893 = arith.constant 2 : index
    %c512_894 = arith.constant 512 : index
    %562 = vector.load %arg23[%c2_893, %c512_894] : memref<128x1152xf32, #tpu.memory_space<vmem>>, vector<2x128xf32>
    tpu.vector_store %arg23[%c2_893, %c512_894], %561 {strides = array<i32>} : memref<128x1152xf32, #tpu.memory_space<vmem>>, vector<2x128xf32>,
    %c43_895 = arith.constant 43 : index
    %c0_896 = arith.constant 0 : index
    %563 = tpu.strided_load %arg20[%c43_895, %c0_896] {strides = array<i32: 2, 1>} : memref<72x128xf32, #tpu.memory_space<vmem>>, vector<2x128xf32>
    %c4_897 = arith.constant 4 : index
    %c512_898 = arith.constant 512 : index
    %564 = vector.load %arg23[%c4_897, %c512_898] : memref<128x1152xf32, #tpu.memory_space<vmem>>, vector<2x128xf32>
    tpu.vector_store %arg23[%c4_897, %c512_898], %563 {strides = array<i32>} : memref<128x1152xf32, #tpu.memory_space<vmem>>, vector<2x128xf32>,
    %c55_899 = arith.constant 55 : index
    %c0_900 = arith.constant 0 : index
    %565 = tpu.strided_load %arg20[%c55_899, %c0_900] {strides = array<i32: 2, 1>} : memref<72x128xf32, #tpu.memory_space<vmem>>, vector<2x128xf32>
    %c6_901 = arith.constant 6 : index
    %c512_902 = arith.constant 512 : index
    %566 = vector.load %arg23[%c6_901, %c512_902] : memref<128x1152xf32, #tpu.memory_space<vmem>>, vector<2x128xf32>
    tpu.vector_store %arg23[%c6_901, %c512_902], %565 {strides = array<i32>} : memref<128x1152xf32, #tpu.memory_space<vmem>>, vector<2x128xf32>,
    %c8_903 = arith.constant 8 : index
    %c0_904 = arith.constant 0 : index
    %567 = tpu.strided_load %arg20[%c8_903, %c0_904] {strides = array<i32: 2, 1>} : memref<72x128xf32, #tpu.memory_space<vmem>>, vector<2x128xf32>
    %c0_905 = arith.constant 0 : index
    %c640_906 = arith.constant 640 : index
    %568 = vector.load %arg23[%c0_905, %c640_906] : memref<128x1152xf32, #tpu.memory_space<vmem>>, vector<2x128xf32>
    tpu.vector_store %arg23[%c0_905, %c640_906], %567 {strides = array<i32>} : memref<128x1152xf32, #tpu.memory_space<vmem>>, vector<2x128xf32>,
    %c20_907 = arith.constant 20 : index
    %c0_908 = arith.constant 0 : index
    %569 = tpu.strided_load %arg20[%c20_907, %c0_908] {strides = array<i32: 2, 1>} : memref<72x128xf32, #tpu.memory_space<vmem>>, vector<2x128xf32>
    %c2_909 = arith.constant 2 : index
    %c640_910 = arith.constant 640 : index
    %570 = vector.load %arg23[%c2_909, %c640_910] : memref<128x1152xf32, #tpu.memory_space<vmem>>, vector<2x128xf32>
    tpu.vector_store %arg23[%c2_909, %c640_910], %569 {strides = array<i32>} : memref<128x1152xf32, #tpu.memory_space<vmem>>, vector<2x128xf32>,
    %c44 = arith.constant 44 : index
    %c0_911 = arith.constant 0 : index
    %571 = tpu.strided_load %arg20[%c44, %c0_911] {strides = array<i32: 2, 1>} : memref<72x128xf32, #tpu.memory_space<vmem>>, vector<2x128xf32>
    %c4_912 = arith.constant 4 : index
    %c640_913 = arith.constant 640 : index
    %572 = vector.load %arg23[%c4_912, %c640_913] : memref<128x1152xf32, #tpu.memory_space<vmem>>, vector<2x128xf32>
    tpu.vector_store %arg23[%c4_912, %c640_913], %571 {strides = array<i32>} : memref<128x1152xf32, #tpu.memory_space<vmem>>, vector<2x128xf32>,
    %c56_914 = arith.constant 56 : index
    %c0_915 = arith.constant 0 : index
    %573 = tpu.strided_load %arg20[%c56_914, %c0_915] {strides = array<i32: 2, 1>} : memref<72x128xf32, #tpu.memory_space<vmem>>, vector<2x128xf32>
    %c6_916 = arith.constant 6 : index
    %c640_917 = arith.constant 640 : index
    %574 = vector.load %arg23[%c6_916, %c640_917] : memref<128x1152xf32, #tpu.memory_space<vmem>>, vector<2x128xf32>
    tpu.vector_store %arg23[%c6_916, %c640_917], %573 {strides = array<i32>} : memref<128x1152xf32, #tpu.memory_space<vmem>>, vector<2x128xf32>,
    %c12_918 = arith.constant 12 : index
    %c0_919 = arith.constant 0 : index
    %575 = tpu.strided_load %arg20[%c12_918, %c0_919] {strides = array<i32: 2, 1>} : memref<72x128xf32, #tpu.memory_space<vmem>>, vector<2x128xf32>
    %c0_920 = arith.constant 0 : index
    %c768_921 = arith.constant 768 : index
    %576 = vector.load %arg23[%c0_920, %c768_921] : memref<128x1152xf32, #tpu.memory_space<vmem>>, vector<2x128xf32>
    tpu.vector_store %arg23[%c0_920, %c768_921], %575 {strides = array<i32>} : memref<128x1152xf32, #tpu.memory_space<vmem>>, vector<2x128xf32>,
    %c24_922 = arith.constant 24 : index
    %c0_923 = arith.constant 0 : index
    %577 = tpu.strided_load %arg20[%c24_922, %c0_923] {strides = array<i32: 2, 1>} : memref<72x128xf32, #tpu.memory_space<vmem>>, vector<2x128xf32>
    %c2_924 = arith.constant 2 : index
    %c768_925 = arith.constant 768 : index
    %578 = vector.load %arg23[%c2_924, %c768_925] : memref<128x1152xf32, #tpu.memory_space<vmem>>, vector<2x128xf32>
    tpu.vector_store %arg23[%c2_924, %c768_925], %577 {strides = array<i32>} : memref<128x1152xf32, #tpu.memory_space<vmem>>, vector<2x128xf32>,
    %c48_926 = arith.constant 48 : index
    %c0_927 = arith.constant 0 : index
    %579 = tpu.strided_load %arg20[%c48_926, %c0_927] {strides = array<i32: 2, 1>} : memref<72x128xf32, #tpu.memory_space<vmem>>, vector<2x128xf32>
    %c4_928 = arith.constant 4 : index
    %c768_929 = arith.constant 768 : index
    %580 = vector.load %arg23[%c4_928, %c768_929] : memref<128x1152xf32, #tpu.memory_space<vmem>>, vector<2x128xf32>
    tpu.vector_store %arg23[%c4_928, %c768_929], %579 {strides = array<i32>} : memref<128x1152xf32, #tpu.memory_space<vmem>>, vector<2x128xf32>,
    %c60_930 = arith.constant 60 : index
    %c0_931 = arith.constant 0 : index
    %581 = tpu.strided_load %arg20[%c60_930, %c0_931] {strides = array<i32: 2, 1>} : memref<72x128xf32, #tpu.memory_space<vmem>>, vector<2x128xf32>
    %c6_932 = arith.constant 6 : index
    %c768_933 = arith.constant 768 : index
    %582 = vector.load %arg23[%c6_932, %c768_933] : memref<128x1152xf32, #tpu.memory_space<vmem>>, vector<2x128xf32>
    tpu.vector_store %arg23[%c6_932, %c768_933], %581 {strides = array<i32>} : memref<128x1152xf32, #tpu.memory_space<vmem>>, vector<2x128xf32>,
    %c13_934 = arith.constant 13 : index
    %c0_935 = arith.constant 0 : index
    %583 = tpu.strided_load %arg20[%c13_934, %c0_935] {strides = array<i32: 2, 1>} : memref<72x128xf32, #tpu.memory_space<vmem>>, vector<2x128xf32>
    %c0_936 = arith.constant 0 : index
    %c896_937 = arith.constant 896 : index
    %584 = vector.load %arg23[%c0_936, %c896_937] : memref<128x1152xf32, #tpu.memory_space<vmem>>, vector<2x128xf32>
    tpu.vector_store %arg23[%c0_936, %c896_937], %583 {strides = array<i32>} : memref<128x1152xf32, #tpu.memory_space<vmem>>, vector<2x128xf32>,
    %c25_938 = arith.constant 25 : index
    %c0_939 = arith.constant 0 : index
    %585 = tpu.strided_load %arg20[%c25_938, %c0_939] {strides = array<i32: 2, 1>} : memref<72x128xf32, #tpu.memory_space<vmem>>, vector<2x128xf32>
    %c2_940 = arith.constant 2 : index
    %c896_941 = arith.constant 896 : index
    %586 = vector.load %arg23[%c2_940, %c896_941] : memref<128x1152xf32, #tpu.memory_space<vmem>>, vector<2x128xf32>
    tpu.vector_store %arg23[%c2_940, %c896_941], %585 {strides = array<i32>} : memref<128x1152xf32, #tpu.memory_space<vmem>>, vector<2x128xf32>,
    %c49_942 = arith.constant 49 : index
    %c0_943 = arith.constant 0 : index
    %587 = tpu.strided_load %arg20[%c49_942, %c0_943] {strides = array<i32: 2, 1>} : memref<72x128xf32, #tpu.memory_space<vmem>>, vector<2x128xf32>
    %c4_944 = arith.constant 4 : index
    %c896_945 = arith.constant 896 : index
    %588 = vector.load %arg23[%c4_944, %c896_945] : memref<128x1152xf32, #tpu.memory_space<vmem>>, vector<2x128xf32>
    tpu.vector_store %arg23[%c4_944, %c896_945], %587 {strides = array<i32>} : memref<128x1152xf32, #tpu.memory_space<vmem>>, vector<2x128xf32>,
    %c61_946 = arith.constant 61 : index
    %c0_947 = arith.constant 0 : index
    %589 = tpu.strided_load %arg20[%c61_946, %c0_947] {strides = array<i32: 2, 1>} : memref<72x128xf32, #tpu.memory_space<vmem>>, vector<2x128xf32>
    %c6_948 = arith.constant 6 : index
    %c896_949 = arith.constant 896 : index
    %590 = vector.load %arg23[%c6_948, %c896_949] : memref<128x1152xf32, #tpu.memory_space<vmem>>, vector<2x128xf32>
    tpu.vector_store %arg23[%c6_948, %c896_949], %589 {strides = array<i32>} : memref<128x1152xf32, #tpu.memory_space<vmem>>, vector<2x128xf32>,
    %c14_950 = arith.constant 14 : index
    %c0_951 = arith.constant 0 : index
    %591 = tpu.strided_load %arg20[%c14_950, %c0_951] {strides = array<i32: 2, 1>} : memref<72x128xf32, #tpu.memory_space<vmem>>, vector<2x128xf32>
    %c0_952 = arith.constant 0 : index
    %c1024_953 = arith.constant 1024 : index
    %592 = vector.load %arg23[%c0_952, %c1024_953] : memref<128x1152xf32, #tpu.memory_space<vmem>>, vector<2x128xf32>
    tpu.vector_store %arg23[%c0_952, %c1024_953], %591 {strides = array<i32>} : memref<128x1152xf32, #tpu.memory_space<vmem>>, vector<2x128xf32>,
    %c26 = arith.constant 26 : index
    %c0_954 = arith.constant 0 : index
    %593 = tpu.strided_load %arg20[%c26, %c0_954] {strides = array<i32: 2, 1>} : memref<72x128xf32, #tpu.memory_space<vmem>>, vector<2x128xf32>
    %c2_955 = arith.constant 2 : index
    %c1024_956 = arith.constant 1024 : index
    %594 = vector.load %arg23[%c2_955, %c1024_956] : memref<128x1152xf32, #tpu.memory_space<vmem>>, vector<2x128xf32>
    tpu.vector_store %arg23[%c2_955, %c1024_956], %593 {strides = array<i32>} : memref<128x1152xf32, #tpu.memory_space<vmem>>, vector<2x128xf32>,
    %c50_957 = arith.constant 50 : index
    %c0_958 = arith.constant 0 : index
    %595 = tpu.strided_load %arg20[%c50_957, %c0_958] {strides = array<i32: 2, 1>} : memref<72x128xf32, #tpu.memory_space<vmem>>, vector<2x128xf32>
    %c4_959 = arith.constant 4 : index
    %c1024_960 = arith.constant 1024 : index
    %596 = vector.load %arg23[%c4_959, %c1024_960] : memref<128x1152xf32, #tpu.memory_space<vmem>>, vector<2x128xf32>
    tpu.vector_store %arg23[%c4_959, %c1024_960], %595 {strides = array<i32>} : memref<128x1152xf32, #tpu.memory_space<vmem>>, vector<2x128xf32>,
    %c62_961 = arith.constant 62 : index
    %c0_962 = arith.constant 0 : index
    %597 = tpu.strided_load %arg20[%c62_961, %c0_962] {strides = array<i32: 2, 1>} : memref<72x128xf32, #tpu.memory_space<vmem>>, vector<2x128xf32>
    %c6_963 = arith.constant 6 : index
    %c1024_964 = arith.constant 1024 : index
    %598 = vector.load %arg23[%c6_963, %c1024_964] : memref<128x1152xf32, #tpu.memory_space<vmem>>, vector<2x128xf32>
    tpu.vector_store %arg23[%c6_963, %c1024_964], %597 {strides = array<i32>} : memref<128x1152xf32, #tpu.memory_space<vmem>>, vector<2x128xf32>,
    %c0_965 = arith.constant 0 : index
    %c0_966 = arith.constant 0 : index
    %599 = vector.load %arg23[%c0_965, %c0_966] : memref<128x1152xf32, #tpu.memory_space<vmem>>, vector<8x1152xf32>
    %600 = arith.truncf %599 : vector<8x1152xf32> to vector<8x1152xbf16>
    %c0_967 = arith.constant 0 : index
    %c0_968 = arith.constant 0 : index
    %601 = vector.load %arg3[%c0_967, %c0_968] : memref<1152x128xbf16, #tpu.memory_space<vmem>>, vector<1152x128xbf16>
    %cst_969 = arith.constant dense<0.000000e+00> : vector<8x128xf32>
    %602 = tpu.matmul %600, %601, %cst_969 {dimension_numbers = #tpu.dot_dimension_numbers<[1], [0], [0], [1], [0, 0, 1, 1], [], []>} : vector<8x1152xbf16>, vector<1152x128xbf16>, vector<8x128xf32> -> vector<8x128xf32>
    %cst_970 = arith.constant dense<0.000000e+00> : vector<128xf32>
    %603 = vector.multi_reduction <add>, %602, %cst_970 [0] : vector<8x128xf32> to vector<128xf32>
    %604 = vector.shape_cast %603 : vector<128xf32> to vector<1x128xf32>
    %cst_971 = arith.constant 1.250000e-01 : f32
    %605 = vector.broadcast %cst_971 : f32 to vector<1x128xf32>
    %606 = arith.mulf %604, %605 : vector<1x128xf32>
    %607 = vector.broadcast %606 : vector<1x128xf32> to vector<8x128xf32>
    %608 = arith.subf %602, %607 : vector<8x128xf32>
    %609 = arith.mulf %608, %608 : vector<8x128xf32>
    %cst_972 = arith.constant dense<0.000000e+00> : vector<128xf32>
    %610 = vector.multi_reduction <add>, %609, %cst_972 [0] : vector<8x128xf32> to vector<128xf32>
    %611 = vector.shape_cast %610 : vector<128xf32> to vector<1x128xf32>
    %cst_973 = arith.constant 1.250000e-01 : f32
    %612 = vector.broadcast %cst_973 : f32 to vector<1x128xf32>
    %613 = arith.mulf %611, %612 : vector<1x128xf32>
    %cst_974 = arith.constant 0.000000e+00 : f32
    %614 = vector.broadcast %cst_974 : f32 to vector<1x128xf32>
    %615 = arith.maximumf %613, %614 : vector<1x128xf32>
    %cst_975 = arith.constant 9.99999974E-6 : f32
    %616 = vector.broadcast %cst_975 : f32 to vector<1x128xf32>
    %617 = arith.addf %615, %616 : vector<1x128xf32>
    %618 = math.rsqrt %617 : vector<1x128xf32>
    %619 = vector.broadcast %618 : vector<1x128xf32> to vector<8x128xf32>
    %620 = arith.mulf %608, %619 : vector<8x128xf32>
    %c0_976 = arith.constant 0 : index
    %c0_977 = arith.constant 0 : index
    %621 = vector.load %arg9[%c0_976, %c0_977] : memref<1x128xf32, #tpu.memory_space<vmem>>, vector<1x128xf32>
    %622 = vector.broadcast %621 : vector<1x128xf32> to vector<8x128xf32>
    %623 = arith.mulf %620, %622 : vector<8x128xf32>
    %c0_978 = arith.constant 0 : index
    %c0_979 = arith.constant 0 : index
    %624 = vector.load %arg10[%c0_978, %c0_979] : memref<1x128xf32, #tpu.memory_space<vmem>>, vector<1x128xf32>
    %625 = vector.broadcast %624 : vector<1x128xf32> to vector<8x128xf32>
    %626 = arith.addf %623, %625 : vector<8x128xf32>
    %cst_980 = arith.constant 2.000000e-01 : f32
    %627 = vector.broadcast %cst_980 : f32 to vector<8x128xf32>
    %628 = arith.mulf %627, %626 : vector<8x128xf32>
    %629 = arith.maximumf %626, %628 : vector<8x128xf32>
    %c0_981 = arith.constant 0 : index
    %c0_982 = arith.constant 0 : index
    %630 = vector.load %arg16[%c0_981, %c0_982] : memref<8x128xf32, #tpu.memory_space<vmem>>, vector<8x128xf32>
    tpu.vector_store %arg16[%c0_981, %c0_982], %629 {strides = array<i32>} : memref<8x128xf32, #tpu.memory_space<vmem>>, vector<8x128xf32>,
    %cst_983 = arith.constant 0.000000e+00 : f32
    %631 = vector.broadcast %cst_983 : f32 to vector<32x128xf32>
    %c0_984 = arith.constant 0 : index
    %c0_985 = arith.constant 0 : index
    %632 = vector.load %arg21[%c0_984, %c0_985] : memref<32x128xf32, #tpu.memory_space<vmem>>, vector<32x128xf32>
    tpu.vector_store %arg21[%c0_984, %c0_985], %631 {strides = array<i32>} : memref<32x128xf32, #tpu.memory_space<vmem>>, vector<32x128xf32>,
    %c0_986 = arith.constant 0 : index
    %c0_987 = arith.constant 0 : index
    %633 = vector.load %arg16[%c0_986, %c0_987] : memref<8x128xf32, #tpu.memory_space<vmem>>, vector<2x128xf32>
    %c5 = arith.constant 5 : index
    %c0_988 = arith.constant 0 : index
    %634 = vector.load %arg21[%c5, %c0_988] : memref<32x128xf32, #tpu.memory_space<vmem>>, vector<2x128xf32>
    tpu.vector_store %arg21[%c5, %c0_988], %633 {strides = array<i32>} : memref<32x128xf32, #tpu.memory_space<vmem>>, vector<2x128xf32>,
    %c2_989 = arith.constant 2 : index
    %c0_990 = arith.constant 0 : index
    %635 = vector.load %arg16[%c2_989, %c0_990] : memref<8x128xf32, #tpu.memory_space<vmem>>, vector<2x128xf32>
    %c9 = arith.constant 9 : index
    %c0_991 = arith.constant 0 : index
    %636 = vector.load %arg21[%c9, %c0_991] : memref<32x128xf32, #tpu.memory_space<vmem>>, vector<2x128xf32>
    tpu.vector_store %arg21[%c9, %c0_991], %635 {strides = array<i32>} : memref<32x128xf32, #tpu.memory_space<vmem>>, vector<2x128xf32>,
    %c4_992 = arith.constant 4 : index
    %c0_993 = arith.constant 0 : index
    %637 = vector.load %arg16[%c4_992, %c0_993] : memref<8x128xf32, #tpu.memory_space<vmem>>, vector<2x128xf32>
    %c21_994 = arith.constant 21 : index
    %c0_995 = arith.constant 0 : index
    %638 = vector.load %arg21[%c21_994, %c0_995] : memref<32x128xf32, #tpu.memory_space<vmem>>, vector<2x128xf32>
    tpu.vector_store %arg21[%c21_994, %c0_995], %637 {strides = array<i32>} : memref<32x128xf32, #tpu.memory_space<vmem>>, vector<2x128xf32>,
    %c6_996 = arith.constant 6 : index
    %c0_997 = arith.constant 0 : index
    %639 = vector.load %arg16[%c6_996, %c0_997] : memref<8x128xf32, #tpu.memory_space<vmem>>, vector<2x128xf32>
    %c25_998 = arith.constant 25 : index
    %c0_999 = arith.constant 0 : index
    %640 = vector.load %arg21[%c25_998, %c0_999] : memref<32x128xf32, #tpu.memory_space<vmem>>, vector<2x128xf32>
    tpu.vector_store %arg21[%c25_998, %c0_999], %639 {strides = array<i32>} : memref<32x128xf32, #tpu.memory_space<vmem>>, vector<2x128xf32>,
    %c0_1000 = arith.constant 0 : index
    %c0_1001 = arith.constant 0 : index
    %641 = vector.load %arg21[%c0_1000, %c0_1001] : memref<32x128xf32, #tpu.memory_space<vmem>>, vector<2x128xf32>
    %c0_1002 = arith.constant 0 : index
    %c0_1003 = arith.constant 0 : index
    %642 = vector.load %arg23[%c0_1002, %c0_1003] : memref<128x1152xf32, #tpu.memory_space<vmem>>, vector<2x128xf32>
    tpu.vector_store %arg23[%c0_1002, %c0_1003], %641 {strides = array<i32>} : memref<128x1152xf32, #tpu.memory_space<vmem>>, vector<2x128xf32>,
    %c4_1004 = arith.constant 4 : index
    %c0_1005 = arith.constant 0 : index
    %643 = vector.load %arg21[%c4_1004, %c0_1005] : memref<32x128xf32, #tpu.memory_space<vmem>>, vector<2x128xf32>
    %c2_1006 = arith.constant 2 : index
    %c0_1007 = arith.constant 0 : index
    %644 = vector.load %arg23[%c2_1006, %c0_1007] : memref<128x1152xf32, #tpu.memory_space<vmem>>, vector<2x128xf32>
    tpu.vector_store %arg23[%c2_1006, %c0_1007], %643 {strides = array<i32>} : memref<128x1152xf32, #tpu.memory_space<vmem>>, vector<2x128xf32>,
    %c16_1008 = arith.constant 16 : index
    %c0_1009 = arith.constant 0 : index
    %645 = vector.load %arg21[%c16_1008, %c0_1009] : memref<32x128xf32, #tpu.memory_space<vmem>>, vector<2x128xf32>
    %c4_1010 = arith.constant 4 : index
    %c0_1011 = arith.constant 0 : index
    %646 = vector.load %arg23[%c4_1010, %c0_1011] : memref<128x1152xf32, #tpu.memory_space<vmem>>, vector<2x128xf32>
    tpu.vector_store %arg23[%c4_1010, %c0_1011], %645 {strides = array<i32>} : memref<128x1152xf32, #tpu.memory_space<vmem>>, vector<2x128xf32>,
    %c20_1012 = arith.constant 20 : index
    %c0_1013 = arith.constant 0 : index
    %647 = vector.load %arg21[%c20_1012, %c0_1013] : memref<32x128xf32, #tpu.memory_space<vmem>>, vector<2x128xf32>
    %c6_1014 = arith.constant 6 : index
    %c0_1015 = arith.constant 0 : index
    %648 = vector.load %arg23[%c6_1014, %c0_1015] : memref<128x1152xf32, #tpu.memory_space<vmem>>, vector<2x128xf32>
    tpu.vector_store %arg23[%c6_1014, %c0_1015], %647 {strides = array<i32>} : memref<128x1152xf32, #tpu.memory_space<vmem>>, vector<2x128xf32>,
    %c1_1016 = arith.constant 1 : index
    %c0_1017 = arith.constant 0 : index
    %649 = vector.load %arg21[%c1_1016, %c0_1017] : memref<32x128xf32, #tpu.memory_space<vmem>>, vector<2x128xf32>
    %c0_1018 = arith.constant 0 : index
    %c128_1019 = arith.constant 128 : index
    %650 = vector.load %arg23[%c0_1018, %c128_1019] : memref<128x1152xf32, #tpu.memory_space<vmem>>, vector<2x128xf32>
    tpu.vector_store %arg23[%c0_1018, %c128_1019], %649 {strides = array<i32>} : memref<128x1152xf32, #tpu.memory_space<vmem>>, vector<2x128xf32>,
    %c5_1020 = arith.constant 5 : index
    %c0_1021 = arith.constant 0 : index
    %651 = vector.load %arg21[%c5_1020, %c0_1021] : memref<32x128xf32, #tpu.memory_space<vmem>>, vector<2x128xf32>
    %c2_1022 = arith.constant 2 : index
    %c128_1023 = arith.constant 128 : index
    %652 = vector.load %arg23[%c2_1022, %c128_1023] : memref<128x1152xf32, #tpu.memory_space<vmem>>, vector<2x128xf32>
    tpu.vector_store %arg23[%c2_1022, %c128_1023], %651 {strides = array<i32>} : memref<128x1152xf32, #tpu.memory_space<vmem>>, vector<2x128xf32>,
    %c17 = arith.constant 17 : index
    %c0_1024 = arith.constant 0 : index
    %653 = vector.load %arg21[%c17, %c0_1024] : memref<32x128xf32, #tpu.memory_space<vmem>>, vector<2x128xf32>
    %c4_1025 = arith.constant 4 : index
    %c128_1026 = arith.constant 128 : index
    %654 = vector.load %arg23[%c4_1025, %c128_1026] : memref<128x1152xf32, #tpu.memory_space<vmem>>, vector<2x128xf32>
    tpu.vector_store %arg23[%c4_1025, %c128_1026], %653 {strides = array<i32>} : memref<128x1152xf32, #tpu.memory_space<vmem>>, vector<2x128xf32>,
    %c21_1027 = arith.constant 21 : index
    %c0_1028 = arith.constant 0 : index
    %655 = vector.load %arg21[%c21_1027, %c0_1028] : memref<32x128xf32, #tpu.memory_space<vmem>>, vector<2x128xf32>
    %c6_1029 = arith.constant 6 : index
    %c128_1030 = arith.constant 128 : index
    %656 = vector.load %arg23[%c6_1029, %c128_1030] : memref<128x1152xf32, #tpu.memory_space<vmem>>, vector<2x128xf32>
    tpu.vector_store %arg23[%c6_1029, %c128_1030], %655 {strides = array<i32>} : memref<128x1152xf32, #tpu.memory_space<vmem>>, vector<2x128xf32>,
    %c2_1031 = arith.constant 2 : index
    %c0_1032 = arith.constant 0 : index
    %657 = vector.load %arg21[%c2_1031, %c0_1032] : memref<32x128xf32, #tpu.memory_space<vmem>>, vector<2x128xf32>
    %c0_1033 = arith.constant 0 : index
    %c256_1034 = arith.constant 256 : index
    %658 = vector.load %arg23[%c0_1033, %c256_1034] : memref<128x1152xf32, #tpu.memory_space<vmem>>, vector<2x128xf32>
    tpu.vector_store %arg23[%c0_1033, %c256_1034], %657 {strides = array<i32>} : memref<128x1152xf32, #tpu.memory_space<vmem>>, vector<2x128xf32>,
    %c6_1035 = arith.constant 6 : index
    %c0_1036 = arith.constant 0 : index
    %659 = vector.load %arg21[%c6_1035, %c0_1036] : memref<32x128xf32, #tpu.memory_space<vmem>>, vector<2x128xf32>
    %c2_1037 = arith.constant 2 : index
    %c256_1038 = arith.constant 256 : index
    %660 = vector.load %arg23[%c2_1037, %c256_1038] : memref<128x1152xf32, #tpu.memory_space<vmem>>, vector<2x128xf32>
    tpu.vector_store %arg23[%c2_1037, %c256_1038], %659 {strides = array<i32>} : memref<128x1152xf32, #tpu.memory_space<vmem>>, vector<2x128xf32>,
    %c18_1039 = arith.constant 18 : index
    %c0_1040 = arith.constant 0 : index
    %661 = vector.load %arg21[%c18_1039, %c0_1040] : memref<32x128xf32, #tpu.memory_space<vmem>>, vector<2x128xf32>
    %c4_1041 = arith.constant 4 : index
    %c256_1042 = arith.constant 256 : index
    %662 = vector.load %arg23[%c4_1041, %c256_1042] : memref<128x1152xf32, #tpu.memory_space<vmem>>, vector<2x128xf32>
    tpu.vector_store %arg23[%c4_1041, %c256_1042], %661 {strides = array<i32>} : memref<128x1152xf32, #tpu.memory_space<vmem>>, vector<2x128xf32>,
    %c22_1043 = arith.constant 22 : index
    %c0_1044 = arith.constant 0 : index
    %663 = vector.load %arg21[%c22_1043, %c0_1044] : memref<32x128xf32, #tpu.memory_space<vmem>>, vector<2x128xf32>
    %c6_1045 = arith.constant 6 : index
    %c256_1046 = arith.constant 256 : index
    %664 = vector.load %arg23[%c6_1045, %c256_1046] : memref<128x1152xf32, #tpu.memory_space<vmem>>, vector<2x128xf32>
    tpu.vector_store %arg23[%c6_1045, %c256_1046], %663 {strides = array<i32>} : memref<128x1152xf32, #tpu.memory_space<vmem>>, vector<2x128xf32>,
    %c4_1047 = arith.constant 4 : index
    %c0_1048 = arith.constant 0 : index
    %665 = vector.load %arg21[%c4_1047, %c0_1048] : memref<32x128xf32, #tpu.memory_space<vmem>>, vector<2x128xf32>
    %c0_1049 = arith.constant 0 : index
    %c384_1050 = arith.constant 384 : index
    %666 = vector.load %arg23[%c0_1049, %c384_1050] : memref<128x1152xf32, #tpu.memory_space<vmem>>, vector<2x128xf32>
    tpu.vector_store %arg23[%c0_1049, %c384_1050], %665 {strides = array<i32>} : memref<128x1152xf32, #tpu.memory_space<vmem>>, vector<2x128xf32>,
    %c8_1051 = arith.constant 8 : index
    %c0_1052 = arith.constant 0 : index
    %667 = vector.load %arg21[%c8_1051, %c0_1052] : memref<32x128xf32, #tpu.memory_space<vmem>>, vector<2x128xf32>
    %c2_1053 = arith.constant 2 : index
    %c384_1054 = arith.constant 384 : index
    %668 = vector.load %arg23[%c2_1053, %c384_1054] : memref<128x1152xf32, #tpu.memory_space<vmem>>, vector<2x128xf32>
    tpu.vector_store %arg23[%c2_1053, %c384_1054], %667 {strides = array<i32>} : memref<128x1152xf32, #tpu.memory_space<vmem>>, vector<2x128xf32>,
    %c20_1055 = arith.constant 20 : index
    %c0_1056 = arith.constant 0 : index
    %669 = vector.load %arg21[%c20_1055, %c0_1056] : memref<32x128xf32, #tpu.memory_space<vmem>>, vector<2x128xf32>
    %c4_1057 = arith.constant 4 : index
    %c384_1058 = arith.constant 384 : index
    %670 = vector.load %arg23[%c4_1057, %c384_1058] : memref<128x1152xf32, #tpu.memory_space<vmem>>, vector<2x128xf32>
    tpu.vector_store %arg23[%c4_1057, %c384_1058], %669 {strides = array<i32>} : memref<128x1152xf32, #tpu.memory_space<vmem>>, vector<2x128xf32>,
    %c24_1059 = arith.constant 24 : index
    %c0_1060 = arith.constant 0 : index
    %671 = vector.load %arg21[%c24_1059, %c0_1060] : memref<32x128xf32, #tpu.memory_space<vmem>>, vector<2x128xf32>
    %c6_1061 = arith.constant 6 : index
    %c384_1062 = arith.constant 384 : index
    %672 = vector.load %arg23[%c6_1061, %c384_1062] : memref<128x1152xf32, #tpu.memory_space<vmem>>, vector<2x128xf32>
    tpu.vector_store %arg23[%c6_1061, %c384_1062], %671 {strides = array<i32>} : memref<128x1152xf32, #tpu.memory_space<vmem>>, vector<2x128xf32>,
    %c5_1063 = arith.constant 5 : index
    %c0_1064 = arith.constant 0 : index
    %673 = vector.load %arg21[%c5_1063, %c0_1064] : memref<32x128xf32, #tpu.memory_space<vmem>>, vector<2x128xf32>
    %c0_1065 = arith.constant 0 : index
    %c512_1066 = arith.constant 512 : index
    %674 = vector.load %arg23[%c0_1065, %c512_1066] : memref<128x1152xf32, #tpu.memory_space<vmem>>, vector<2x128xf32>
    tpu.vector_store %arg23[%c0_1065, %c512_1066], %673 {strides = array<i32>} : memref<128x1152xf32, #tpu.memory_space<vmem>>, vector<2x128xf32>,
    %c9_1067 = arith.constant 9 : index
    %c0_1068 = arith.constant 0 : index
    %675 = vector.load %arg21[%c9_1067, %c0_1068] : memref<32x128xf32, #tpu.memory_space<vmem>>, vector<2x128xf32>
    %c2_1069 = arith.constant 2 : index
    %c512_1070 = arith.constant 512 : index
    %676 = vector.load %arg23[%c2_1069, %c512_1070] : memref<128x1152xf32, #tpu.memory_space<vmem>>, vector<2x128xf32>
    tpu.vector_store %arg23[%c2_1069, %c512_1070], %675 {strides = array<i32>} : memref<128x1152xf32, #tpu.memory_space<vmem>>, vector<2x128xf32>,
    %c21_1071 = arith.constant 21 : index
    %c0_1072 = arith.constant 0 : index
    %677 = vector.load %arg21[%c21_1071, %c0_1072] : memref<32x128xf32, #tpu.memory_space<vmem>>, vector<2x128xf32>
    %c4_1073 = arith.constant 4 : index
    %c512_1074 = arith.constant 512 : index
    %678 = vector.load %arg23[%c4_1073, %c512_1074] : memref<128x1152xf32, #tpu.memory_space<vmem>>, vector<2x128xf32>
    tpu.vector_store %arg23[%c4_1073, %c512_1074], %677 {strides = array<i32>} : memref<128x1152xf32, #tpu.memory_space<vmem>>, vector<2x128xf32>,
    %c25_1075 = arith.constant 25 : index
    %c0_1076 = arith.constant 0 : index
    %679 = vector.load %arg21[%c25_1075, %c0_1076] : memref<32x128xf32, #tpu.memory_space<vmem>>, vector<2x128xf32>
    %c6_1077 = arith.constant 6 : index
    %c512_1078 = arith.constant 512 : index
    %680 = vector.load %arg23[%c6_1077, %c512_1078] : memref<128x1152xf32, #tpu.memory_space<vmem>>, vector<2x128xf32>
    tpu.vector_store %arg23[%c6_1077, %c512_1078], %679 {strides = array<i32>} : memref<128x1152xf32, #tpu.memory_space<vmem>>, vector<2x128xf32>,
    %c6_1079 = arith.constant 6 : index
    %c0_1080 = arith.constant 0 : index
    %681 = vector.load %arg21[%c6_1079, %c0_1080] : memref<32x128xf32, #tpu.memory_space<vmem>>, vector<2x128xf32>
    %c0_1081 = arith.constant 0 : index
    %c640_1082 = arith.constant 640 : index
    %682 = vector.load %arg23[%c0_1081, %c640_1082] : memref<128x1152xf32, #tpu.memory_space<vmem>>, vector<2x128xf32>
    tpu.vector_store %arg23[%c0_1081, %c640_1082], %681 {strides = array<i32>} : memref<128x1152xf32, #tpu.memory_space<vmem>>, vector<2x128xf32>,
    %c10_1083 = arith.constant 10 : index
    %c0_1084 = arith.constant 0 : index
    %683 = vector.load %arg21[%c10_1083, %c0_1084] : memref<32x128xf32, #tpu.memory_space<vmem>>, vector<2x128xf32>
    %c2_1085 = arith.constant 2 : index
    %c640_1086 = arith.constant 640 : index
    %684 = vector.load %arg23[%c2_1085, %c640_1086] : memref<128x1152xf32, #tpu.memory_space<vmem>>, vector<2x128xf32>
    tpu.vector_store %arg23[%c2_1085, %c640_1086], %683 {strides = array<i32>} : memref<128x1152xf32, #tpu.memory_space<vmem>>, vector<2x128xf32>,
    %c22_1087 = arith.constant 22 : index
    %c0_1088 = arith.constant 0 : index
    %685 = vector.load %arg21[%c22_1087, %c0_1088] : memref<32x128xf32, #tpu.memory_space<vmem>>, vector<2x128xf32>
    %c4_1089 = arith.constant 4 : index
    %c640_1090 = arith.constant 640 : index
    %686 = vector.load %arg23[%c4_1089, %c640_1090] : memref<128x1152xf32, #tpu.memory_space<vmem>>, vector<2x128xf32>
    tpu.vector_store %arg23[%c4_1089, %c640_1090], %685 {strides = array<i32>} : memref<128x1152xf32, #tpu.memory_space<vmem>>, vector<2x128xf32>,
    %c26_1091 = arith.constant 26 : index
    %c0_1092 = arith.constant 0 : index
    %687 = vector.load %arg21[%c26_1091, %c0_1092] : memref<32x128xf32, #tpu.memory_space<vmem>>, vector<2x128xf32>
    %c6_1093 = arith.constant 6 : index
    %c640_1094 = arith.constant 640 : index
    %688 = vector.load %arg23[%c6_1093, %c640_1094] : memref<128x1152xf32, #tpu.memory_space<vmem>>, vector<2x128xf32>
    tpu.vector_store %arg23[%c6_1093, %c640_1094], %687 {strides = array<i32>} : memref<128x1152xf32, #tpu.memory_space<vmem>>, vector<2x128xf32>,
    %c8_1095 = arith.constant 8 : index
    %c0_1096 = arith.constant 0 : index
    %689 = vector.load %arg21[%c8_1095, %c0_1096] : memref<32x128xf32, #tpu.memory_space<vmem>>, vector<2x128xf32>
    %c0_1097 = arith.constant 0 : index
    %c768_1098 = arith.constant 768 : index
    %690 = vector.load %arg23[%c0_1097, %c768_1098] : memref<128x1152xf32, #tpu.memory_space<vmem>>, vector<2x128xf32>
    tpu.vector_store %arg23[%c0_1097, %c768_1098], %689 {strides = array<i32>} : memref<128x1152xf32, #tpu.memory_space<vmem>>, vector<2x128xf32>,
    %c12_1099 = arith.constant 12 : index
    %c0_1100 = arith.constant 0 : index
    %691 = vector.load %arg21[%c12_1099, %c0_1100] : memref<32x128xf32, #tpu.memory_space<vmem>>, vector<2x128xf32>
    %c2_1101 = arith.constant 2 : index
    %c768_1102 = arith.constant 768 : index
    %692 = vector.load %arg23[%c2_1101, %c768_1102] : memref<128x1152xf32, #tpu.memory_space<vmem>>, vector<2x128xf32>
    tpu.vector_store %arg23[%c2_1101, %c768_1102], %691 {strides = array<i32>} : memref<128x1152xf32, #tpu.memory_space<vmem>>, vector<2x128xf32>,
    %c24_1103 = arith.constant 24 : index
    %c0_1104 = arith.constant 0 : index
    %693 = vector.load %arg21[%c24_1103, %c0_1104] : memref<32x128xf32, #tpu.memory_space<vmem>>, vector<2x128xf32>
    %c4_1105 = arith.constant 4 : index
    %c768_1106 = arith.constant 768 : index
    %694 = vector.load %arg23[%c4_1105, %c768_1106] : memref<128x1152xf32, #tpu.memory_space<vmem>>, vector<2x128xf32>
    tpu.vector_store %arg23[%c4_1105, %c768_1106], %693 {strides = array<i32>} : memref<128x1152xf32, #tpu.memory_space<vmem>>, vector<2x128xf32>,
    %c28_1107 = arith.constant 28 : index
    %c0_1108 = arith.constant 0 : index
    %695 = vector.load %arg21[%c28_1107, %c0_1108] : memref<32x128xf32, #tpu.memory_space<vmem>>, vector<2x128xf32>
    %c6_1109 = arith.constant 6 : index
    %c768_1110 = arith.constant 768 : index
    %696 = vector.load %arg23[%c6_1109, %c768_1110] : memref<128x1152xf32, #tpu.memory_space<vmem>>, vector<2x128xf32>
    tpu.vector_store %arg23[%c6_1109, %c768_1110], %695 {strides = array<i32>} : memref<128x1152xf32, #tpu.memory_space<vmem>>, vector<2x128xf32>,
    %c9_1111 = arith.constant 9 : index
    %c0_1112 = arith.constant 0 : index
    %697 = vector.load %arg21[%c9_1111, %c0_1112] : memref<32x128xf32, #tpu.memory_space<vmem>>, vector<2x128xf32>
    %c0_1113 = arith.constant 0 : index
    %c896_1114 = arith.constant 896 : index
    %698 = vector.load %arg23[%c0_1113, %c896_1114] : memref<128x1152xf32, #tpu.memory_space<vmem>>, vector<2x128xf32>
    tpu.vector_store %arg23[%c0_1113, %c896_1114], %697 {strides = array<i32>} : memref<128x1152xf32, #tpu.memory_space<vmem>>, vector<2x128xf32>,
    %c13_1115 = arith.constant 13 : index
    %c0_1116 = arith.constant 0 : index
    %699 = vector.load %arg21[%c13_1115, %c0_1116] : memref<32x128xf32, #tpu.memory_space<vmem>>, vector<2x128xf32>
    %c2_1117 = arith.constant 2 : index
    %c896_1118 = arith.constant 896 : index
    %700 = vector.load %arg23[%c2_1117, %c896_1118] : memref<128x1152xf32, #tpu.memory_space<vmem>>, vector<2x128xf32>
    tpu.vector_store %arg23[%c2_1117, %c896_1118], %699 {strides = array<i32>} : memref<128x1152xf32, #tpu.memory_space<vmem>>, vector<2x128xf32>,
    %c25_1119 = arith.constant 25 : index
    %c0_1120 = arith.constant 0 : index
    %701 = vector.load %arg21[%c25_1119, %c0_1120] : memref<32x128xf32, #tpu.memory_space<vmem>>, vector<2x128xf32>
    %c4_1121 = arith.constant 4 : index
    %c896_1122 = arith.constant 896 : index
    %702 = vector.load %arg23[%c4_1121, %c896_1122] : memref<128x1152xf32, #tpu.memory_space<vmem>>, vector<2x128xf32>
    tpu.vector_store %arg23[%c4_1121, %c896_1122], %701 {strides = array<i32>} : memref<128x1152xf32, #tpu.memory_space<vmem>>, vector<2x128xf32>,
    %c29 = arith.constant 29 : index
    %c0_1123 = arith.constant 0 : index
    %703 = vector.load %arg21[%c29, %c0_1123] : memref<32x128xf32, #tpu.memory_space<vmem>>, vector<2x128xf32>
    %c6_1124 = arith.constant 6 : index
    %c896_1125 = arith.constant 896 : index
    %704 = vector.load %arg23[%c6_1124, %c896_1125] : memref<128x1152xf32, #tpu.memory_space<vmem>>, vector<2x128xf32>
    tpu.vector_store %arg23[%c6_1124, %c896_1125], %703 {strides = array<i32>} : memref<128x1152xf32, #tpu.memory_space<vmem>>, vector<2x128xf32>,
    %c10_1126 = arith.constant 10 : index
    %c0_1127 = arith.constant 0 : index
    %705 = vector.load %arg21[%c10_1126, %c0_1127] : memref<32x128xf32, #tpu.memory_space<vmem>>, vector<2x128xf32>
    %c0_1128 = arith.constant 0 : index
    %c1024_1129 = arith.constant 1024 : index
    %706 = vector.load %arg23[%c0_1128, %c1024_1129] : memref<128x1152xf32, #tpu.memory_space<vmem>>, vector<2x128xf32>
    tpu.vector_store %arg23[%c0_1128, %c1024_1129], %705 {strides = array<i32>} : memref<128x1152xf32, #tpu.memory_space<vmem>>, vector<2x128xf32>,
    %c14_1130 = arith.constant 14 : index
    %c0_1131 = arith.constant 0 : index
    %707 = vector.load %arg21[%c14_1130, %c0_1131] : memref<32x128xf32, #tpu.memory_space<vmem>>, vector<2x128xf32>
    %c2_1132 = arith.constant 2 : index
    %c1024_1133 = arith.constant 1024 : index
    %708 = vector.load %arg23[%c2_1132, %c1024_1133] : memref<128x1152xf32, #tpu.memory_space<vmem>>, vector<2x128xf32>
    tpu.vector_store %arg23[%c2_1132, %c1024_1133], %707 {strides = array<i32>} : memref<128x1152xf32, #tpu.memory_space<vmem>>, vector<2x128xf32>,
    %c26_1134 = arith.constant 26 : index
    %c0_1135 = arith.constant 0 : index
    %709 = vector.load %arg21[%c26_1134, %c0_1135] : memref<32x128xf32, #tpu.memory_space<vmem>>, vector<2x128xf32>
    %c4_1136 = arith.constant 4 : index
    %c1024_1137 = arith.constant 1024 : index
    %710 = vector.load %arg23[%c4_1136, %c1024_1137] : memref<128x1152xf32, #tpu.memory_space<vmem>>, vector<2x128xf32>
    tpu.vector_store %arg23[%c4_1136, %c1024_1137], %709 {strides = array<i32>} : memref<128x1152xf32, #tpu.memory_space<vmem>>, vector<2x128xf32>,
    %c30_1138 = arith.constant 30 : index
    %c0_1139 = arith.constant 0 : index
    %711 = vector.load %arg21[%c30_1138, %c0_1139] : memref<32x128xf32, #tpu.memory_space<vmem>>, vector<2x128xf32>
    %c6_1140 = arith.constant 6 : index
    %c1024_1141 = arith.constant 1024 : index
    %712 = vector.load %arg23[%c6_1140, %c1024_1141] : memref<128x1152xf32, #tpu.memory_space<vmem>>, vector<2x128xf32>
    tpu.vector_store %arg23[%c6_1140, %c1024_1141], %711 {strides = array<i32>} : memref<128x1152xf32, #tpu.memory_space<vmem>>, vector<2x128xf32>,
    %c0_1142 = arith.constant 0 : index
    %c0_1143 = arith.constant 0 : index
    %713 = vector.load %arg23[%c0_1142, %c0_1143] : memref<128x1152xf32, #tpu.memory_space<vmem>>, vector<8x1152xf32>
    %714 = arith.truncf %713 : vector<8x1152xf32> to vector<8x1152xbf16>
    %c0_1144 = arith.constant 0 : index
    %c0_1145 = arith.constant 0 : index
    %715 = vector.load %arg4[%c0_1144, %c0_1145] : memref<1152x128xbf16, #tpu.memory_space<vmem>>, vector<1152x128xbf16>
    %cst_1146 = arith.constant dense<0.000000e+00> : vector<8x128xf32>
    %716 = tpu.matmul %714, %715, %cst_1146 {dimension_numbers = #tpu.dot_dimension_numbers<[1], [0], [0], [1], [0, 0, 1, 1], [], []>} : vector<8x1152xbf16>, vector<1152x128xbf16>, vector<8x128xf32> -> vector<8x128xf32>
    %cst_1147 = arith.constant dense<0.000000e+00> : vector<128xf32>
    %717 = vector.multi_reduction <add>, %716, %cst_1147 [0] : vector<8x128xf32> to vector<128xf32>
    %718 = vector.shape_cast %717 : vector<128xf32> to vector<1x128xf32>
    %cst_1148 = arith.constant 1.250000e-01 : f32
    %719 = vector.broadcast %cst_1148 : f32 to vector<1x128xf32>
    %720 = arith.mulf %718, %719 : vector<1x128xf32>
    %721 = vector.broadcast %720 : vector<1x128xf32> to vector<8x128xf32>
    %722 = arith.subf %716, %721 : vector<8x128xf32>
    %723 = arith.mulf %722, %722 : vector<8x128xf32>
    %cst_1149 = arith.constant dense<0.000000e+00> : vector<128xf32>
    %724 = vector.multi_reduction <add>, %723, %cst_1149 [0] : vector<8x128xf32> to vector<128xf32>
    %725 = vector.shape_cast %724 : vector<128xf32> to vector<1x128xf32>
    %cst_1150 = arith.constant 1.250000e-01 : f32
    %726 = vector.broadcast %cst_1150 : f32 to vector<1x128xf32>
    %727 = arith.mulf %725, %726 : vector<1x128xf32>
    %cst_1151 = arith.constant 0.000000e+00 : f32
    %728 = vector.broadcast %cst_1151 : f32 to vector<1x128xf32>
    %729 = arith.maximumf %727, %728 : vector<1x128xf32>
    %cst_1152 = arith.constant 9.99999974E-6 : f32
    %730 = vector.broadcast %cst_1152 : f32 to vector<1x128xf32>
    %731 = arith.addf %729, %730 : vector<1x128xf32>
    %732 = math.rsqrt %731 : vector<1x128xf32>
    %733 = vector.broadcast %732 : vector<1x128xf32> to vector<8x128xf32>
    %734 = arith.mulf %722, %733 : vector<8x128xf32>
    %c0_1153 = arith.constant 0 : index
    %c0_1154 = arith.constant 0 : index
    %735 = vector.load %arg11[%c0_1153, %c0_1154] : memref<1x128xf32, #tpu.memory_space<vmem>>, vector<1x128xf32>
    %736 = vector.broadcast %735 : vector<1x128xf32> to vector<8x128xf32>
    %737 = arith.mulf %734, %736 : vector<8x128xf32>
    %c0_1155 = arith.constant 0 : index
    %c0_1156 = arith.constant 0 : index
    %738 = vector.load %arg12[%c0_1155, %c0_1156] : memref<1x128xf32, #tpu.memory_space<vmem>>, vector<1x128xf32>
    %739 = vector.broadcast %738 : vector<1x128xf32> to vector<8x128xf32>
    %740 = arith.addf %737, %739 : vector<8x128xf32>
    %cst_1157 = arith.constant 2.000000e-01 : f32
    %741 = vector.broadcast %cst_1157 : f32 to vector<8x128xf32>
    %742 = arith.mulf %741, %740 : vector<8x128xf32>
    %743 = arith.maximumf %740, %742 : vector<8x128xf32>
    %c0_1158 = arith.constant 0 : index
    %c0_1159 = arith.constant 0 : index
    %744 = vector.load %arg17[%c0_1158, %c0_1159] : memref<8x128xf32, #tpu.memory_space<vmem>>, vector<8x128xf32>
    tpu.vector_store %arg17[%c0_1158, %c0_1159], %743 {strides = array<i32>} : memref<8x128xf32, #tpu.memory_space<vmem>>, vector<8x128xf32>,
    %cst_1160 = arith.constant 0.000000e+00 : f32
    %745 = vector.broadcast %cst_1160 : f32 to vector<32x128xf32>
    %c0_1161 = arith.constant 0 : index
    %c0_1162 = arith.constant 0 : index
    %746 = vector.load %arg22[%c0_1161, %c0_1162] : memref<32x128xf32, #tpu.memory_space<vmem>>, vector<32x128xf32>
    tpu.vector_store %arg22[%c0_1161, %c0_1162], %745 {strides = array<i32>} : memref<32x128xf32, #tpu.memory_space<vmem>>, vector<32x128xf32>,
    %c0_1163 = arith.constant 0 : index
    %c0_1164 = arith.constant 0 : index
    %747 = vector.load %arg17[%c0_1163, %c0_1164] : memref<8x128xf32, #tpu.memory_space<vmem>>, vector<2x128xf32>
    %c5_1165 = arith.constant 5 : index
    %c0_1166 = arith.constant 0 : index
    %748 = vector.load %arg22[%c5_1165, %c0_1166] : memref<32x128xf32, #tpu.memory_space<vmem>>, vector<2x128xf32>
    tpu.vector_store %arg22[%c5_1165, %c0_1166], %747 {strides = array<i32>} : memref<32x128xf32, #tpu.memory_space<vmem>>, vector<2x128xf32>,
    %c2_1167 = arith.constant 2 : index
    %c0_1168 = arith.constant 0 : index
    %749 = vector.load %arg17[%c2_1167, %c0_1168] : memref<8x128xf32, #tpu.memory_space<vmem>>, vector<2x128xf32>
    %c9_1169 = arith.constant 9 : index
    %c0_1170 = arith.constant 0 : index
    %750 = vector.load %arg22[%c9_1169, %c0_1170] : memref<32x128xf32, #tpu.memory_space<vmem>>, vector<2x128xf32>
    tpu.vector_store %arg22[%c9_1169, %c0_1170], %749 {strides = array<i32>} : memref<32x128xf32, #tpu.memory_space<vmem>>, vector<2x128xf32>,
    %c4_1171 = arith.constant 4 : index
    %c0_1172 = arith.constant 0 : index
    %751 = vector.load %arg17[%c4_1171, %c0_1172] : memref<8x128xf32, #tpu.memory_space<vmem>>, vector<2x128xf32>
    %c21_1173 = arith.constant 21 : index
    %c0_1174 = arith.constant 0 : index
    %752 = vector.load %arg22[%c21_1173, %c0_1174] : memref<32x128xf32, #tpu.memory_space<vmem>>, vector<2x128xf32>
    tpu.vector_store %arg22[%c21_1173, %c0_1174], %751 {strides = array<i32>} : memref<32x128xf32, #tpu.memory_space<vmem>>, vector<2x128xf32>,
    %c6_1175 = arith.constant 6 : index
    %c0_1176 = arith.constant 0 : index
    %753 = vector.load %arg17[%c6_1175, %c0_1176] : memref<8x128xf32, #tpu.memory_space<vmem>>, vector<2x128xf32>
    %c25_1177 = arith.constant 25 : index
    %c0_1178 = arith.constant 0 : index
    %754 = vector.load %arg22[%c25_1177, %c0_1178] : memref<32x128xf32, #tpu.memory_space<vmem>>, vector<2x128xf32>
    tpu.vector_store %arg22[%c25_1177, %c0_1178], %753 {strides = array<i32>} : memref<32x128xf32, #tpu.memory_space<vmem>>, vector<2x128xf32>,
    %c0_1179 = arith.constant 0 : index
    %c0_1180 = arith.constant 0 : index
    %755 = vector.load %arg22[%c0_1179, %c0_1180] : memref<32x128xf32, #tpu.memory_space<vmem>>, vector<2x128xf32>
    %c0_1181 = arith.constant 0 : index
    %c0_1182 = arith.constant 0 : index
    %756 = vector.load %arg23[%c0_1181, %c0_1182] : memref<128x1152xf32, #tpu.memory_space<vmem>>, vector<2x128xf32>
    tpu.vector_store %arg23[%c0_1181, %c0_1182], %755 {strides = array<i32>} : memref<128x1152xf32, #tpu.memory_space<vmem>>, vector<2x128xf32>,
    %c4_1183 = arith.constant 4 : index
    %c0_1184 = arith.constant 0 : index
    %757 = vector.load %arg22[%c4_1183, %c0_1184] : memref<32x128xf32, #tpu.memory_space<vmem>>, vector<2x128xf32>
    %c2_1185 = arith.constant 2 : index
    %c0_1186 = arith.constant 0 : index
    %758 = vector.load %arg23[%c2_1185, %c0_1186] : memref<128x1152xf32, #tpu.memory_space<vmem>>, vector<2x128xf32>
    tpu.vector_store %arg23[%c2_1185, %c0_1186], %757 {strides = array<i32>} : memref<128x1152xf32, #tpu.memory_space<vmem>>, vector<2x128xf32>,
    %c16_1187 = arith.constant 16 : index
    %c0_1188 = arith.constant 0 : index
    %759 = vector.load %arg22[%c16_1187, %c0_1188] : memref<32x128xf32, #tpu.memory_space<vmem>>, vector<2x128xf32>
    %c4_1189 = arith.constant 4 : index
    %c0_1190 = arith.constant 0 : index
    %760 = vector.load %arg23[%c4_1189, %c0_1190] : memref<128x1152xf32, #tpu.memory_space<vmem>>, vector<2x128xf32>
    tpu.vector_store %arg23[%c4_1189, %c0_1190], %759 {strides = array<i32>} : memref<128x1152xf32, #tpu.memory_space<vmem>>, vector<2x128xf32>,
    %c20_1191 = arith.constant 20 : index
    %c0_1192 = arith.constant 0 : index
    %761 = vector.load %arg22[%c20_1191, %c0_1192] : memref<32x128xf32, #tpu.memory_space<vmem>>, vector<2x128xf32>
    %c6_1193 = arith.constant 6 : index
    %c0_1194 = arith.constant 0 : index
    %762 = vector.load %arg23[%c6_1193, %c0_1194] : memref<128x1152xf32, #tpu.memory_space<vmem>>, vector<2x128xf32>
    tpu.vector_store %arg23[%c6_1193, %c0_1194], %761 {strides = array<i32>} : memref<128x1152xf32, #tpu.memory_space<vmem>>, vector<2x128xf32>,
    %c1_1195 = arith.constant 1 : index
    %c0_1196 = arith.constant 0 : index
    %763 = vector.load %arg22[%c1_1195, %c0_1196] : memref<32x128xf32, #tpu.memory_space<vmem>>, vector<2x128xf32>
    %c0_1197 = arith.constant 0 : index
    %c128_1198 = arith.constant 128 : index
    %764 = vector.load %arg23[%c0_1197, %c128_1198] : memref<128x1152xf32, #tpu.memory_space<vmem>>, vector<2x128xf32>
    tpu.vector_store %arg23[%c0_1197, %c128_1198], %763 {strides = array<i32>} : memref<128x1152xf32, #tpu.memory_space<vmem>>, vector<2x128xf32>,
    %c5_1199 = arith.constant 5 : index
    %c0_1200 = arith.constant 0 : index
    %765 = vector.load %arg22[%c5_1199, %c0_1200] : memref<32x128xf32, #tpu.memory_space<vmem>>, vector<2x128xf32>
    %c2_1201 = arith.constant 2 : index
    %c128_1202 = arith.constant 128 : index
    %766 = vector.load %arg23[%c2_1201, %c128_1202] : memref<128x1152xf32, #tpu.memory_space<vmem>>, vector<2x128xf32>
    tpu.vector_store %arg23[%c2_1201, %c128_1202], %765 {strides = array<i32>} : memref<128x1152xf32, #tpu.memory_space<vmem>>, vector<2x128xf32>,
    %c17_1203 = arith.constant 17 : index
    %c0_1204 = arith.constant 0 : index
    %767 = vector.load %arg22[%c17_1203, %c0_1204] : memref<32x128xf32, #tpu.memory_space<vmem>>, vector<2x128xf32>
    %c4_1205 = arith.constant 4 : index
    %c128_1206 = arith.constant 128 : index
    %768 = vector.load %arg23[%c4_1205, %c128_1206] : memref<128x1152xf32, #tpu.memory_space<vmem>>, vector<2x128xf32>
    tpu.vector_store %arg23[%c4_1205, %c128_1206], %767 {strides = array<i32>} : memref<128x1152xf32, #tpu.memory_space<vmem>>, vector<2x128xf32>,
    %c21_1207 = arith.constant 21 : index
    %c0_1208 = arith.constant 0 : index
    %769 = vector.load %arg22[%c21_1207, %c0_1208] : memref<32x128xf32, #tpu.memory_space<vmem>>, vector<2x128xf32>
    %c6_1209 = arith.constant 6 : index
    %c128_1210 = arith.constant 128 : index
    %770 = vector.load %arg23[%c6_1209, %c128_1210] : memref<128x1152xf32, #tpu.memory_space<vmem>>, vector<2x128xf32>
    tpu.vector_store %arg23[%c6_1209, %c128_1210], %769 {strides = array<i32>} : memref<128x1152xf32, #tpu.memory_space<vmem>>, vector<2x128xf32>,
    %c2_1211 = arith.constant 2 : index
    %c0_1212 = arith.constant 0 : index
    %771 = vector.load %arg22[%c2_1211, %c0_1212] : memref<32x128xf32, #tpu.memory_space<vmem>>, vector<2x128xf32>
    %c0_1213 = arith.constant 0 : index
    %c256_1214 = arith.constant 256 : index
    %772 = vector.load %arg23[%c0_1213, %c256_1214] : memref<128x1152xf32, #tpu.memory_space<vmem>>, vector<2x128xf32>
    tpu.vector_store %arg23[%c0_1213, %c256_1214], %771 {strides = array<i32>} : memref<128x1152xf32, #tpu.memory_space<vmem>>, vector<2x128xf32>,
    %c6_1215 = arith.constant 6 : index
    %c0_1216 = arith.constant 0 : index
    %773 = vector.load %arg22[%c6_1215, %c0_1216] : memref<32x128xf32, #tpu.memory_space<vmem>>, vector<2x128xf32>
    %c2_1217 = arith.constant 2 : index
    %c256_1218 = arith.constant 256 : index
    %774 = vector.load %arg23[%c2_1217, %c256_1218] : memref<128x1152xf32, #tpu.memory_space<vmem>>, vector<2x128xf32>
    tpu.vector_store %arg23[%c2_1217, %c256_1218], %773 {strides = array<i32>} : memref<128x1152xf32, #tpu.memory_space<vmem>>, vector<2x128xf32>,
    %c18_1219 = arith.constant 18 : index
    %c0_1220 = arith.constant 0 : index
    %775 = vector.load %arg22[%c18_1219, %c0_1220] : memref<32x128xf32, #tpu.memory_space<vmem>>, vector<2x128xf32>
    %c4_1221 = arith.constant 4 : index
    %c256_1222 = arith.constant 256 : index
    %776 = vector.load %arg23[%c4_1221, %c256_1222] : memref<128x1152xf32, #tpu.memory_space<vmem>>, vector<2x128xf32>
    tpu.vector_store %arg23[%c4_1221, %c256_1222], %775 {strides = array<i32>} : memref<128x1152xf32, #tpu.memory_space<vmem>>, vector<2x128xf32>,
    %c22_1223 = arith.constant 22 : index
    %c0_1224 = arith.constant 0 : index
    %777 = vector.load %arg22[%c22_1223, %c0_1224] : memref<32x128xf32, #tpu.memory_space<vmem>>, vector<2x128xf32>
    %c6_1225 = arith.constant 6 : index
    %c256_1226 = arith.constant 256 : index
    %778 = vector.load %arg23[%c6_1225, %c256_1226] : memref<128x1152xf32, #tpu.memory_space<vmem>>, vector<2x128xf32>
    tpu.vector_store %arg23[%c6_1225, %c256_1226], %777 {strides = array<i32>} : memref<128x1152xf32, #tpu.memory_space<vmem>>, vector<2x128xf32>,
    %c4_1227 = arith.constant 4 : index
    %c0_1228 = arith.constant 0 : index
    %779 = vector.load %arg22[%c4_1227, %c0_1228] : memref<32x128xf32, #tpu.memory_space<vmem>>, vector<2x128xf32>
    %c0_1229 = arith.constant 0 : index
    %c384_1230 = arith.constant 384 : index
    %780 = vector.load %arg23[%c0_1229, %c384_1230] : memref<128x1152xf32, #tpu.memory_space<vmem>>, vector<2x128xf32>
    tpu.vector_store %arg23[%c0_1229, %c384_1230], %779 {strides = array<i32>} : memref<128x1152xf32, #tpu.memory_space<vmem>>, vector<2x128xf32>,
    %c8_1231 = arith.constant 8 : index
    %c0_1232 = arith.constant 0 : index
    %781 = vector.load %arg22[%c8_1231, %c0_1232] : memref<32x128xf32, #tpu.memory_space<vmem>>, vector<2x128xf32>
    %c2_1233 = arith.constant 2 : index
    %c384_1234 = arith.constant 384 : index
    %782 = vector.load %arg23[%c2_1233, %c384_1234] : memref<128x1152xf32, #tpu.memory_space<vmem>>, vector<2x128xf32>
    tpu.vector_store %arg23[%c2_1233, %c384_1234], %781 {strides = array<i32>} : memref<128x1152xf32, #tpu.memory_space<vmem>>, vector<2x128xf32>,
    %c20_1235 = arith.constant 20 : index
    %c0_1236 = arith.constant 0 : index
    %783 = vector.load %arg22[%c20_1235, %c0_1236] : memref<32x128xf32, #tpu.memory_space<vmem>>, vector<2x128xf32>
    %c4_1237 = arith.constant 4 : index
    %c384_1238 = arith.constant 384 : index
    %784 = vector.load %arg23[%c4_1237, %c384_1238] : memref<128x1152xf32, #tpu.memory_space<vmem>>, vector<2x128xf32>
    tpu.vector_store %arg23[%c4_1237, %c384_1238], %783 {strides = array<i32>} : memref<128x1152xf32, #tpu.memory_space<vmem>>, vector<2x128xf32>,
    %c24_1239 = arith.constant 24 : index
    %c0_1240 = arith.constant 0 : index
    %785 = vector.load %arg22[%c24_1239, %c0_1240] : memref<32x128xf32, #tpu.memory_space<vmem>>, vector<2x128xf32>
    %c6_1241 = arith.constant 6 : index
    %c384_1242 = arith.constant 384 : index
    %786 = vector.load %arg23[%c6_1241, %c384_1242] : memref<128x1152xf32, #tpu.memory_space<vmem>>, vector<2x128xf32>
    tpu.vector_store %arg23[%c6_1241, %c384_1242], %785 {strides = array<i32>} : memref<128x1152xf32, #tpu.memory_space<vmem>>, vector<2x128xf32>,
    %c5_1243 = arith.constant 5 : index
    %c0_1244 = arith.constant 0 : index
    %787 = vector.load %arg22[%c5_1243, %c0_1244] : memref<32x128xf32, #tpu.memory_space<vmem>>, vector<2x128xf32>
    %c0_1245 = arith.constant 0 : index
    %c512_1246 = arith.constant 512 : index
    %788 = vector.load %arg23[%c0_1245, %c512_1246] : memref<128x1152xf32, #tpu.memory_space<vmem>>, vector<2x128xf32>
    tpu.vector_store %arg23[%c0_1245, %c512_1246], %787 {strides = array<i32>} : memref<128x1152xf32, #tpu.memory_space<vmem>>, vector<2x128xf32>,
    %c9_1247 = arith.constant 9 : index
    %c0_1248 = arith.constant 0 : index
    %789 = vector.load %arg22[%c9_1247, %c0_1248] : memref<32x128xf32, #tpu.memory_space<vmem>>, vector<2x128xf32>
    %c2_1249 = arith.constant 2 : index
    %c512_1250 = arith.constant 512 : index
    %790 = vector.load %arg23[%c2_1249, %c512_1250] : memref<128x1152xf32, #tpu.memory_space<vmem>>, vector<2x128xf32>
    tpu.vector_store %arg23[%c2_1249, %c512_1250], %789 {strides = array<i32>} : memref<128x1152xf32, #tpu.memory_space<vmem>>, vector<2x128xf32>,
    %c21_1251 = arith.constant 21 : index
    %c0_1252 = arith.constant 0 : index
    %791 = vector.load %arg22[%c21_1251, %c0_1252] : memref<32x128xf32, #tpu.memory_space<vmem>>, vector<2x128xf32>
    %c4_1253 = arith.constant 4 : index
    %c512_1254 = arith.constant 512 : index
    %792 = vector.load %arg23[%c4_1253, %c512_1254] : memref<128x1152xf32, #tpu.memory_space<vmem>>, vector<2x128xf32>
    tpu.vector_store %arg23[%c4_1253, %c512_1254], %791 {strides = array<i32>} : memref<128x1152xf32, #tpu.memory_space<vmem>>, vector<2x128xf32>,
    %c25_1255 = arith.constant 25 : index
    %c0_1256 = arith.constant 0 : index
    %793 = vector.load %arg22[%c25_1255, %c0_1256] : memref<32x128xf32, #tpu.memory_space<vmem>>, vector<2x128xf32>
    %c6_1257 = arith.constant 6 : index
    %c512_1258 = arith.constant 512 : index
    %794 = vector.load %arg23[%c6_1257, %c512_1258] : memref<128x1152xf32, #tpu.memory_space<vmem>>, vector<2x128xf32>
    tpu.vector_store %arg23[%c6_1257, %c512_1258], %793 {strides = array<i32>} : memref<128x1152xf32, #tpu.memory_space<vmem>>, vector<2x128xf32>,
    %c6_1259 = arith.constant 6 : index
    %c0_1260 = arith.constant 0 : index
    %795 = vector.load %arg22[%c6_1259, %c0_1260] : memref<32x128xf32, #tpu.memory_space<vmem>>, vector<2x128xf32>
    %c0_1261 = arith.constant 0 : index
    %c640_1262 = arith.constant 640 : index
    %796 = vector.load %arg23[%c0_1261, %c640_1262] : memref<128x1152xf32, #tpu.memory_space<vmem>>, vector<2x128xf32>
    tpu.vector_store %arg23[%c0_1261, %c640_1262], %795 {strides = array<i32>} : memref<128x1152xf32, #tpu.memory_space<vmem>>, vector<2x128xf32>,
    %c10_1263 = arith.constant 10 : index
    %c0_1264 = arith.constant 0 : index
    %797 = vector.load %arg22[%c10_1263, %c0_1264] : memref<32x128xf32, #tpu.memory_space<vmem>>, vector<2x128xf32>
    %c2_1265 = arith.constant 2 : index
    %c640_1266 = arith.constant 640 : index
    %798 = vector.load %arg23[%c2_1265, %c640_1266] : memref<128x1152xf32, #tpu.memory_space<vmem>>, vector<2x128xf32>
    tpu.vector_store %arg23[%c2_1265, %c640_1266], %797 {strides = array<i32>} : memref<128x1152xf32, #tpu.memory_space<vmem>>, vector<2x128xf32>,
    %c22_1267 = arith.constant 22 : index
    %c0_1268 = arith.constant 0 : index
    %799 = vector.load %arg22[%c22_1267, %c0_1268] : memref<32x128xf32, #tpu.memory_space<vmem>>, vector<2x128xf32>
    %c4_1269 = arith.constant 4 : index
    %c640_1270 = arith.constant 640 : index
    %800 = vector.load %arg23[%c4_1269, %c640_1270] : memref<128x1152xf32, #tpu.memory_space<vmem>>, vector<2x128xf32>
    tpu.vector_store %arg23[%c4_1269, %c640_1270], %799 {strides = array<i32>} : memref<128x1152xf32, #tpu.memory_space<vmem>>, vector<2x128xf32>,
    %c26_1271 = arith.constant 26 : index
    %c0_1272 = arith.constant 0 : index
    %801 = vector.load %arg22[%c26_1271, %c0_1272] : memref<32x128xf32, #tpu.memory_space<vmem>>, vector<2x128xf32>
    %c6_1273 = arith.constant 6 : index
    %c640_1274 = arith.constant 640 : index
    %802 = vector.load %arg23[%c6_1273, %c640_1274] : memref<128x1152xf32, #tpu.memory_space<vmem>>, vector<2x128xf32>
    tpu.vector_store %arg23[%c6_1273, %c640_1274], %801 {strides = array<i32>} : memref<128x1152xf32, #tpu.memory_space<vmem>>, vector<2x128xf32>,
    %c8_1275 = arith.constant 8 : index
    %c0_1276 = arith.constant 0 : index
    %803 = vector.load %arg22[%c8_1275, %c0_1276] : memref<32x128xf32, #tpu.memory_space<vmem>>, vector<2x128xf32>
    %c0_1277 = arith.constant 0 : index
    %c768_1278 = arith.constant 768 : index
    %804 = vector.load %arg23[%c0_1277, %c768_1278] : memref<128x1152xf32, #tpu.memory_space<vmem>>, vector<2x128xf32>
    tpu.vector_store %arg23[%c0_1277, %c768_1278], %803 {strides = array<i32>} : memref<128x1152xf32, #tpu.memory_space<vmem>>, vector<2x128xf32>,
    %c12_1279 = arith.constant 12 : index
    %c0_1280 = arith.constant 0 : index
    %805 = vector.load %arg22[%c12_1279, %c0_1280] : memref<32x128xf32, #tpu.memory_space<vmem>>, vector<2x128xf32>
    %c2_1281 = arith.constant 2 : index
    %c768_1282 = arith.constant 768 : index
    %806 = vector.load %arg23[%c2_1281, %c768_1282] : memref<128x1152xf32, #tpu.memory_space<vmem>>, vector<2x128xf32>
    tpu.vector_store %arg23[%c2_1281, %c768_1282], %805 {strides = array<i32>} : memref<128x1152xf32, #tpu.memory_space<vmem>>, vector<2x128xf32>,
    %c24_1283 = arith.constant 24 : index
    %c0_1284 = arith.constant 0 : index
    %807 = vector.load %arg22[%c24_1283, %c0_1284] : memref<32x128xf32, #tpu.memory_space<vmem>>, vector<2x128xf32>
    %c4_1285 = arith.constant 4 : index
    %c768_1286 = arith.constant 768 : index
    %808 = vector.load %arg23[%c4_1285, %c768_1286] : memref<128x1152xf32, #tpu.memory_space<vmem>>, vector<2x128xf32>
    tpu.vector_store %arg23[%c4_1285, %c768_1286], %807 {strides = array<i32>} : memref<128x1152xf32, #tpu.memory_space<vmem>>, vector<2x128xf32>,
    %c28_1287 = arith.constant 28 : index
    %c0_1288 = arith.constant 0 : index
    %809 = vector.load %arg22[%c28_1287, %c0_1288] : memref<32x128xf32, #tpu.memory_space<vmem>>, vector<2x128xf32>
    %c6_1289 = arith.constant 6 : index
    %c768_1290 = arith.constant 768 : index
    %810 = vector.load %arg23[%c6_1289, %c768_1290] : memref<128x1152xf32, #tpu.memory_space<vmem>>, vector<2x128xf32>
    tpu.vector_store %arg23[%c6_1289, %c768_1290], %809 {strides = array<i32>} : memref<128x1152xf32, #tpu.memory_space<vmem>>, vector<2x128xf32>,
    %c9_1291 = arith.constant 9 : index
    %c0_1292 = arith.constant 0 : index
    %811 = vector.load %arg22[%c9_1291, %c0_1292] : memref<32x128xf32, #tpu.memory_space<vmem>>, vector<2x128xf32>
    %c0_1293 = arith.constant 0 : index
    %c896_1294 = arith.constant 896 : index
    %812 = vector.load %arg23[%c0_1293, %c896_1294] : memref<128x1152xf32, #tpu.memory_space<vmem>>, vector<2x128xf32>
    tpu.vector_store %arg23[%c0_1293, %c896_1294], %811 {strides = array<i32>} : memref<128x1152xf32, #tpu.memory_space<vmem>>, vector<2x128xf32>,
    %c13_1295 = arith.constant 13 : index
    %c0_1296 = arith.constant 0 : index
    %813 = vector.load %arg22[%c13_1295, %c0_1296] : memref<32x128xf32, #tpu.memory_space<vmem>>, vector<2x128xf32>
    %c2_1297 = arith.constant 2 : index
    %c896_1298 = arith.constant 896 : index
    %814 = vector.load %arg23[%c2_1297, %c896_1298] : memref<128x1152xf32, #tpu.memory_space<vmem>>, vector<2x128xf32>
    tpu.vector_store %arg23[%c2_1297, %c896_1298], %813 {strides = array<i32>} : memref<128x1152xf32, #tpu.memory_space<vmem>>, vector<2x128xf32>,
    %c25_1299 = arith.constant 25 : index
    %c0_1300 = arith.constant 0 : index
    %815 = vector.load %arg22[%c25_1299, %c0_1300] : memref<32x128xf32, #tpu.memory_space<vmem>>, vector<2x128xf32>
    %c4_1301 = arith.constant 4 : index
    %c896_1302 = arith.constant 896 : index
    %816 = vector.load %arg23[%c4_1301, %c896_1302] : memref<128x1152xf32, #tpu.memory_space<vmem>>, vector<2x128xf32>
    tpu.vector_store %arg23[%c4_1301, %c896_1302], %815 {strides = array<i32>} : memref<128x1152xf32, #tpu.memory_space<vmem>>, vector<2x128xf32>,
    %c29_1303 = arith.constant 29 : index
    %c0_1304 = arith.constant 0 : index
    %817 = vector.load %arg22[%c29_1303, %c0_1304] : memref<32x128xf32, #tpu.memory_space<vmem>>, vector<2x128xf32>
    %c6_1305 = arith.constant 6 : index
    %c896_1306 = arith.constant 896 : index
    %818 = vector.load %arg23[%c6_1305, %c896_1306] : memref<128x1152xf32, #tpu.memory_space<vmem>>, vector<2x128xf32>
    tpu.vector_store %arg23[%c6_1305, %c896_1306], %817 {strides = array<i32>} : memref<128x1152xf32, #tpu.memory_space<vmem>>, vector<2x128xf32>,
    %c10_1307 = arith.constant 10 : index
    %c0_1308 = arith.constant 0 : index
    %819 = vector.load %arg22[%c10_1307, %c0_1308] : memref<32x128xf32, #tpu.memory_space<vmem>>, vector<2x128xf32>
    %c0_1309 = arith.constant 0 : index
    %c1024_1310 = arith.constant 1024 : index
    %820 = vector.load %arg23[%c0_1309, %c1024_1310] : memref<128x1152xf32, #tpu.memory_space<vmem>>, vector<2x128xf32>
    tpu.vector_store %arg23[%c0_1309, %c1024_1310], %819 {strides = array<i32>} : memref<128x1152xf32, #tpu.memory_space<vmem>>, vector<2x128xf32>,
    %c14_1311 = arith.constant 14 : index
    %c0_1312 = arith.constant 0 : index
    %821 = vector.load %arg22[%c14_1311, %c0_1312] : memref<32x128xf32, #tpu.memory_space<vmem>>, vector<2x128xf32>
    %c2_1313 = arith.constant 2 : index
    %c1024_1314 = arith.constant 1024 : index
    %822 = vector.load %arg23[%c2_1313, %c1024_1314] : memref<128x1152xf32, #tpu.memory_space<vmem>>, vector<2x128xf32>
    tpu.vector_store %arg23[%c2_1313, %c1024_1314], %821 {strides = array<i32>} : memref<128x1152xf32, #tpu.memory_space<vmem>>, vector<2x128xf32>,
    %c26_1315 = arith.constant 26 : index
    %c0_1316 = arith.constant 0 : index
    %823 = vector.load %arg22[%c26_1315, %c0_1316] : memref<32x128xf32, #tpu.memory_space<vmem>>, vector<2x128xf32>
    %c4_1317 = arith.constant 4 : index
    %c1024_1318 = arith.constant 1024 : index
    %824 = vector.load %arg23[%c4_1317, %c1024_1318] : memref<128x1152xf32, #tpu.memory_space<vmem>>, vector<2x128xf32>
    tpu.vector_store %arg23[%c4_1317, %c1024_1318], %823 {strides = array<i32>} : memref<128x1152xf32, #tpu.memory_space<vmem>>, vector<2x128xf32>,
    %c30_1319 = arith.constant 30 : index
    %c0_1320 = arith.constant 0 : index
    %825 = vector.load %arg22[%c30_1319, %c0_1320] : memref<32x128xf32, #tpu.memory_space<vmem>>, vector<2x128xf32>
    %c6_1321 = arith.constant 6 : index
    %c1024_1322 = arith.constant 1024 : index
    %826 = vector.load %arg23[%c6_1321, %c1024_1322] : memref<128x1152xf32, #tpu.memory_space<vmem>>, vector<2x128xf32>
    tpu.vector_store %arg23[%c6_1321, %c1024_1322], %825 {strides = array<i32>} : memref<128x1152xf32, #tpu.memory_space<vmem>>, vector<2x128xf32>,
    %c0_1323 = arith.constant 0 : index
    %c0_1324 = arith.constant 0 : index
    %827 = vector.load %arg23[%c0_1323, %c0_1324] : memref<128x1152xf32, #tpu.memory_space<vmem>>, vector<8x1152xf32>
    %828 = arith.truncf %827 : vector<8x1152xf32> to vector<8x1152xbf16>
    %c0_1325 = arith.constant 0 : index
    %c0_1326 = arith.constant 0 : index
    %829 = vector.load %arg5[%c0_1325, %c0_1326] : memref<1152x128xbf16, #tpu.memory_space<vmem>>, vector<1152x128xbf16>
    %cst_1327 = arith.constant dense<0.000000e+00> : vector<8x128xf32>
    %830 = tpu.matmul %828, %829, %cst_1327 {dimension_numbers = #tpu.dot_dimension_numbers<[1], [0], [0], [1], [0, 0, 1, 1], [], []>} : vector<8x1152xbf16>, vector<1152x128xbf16>, vector<8x128xf32> -> vector<8x128xf32>
    %c0_1328 = arith.constant 0 : index
    %c0_1329 = arith.constant 0 : index
    %831 = vector.load %arg13[%c0_1328, %c0_1329] : memref<1x128xf32, #tpu.memory_space<vmem>>, vector<1x128xf32>
    %832 = vector.broadcast %831 : vector<1x128xf32> to vector<8x128xf32>
    %833 = arith.addf %830, %832 : vector<8x128xf32>
    %c0_1330 = arith.constant 0 : index
    %c0_1331 = arith.constant 0 : index
    %834 = vector.load %arg18[%c0_1330, %c0_1331] : memref<8x128xf32, #tpu.memory_space<vmem>>, vector<8x128xf32>
    tpu.vector_store %arg18[%c0_1330, %c0_1331], %833 {strides = array<i32>} : memref<8x128xf32, #tpu.memory_space<vmem>>, vector<8x128xf32>,
    return
  }
}

</mosaic_0001>

<llo_original>
// kernel: tpu_custom_call.1
$region0: #{tpu_custom_call.1}
  #allocation0 [shape = 'u32[]', space=smem, size = 0x4, offset = 0x4, fixed_abs, tag = 'smem constant byte address 0x4 - core index']
  #allocation1 [shape = 'u32[72,128]{1,0:T(1,128)}', space=vmem, size = 0x9000, scoped, tag = 'internal scratch']
  #allocation2 [shape = 'f32[200,128]{1,0:T(8,128)}', space=vmem, size = 0x19000, scoped, tag = 'scratch operand']
  #allocation3 [shape = 'f32[72,128]{1,0:T(8,128)}', space=vmem, size = 0x9000, scoped, tag = 'scratch operand']
  #allocation4 [shape = 'f32[32,128]{1,0:T(8,128)}', space=vmem, size = 0x4000, scoped, tag = 'scratch operand']
  #allocation5 [shape = 'f32[32,128]{1,0:T(8,128)}', space=vmem, size = 0x4000, scoped, tag = 'scratch operand']
  #allocation6 [shape = 'f32[128,1152]{1,0:T(8,128)}', space=vmem, size = 0x90000, scoped, tag = 'scratch operand']
  %s0 = inlined_call_operand.hbm [shape: f32[648,128], index: 0, kind: input, shape index: {}]
  %s1 = inlined_call_operand.hbm [shape: bf16[1152,128], index: 1, kind: input, shape index: {}]
  %s2 = inlined_call_operand.hbm [shape: bf16[1152,128], index: 2, kind: input, shape index: {}]
  %s3 = inlined_call_operand.hbm [shape: bf16[1152,128], index: 3, kind: input, shape index: {}]
  %s4 = inlined_call_operand.hbm [shape: bf16[1152,128], index: 4, kind: input, shape index: {}]
  %s5 = inlined_call_operand.hbm [shape: bf16[1152,128], index: 5, kind: input, shape index: {}]
  %s6 = inlined_call_operand.vmem [shape: f32[1,128], index: 6, kind: input, shape index: {}]
  %s7 = inlined_call_operand.vmem [shape: f32[1,128], index: 7, kind: input, shape index: {}]
  %s8 = inlined_call_operand.vmem [shape: f32[1,128], index: 8, kind: input, shape index: {}]
  %s9 = inlined_call_operand.vmem [shape: f32[1,128], index: 9, kind: input, shape index: {}]
  %s10 = inlined_call_operand.vmem [shape: f32[1,128], index: 10, kind: input, shape index: {}]
  %s11 = inlined_call_operand.vmem [shape: f32[1,128], index: 11, kind: input, shape index: {}]
  %s12 = inlined_call_operand.vmem [shape: f32[1,128], index: 12, kind: input, shape index: {}]
  %s13 = inlined_call_operand.vmem [shape: f32[1,128], index: 13, kind: input, shape index: {}]
  %s14 = inlined_call_operand.hbm [shape: f32[128,128], index: 14, kind: output, shape index: {0}]
  %s15 = inlined_call_operand.hbm [shape: f32[32,128], index: 15, kind: output, shape index: {1}]
  %s16 = inlined_call_operand.hbm [shape: f32[8,128], index: 16, kind: output, shape index: {2}]
  %s17 = inlined_call_operand.hbm [shape: f32[8,128], index: 17, kind: output, shape index: {3}]
  %s18 = inlined_call_operand.hbm [shape: f32[8,128], index: 18, kind: output, shape index: {4}]
  %19 = xla_tuple %s14, %s15, %s16, %s17, %s18
  %s20 = sld [smem:[#allocation0]]
  $region122: #{tpu_custom_call.1} parent=0
    _
  %s22 = ssub.s32 1, %s20
  %s23 = scalar_select 0, %s22, %s20
  $region1: #{tpu_custom_call.1} parent=0
    #allocation7 [shape = 'u8[331776]{0}', space=vmem, size = 0x51000, scoped, tag = 'input window, operand 0, single buffered']
    #allocation8 [shape = 's32[1]{0}', space=sflag, size = 0x4, scoped, tag = 'scoped memory for tpu_custom_call.1']
    #allocation9 [shape = 's32[1]{0}', space=sflag, size = 0x4, scoped, tag = 'scoped memory for tpu_custom_call.1']
    #allocation10 [shape = 'u8[294912]{0}', space=vmem, size = 0x48000, scoped, tag = 'input window, operand 1, single buffered']
    #allocation11 [shape = 's32[1]{0}', space=sflag, size = 0x4, scoped, tag = 'scoped memory for tpu_custom_call.1']
    #allocation12 [shape = 'u8[294912]{0}', space=vmem, size = 0x48000, scoped, tag = 'input window, operand 2, single buffered']
    #allocation13 [shape = 'u8[294912]{0}', space=vmem, size = 0x48000, scoped, tag = 'input window, operand 3, single buffered']
    #allocation14 [shape = 's32[1]{0}', space=sflag, size = 0x4, scoped, tag = 'scoped memory for tpu_custom_call.1']
    #allocation15 [shape = 'u8[294912]{0}', space=vmem, size = 0x48000, scoped, tag = 'input window, operand 4, single buffered']
    #allocation16 [shape = 'u8[294912]{0}', space=vmem, size = 0x48000, scoped, tag = 'input window, operand 5, single buffered']
    #allocation17 [shape = 's32[1]{0}', space=sflag, size = 0x4, scoped, tag = 'scoped memory for tpu_custom_call.1']
    #allocation18 [shape = 'u8[65536]{0}', space=vmem, size = 0x10000, scoped, tag = 'output window, operand 0, single buffered']
    #allocation19 [shape = 'u8[16384]{0}', space=vmem, size = 0x4000, scoped, tag = 'output window, operand 1, single buffered']
    #allocation20 [shape = 's32[1]{0}', space=sflag, size = 0x4, scoped, tag = 'scoped memory for tpu_custom_call.1']
    #allocation21 [shape = 'u8[4096]{0}', space=vmem, size = 0x1000, scoped, tag = 'output window, operand 2, single buffered']
    #allocation22 [shape = 'u8[4096]{0}', space=vmem, size = 0x1000, scoped, tag = 'output window, operand 3, single buffered']
    #allocation23 [shape = 's32[1]{0}', space=sflag, size = 0x4, scoped, tag = 'scoped memory for tpu_custom_call.1']
    #allocation24 [shape = 'u8[4096]{0}', space=vmem, size = 0x1000, scoped, tag = 'output window, operand 4, single buffered']
    %24 = vsyncpa [#allocation8], 0
    %25 = vsyncpa [#allocation11], 0
    %26 = vsyncpa [#allocation14], 0
    %27 = vsyncpa [#allocation17], 0
    %28 = vsyncpa [#allocation9], 0
    %29 = vsyncpa [#allocation20], 0
    %30 = vsyncpa [#allocation23], 0
    // Predicated region
    $region2: #{tpu_custom_call.1} parent=1 // pred_check
      _
    $region3: #{tpu_custom_call.1} parent=1 // pred_check_branch
      %32 = sbr.rel (0) target = $region5
    $region4: #{tpu_custom_call.1} parent=1 // pred_region
      %34 = vsyncadd [#allocation8], 0
      %s35 = sshll.u32 %s0, 4
      %s36 = int_to_ptr.hbm [resolvable:$true] %s35
      %s37 = sshll.u32 [#allocation7], 4
      %s38 = int_to_ptr.vmem [resolvable:$true] %s37
      %43 = dma.hbm_to_vmem [thread:$0]  %s36, 10368, %s38, [#allocation8], 128, 128, 8
    $region5: #{tpu_custom_call.1} parent=1 // pred_fallthru
      _
    // Predicated region
    $region6: #{tpu_custom_call.1} parent=1 // pred_check
      _
    $region7: #{tpu_custom_call.1} parent=1 // pred_check_branch
      %45 = sbr.rel (0) target = $region9
    $region8: #{tpu_custom_call.1} parent=1 // pred_region
      %47 = vsyncadd [#allocation11], 0
      %s48 = sshll.u32 %s1, 4
      %s49 = int_to_ptr.hbm [resolvable:$true] %s48
      %s50 = sshll.u32 [#allocation10], 4
      %s51 = int_to_ptr.vmem [resolvable:$true] %s50
      %56 = dma.hbm_to_vmem [thread:$0]  %s49, 9216, %s51, [#allocation11], 64, 64, 4
    $region9: #{tpu_custom_call.1} parent=1 // pred_fallthru
      _
    // Predicated region
    $region10: #{tpu_custom_call.1} parent=1 // pred_check
      _
    $region11: #{tpu_custom_call.1} parent=1 // pred_check_branch
      %58 = sbr.rel (0) target = $region13
    $region12: #{tpu_custom_call.1} parent=1 // pred_region
      %60 = vsyncadd [#allocation11], 0
      %s61 = sshll.u32 %s2, 4
      %s62 = int_to_ptr.hbm [resolvable:$true] %s61
      %s63 = sshll.u32 [#allocation12], 4
      %s64 = int_to_ptr.vmem [resolvable:$true] %s63
      %69 = dma.hbm_to_vmem [thread:$0]  %s62, 9216, %s64, [#allocation11], 64, 64, 4
    $region13: #{tpu_custom_call.1} parent=1 // pred_fallthru
      _
    // Predicated region
    $region14: #{tpu_custom_call.1} parent=1 // pred_check
      _
    $region15: #{tpu_custom_call.1} parent=1 // pred_check_branch
      %71 = sbr.rel (0) target = $region17
    $region16: #{tpu_custom_call.1} parent=1 // pred_region
      %73 = vsyncadd [#allocation14], 0
      %s74 = sshll.u32 %s3, 4
      %s75 = int_to_ptr.hbm [resolvable:$true] %s74
      %s76 = sshll.u32 [#allocation13], 4
      %s77 = int_to_ptr.vmem [resolvable:$true] %s76
      %82 = dma.hbm_to_vmem [thread:$0]  %s75, 9216, %s77, [#allocation14], 64, 64, 4
    $region17: #{tpu_custom_call.1} parent=1 // pred_fallthru
      _
    // Predicated region
    $region18: #{tpu_custom_call.1} parent=1 // pred_check
      _
    $region19: #{tpu_custom_call.1} parent=1 // pred_check_branch
      %84 = sbr.rel (0) target = $region21
    $region20: #{tpu_custom_call.1} parent=1 // pred_region
      %86 = vsyncadd [#allocation14], 0
      %s87 = sshll.u32 %s4, 4
      %s88 = int_to_ptr.hbm [resolvable:$true] %s87
      %s89 = sshll.u32 [#allocation15], 4
      %s90 = int_to_ptr.vmem [resolvable:$true] %s89
      %95 = dma.hbm_to_vmem [thread:$0]  %s88, 9216, %s90, [#allocation14], 64, 64, 4
    $region21: #{tpu_custom_call.1} parent=1 // pred_fallthru
      _
    // Predicated region
    $region22: #{tpu_custom_call.1} parent=1 // pred_check
      _
    $region23: #{tpu_custom_call.1} parent=1 // pred_check_branch
      %97 = sbr.rel (0) target = $region25
    $region24: #{tpu_custom_call.1} parent=1 // pred_region
      %99 = vsyncadd [#allocation17], 0
      %s100 = sshll.u32 %s5, 4
      %s101 = int_to_ptr.hbm [resolvable:$true] %s100
      %s102 = sshll.u32 [#allocation16], 4
      %s103 = int_to_ptr.vmem [resolvable:$true] %s102
      %108 = dma.hbm_to_vmem [thread:$0]  %s101, 9216, %s103, [#allocation17], 64, 64, 4
    $region25: #{tpu_custom_call.1} parent=1 // pred_fallthru
      _
    // Predicated region
    $region26: #{tpu_custom_call.1} parent=1 // pred_check
      _
    $region27: #{tpu_custom_call.1} parent=1 // pred_check_branch
      %110 = sbr.rel (0) target = $region29
    $region28: #{tpu_custom_call.1} parent=1 // pred_region
      _
    $region29: #{tpu_custom_call.1} parent=1 // pred_fallthru
      _
    // Predicated region
    $region30: #{tpu_custom_call.1} parent=1 // pred_check
      _
    $region31: #{tpu_custom_call.1} parent=1 // pred_check_branch
      %112 = sbr.rel (0) target = $region33
    $region32: #{tpu_custom_call.1} parent=1 // pred_region
      _
    $region33: #{tpu_custom_call.1} parent=1 // pred_fallthru
      _
    // Predicated region
    $region34: #{tpu_custom_call.1} parent=1 // pred_check
      _
    $region35: #{tpu_custom_call.1} parent=1 // pred_check_branch
      %114 = sbr.rel (0) target = $region37
    $region36: #{tpu_custom_call.1} parent=1 // pred_region
      _
    $region37: #{tpu_custom_call.1} parent=1 // pred_fallthru
      _
    // Predicated region
    $region38: #{tpu_custom_call.1} parent=1 // pred_check
      _
    $region39: #{tpu_custom_call.1} parent=1 // pred_check_branch
      %116 = sbr.rel (0) target = $region41
    $region40: #{tpu_custom_call.1} parent=1 // pred_region
      _
    $region41: #{tpu_custom_call.1} parent=1 // pred_fallthru
      _
    // Predicated region
    $region42: #{tpu_custom_call.1} parent=1 // pred_check
      _
    $region43: #{tpu_custom_call.1} parent=1 // pred_check_branch
      %118 = sbr.rel (0) target = $region45
    $region44: #{tpu_custom_call.1} parent=1 // pred_region
      _
    $region45: #{tpu_custom_call.1} parent=1 // pred_fallthru
      _
    // Predicated region
    $region46: #{tpu_custom_call.1} parent=1 // pred_check
      _
    $region47: #{tpu_custom_call.1} parent=1 // pred_check_branch
      %120 = sbr.rel (0) target = $region49
    $region48: #{tpu_custom_call.1} parent=1 // pred_region
      _
    $region49: #{tpu_custom_call.1} parent=1 // pred_fallthru
      _
    // Predicated region
    $region50: #{tpu_custom_call.1} parent=1 // pred_check
      _
    $region51: #{tpu_custom_call.1} parent=1 // pred_check_branch
      %122 = sbr.rel (0) target = $region53
    $region52: #{tpu_custom_call.1} parent=1 // pred_region
      _
    $region53: #{tpu_custom_call.1} parent=1 // pred_fallthru
      _
    // Predicated region
    $region54: #{tpu_custom_call.1} parent=1 // pred_check
      _
    $region55: #{tpu_custom_call.1} parent=1 // pred_check_branch
      %124 = sbr.rel (0) target = $region57
    $region56: #{tpu_custom_call.1} parent=1 // pred_region
      _
    $region57: #{tpu_custom_call.1} parent=1 // pred_fallthru
      _
    // Predicated region
    $region58: #{tpu_custom_call.1} parent=1 // pred_check
      _
    $region59: #{tpu_custom_call.1} parent=1 // pred_check_branch
      %126 = sbr.rel (0) target = $region61
    $region60: #{tpu_custom_call.1} parent=1 // pred_region
      %128 = dma.done [#allocation8], 10368
    $region61: #{tpu_custom_call.1} parent=1 // pred_fallthru
      _
    // Predicated region
    $region62: #{tpu_custom_call.1} parent=1 // pred_check
      _
    $region63: #{tpu_custom_call.1} parent=1 // pred_check_branch
      %130 = sbr.rel (0) target = $region65
    $region64: #{tpu_custom_call.1} parent=1 // pred_region
      %132 = dma.done [#allocation11], 9216
    $region65: #{tpu_custom_call.1} parent=1 // pred_fallthru
      _
    // Predicated region
    $region66: #{tpu_custom_call.1} parent=1 // pred_check
      _
    $region67: #{tpu_custom_call.1} parent=1 // pred_check_branch
      %134 = sbr.rel (0) target = $region69
    $region68: #{tpu_custom_call.1} parent=1 // pred_region
      %136 = dma.done [#allocation11], 9216
    $region69: #{tpu_custom_call.1} parent=1 // pred_fallthru
      _
    // Predicated region
    $region70: #{tpu_custom_call.1} parent=1 // pred_check
      _
    $region71: #{tpu_custom_call.1} parent=1 // pred_check_branch
      %138 = sbr.rel (0) target = $region73
    $region72: #{tpu_custom_call.1} parent=1 // pred_region
      %140 = dma.done [#allocation14], 9216
    $region73: #{tpu_custom_call.1} parent=1 // pred_fallthru
      _
    // Predicated region
    $region74: #{tpu_custom_call.1} parent=1 // pred_check
      _
    $region75: #{tpu_custom_call.1} parent=1 // pred_check_branch
      %142 = sbr.rel (0) target = $region77
    $region76: #{tpu_custom_call.1} parent=1 // pred_region
      %144 = dma.done [#allocation14], 9216
    $region77: #{tpu_custom_call.1} parent=1 // pred_fallthru
      _
    // Predicated region
    $region78: #{tpu_custom_call.1} parent=1 // pred_check
      _
    $region79: #{tpu_custom_call.1} parent=1 // pred_check_branch
      %146 = sbr.rel (0) target = $region81
    $region80: #{tpu_custom_call.1} parent=1 // pred_region
      %148 = dma.done [#allocation17], 9216
    $region81: #{tpu_custom_call.1} parent=1 // pred_fallthru
      _
    %v149 = vld [vmem:[#allocation7] ss:$2 sm:$0xff]
    %150 = vst [vmem:[#allocation6] sm:$0xff] %v149
    %s151 = scalar_lea.vmem [#allocation7], 36
    %v152 = vld [vmem:[%s151] ss:$2 sm:$0xff]
    %153 = vst [vmem:[#allocation6 + $0x48] sm:$0xff] %v152
    %s154 = scalar_lea.vmem [#allocation7], 72
    %v155 = vld [vmem:[%s154] ss:$2 sm:$0xff]
    %156 = vst [vmem:[#allocation6 + $0x90] sm:$0xff] %v155
    %s157 = scalar_lea.vmem [#allocation7], 108
    %v158 = vld [vmem:[%s157] ss:$2 sm:$0xff]
    %159 = vst [vmem:[#allocation6 + $0xd8] sm:$0xff] %v158
    %s160 = scalar_lea.vmem [#allocation7], 144
    %v161 = vld [vmem:[%s160] ss:$2 sm:$0xff]
    %162 = vst [vmem:[#allocation6 + $0x120] sm:$0xff] %v161
    %s163 = scalar_lea.vmem [#allocation7], 180
    %v164 = vld [vmem:[%s163] ss:$2 sm:$0xff]
    %165 = vst [vmem:[#allocation6 + $0x168] sm:$0xff] %v164
    %s166 = scalar_lea.vmem [#allocation7], 216
    %v167 = vld [vmem:[%s166] ss:$2 sm:$0xff]
    %168 = vst [vmem:[#allocation6 + $0x1b0] sm:$0xff] %v167
    %s169 = scalar_lea.vmem [#allocation7], 252
    %v170 = vld [vmem:[%s169] ss:$2 sm:$0xff]
    %171 = vst [vmem:[#allocation6 + $0x1f8] sm:$0xff] %v170
    %s172 = scalar_lea.vmem [#allocation7], 324
    %v173 = vld [vmem:[%s172] ss:$2 sm:$0xff]
    %174 = vst [vmem:[#allocation6 + $0x240] sm:$0xff] %v173
    %s175 = scalar_lea.vmem [#allocation7], 360
    %v176 = vld [vmem:[%s175] ss:$2 sm:$0xff]
    %177 = vst [vmem:[#allocation6 + $0x288] sm:$0xff] %v176
    %s178 = scalar_lea.vmem [#allocation7], 396
    %v179 = vld [vmem:[%s178] ss:$2 sm:$0xff]
    %180 = vst [vmem:[#allocation6 + $0x2d0] sm:$0xff] %v179
    %s181 = scalar_lea.vmem [#allocation7], 432
    %v182 = vld [vmem:[%s181] ss:$2 sm:$0xff]
    %183 = vst [vmem:[#allocation6 + $0x318] sm:$0xff] %v182
    %s184 = scalar_lea.vmem [#allocation7], 468
    %v185 = vld [vmem:[%s184] ss:$2 sm:$0xff]
    %186 = vst [vmem:[#allocation6 + $0x360] sm:$0xff] %v185
    %s187 = scalar_lea.vmem [#allocation7], 504
    %v188 = vld [vmem:[%s187] ss:$2 sm:$0xff]
    %189 = vst [vmem:[#allocation6 + $0x3a8] sm:$0xff] %v188
    %s190 = scalar_lea.vmem [#allocation7], 540
    %v191 = vld [vmem:[%s190] ss:$2 sm:$0xff]
    %192 = vst [vmem:[#allocation6 + $0x3f0] sm:$0xff] %v191
    %s193 = scalar_lea.vmem [#allocation7], 576
    %v194 = vld [vmem:[%s193] ss:$2 sm:$0xff]
    %195 = vst [vmem:[#allocation6 + $0x438] sm:$0xff] %v194
    %s196 = scalar_lea.vmem [#allocation7], 1
    %v197 = vld [vmem:[%s196] ss:$2 sm:$0xff]
    %198 = vst [vmem:[#allocation6 + $0x8] sm:$0xff] %v197
    %s199 = scalar_lea.vmem [#allocation7], 37
    %v200 = vld [vmem:[%s199] ss:$2 sm:$0xff]
    %201 = vst [vmem:[#allocation6 + $0x50] sm:$0xff] %v200
    %s202 = scalar_lea.vmem [#allocation7], 73
    %v203 = vld [vmem:[%s202] ss:$2 sm:$0xff]
    %204 = vst [vmem:[#allocation6 + $0x98] sm:$0xff] %v203
    %s205 = scalar_lea.vmem [#allocation7], 109
    %v206 = vld [vmem:[%s205] ss:$2 sm:$0xff]
    %207 = vst [vmem:[#allocation6 + $0xe0] sm:$0xff] %v206
    %s208 = scalar_lea.vmem [#allocation7], 145
    %v209 = vld [vmem:[%s208] ss:$2 sm:$0xff]
    %210 = vst [vmem:[#allocation6 + $0x128] sm:$0xff] %v209
    %s211 = scalar_lea.vmem [#allocation7], 181
    %v212 = vld [vmem:[%s211] ss:$2 sm:$0xff]
    %213 = vst [vmem:[#allocation6 + $0x170] sm:$0xff] %v212
    %s214 = scalar_lea.vmem [#allocation7], 217
    %v215 = vld [vmem:[%s214] ss:$2 sm:$0xff]
    %216 = vst [vmem:[#allocation6 + $0x1b8] sm:$0xff] %v215
    %s217 = scalar_lea.vmem [#allocation7], 253
    %v218 = vld [vmem:[%s217] ss:$2 sm:$0xff]
    %219 = vst [vmem:[#allocation6 + $0x200] sm:$0xff] %v218
    %s220 = scalar_lea.vmem [#allocation7], 325
    %v221 = vld [vmem:[%s220] ss:$2 sm:$0xff]
    %222 = vst [vmem:[#allocation6 + $0x248] sm:$0xff] %v221
    %s223 = scalar_lea.vmem [#allocation7], 361
    %v224 = vld [vmem:[%s223] ss:$2 sm:$0xff]
    %225 = vst [vmem:[#allocation6 + $0x290] sm:$0xff] %v224
    %s226 = scalar_lea.vmem [#allocation7], 397
    %v227 = vld [vmem:[%s226] ss:$2 sm:$0xff]
    %228 = vst [vmem:[#allocation6 + $0x2d8] sm:$0xff] %v227
    %s229 = scalar_lea.vmem [#allocation7], 433
    %v230 = vld [vmem:[%s229] ss:$2 sm:$0xff]
    %231 = vst [vmem:[#allocation6 + $0x320] sm:$0xff] %v230
    %s232 = scalar_lea.vmem [#allocation7], 469
    %v233 = vld [vmem:[%s232] ss:$2 sm:$0xff]
    %234 = vst [vmem:[#allocation6 + $0x368] sm:$0xff] %v233
    %s235 = scalar_lea.vmem [#allocation7], 505
    %v236 = vld [vmem:[%s235] ss:$2 sm:$0xff]
    %237 = vst [vmem:[#allocation6 + $0x3b0] sm:$0xff] %v236
    %s238 = scalar_lea.vmem [#allocation7], 541
    %v239 = vld [vmem:[%s238] ss:$2 sm:$0xff]
    %240 = vst [vmem:[#allocation6 + $0x3f8] sm:$0xff] %v239
    %s241 = scalar_lea.vmem [#allocation7], 577
    %v242 = vld [vmem:[%s241] ss:$2 sm:$0xff]
    %243 = vst [vmem:[#allocation6 + $0x440] sm:$0xff] %v242
    %s244 = scalar_lea.vmem [#allocation7], 2
    %v245 = vld [vmem:[%s244] ss:$2 sm:$0xff]
    %246 = vst [vmem:[#allocation6 + $0x10] sm:$0xff] %v245
    %s247 = scalar_lea.vmem [#allocation7], 38
    %v248 = vld [vmem:[%s247] ss:$2 sm:$0xff]
    %249 = vst [vmem:[#allocation6 + $0x58] sm:$0xff] %v248
    %s250 = scalar_lea.vmem [#allocation7], 74
    %v251 = vld [vmem:[%s250] ss:$2 sm:$0xff]
    %252 = vst [vmem:[#allocation6 + $0xa0] sm:$0xff] %v251
    %s253 = scalar_lea.vmem [#allocation7], 110
    %v254 = vld [vmem:[%s253] ss:$2 sm:$0xff]
    %255 = vst [vmem:[#allocation6 + $0xe8] sm:$0xff] %v254
    %s256 = scalar_lea.vmem [#allocation7], 146
    %v257 = vld [vmem:[%s256] ss:$2 sm:$0xff]
    %258 = vst [vmem:[#allocation6 + $0x130] sm:$0xff] %v257
    %s259 = scalar_lea.vmem [#allocation7], 182
    %v260 = vld [vmem:[%s259] ss:$2 sm:$0xff]
    %261 = vst [vmem:[#allocation6 + $0x178] sm:$0xff] %v260
    %s262 = scalar_lea.vmem [#allocation7], 218
    %v263 = vld [vmem:[%s262] ss:$2 sm:$0xff]
    %264 = vst [vmem:[#allocation6 + $0x1c0] sm:$0xff] %v263
    %s265 = scalar_lea.vmem [#allocation7], 254
    %v266 = vld [vmem:[%s265] ss:$2 sm:$0xff]
    %267 = vst [vmem:[#allocation6 + $0x208] sm:$0xff] %v266
    %s268 = scalar_lea.vmem [#allocation7], 326
    %v269 = vld [vmem:[%s268] ss:$2 sm:$0xff]
    %270 = vst [vmem:[#allocation6 + $0x250] sm:$0xff] %v269
    %s271 = scalar_lea.vmem [#allocation7], 362
    %v272 = vld [vmem:[%s271] ss:$2 sm:$0xff]
    %273 = vst [vmem:[#allocation6 + $0x298] sm:$0xff] %v272
    %s274 = scalar_lea.vmem [#allocation7], 398
    %v275 = vld [vmem:[%s274] ss:$2 sm:$0xff]
    %276 = vst [vmem:[#allocation6 + $0x2e0] sm:$0xff] %v275
    %s277 = scalar_lea.vmem [#allocation7], 434
    %v278 = vld [vmem:[%s277] ss:$2 sm:$0xff]
    %279 = vst [vmem:[#allocation6 + $0x328] sm:$0xff] %v278
    %s280 = scalar_lea.vmem [#allocation7], 470
    %v281 = vld [vmem:[%s280] ss:$2 sm:$0xff]
    %282 = vst [vmem:[#allocation6 + $0x370] sm:$0xff] %v281
    %s283 = scalar_lea.vmem [#allocation7], 506
    %v284 = vld [vmem:[%s283] ss:$2 sm:$0xff]
    %285 = vst [vmem:[#allocation6 + $0x3b8] sm:$0xff] %v284
    %s286 = scalar_lea.vmem [#allocation7], 542
    %v287 = vld [vmem:[%s286] ss:$2 sm:$0xff]
    %288 = vst [vmem:[#allocation6 + $0x400] sm:$0xff] %v287
    %s289 = scalar_lea.vmem [#allocation7], 578
    %v290 = vld [vmem:[%s289] ss:$2 sm:$0xff]
    %291 = vst [vmem:[#allocation6 + $0x448] sm:$0xff] %v290
    %s292 = scalar_lea.vmem [#allocation7], 18
    %v293 = vld [vmem:[%s292] ss:$2 sm:$0xff]
    %294 = vst [vmem:[#allocation6 + $0x18] sm:$0xff] %v293
    %s295 = scalar_lea.vmem [#allocation7], 54
    %v296 = vld [vmem:[%s295] ss:$2 sm:$0xff]
    %297 = vst [vmem:[#allocation6 + $0x60] sm:$0xff] %v296
    %s298 = scalar_lea.vmem [#allocation7], 90
    %v299 = vld [vmem:[%s298] ss:$2 sm:$0xff]
    %300 = vst [vmem:[#allocation6 + $0xa8] sm:$0xff] %v299
    %s301 = scalar_lea.vmem [#allocation7], 126
    %v302 = vld [vmem:[%s301] ss:$2 sm:$0xff]
    %303 = vst [vmem:[#allocation6 + $0xf0] sm:$0xff] %v302
    %s304 = scalar_lea.vmem [#allocation7], 162
    %v305 = vld [vmem:[%s304] ss:$2 sm:$0xff]
    %306 = vst [vmem:[#allocation6 + $0x138] sm:$0xff] %v305
    %s307 = scalar_lea.vmem [#allocation7], 198
    %v308 = vld [vmem:[%s307] ss:$2 sm:$0xff]
    %309 = vst [vmem:[#allocation6 + $0x180] sm:$0xff] %v308
    %s310 = scalar_lea.vmem [#allocation7], 234
    %v311 = vld [vmem:[%s310] ss:$2 sm:$0xff]
    %312 = vst [vmem:[#allocation6 + $0x1c8] sm:$0xff] %v311
    %s313 = scalar_lea.vmem [#allocation7], 270
    %v314 = vld [vmem:[%s313] ss:$2 sm:$0xff]
    %315 = vst [vmem:[#allocation6 + $0x210] sm:$0xff] %v314
    %s316 = scalar_lea.vmem [#allocation7], 342
    %v317 = vld [vmem:[%s316] ss:$2 sm:$0xff]
    %318 = vst [vmem:[#allocation6 + $0x258] sm:$0xff] %v317
    %s319 = scalar_lea.vmem [#allocation7], 378
    %v320 = vld [vmem:[%s319] ss:$2 sm:$0xff]
    %321 = vst [vmem:[#allocation6 + $0x2a0] sm:$0xff] %v320
    %s322 = scalar_lea.vmem [#allocation7], 414
    %v323 = vld [vmem:[%s322] ss:$2 sm:$0xff]
    %324 = vst [vmem:[#allocation6 + $0x2e8] sm:$0xff] %v323
    %s325 = scalar_lea.vmem [#allocation7], 450
    %v326 = vld [vmem:[%s325] ss:$2 sm:$0xff]
    %327 = vst [vmem:[#allocation6 + $0x330] sm:$0xff] %v326
    %s328 = scalar_lea.vmem [#allocation7], 486
    %v329 = vld [vmem:[%s328] ss:$2 sm:$0xff]
    %330 = vst [vmem:[#allocation6 + $0x378] sm:$0xff] %v329
    %s331 = scalar_lea.vmem [#allocation7], 522
    %v332 = vld [vmem:[%s331] ss:$2 sm:$0xff]
    %333 = vst [vmem:[#allocation6 + $0x3c0] sm:$0xff] %v332
    %s334 = scalar_lea.vmem [#allocation7], 558
    %v335 = vld [vmem:[%s334] ss:$2 sm:$0xff]
    %336 = vst [vmem:[#allocation6 + $0x408] sm:$0xff] %v335
    %s337 = scalar_lea.vmem [#allocation7], 594
    %v338 = vld [vmem:[%s337] ss:$2 sm:$0xff]
    %339 = vst [vmem:[#allocation6 + $0x450] sm:$0xff] %v338
    %s340 = scalar_lea.vmem [#allocation7], 19
    %v341 = vld [vmem:[%s340] ss:$2 sm:$0xff]
    %342 = vst [vmem:[#allocation6 + $0x20] sm:$0xff] %v341
    %s343 = scalar_lea.vmem [#allocation7], 55
    %v344 = vld [vmem:[%s343] ss:$2 sm:$0xff]
    %345 = vst [vmem:[#allocation6 + $0x68] sm:$0xff] %v344
    %s346 = scalar_lea.vmem [#allocation7], 91
    %v347 = vld [vmem:[%s346] ss:$2 sm:$0xff]
    %348 = vst [vmem:[#allocation6 + $0xb0] sm:$0xff] %v347
    %s349 = scalar_lea.vmem [#allocation7], 127
    %v350 = vld [vmem:[%s349] ss:$2 sm:$0xff]
    %351 = vst [vmem:[#allocation6 + $0xf8] sm:$0xff] %v350
    %s352 = scalar_lea.vmem [#allocation7], 163
    %v353 = vld [vmem:[%s352] ss:$2 sm:$0xff]
    %354 = vst [vmem:[#allocation6 + $0x140] sm:$0xff] %v353
    %s355 = scalar_lea.vmem [#allocation7], 199
    %v356 = vld [vmem:[%s355] ss:$2 sm:$0xff]
    %357 = vst [vmem:[#allocation6 + $0x188] sm:$0xff] %v356
    %s358 = scalar_lea.vmem [#allocation7], 235
    %v359 = vld [vmem:[%s358] ss:$2 sm:$0xff]
    %360 = vst [vmem:[#allocation6 + $0x1d0] sm:$0xff] %v359
    %s361 = scalar_lea.vmem [#allocation7], 271
    %v362 = vld [vmem:[%s361] ss:$2 sm:$0xff]
    %363 = vst [vmem:[#allocation6 + $0x218] sm:$0xff] %v362
    %s364 = scalar_lea.vmem [#allocation7], 343
    %v365 = vld [vmem:[%s364] ss:$2 sm:$0xff]
    %366 = vst [vmem:[#allocation6 + $0x260] sm:$0xff] %v365
    %s367 = scalar_lea.vmem [#allocation7], 379
    %v368 = vld [vmem:[%s367] ss:$2 sm:$0xff]
    %369 = vst [vmem:[#allocation6 + $0x2a8] sm:$0xff] %v368
    %s370 = scalar_lea.vmem [#allocation7], 415
    %v371 = vld [vmem:[%s370] ss:$2 sm:$0xff]
    %372 = vst [vmem:[#allocation6 + $0x2f0] sm:$0xff] %v371
    %s373 = scalar_lea.vmem [#allocation7], 451
    %v374 = vld [vmem:[%s373] ss:$2 sm:$0xff]
    %375 = vst [vmem:[#allocation6 + $0x338] sm:$0xff] %v374
    %s376 = scalar_lea.vmem [#allocation7], 487
    %v377 = vld [vmem:[%s376] ss:$2 sm:$0xff]
    %378 = vst [vmem:[#allocation6 + $0x380] sm:$0xff] %v377
    %s379 = scalar_lea.vmem [#allocation7], 523
    %v380 = vld [vmem:[%s379] ss:$2 sm:$0xff]
    %381 = vst [vmem:[#allocation6 + $0x3c8] sm:$0xff] %v380
    %s382 = scalar_lea.vmem [#allocation7], 559
    %v383 = vld [vmem:[%s382] ss:$2 sm:$0xff]
    %384 = vst [vmem:[#allocation6 + $0x410] sm:$0xff] %v383
    %s385 = scalar_lea.vmem [#allocation7], 595
    %v386 = vld [vmem:[%s385] ss:$2 sm:$0xff]
    %387 = vst [vmem:[#allocation6 + $0x458] sm:$0xff] %v386
    %s388 = scalar_lea.vmem [#allocation7], 20
    %v389 = vld [vmem:[%s388] ss:$2 sm:$0xff]
    %390 = vst [vmem:[#allocation6 + $0x28] sm:$0xff] %v389
    %s391 = scalar_lea.vmem [#allocation7], 56
    %v392 = vld [vmem:[%s391] ss:$2 sm:$0xff]
    %393 = vst [vmem:[#allocation6 + $0x70] sm:$0xff] %v392
    %s394 = scalar_lea.vmem [#allocation7], 92
    %v395 = vld [vmem:[%s394] ss:$2 sm:$0xff]
    %396 = vst [vmem:[#allocation6 + $0xb8] sm:$0xff] %v395
    %s397 = scalar_lea.vmem [#allocation7], 128
    %v398 = vld [vmem:[%s397] ss:$2 sm:$0xff]
    %399 = vst [vmem:[#allocation6 + $0x100] sm:$0xff] %v398
    %s400 = scalar_lea.vmem [#allocation7], 164
    %v401 = vld [vmem:[%s400] ss:$2 sm:$0xff]
    %402 = vst [vmem:[#allocation6 + $0x148] sm:$0xff] %v401
    %s403 = scalar_lea.vmem [#allocation7], 200
    %v404 = vld [vmem:[%s403] ss:$2 sm:$0xff]
    %405 = vst [vmem:[#allocation6 + $0x190] sm:$0xff] %v404
    %s406 = scalar_lea.vmem [#allocation7], 236
    %v407 = vld [vmem:[%s406] ss:$2 sm:$0xff]
    %408 = vst [vmem:[#allocation6 + $0x1d8] sm:$0xff] %v407
    %s409 = scalar_lea.vmem [#allocation7], 272
    %v410 = vld [vmem:[%s409] ss:$2 sm:$0xff]
    %411 = vst [vmem:[#allocation6 + $0x220] sm:$0xff] %v410
    %s412 = scalar_lea.vmem [#allocation7], 344
    %v413 = vld [vmem:[%s412] ss:$2 sm:$0xff]
    %414 = vst [vmem:[#allocation6 + $0x268] sm:$0xff] %v413
    %s415 = scalar_lea.vmem [#allocation7], 380
    %v416 = vld [vmem:[%s415] ss:$2 sm:$0xff]
    %417 = vst [vmem:[#allocation6 + $0x2b0] sm:$0xff] %v416
    %s418 = scalar_lea.vmem [#allocation7], 416
    %v419 = vld [vmem:[%s418] ss:$2 sm:$0xff]
    %420 = vst [vmem:[#allocation6 + $0x2f8] sm:$0xff] %v419
    %s421 = scalar_lea.vmem [#allocation7], 452
    %v422 = vld [vmem:[%s421] ss:$2 sm:$0xff]
    %423 = vst [vmem:[#allocation6 + $0x340] sm:$0xff] %v422
    %s424 = scalar_lea.vmem [#allocation7], 488
    %v425 = vld [vmem:[%s424] ss:$2 sm:$0xff]
    %426 = vst [vmem:[#allocation6 + $0x388] sm:$0xff] %v425
    %s427 = scalar_lea.vmem [#allocation7], 524
    %v428 = vld [vmem:[%s427] ss:$2 sm:$0xff]
    %429 = vst [vmem:[#allocation6 + $0x3d0] sm:$0xff] %v428
    %s430 = scalar_lea.vmem [#allocation7], 560
    %v431 = vld [vmem:[%s430] ss:$2 sm:$0xff]
    %432 = vst [vmem:[#allocation6 + $0x418] sm:$0xff] %v431
    %s433 = scalar_lea.vmem [#allocation7], 596
    %v434 = vld [vmem:[%s433] ss:$2 sm:$0xff]
    %435 = vst [vmem:[#allocation6 + $0x460] sm:$0xff] %v434
    %v436 = vld [vmem:[%s151] ss:$2 sm:$0xff]
    %437 = vst [vmem:[#allocation6 + $0x30] sm:$0xff] %v436
    %v438 = vld [vmem:[%s154] ss:$2 sm:$0xff]
    %439 = vst [vmem:[#allocation6 + $0x78] sm:$0xff] %v438
    %v440 = vld [vmem:[%s157] ss:$2 sm:$0xff]
    %441 = vst [vmem:[#allocation6 + $0xc0] sm:$0xff] %v440
    %v442 = vld [vmem:[%s160] ss:$2 sm:$0xff]
    %443 = vst [vmem:[#allocation6 + $0x108] sm:$0xff] %v442
    %v444 = vld [vmem:[%s163] ss:$2 sm:$0xff]
    %445 = vst [vmem:[#allocation6 + $0x150] sm:$0xff] %v444
    %v446 = vld [vmem:[%s166] ss:$2 sm:$0xff]
    %447 = vst [vmem:[#allocation6 + $0x198] sm:$0xff] %v446
    %v448 = vld [vmem:[%s169] ss:$2 sm:$0xff]
    %449 = vst [vmem:[#allocation6 + $0x1e0] sm:$0xff] %v448
    %s450 = scalar_lea.vmem [#allocation7], 288
    %v451 = vld [vmem:[%s450] ss:$2 sm:$0xff]
    %452 = vst [vmem:[#allocation6 + $0x228] sm:$0xff] %v451
    %v453 = vld [vmem:[%s175] ss:$2 sm:$0xff]
    %454 = vst [vmem:[#allocation6 + $0x270] sm:$0xff] %v453
    %v455 = vld [vmem:[%s178] ss:$2 sm:$0xff]
    %456 = vst [vmem:[#allocation6 + $0x2b8] sm:$0xff] %v455
    %v457 = vld [vmem:[%s181] ss:$2 sm:$0xff]
    %458 = vst [vmem:[#allocation6 + $0x300] sm:$0xff] %v457
    %v459 = vld [vmem:[%s184] ss:$2 sm:$0xff]
    %460 = vst [vmem:[#allocation6 + $0x348] sm:$0xff] %v459
    %v461 = vld [vmem:[%s187] ss:$2 sm:$0xff]
    %462 = vst [vmem:[#allocation6 + $0x390] sm:$0xff] %v461
    %v463 = vld [vmem:[%s190] ss:$2 sm:$0xff]
    %464 = vst [vmem:[#allocation6 + $0x3d8] sm:$0xff] %v463
    %v465 = vld [vmem:[%s193] ss:$2 sm:$0xff]
    %466 = vst [vmem:[#allocation6 + $0x420] sm:$0xff] %v465
    %s467 = scalar_lea.vmem [#allocation7], 612
    %v468 = vld [vmem:[%s467] ss:$2 sm:$0xff]
    %469 = vst [vmem:[#allocation6 + $0x468] sm:$0xff] %v468
    %v470 = vld [vmem:[%s199] ss:$2 sm:$0xff]
    %471 = vst [vmem:[#allocation6 + $0x38] sm:$0xff] %v470
    %v472 = vld [vmem:[%s202] ss:$2 sm:$0xff]
    %473 = vst [vmem:[#allocation6 + $0x80] sm:$0xff] %v472
    %v474 = vld [vmem:[%s205] ss:$2 sm:$0xff]
    %475 = vst [vmem:[#allocation6 + $0xc8] sm:$0xff] %v474
    %v476 = vld [vmem:[%s208] ss:$2 sm:$0xff]
    %477 = vst [vmem:[#allocation6 + $0x110] sm:$0xff] %v476
    %v478 = vld [vmem:[%s211] ss:$2 sm:$0xff]
    %479 = vst [vmem:[#allocation6 + $0x158] sm:$0xff] %v478
    %v480 = vld [vmem:[%s214] ss:$2 sm:$0xff]
    %481 = vst [vmem:[#allocation6 + $0x1a0] sm:$0xff] %v480
    %v482 = vld [vmem:[%s217] ss:$2 sm:$0xff]
    %483 = vst [vmem:[#allocation6 + $0x1e8] sm:$0xff] %v482
    %s484 = scalar_lea.vmem [#allocation7], 289
    %v485 = vld [vmem:[%s484] ss:$2 sm:$0xff]
    %486 = vst [vmem:[#allocation6 + $0x230] sm:$0xff] %v485
    %v487 = vld [vmem:[%s223] ss:$2 sm:$0xff]
    %488 = vst [vmem:[#allocation6 + $0x278] sm:$0xff] %v487
    %v489 = vld [vmem:[%s226] ss:$2 sm:$0xff]
    %490 = vst [vmem:[#allocation6 + $0x2c0] sm:$0xff] %v489
    %v491 = vld [vmem:[%s229] ss:$2 sm:$0xff]
    %492 = vst [vmem:[#allocation6 + $0x308] sm:$0xff] %v491
    %v493 = vld [vmem:[%s232] ss:$2 sm:$0xff]
    %494 = vst [vmem:[#allocation6 + $0x350] sm:$0xff] %v493
    %v495 = vld [vmem:[%s235] ss:$2 sm:$0xff]
    %496 = vst [vmem:[#allocation6 + $0x398] sm:$0xff] %v495
    %v497 = vld [vmem:[%s238] ss:$2 sm:$0xff]
    %498 = vst [vmem:[#allocation6 + $0x3e0] sm:$0xff] %v497
    %v499 = vld [vmem:[%s241] ss:$2 sm:$0xff]
    %500 = vst [vmem:[#allocation6 + $0x428] sm:$0xff] %v499
    %s501 = scalar_lea.vmem [#allocation7], 613
    %v502 = vld [vmem:[%s501] ss:$2 sm:$0xff]
    %503 = vst [vmem:[#allocation6 + $0x470] sm:$0xff] %v502
    %v504 = vld [vmem:[%s247] ss:$2 sm:$0xff]
    %505 = vst [vmem:[#allocation6 + $0x40] sm:$0xff] %v504
    %v506 = vld [vmem:[%s250] ss:$2 sm:$0xff]
    %507 = vst [vmem:[#allocation6 + $0x88] sm:$0xff] %v506
    %v508 = vld [vmem:[%s253] ss:$2 sm:$0xff]
    %509 = vst [vmem:[#allocation6 + $0xd0] sm:$0xff] %v508
    %v510 = vld [vmem:[%s256] ss:$2 sm:$0xff]
    %511 = vst [vmem:[#allocation6 + $0x118] sm:$0xff] %v510
    %v512 = vld [vmem:[%s259] ss:$2 sm:$0xff]
    %513 = vst [vmem:[#allocation6 + $0x160] sm:$0xff] %v512
    %v514 = vld [vmem:[%s262] ss:$2 sm:$0xff]
    %515 = vst [vmem:[#allocation6 + $0x1a8] sm:$0xff] %v514
    %v516 = vld [vmem:[%s265] ss:$2 sm:$0xff]
    %517 = vst [vmem:[#allocation6 + $0x1f0] sm:$0xff] %v516
    %s518 = scalar_lea.vmem [#allocation7], 290
    %v519 = vld [vmem:[%s518] ss:$2 sm:$0xff]
    %520 = vst [vmem:[#allocation6 + $0x238] sm:$0xff] %v519
    %v521 = vld [vmem:[%s271] ss:$2 sm:$0xff]
    %522 = vst [vmem:[#allocation6 + $0x280] sm:$0xff] %v521
    %v523 = vld [vmem:[%s274] ss:$2 sm:$0xff]
    %524 = vst [vmem:[#allocation6 + $0x2c8] sm:$0xff] %v523
    %v525 = vld [vmem:[%s277] ss:$2 sm:$0xff]
    %526 = vst [vmem:[#allocation6 + $0x310] sm:$0xff] %v525
    %v527 = vld [vmem:[%s280] ss:$2 sm:$0xff]
    %528 = vst [vmem:[#allocation6 + $0x358] sm:$0xff] %v527
    %v529 = vld [vmem:[%s283] ss:$2 sm:$0xff]
    %530 = vst [vmem:[#allocation6 + $0x3a0] sm:$0xff] %v529
    %v531 = vld [vmem:[%s286] ss:$2 sm:$0xff]
    %532 = vst [vmem:[#allocation6 + $0x3e8] sm:$0xff] %v531
    %v533 = vld [vmem:[%s289] ss:$2 sm:$0xff]
    %534 = vst [vmem:[#allocation6 + $0x430] sm:$0xff] %v533
    %s535 = scalar_lea.vmem [#allocation7], 614
    %v536 = vld [vmem:[%s535] ss:$2 sm:$0xff]
    %537 = vst [vmem:[#allocation6 + $0x478] sm:$0xff] %v536
    %v538 = vld [vmem:[#allocation6] sm:$0xff]
    %v539 = vld [vmem:[#allocation6 + $0x8] sm:$0xff]
    %v540 = vld [vmem:[#allocation6 + $0x10] sm:$0xff]
    %v541 = vld [vmem:[#allocation6 + $0x18] sm:$0xff]
    %v542 = vld [vmem:[#allocation6 + $0x20] sm:$0xff]
    %v543 = vld [vmem:[#allocation6 + $0x28] sm:$0xff]
    %v544 = vld [vmem:[#allocation6 + $0x30] sm:$0xff]
    %v545 = vld [vmem:[#allocation6 + $0x38] sm:$0xff]
    %v546 = vld [vmem:[#allocation6 + $0x40] sm:$0xff]
    %v547 = vld [vmem:[#allocation6 + $0x48] sm:$0xff]
    %v548 = vld [vmem:[#allocation6 + $0x50] sm:$0xff]
    %v549 = vld [vmem:[#allocation6 + $0x58] sm:$0xff]
    %v550 = vld [vmem:[#allocation6 + $0x60] sm:$0xff]
    %v551 = vld [vmem:[#allocation6 + $0x68] sm:$0xff]
    %v552 = vld [vmem:[#allocation6 + $0x70] sm:$0xff]
    %v553 = vld [vmem:[#allocation6 + $0x78] sm:$0xff]
    %v554 = vld [vmem:[#allocation6 + $0x80] sm:$0xff]
    %v555 = vld [vmem:[#allocation6 + $0x88] sm:$0xff]
    %v556 = vld [vmem:[#allocation6 + $0x90] sm:$0xff]
    %v557 = vld [vmem:[#allocation6 + $0x98] sm:$0xff]
    %v558 = vld [vmem:[#allocation6 + $0xa0] sm:$0xff]
    %v559 = vld [vmem:[#allocation6 + $0xa8] sm:$0xff]
    %v560 = vld [vmem:[#allocation6 + $0xb0] sm:$0xff]
    %v561 = vld [vmem:[#allocation6 + $0xb8] sm:$0xff]
    %v562 = vld [vmem:[#allocation6 + $0xc0] sm:$0xff]
    %v563 = vld [vmem:[#allocation6 + $0xc8] sm:$0xff]
    %v564 = vld [vmem:[#allocation6 + $0xd0] sm:$0xff]
    %v565 = vld [vmem:[#allocation6 + $0xd8] sm:$0xff]
    %v566 = vld [vmem:[#allocation6 + $0xe0] sm:$0xff]
    %v567 = vld [vmem:[#allocation6 + $0xe8] sm:$0xff]
    %v568 = vld [vmem:[#allocation6 + $0xf0] sm:$0xff]
    %v569 = vld [vmem:[#allocation6 + $0xf8] sm:$0xff]
    %v570 = vld [vmem:[#allocation6 + $0x100] sm:$0xff]
    %v571 = vld [vmem:[#allocation6 + $0x108] sm:$0xff]
    %v572 = vld [vmem:[#allocation6 + $0x110] sm:$0xff]
    %v573 = vld [vmem:[#allocation6 + $0x118] sm:$0xff]
    %v574 = vld [vmem:[#allocation6 + $0x120] sm:$0xff]
    %v575 = vld [vmem:[#allocation6 + $0x128] sm:$0xff]
    %v576 = vld [vmem:[#allocation6 + $0x130] sm:$0xff]
    %v577 = vld [vmem:[#allocation6 + $0x138] sm:$0xff]
    %v578 = vld [vmem:[#allocation6 + $0x140] sm:$0xff]
    %v579 = vld [vmem:[#allocation6 + $0x148] sm:$0xff]
    %v580 = vld [vmem:[#allocation6 + $0x150] sm:$0xff]
    %v581 = vld [vmem:[#allocation6 + $0x158] sm:$0xff]
    %v582 = vld [vmem:[#allocation6 + $0x160] sm:$0xff]
    %v583 = vld [vmem:[#allocation6 + $0x168] sm:$0xff]
    %v584 = vld [vmem:[#allocation6 + $0x170] sm:$0xff]
    %v585 = vld [vmem:[#allocation6 + $0x178] sm:$0xff]
    %v586 = vld [vmem:[#allocation6 + $0x180] sm:$0xff]
    %v587 = vld [vmem:[#allocation6 + $0x188] sm:$0xff]
    %v588 = vld [vmem:[#allocation6 + $0x190] sm:$0xff]
    %v589 = vld [vmem:[#allocation6 + $0x198] sm:$0xff]
    %v590 = vld [vmem:[#allocation6 + $0x1a0] sm:$0xff]
    %v591 = vld [vmem:[#allocation6 + $0x1a8] sm:$0xff]
    %v592 = vld [vmem:[#allocation6 + $0x1b0] sm:$0xff]
    %v593 = vld [vmem:[#allocation6 + $0x1b8] sm:$0xff]
    %v594 = vld [vmem:[#allocation6 + $0x1c0] sm:$0xff]
    %v595 = vld [vmem:[#allocation6 + $0x1c8] sm:$0xff]
    %v596 = vld [vmem:[#allocation6 + $0x1d0] sm:$0xff]
    %v597 = vld [vmem:[#allocation6 + $0x1d8] sm:$0xff]
    %v598 = vld [vmem:[#allocation6 + $0x1e0] sm:$0xff]
    %v599 = vld [vmem:[#allocation6 + $0x1e8] sm:$0xff]
    %v600 = vld [vmem:[#allocation6 + $0x1f0] sm:$0xff]
    %v601 = vld [vmem:[#allocation6 + $0x1f8] sm:$0xff]
    %v602 = vld [vmem:[#allocation6 + $0x200] sm:$0xff]
    %v603 = vld [vmem:[#allocation6 + $0x208] sm:$0xff]
    %v604 = vld [vmem:[#allocation6 + $0x210] sm:$0xff]
    %v605 = vld [vmem:[#allocation6 + $0x218] sm:$0xff]
    %v606 = vld [vmem:[#allocation6 + $0x220] sm:$0xff]
    %v607 = vld [vmem:[#allocation6 + $0x228] sm:$0xff]
    %v608 = vld [vmem:[#allocation6 + $0x230] sm:$0xff]
    %v609 = vld [vmem:[#allocation6 + $0x238] sm:$0xff]
    %v610 = vld [vmem:[#allocation6 + $0x240] sm:$0xff]
    %v611 = vld [vmem:[#allocation6 + $0x248] sm:$0xff]
    %v612 = vld [vmem:[#allocation6 + $0x250] sm:$0xff]
    %v613 = vld [vmem:[#allocation6 + $0x258] sm:$0xff]
    %v614 = vld [vmem:[#allocation6 + $0x260] sm:$0xff]
    %v615 = vld [vmem:[#allocation6 + $0x268] sm:$0xff]
    %v616 = vld [vmem:[#allocation6 + $0x270] sm:$0xff]
    %v617 = vld [vmem:[#allocation6 + $0x278] sm:$0xff]
    %v618 = vld [vmem:[#allocation6 + $0x280] sm:$0xff]
    %v619 = vld [vmem:[#allocation6 + $0x288] sm:$0xff]
    %v620 = vld [vmem:[#allocation6 + $0x290] sm:$0xff]
    %v621 = vld [vmem:[#allocation6 + $0x298] sm:$0xff]
    %v622 = vld [vmem:[#allocation6 + $0x2a0] sm:$0xff]
    %v623 = vld [vmem:[#allocation6 + $0x2a8] sm:$0xff]
    %v624 = vld [vmem:[#allocation6 + $0x2b0] sm:$0xff]
    %v625 = vld [vmem:[#allocation6 + $0x2b8] sm:$0xff]
    %v626 = vld [vmem:[#allocation6 + $0x2c0] sm:$0xff]
    %v627 = vld [vmem:[#allocation6 + $0x2c8] sm:$0xff]
    %v628 = vld [vmem:[#allocation6 + $0x2d0] sm:$0xff]
    %v629 = vld [vmem:[#allocation6 + $0x2d8] sm:$0xff]
    %v630 = vld [vmem:[#allocation6 + $0x2e0] sm:$0xff]
    %v631 = vld [vmem:[#allocation6 + $0x2e8] sm:$0xff]
    %v632 = vld [vmem:[#allocation6 + $0x2f0] sm:$0xff]
    %v633 = vld [vmem:[#allocation6 + $0x2f8] sm:$0xff]
    %v634 = vld [vmem:[#allocation6 + $0x300] sm:$0xff]
    %v635 = vld [vmem:[#allocation6 + $0x308] sm:$0xff]
    %v636 = vld [vmem:[#allocation6 + $0x310] sm:$0xff]
    %v637 = vld [vmem:[#allocation6 + $0x318] sm:$0xff]
    %v638 = vld [vmem:[#allocation6 + $0x320] sm:$0xff]
    %v639 = vld [vmem:[#allocation6 + $0x328] sm:$0xff]
    %v640 = vld [vmem:[#allocation6 + $0x330] sm:$0xff]
    %v641 = vld [vmem:[#allocation6 + $0x338] sm:$0xff]
    %v642 = vld [vmem:[#allocation6 + $0x340] sm:$0xff]
    %v643 = vld [vmem:[#allocation6 + $0x348] sm:$0xff]
    %v644 = vld [vmem:[#allocation6 + $0x350] sm:$0xff]
    %v645 = vld [vmem:[#allocation6 + $0x358] sm:$0xff]
    %v646 = vld [vmem:[#allocation6 + $0x360] sm:$0xff]
    %v647 = vld [vmem:[#allocation6 + $0x368] sm:$0xff]
    %v648 = vld [vmem:[#allocation6 + $0x370] sm:$0xff]
    %v649 = vld [vmem:[#allocation6 + $0x378] sm:$0xff]
    %v650 = vld [vmem:[#allocation6 + $0x380] sm:$0xff]
    %v651 = vld [vmem:[#allocation6 + $0x388] sm:$0xff]
    %v652 = vld [vmem:[#allocation6 + $0x390] sm:$0xff]
    %v653 = vld [vmem:[#allocation6 + $0x398] sm:$0xff]
    %v654 = vld [vmem:[#allocation6 + $0x3a0] sm:$0xff]
    %v655 = vld [vmem:[#allocation6 + $0x3a8] sm:$0xff]
    %v656 = vld [vmem:[#allocation6 + $0x3b0] sm:$0xff]
    %v657 = vld [vmem:[#allocation6 + $0x3b8] sm:$0xff]
    %v658 = vld [vmem:[#allocation6 + $0x3c0] sm:$0xff]
    %v659 = vld [vmem:[#allocation6 + $0x3c8] sm:$0xff]
    %v660 = vld [vmem:[#allocation6 + $0x3d0] sm:$0xff]
    %v661 = vld [vmem:[#allocation6 + $0x3d8] sm:$0xff]
    %v662 = vld [vmem:[#allocation6 + $0x3e0] sm:$0xff]
    %v663 = vld [vmem:[#allocation6 + $0x3e8] sm:$0xff]
    %v664 = vld [vmem:[#allocation6 + $0x3f0] sm:$0xff]
    %v665 = vld [vmem:[#allocation6 + $0x3f8] sm:$0xff]
    %v666 = vld [vmem:[#allocation6 + $0x400] sm:$0xff]
    %v667 = vld [vmem:[#allocation6 + $0x408] sm:$0xff]
    %v668 = vld [vmem:[#allocation6 + $0x410] sm:$0xff]
    %v669 = vld [vmem:[#allocation6 + $0x418] sm:$0xff]
    %v670 = vld [vmem:[#allocation6 + $0x420] sm:$0xff]
    %v671 = vld [vmem:[#allocation6 + $0x428] sm:$0xff]
    %v672 = vld [vmem:[#allocation6 + $0x430] sm:$0xff]
    %v673 = vld [vmem:[#allocation6 + $0x438] sm:$0xff]
    %v674 = vld [vmem:[#allocation6 + $0x440] sm:$0xff]
    %v675 = vld [vmem:[#allocation6 + $0x448] sm:$0xff]
    %v676 = vld [vmem:[#allocation6 + $0x450] sm:$0xff]
    %v677 = vld [vmem:[#allocation6 + $0x458] sm:$0xff]
    %v678 = vld [vmem:[#allocation6 + $0x460] sm:$0xff]
    %v679 = vld [vmem:[#allocation6 + $0x468] sm:$0xff]
    %v680 = vld [vmem:[#allocation6 + $0x470] sm:$0xff]
    %v681 = vld [vmem:[#allocation6 + $0x478] sm:$0xff]
    %v682 = vpack.c.bf16 %v547, %v538
    %v683 = vpack.c.bf16 %v548, %v539
    %v684 = vpack.c.bf16 %v549, %v540
    %v685 = vpack.c.bf16 %v550, %v541
    %v686 = vpack.c.bf16 %v551, %v542
    %v687 = vpack.c.bf16 %v552, %v543
    %v688 = vpack.c.bf16 %v553, %v544
    %v689 = vpack.c.bf16 %v554, %v545
    %v690 = vpack.c.bf16 %v555, %v546
    %v691 = vpack.c.bf16 %v565, %v556
    %v692 = vpack.c.bf16 %v566, %v557
    %v693 = vpack.c.bf16 %v567, %v558
    %v694 = vpack.c.bf16 %v568, %v559
    %v695 = vpack.c.bf16 %v569, %v560
    %v696 = vpack.c.bf16 %v570, %v561
    %v697 = vpack.c.bf16 %v571, %v562
    %v698 = vpack.c.bf16 %v572, %v563
    %v699 = vpack.c.bf16 %v573, %v564
    %v700 = vpack.c.bf16 %v583, %v574
    %v701 = vpack.c.bf16 %v584, %v575
    %v702 = vpack.c.bf16 %v585, %v576
    %v703 = vpack.c.bf16 %v586, %v577
    %v704 = vpack.c.bf16 %v587, %v578
    %v705 = vpack.c.bf16 %v588, %v579
    %v706 = vpack.c.bf16 %v589, %v580
    %v707 = vpack.c.bf16 %v590, %v581
    %v708 = vpack.c.bf16 %v591, %v582
    %v709 = vpack.c.bf16 %v601, %v592
    %v710 = vpack.c.bf16 %v602, %v593
    %v711 = vpack.c.bf16 %v603, %v594
    %v712 = vpack.c.bf16 %v604, %v595
    %v713 = vpack.c.bf16 %v605, %v596
    %v714 = vpack.c.bf16 %v606, %v597
    %v715 = vpack.c.bf16 %v607, %v598
    %v716 = vpack.c.bf16 %v608, %v599
    %v717 = vpack.c.bf16 %v609, %v600
    %v718 = vpack.c.bf16 %v619, %v610
    %v719 = vpack.c.bf16 %v620, %v611
    %v720 = vpack.c.bf16 %v621, %v612
    %v721 = vpack.c.bf16 %v622, %v613
    %v722 = vpack.c.bf16 %v623, %v614
    %v723 = vpack.c.bf16 %v624, %v615
    %v724 = vpack.c.bf16 %v625, %v616
    %v725 = vpack.c.bf16 %v626, %v617
    %v726 = vpack.c.bf16 %v627, %v618
    %v727 = vpack.c.bf16 %v637, %v628
    %v728 = vpack.c.bf16 %v638, %v629
    %v729 = vpack.c.bf16 %v639, %v630
    %v730 = vpack.c.bf16 %v640, %v631
    %v731 = vpack.c.bf16 %v641, %v632
    %v732 = vpack.c.bf16 %v642, %v633
    %v733 = vpack.c.bf16 %v643, %v634
    %v734 = vpack.c.bf16 %v644, %v635
    %v735 = vpack.c.bf16 %v645, %v636
    %v736 = vpack.c.bf16 %v655, %v646
    %v737 = vpack.c.bf16 %v656, %v647
    %v738 = vpack.c.bf16 %v657, %v648
    %v739 = vpack.c.bf16 %v658, %v649
    %v740 = vpack.c.bf16 %v659, %v650
    %v741 = vpack.c.bf16 %v660, %v651
    %v742 = vpack.c.bf16 %v661, %v652
    %v743 = vpack.c.bf16 %v662, %v653
    %v744 = vpack.c.bf16 %v663, %v654
    %v745 = vpack.c.bf16 %v673, %v664
    %v746 = vpack.c.bf16 %v674, %v665
    %v747 = vpack.c.bf16 %v675, %v666
    %v748 = vpack.c.bf16 %v676, %v667
    %v749 = vpack.c.bf16 %v677, %v668
    %v750 = vpack.c.bf16 %v678, %v669
    %v751 = vpack.c.bf16 %v679, %v670
    %v752 = vpack.c.bf16 %v680, %v671
    %v753 = vpack.c.bf16 %v681, %v672
    %v754 = vld [vmem:[#allocation10] sm:$0xf]
    %v755 = vld [vmem:[#allocation10 + $0x4] sm:$0xf]
    %v756 = vld [vmem:[#allocation10 + $0x8] sm:$0xf]
    %v757 = vld [vmem:[#allocation10 + $0xc] sm:$0xf]
    %v758 = vld [vmem:[#allocation10 + $0x10] sm:$0xf]
    %v759 = vld [vmem:[#allocation10 + $0x14] sm:$0xf]
    %v760 = vld [vmem:[#allocation10 + $0x18] sm:$0xf]
    %v761 = vld [vmem:[#allocation10 + $0x1c] sm:$0xf]
    %v762 = vld [vmem:[#allocation10 + $0x20] sm:$0xf]
    %v763 = vld [vmem:[#allocation10 + $0x24] sm:$0xf]
    %v764 = vld [vmem:[#allocation10 + $0x28] sm:$0xf]
    %v765 = vld [vmem:[#allocation10 + $0x2c] sm:$0xf]
    %v766 = vld [vmem:[#allocation10 + $0x30] sm:$0xf]
    %v767 = vld [vmem:[#allocation10 + $0x34] sm:$0xf]
    %v768 = vld [vmem:[#allocation10 + $0x38] sm:$0xf]
    %v769 = vld [vmem:[#allocation10 + $0x3c] sm:$0xf]
    %v770 = vld [vmem:[#allocation10 + $0x40] sm:$0xf]
    %v771 = vld [vmem:[#allocation10 + $0x44] sm:$0xf]
    %v772 = vld [vmem:[#allocation10 + $0x48] sm:$0xf]
    %v773 = vld [vmem:[#allocation10 + $0x4c] sm:$0xf]
    %v774 = vld [vmem:[#allocation10 + $0x50] sm:$0xf]
    %v775 = vld [vmem:[#allocation10 + $0x54] sm:$0xf]
    %v776 = vld [vmem:[#allocation10 + $0x58] sm:$0xf]
    %v777 = vld [vmem:[#allocation10 + $0x5c] sm:$0xf]
    %v778 = vld [vmem:[#allocation10 + $0x60] sm:$0xf]
    %v779 = vld [vmem:[#allocation10 + $0x64] sm:$0xf]
    %v780 = vld [vmem:[#allocation10 + $0x68] sm:$0xf]
    %v781 = vld [vmem:[#allocation10 + $0x6c] sm:$0xf]
    %v782 = vld [vmem:[#allocation10 + $0x70] sm:$0xf]
    %v783 = vld [vmem:[#allocation10 + $0x74] sm:$0xf]
    %v784 = vld [vmem:[#allocation10 + $0x78] sm:$0xf]
    %v785 = vld [vmem:[#allocation10 + $0x7c] sm:$0xf]
    %v786 = vld [vmem:[#allocation10 + $0x80] sm:$0xf]
    %v787 = vld [vmem:[#allocation10 + $0x84] sm:$0xf]
    %v788 = vld [vmem:[#allocation10 + $0x88] sm:$0xf]
    %v789 = vld [vmem:[#allocation10 + $0x8c] sm:$0xf]
    %v790 = vld [vmem:[#allocation10 + $0x90] sm:$0xf]
    %v791 = vld [vmem:[#allocation10 + $0x94] sm:$0xf]
    %v792 = vld [vmem:[#allocation10 + $0x98] sm:$0xf]
    %v793 = vld [vmem:[#allocation10 + $0x9c] sm:$0xf]
    %v794 = vld [vmem:[#allocation10 + $0xa0] sm:$0xf]
    %v795 = vld [vmem:[#allocation10 + $0xa4] sm:$0xf]
    %v796 = vld [vmem:[#allocation10 + $0xa8] sm:$0xf]
    %v797 = vld [vmem:[#allocation10 + $0xac] sm:$0xf]
    %v798 = vld [vmem:[#allocation10 + $0xb0] sm:$0xf]
    %v799 = vld [vmem:[#allocation10 + $0xb4] sm:$0xf]
    %v800 = vld [vmem:[#allocation10 + $0xb8] sm:$0xf]
    %v801 = vld [vmem:[#allocation10 + $0xbc] sm:$0xf]
    %v802 = vld [vmem:[#allocation10 + $0xc0] sm:$0xf]
    %v803 = vld [vmem:[#allocation10 + $0xc4] sm:$0xf]
    %v804 = vld [vmem:[#allocation10 + $0xc8] sm:$0xf]
    %v805 = vld [vmem:[#allocation10 + $0xcc] sm:$0xf]
    %v806 = vld [vmem:[#allocation10 + $0xd0] sm:$0xf]
    %v807 = vld [vmem:[#allocation10 + $0xd4] sm:$0xf]
    %v808 = vld [vmem:[#allocation10 + $0xd8] sm:$0xf]
    %v809 = vld [vmem:[#allocation10 + $0xdc] sm:$0xf]
    %v810 = vld [vmem:[#allocation10 + $0xe0] sm:$0xf]
    %v811 = vld [vmem:[#allocation10 + $0xe4] sm:$0xf]
    %v812 = vld [vmem:[#allocation10 + $0xe8] sm:$0xf]
    %v813 = vld [vmem:[#allocation10 + $0xec] sm:$0xf]
    %v814 = vld [vmem:[#allocation10 + $0xf0] sm:$0xf]
    %v815 = vld [vmem:[#allocation10 + $0xf4] sm:$0xf]
    %v816 = vld [vmem:[#allocation10 + $0xf8] sm:$0xf]
    %v817 = vld [vmem:[#allocation10 + $0xfc] sm:$0xf]
    %v818 = vld [vmem:[#allocation10 + $0x100] sm:$0xf]
    %v819 = vld [vmem:[#allocation10 + $0x104] sm:$0xf]
    %v820 = vld [vmem:[#allocation10 + $0x108] sm:$0xf]
    %v821 = vld [vmem:[#allocation10 + $0x10c] sm:$0xf]
    %v822 = vld [vmem:[#allocation10 + $0x110] sm:$0xf]
    %v823 = vld [vmem:[#allocation10 + $0x114] sm:$0xf]
    %v824 = vld [vmem:[#allocation10 + $0x118] sm:$0xf]
    %v825 = vld [vmem:[#allocation10 + $0x11c] sm:$0xf]
    %v826 = vld [vmem:[#allocation10 + $0x120] sm:$0xf]
    %v827 = vld [vmem:[#allocation10 + $0x124] sm:$0xf]
    %v828 = vld [vmem:[#allocation10 + $0x128] sm:$0xf]
    %v829 = vld [vmem:[#allocation10 + $0x12c] sm:$0xf]
    %v830 = vld [vmem:[#allocation10 + $0x130] sm:$0xf]
    %v831 = vld [vmem:[#allocation10 + $0x134] sm:$0xf]
    %v832 = vld [vmem:[#allocation10 + $0x138] sm:$0xf]
    %v833 = vld [vmem:[#allocation10 + $0x13c] sm:$0xf]
    %v834 = vld [vmem:[#allocation10 + $0x140] sm:$0xf]
    %v835 = vld [vmem:[#allocation10 + $0x144] sm:$0xf]
    %v836 = vld [vmem:[#allocation10 + $0x148] sm:$0xf]
    %v837 = vld [vmem:[#allocation10 + $0x14c] sm:$0xf]
    %v838 = vld [vmem:[#allocation10 + $0x150] sm:$0xf]
    %v839 = vld [vmem:[#allocation10 + $0x154] sm:$0xf]
    %v840 = vld [vmem:[#allocation10 + $0x158] sm:$0xf]
    %v841 = vld [vmem:[#allocation10 + $0x15c] sm:$0xf]
    %v842 = vld [vmem:[#allocation10 + $0x160] sm:$0xf]
    %v843 = vld [vmem:[#allocation10 + $0x164] sm:$0xf]
    %v844 = vld [vmem:[#allocation10 + $0x168] sm:$0xf]
    %v845 = vld [vmem:[#allocation10 + $0x16c] sm:$0xf]
    %v846 = vld [vmem:[#allocation10 + $0x170] sm:$0xf]
    %v847 = vld [vmem:[#allocation10 + $0x174] sm:$0xf]
    %v848 = vld [vmem:[#allocation10 + $0x178] sm:$0xf]
    %v849 = vld [vmem:[#allocation10 + $0x17c] sm:$0xf]
    %v850 = vld [vmem:[#allocation10 + $0x180] sm:$0xf]
    %v851 = vld [vmem:[#allocation10 + $0x184] sm:$0xf]
    %v852 = vld [vmem:[#allocation10 + $0x188] sm:$0xf]
    %v853 = vld [vmem:[#allocation10 + $0x18c] sm:$0xf]
    %v854 = vld [vmem:[#allocation10 + $0x190] sm:$0xf]
    %v855 = vld [vmem:[#allocation10 + $0x194] sm:$0xf]
    %v856 = vld [vmem:[#allocation10 + $0x198] sm:$0xf]
    %v857 = vld [vmem:[#allocation10 + $0x19c] sm:$0xf]
    %v858 = vld [vmem:[#allocation10 + $0x1a0] sm:$0xf]
    %v859 = vld [vmem:[#allocation10 + $0x1a4] sm:$0xf]
    %v860 = vld [vmem:[#allocation10 + $0x1a8] sm:$0xf]
    %v861 = vld [vmem:[#allocation10 + $0x1ac] sm:$0xf]
    %v862 = vld [vmem:[#allocation10 + $0x1b0] sm:$0xf]
    %v863 = vld [vmem:[#allocation10 + $0x1b4] sm:$0xf]
    %v864 = vld [vmem:[#allocation10 + $0x1b8] sm:$0xf]
    %v865 = vld [vmem:[#allocation10 + $0x1bc] sm:$0xf]
    %v866 = vld [vmem:[#allocation10 + $0x1c0] sm:$0xf]
    %v867 = vld [vmem:[#allocation10 + $0x1c4] sm:$0xf]
    %v868 = vld [vmem:[#allocation10 + $0x1c8] sm:$0xf]
    %v869 = vld [vmem:[#allocation10 + $0x1cc] sm:$0xf]
    %v870 = vld [vmem:[#allocation10 + $0x1d0] sm:$0xf]
    %v871 = vld [vmem:[#allocation10 + $0x1d4] sm:$0xf]
    %v872 = vld [vmem:[#allocation10 + $0x1d8] sm:$0xf]
    %v873 = vld [vmem:[#allocation10 + $0x1dc] sm:$0xf]
    %v874 = vld [vmem:[#allocation10 + $0x1e0] sm:$0xf]
    %v875 = vld [vmem:[#allocation10 + $0x1e4] sm:$0xf]
    %v876 = vld [vmem:[#allocation10 + $0x1e8] sm:$0xf]
    %v877 = vld [vmem:[#allocation10 + $0x1ec] sm:$0xf]
    %v878 = vld [vmem:[#allocation10 + $0x1f0] sm:$0xf]
    %v879 = vld [vmem:[#allocation10 + $0x1f4] sm:$0xf]
    %v880 = vld [vmem:[#allocation10 + $0x1f8] sm:$0xf]
    %v881 = vld [vmem:[#allocation10 + $0x1fc] sm:$0xf]
    %v882 = vld [vmem:[#allocation10 + $0x200] sm:$0xf]
    %v883 = vld [vmem:[#allocation10 + $0x204] sm:$0xf]
    %v884 = vld [vmem:[#allocation10 + $0x208] sm:$0xf]
    %v885 = vld [vmem:[#allocation10 + $0x20c] sm:$0xf]
    %v886 = vld [vmem:[#allocation10 + $0x210] sm:$0xf]
    %v887 = vld [vmem:[#allocation10 + $0x214] sm:$0xf]
    %v888 = vld [vmem:[#allocation10 + $0x218] sm:$0xf]
    %v889 = vld [vmem:[#allocation10 + $0x21c] sm:$0xf]
    %v890 = vld [vmem:[#allocation10 + $0x220] sm:$0xf]
    %v891 = vld [vmem:[#allocation10 + $0x224] sm:$0xf]
    %v892 = vld [vmem:[#allocation10 + $0x228] sm:$0xf]
    %v893 = vld [vmem:[#allocation10 + $0x22c] sm:$0xf]
    %v894 = vld [vmem:[#allocation10 + $0x230] sm:$0xf]
    %v895 = vld [vmem:[#allocation10 + $0x234] sm:$0xf]
    %v896 = vld [vmem:[#allocation10 + $0x238] sm:$0xf]
    %v897 = vld [vmem:[#allocation10 + $0x23c] sm:$0xf]
    %v898 = vld [vmem:[%s6] sm:$0x1]
    %v900 = vperm.slane %v898, 0
    %v1046 = vunpack.c.l.b16 %v754
    %v1047 = vunpack.c.l.b16 %v755
    %v1048 = vunpack.c.l.b16 %v756
    %v1049 = vunpack.c.l.b16 %v757
    %v1050 = vunpack.c.l.b16 %v758
    %v1051 = vunpack.c.l.b16 %v759
    %v1052 = vunpack.c.l.b16 %v760
    %v1053 = vunpack.c.l.b16 %v761
    %v1054 = vunpack.c.l.b16 %v762
    %v1055 = vunpack.c.l.b16 %v763
    %v1056 = vunpack.c.l.b16 %v764
    %v1057 = vunpack.c.l.b16 %v765
    %v1058 = vunpack.c.l.b16 %v766
    %v1059 = vunpack.c.l.b16 %v767
    %v1060 = vunpack.c.l.b16 %v768
    %v1061 = vunpack.c.l.b16 %v769
    %v1062 = vunpack.c.l.b16 %v770
    %v1063 = vunpack.c.l.b16 %v771
    %v1064 = vunpack.c.l.b16 %v772
    %v1065 = vunpack.c.l.b16 %v773
    %v1066 = vunpack.c.l.b16 %v774
    %v1067 = vunpack.c.l.b16 %v775
    %v1068 = vunpack.c.l.b16 %v776
    %v1069 = vunpack.c.l.b16 %v777
    %v1070 = vunpack.c.l.b16 %v778
    %v1071 = vunpack.c.l.b16 %v779
    %v1072 = vunpack.c.l.b16 %v780
    %v1073 = vunpack.c.l.b16 %v781
    %v1074 = vunpack.c.l.b16 %v782
    %v1075 = vunpack.c.l.b16 %v783
    %v1076 = vunpack.c.l.b16 %v784
    %v1077 = vunpack.c.l.b16 %v785
    %v1078 = vunpack.c.l.b16 %v786
    %v1079 = vunpack.c.l.b16 %v787
    %v1080 = vunpack.c.l.b16 %v788
    %v1081 = vunpack.c.l.b16 %v789
    %v1082 = vunpack.c.l.b16 %v790
    %v1083 = vunpack.c.l.b16 %v791
    %v1084 = vunpack.c.l.b16 %v792
    %v1085 = vunpack.c.l.b16 %v793
    %v1086 = vunpack.c.l.b16 %v794
    %v1087 = vunpack.c.l.b16 %v795
    %v1088 = vunpack.c.l.b16 %v796
    %v1089 = vunpack.c.l.b16 %v797
    %v1090 = vunpack.c.l.b16 %v798
    %v1091 = vunpack.c.l.b16 %v799
    %v1092 = vunpack.c.l.b16 %v800
    %v1093 = vunpack.c.l.b16 %v801
    %v1094 = vunpack.c.l.b16 %v802
    %v1095 = vunpack.c.l.b16 %v803
    %v1096 = vunpack.c.l.b16 %v804
    %v1097 = vunpack.c.l.b16 %v805
    %v1098 = vunpack.c.l.b16 %v806
    %v1099 = vunpack.c.l.b16 %v807
    %v1100 = vunpack.c.l.b16 %v808
    %v1101 = vunpack.c.l.b16 %v809
    %v1102 = vunpack.c.l.b16 %v810
    %v1103 = vunpack.c.l.b16 %v811
    %v1104 = vunpack.c.l.b16 %v812
    %v1105 = vunpack.c.l.b16 %v813
    %v1106 = vunpack.c.l.b16 %v814
    %v1107 = vunpack.c.l.b16 %v815
    %v1108 = vunpack.c.l.b16 %v816
    %v1109 = vunpack.c.l.b16 %v817
    %v1110 = vunpack.c.l.b16 %v818
    %v1111 = vunpack.c.l.b16 %v819
    %v1112 = vunpack.c.l.b16 %v820
    %v1113 = vunpack.c.l.b16 %v821
    %v1114 = vunpack.c.l.b16 %v822
    %v1115 = vunpack.c.l.b16 %v823
    %v1116 = vunpack.c.l.b16 %v824
    %v1117 = vunpack.c.l.b16 %v825
    %v1118 = vunpack.c.l.b16 %v826
    %v1119 = vunpack.c.l.b16 %v827
    %v1120 = vunpack.c.l.b16 %v828
    %v1121 = vunpack.c.l.b16 %v829
    %v1122 = vunpack.c.l.b16 %v830
    %v1123 = vunpack.c.l.b16 %v831
    %v1124 = vunpack.c.l.b16 %v832
    %v1125 = vunpack.c.l.b16 %v833
    %v1126 = vunpack.c.l.b16 %v834
    %v1127 = vunpack.c.l.b16 %v835
    %v1128 = vunpack.c.l.b16 %v836
    %v1129 = vunpack.c.l.b16 %v837
    %v1130 = vunpack.c.l.b16 %v838
    %v1131 = vunpack.c.l.b16 %v839
    %v1132 = vunpack.c.l.b16 %v840
    %v1133 = vunpack.c.l.b16 %v841
    %v1134 = vunpack.c.l.b16 %v842
    %v1135 = vunpack.c.l.b16 %v843
    %v1136 = vunpack.c.l.b16 %v844
    %v1137 = vunpack.c.l.b16 %v845
    %v1138 = vunpack.c.l.b16 %v846
    %v1139 = vunpack.c.l.b16 %v847
    %v1140 = vunpack.c.l.b16 %v848
    %v1141 = vunpack.c.l.b16 %v849
    %v1142 = vunpack.c.l.b16 %v850
    %v1143 = vunpack.c.l.b16 %v851
    %v1144 = vunpack.c.l.b16 %v852
    %v1145 = vunpack.c.l.b16 %v853
    %v1146 = vunpack.c.l.b16 %v854
    %v1147 = vunpack.c.l.b16 %v855
    %v1148 = vunpack.c.l.b16 %v856
    %v1149 = vunpack.c.l.b16 %v857
    %v1150 = vunpack.c.l.b16 %v858
    %v1151 = vunpack.c.l.b16 %v859
    %v1152 = vunpack.c.l.b16 %v860
    %v1153 = vunpack.c.l.b16 %v861
    %v1154 = vunpack.c.l.b16 %v862
    %v1155 = vunpack.c.l.b16 %v863
    %v1156 = vunpack.c.l.b16 %v864
    %v1157 = vunpack.c.l.b16 %v865
    %v1158 = vunpack.c.l.b16 %v866
    %v1159 = vunpack.c.l.b16 %v867
    %v1160 = vunpack.c.l.b16 %v868
    %v1161 = vunpack.c.l.b16 %v869
    %v1162 = vunpack.c.l.b16 %v870
    %v1163 = vunpack.c.l.b16 %v871
    %v1164 = vunpack.c.l.b16 %v872
    %v1165 = vunpack.c.l.b16 %v873
    %v1166 = vunpack.c.l.b16 %v874
    %v1167 = vunpack.c.l.b16 %v875
    %v1168 = vunpack.c.l.b16 %v876
    %v1169 = vunpack.c.l.b16 %v877
    %v1170 = vunpack.c.l.b16 %v878
    %v1171 = vunpack.c.l.b16 %v879
    %v1172 = vunpack.c.l.b16 %v880
    %v1173 = vunpack.c.l.b16 %v881
    %v1174 = vunpack.c.l.b16 %v882
    %v1175 = vunpack.c.l.b16 %v883
    %v1176 = vunpack.c.l.b16 %v884
    %v1177 = vunpack.c.l.b16 %v885
    %v1178 = vunpack.c.l.b16 %v886
    %v1179 = vunpack.c.l.b16 %v887
    %v1180 = vunpack.c.l.b16 %v888
    %v1181 = vunpack.c.l.b16 %v889
    %v1182 = vunpack.c.l.b16 %v890
    %v1183 = vunpack.c.l.b16 %v891
    %v1184 = vunpack.c.l.b16 %v892
    %v1185 = vunpack.c.l.b16 %v893
    %v1186 = vunpack.c.l.b16 %v894
    %v1187 = vunpack.c.l.b16 %v895
    %v1188 = vunpack.c.l.b16 %v896
    %v1189 = vunpack.c.l.b16 %v897
    %v1190 = vpack.c.b16 %v1047, %v1046
    %v1191 = vpack.c.b16 %v1049, %v1048
    %v1192 = vpack.c.b16 %v1051, %v1050
    %v1193 = vpack.c.b16 %v1053, %v1052
    %v1194 = vpack.c.b16 %v1055, %v1054
    %v1195 = vpack.c.b16 %v1057, %v1056
    %v1196 = vpack.c.b16 %v1059, %v1058
    %v1197 = vpack.c.b16 %v1061, %v1060
    %v1198 = vpack.c.b16 %v1063, %v1062
    %v1199 = vpack.c.b16 %v1065, %v1064
    %v1200 = vpack.c.b16 %v1067, %v1066
    %v1201 = vpack.c.b16 %v1069, %v1068
    %v1202 = vpack.c.b16 %v1071, %v1070
    %v1203 = vpack.c.b16 %v1073, %v1072
    %v1204 = vpack.c.b16 %v1075, %v1074
    %v1205 = vpack.c.b16 %v1077, %v1076
    %v1206 = vpack.c.b16 %v1079, %v1078
    %v1207 = vpack.c.b16 %v1081, %v1080
    %v1208 = vpack.c.b16 %v1083, %v1082
    %v1209 = vpack.c.b16 %v1085, %v1084
    %v1210 = vpack.c.b16 %v1087, %v1086
    %v1211 = vpack.c.b16 %v1089, %v1088
    %v1212 = vpack.c.b16 %v1091, %v1090
    %v1213 = vpack.c.b16 %v1093, %v1092
    %v1214 = vpack.c.b16 %v1095, %v1094
    %v1215 = vpack.c.b16 %v1097, %v1096
    %v1216 = vpack.c.b16 %v1099, %v1098
    %v1217 = vpack.c.b16 %v1101, %v1100
    %v1218 = vpack.c.b16 %v1103, %v1102
    %v1219 = vpack.c.b16 %v1105, %v1104
    %v1220 = vpack.c.b16 %v1107, %v1106
    %v1221 = vpack.c.b16 %v1109, %v1108
    %v1222 = vpack.c.b16 %v1111, %v1110
    %v1223 = vpack.c.b16 %v1113, %v1112
    %v1224 = vpack.c.b16 %v1115, %v1114
    %v1225 = vpack.c.b16 %v1117, %v1116
    %v1226 = vpack.c.b16 %v1119, %v1118
    %v1227 = vpack.c.b16 %v1121, %v1120
    %v1228 = vpack.c.b16 %v1123, %v1122
    %v1229 = vpack.c.b16 %v1125, %v1124
    %v1230 = vpack.c.b16 %v1127, %v1126
    %v1231 = vpack.c.b16 %v1129, %v1128
    %v1232 = vpack.c.b16 %v1131, %v1130
    %v1233 = vpack.c.b16 %v1133, %v1132
    %v1234 = vpack.c.b16 %v1135, %v1134
    %v1235 = vpack.c.b16 %v1137, %v1136
    %v1236 = vpack.c.b16 %v1139, %v1138
    %v1237 = vpack.c.b16 %v1141, %v1140
    %v1238 = vpack.c.b16 %v1143, %v1142
    %v1239 = vpack.c.b16 %v1145, %v1144
    %v1240 = vpack.c.b16 %v1147, %v1146
    %v1241 = vpack.c.b16 %v1149, %v1148
    %v1242 = vpack.c.b16 %v1151, %v1150
    %v1243 = vpack.c.b16 %v1153, %v1152
    %v1244 = vpack.c.b16 %v1155, %v1154
    %v1245 = vpack.c.b16 %v1157, %v1156
    %v1246 = vpack.c.b16 %v1159, %v1158
    %v1247 = vpack.c.b16 %v1161, %v1160
    %v1248 = vpack.c.b16 %v1163, %v1162
    %v1249 = vpack.c.b16 %v1165, %v1164
    %v1250 = vpack.c.b16 %v1167, %v1166
    %v1251 = vpack.c.b16 %v1169, %v1168
    %v1252 = vpack.c.b16 %v1171, %v1170
    %v1253 = vpack.c.b16 %v1173, %v1172
    %v1254 = vpack.c.b16 %v1175, %v1174
    %v1255 = vpack.c.b16 %v1177, %v1176
    %v1256 = vpack.c.b16 %v1179, %v1178
    %v1257 = vpack.c.b16 %v1181, %v1180
    %v1258 = vpack.c.b16 %v1183, %v1182
    %v1259 = vpack.c.b16 %v1185, %v1184
    %v1260 = vpack.c.b16 %v1187, %v1186
    %v1261 = vpack.c.b16 %v1189, %v1188
    %1334 = vmatpush.bf16.msra.mxu0 %v1197
    %1335 = vmatpush.bf16.msra.mxu0 %v1196
    %1336 = vmatpush.bf16.msra.mxu0 %v1195
    %1337 = vmatpush.bf16.msra.mxu0 %v1194
    %1338 = vmatpush.bf16.msra.mxu0 %v1193
    %1339 = vmatpush.bf16.msra.mxu0 %v1192
    %1340 = vmatpush.bf16.msra.mxu0 %v1191
    %1341 = vmatpush.bf16.msra.mxu0 %v1190
    %1342 = vmatmul.bf16.gmra.mxu0 %v682
    %v1343 = vpop.f32.mrf.mxu0
    %v1344 = vadd.f32 %v900, %v1343
    %v1345 = vpop.f32.mrf.mxu0
    %v1346 = vadd.f32 %v900, %v1345
    %1347 = vmatmul.bf16.gmra.mxu0 %v691
    %v1348 = vpop.f32.mrf.mxu0
    %v1349 = vadd.f32 %v900, %v1348
    %v1350 = vpop.f32.mrf.mxu0
    %v1351 = vadd.f32 %v900, %v1350
    %1352 = vmatmul.bf16.gmra.mxu0 %v700
    %v1353 = vpop.f32.mrf.mxu0
    %v1354 = vadd.f32 %v900, %v1353
    %v1355 = vpop.f32.mrf.mxu0
    %v1356 = vadd.f32 %v900, %v1355
    %1357 = vmatmul.bf16.gmra.mxu0 %v709
    %v1358 = vpop.f32.mrf.mxu0
    %v1359 = vadd.f32 %v900, %v1358
    %v1360 = vpop.f32.mrf.mxu0
    %v1361 = vadd.f32 %v900, %v1360
    %1362 = vmatmul.bf16.gmra.mxu0 %v718
    %v1363 = vpop.f32.mrf.mxu0
    %v1364 = vadd.f32 %v900, %v1363
    %v1365 = vpop.f32.mrf.mxu0
    %v1366 = vadd.f32 %v900, %v1365
    %1367 = vmatmul.bf16.gmra.mxu0 %v727
    %v1368 = vpop.f32.mrf.mxu0
    %v1369 = vadd.f32 %v900, %v1368
    %v1370 = vpop.f32.mrf.mxu0
    %v1371 = vadd.f32 %v900, %v1370
    %1372 = vmatmul.bf16.gmra.mxu0 %v736
    %v1373 = vpop.f32.mrf.mxu0
    %v1374 = vadd.f32 %v900, %v1373
    %v1375 = vpop.f32.mrf.mxu0
    %v1376 = vadd.f32 %v900, %v1375
    %1377 = vmatmul.bf16.gmra.mxu0 %v745
    %v1378 = vpop.f32.mrf.mxu0
    %v1379 = vadd.f32 %v900, %v1378
    %v1380 = vpop.f32.mrf.mxu0
    %v1381 = vadd.f32 %v900, %v1380
    %1382 = vdwg.mxu0
    %1383 = vmatpush.bf16.msra.mxu0 %v1205
    %1384 = vmatpush.bf16.msra.mxu0 %v1204
    %1385 = vmatpush.bf16.msra.mxu0 %v1203
    %1386 = vmatpush.bf16.msra.mxu0 %v1202
    %1387 = vmatpush.bf16.msra.mxu0 %v1201
    %1388 = vmatpush.bf16.msra.mxu0 %v1200
    %1389 = vmatpush.bf16.msra.mxu0 %v1199
    %1390 = vmatpush.bf16.msra.mxu0 %v1198
    %1391 = vmatmul.bf16.gmra.mxu0 %v683
    %v1392 = vpop.f32.mrf.mxu0
    %v1393 = vadd.f32 %v1344, %v1392
    %v1394 = vpop.f32.mrf.mxu0
    %v1395 = vadd.f32 %v1346, %v1394
    %1396 = vmatmul.bf16.gmra.mxu0 %v692
    %v1397 = vpop.f32.mrf.mxu0
    %v1398 = vadd.f32 %v1349, %v1397
    %v1399 = vpop.f32.mrf.mxu0
    %v1400 = vadd.f32 %v1351, %v1399
    %1401 = vmatmul.bf16.gmra.mxu0 %v701
    %v1402 = vpop.f32.mrf.mxu0
    %v1403 = vadd.f32 %v1354, %v1402
    %v1404 = vpop.f32.mrf.mxu0
    %v1405 = vadd.f32 %v1356, %v1404
    %1406 = vmatmul.bf16.gmra.mxu0 %v710
    %v1407 = vpop.f32.mrf.mxu0
    %v1408 = vadd.f32 %v1359, %v1407
    %v1409 = vpop.f32.mrf.mxu0
    %v1410 = vadd.f32 %v1361, %v1409
    %1411 = vmatmul.bf16.gmra.mxu0 %v719
    %v1412 = vpop.f32.mrf.mxu0
    %v1413 = vadd.f32 %v1364, %v1412
    %v1414 = vpop.f32.mrf.mxu0
    %v1415 = vadd.f32 %v1366, %v1414
    %1416 = vmatmul.bf16.gmra.mxu0 %v728
    %v1417 = vpop.f32.mrf.mxu0
    %v1418 = vadd.f32 %v1369, %v1417
    %v1419 = vpop.f32.mrf.mxu0
    %v1420 = vadd.f32 %v1371, %v1419
    %1421 = vmatmul.bf16.gmra.mxu0 %v737
    %v1422 = vpop.f32.mrf.mxu0
    %v1423 = vadd.f32 %v1374, %v1422
    %v1424 = vpop.f32.mrf.mxu0
    %v1425 = vadd.f32 %v1376, %v1424
    %1426 = vmatmul.bf16.gmra.mxu0 %v746
    %v1427 = vpop.f32.mrf.mxu0
    %v1428 = vadd.f32 %v1379, %v1427
    %v1429 = vpop.f32.mrf.mxu0
    %v1430 = vadd.f32 %v1381, %v1429
    %1431 = vdwg.mxu0
    %1432 = vmatpush.bf16.msra.mxu0 %v1213
    %1433 = vmatpush.bf16.msra.mxu0 %v1212
    %1434 = vmatpush.bf16.msra.mxu0 %v1211
    %1435 = vmatpush.bf16.msra.mxu0 %v1210
    %1436 = vmatpush.bf16.msra.mxu0 %v1209
    %1437 = vmatpush.bf16.msra.mxu0 %v1208
    %1438 = vmatpush.bf16.msra.mxu0 %v1207
    %1439 = vmatpush.bf16.msra.mxu0 %v1206
    %1440 = vmatmul.bf16.gmra.mxu0 %v684
    %v1441 = vpop.f32.mrf.mxu0
    %v1442 = vadd.f32 %v1393, %v1441
    %v1443 = vpop.f32.mrf.mxu0
    %v1444 = vadd.f32 %v1395, %v1443
    %1445 = vmatmul.bf16.gmra.mxu0 %v693
    %v1446 = vpop.f32.mrf.mxu0
    %v1447 = vadd.f32 %v1398, %v1446
    %v1448 = vpop.f32.mrf.mxu0
    %v1449 = vadd.f32 %v1400, %v1448
    %1450 = vmatmul.bf16.gmra.mxu0 %v702
    %v1451 = vpop.f32.mrf.mxu0
    %v1452 = vadd.f32 %v1403, %v1451
    %v1453 = vpop.f32.mrf.mxu0
    %v1454 = vadd.f32 %v1405, %v1453
    %1455 = vmatmul.bf16.gmra.mxu0 %v711
    %v1456 = vpop.f32.mrf.mxu0
    %v1457 = vadd.f32 %v1408, %v1456
    %v1458 = vpop.f32.mrf.mxu0
    %v1459 = vadd.f32 %v1410, %v1458
    %1460 = vmatmul.bf16.gmra.mxu0 %v720
    %v1461 = vpop.f32.mrf.mxu0
    %v1462 = vadd.f32 %v1413, %v1461
    %v1463 = vpop.f32.mrf.mxu0
    %v1464 = vadd.f32 %v1415, %v1463
    %1465 = vmatmul.bf16.gmra.mxu0 %v729
    %v1466 = vpop.f32.mrf.mxu0
    %v1467 = vadd.f32 %v1418, %v1466
    %v1468 = vpop.f32.mrf.mxu0
    %v1469 = vadd.f32 %v1420, %v1468
    %1470 = vmatmul.bf16.gmra.mxu0 %v738
    %v1471 = vpop.f32.mrf.mxu0
    %v1472 = vadd.f32 %v1423, %v1471
    %v1473 = vpop.f32.mrf.mxu0
    %v1474 = vadd.f32 %v1425, %v1473
    %1475 = vmatmul.bf16.gmra.mxu0 %v747
    %v1476 = vpop.f32.mrf.mxu0
    %v1477 = vadd.f32 %v1428, %v1476
    %v1478 = vpop.f32.mrf.mxu0
    %v1479 = vadd.f32 %v1430, %v1478
    %1480 = vdwg.mxu0
    %1481 = vmatpush.bf16.msra.mxu0 %v1221
    %1482 = vmatpush.bf16.msra.mxu0 %v1220
    %1483 = vmatpush.bf16.msra.mxu0 %v1219
    %1484 = vmatpush.bf16.msra.mxu0 %v1218
    %1485 = vmatpush.bf16.msra.mxu0 %v1217
    %1486 = vmatpush.bf16.msra.mxu0 %v1216
    %1487 = vmatpush.bf16.msra.mxu0 %v1215
    %1488 = vmatpush.bf16.msra.mxu0 %v1214
    %1489 = vmatmul.bf16.gmra.mxu0 %v685
    %v1490 = vpop.f32.mrf.mxu0
    %v1491 = vadd.f32 %v1442, %v1490
    %v1492 = vpop.f32.mrf.mxu0
    %v1493 = vadd.f32 %v1444, %v1492
    %1494 = vmatmul.bf16.gmra.mxu0 %v694
    %v1495 = vpop.f32.mrf.mxu0
    %v1496 = vadd.f32 %v1447, %v1495
    %v1497 = vpop.f32.mrf.mxu0
    %v1498 = vadd.f32 %v1449, %v1497
    %1499 = vmatmul.bf16.gmra.mxu0 %v703
    %v1500 = vpop.f32.mrf.mxu0
    %v1501 = vadd.f32 %v1452, %v1500
    %v1502 = vpop.f32.mrf.mxu0
    %v1503 = vadd.f32 %v1454, %v1502
    %1504 = vmatmul.bf16.gmra.mxu0 %v712
    %v1505 = vpop.f32.mrf.mxu0
    %v1506 = vadd.f32 %v1457, %v1505
    %v1507 = vpop.f32.mrf.mxu0
    %v1508 = vadd.f32 %v1459, %v1507
    %1509 = vmatmul.bf16.gmra.mxu0 %v721
    %v1510 = vpop.f32.mrf.mxu0
    %v1511 = vadd.f32 %v1462, %v1510
    %v1512 = vpop.f32.mrf.mxu0
    %v1513 = vadd.f32 %v1464, %v1512
    %1514 = vmatmul.bf16.gmra.mxu0 %v730
    %v1515 = vpop.f32.mrf.mxu0
    %v1516 = vadd.f32 %v1467, %v1515
    %v1517 = vpop.f32.mrf.mxu0
    %v1518 = vadd.f32 %v1469, %v1517
    %1519 = vmatmul.bf16.gmra.mxu0 %v739
    %v1520 = vpop.f32.mrf.mxu0
    %v1521 = vadd.f32 %v1472, %v1520
    %v1522 = vpop.f32.mrf.mxu0
    %v1523 = vadd.f32 %v1474, %v1522
    %1524 = vmatmul.bf16.gmra.mxu0 %v748
    %v1525 = vpop.f32.mrf.mxu0
    %v1526 = vadd.f32 %v1477, %v1525
    %v1527 = vpop.f32.mrf.mxu0
    %v1528 = vadd.f32 %v1479, %v1527
    %1529 = vdwg.mxu0
    %1530 = vmatpush.bf16.msra.mxu0 %v1229
    %1531 = vmatpush.bf16.msra.mxu0 %v1228
    %1532 = vmatpush.bf16.msra.mxu0 %v1227
    %1533 = vmatpush.bf16.msra.mxu0 %v1226
    %1534 = vmatpush.bf16.msra.mxu0 %v1225
    %1535 = vmatpush.bf16.msra.mxu0 %v1224
    %1536 = vmatpush.bf16.msra.mxu0 %v1223
    %1537 = vmatpush.bf16.msra.mxu0 %v1222
    %1538 = vmatmul.bf16.gmra.mxu0 %v686
    %v1539 = vpop.f32.mrf.mxu0
    %v1540 = vadd.f32 %v1491, %v1539
    %v1541 = vpop.f32.mrf.mxu0
    %v1542 = vadd.f32 %v1493, %v1541
    %1543 = vmatmul.bf16.gmra.mxu0 %v695
    %v1544 = vpop.f32.mrf.mxu0
    %v1545 = vadd.f32 %v1496, %v1544
    %v1546 = vpop.f32.mrf.mxu0
    %v1547 = vadd.f32 %v1498, %v1546
    %1548 = vmatmul.bf16.gmra.mxu0 %v704
    %v1549 = vpop.f32.mrf.mxu0
    %v1550 = vadd.f32 %v1501, %v1549
    %v1551 = vpop.f32.mrf.mxu0
    %v1552 = vadd.f32 %v1503, %v1551
    %1553 = vmatmul.bf16.gmra.mxu0 %v713
    %v1554 = vpop.f32.mrf.mxu0
    %v1555 = vadd.f32 %v1506, %v1554
    %v1556 = vpop.f32.mrf.mxu0
    %v1557 = vadd.f32 %v1508, %v1556
    %1558 = vmatmul.bf16.gmra.mxu0 %v722
    %v1559 = vpop.f32.mrf.mxu0
    %v1560 = vadd.f32 %v1511, %v1559
    %v1561 = vpop.f32.mrf.mxu0
    %v1562 = vadd.f32 %v1513, %v1561
    %1563 = vmatmul.bf16.gmra.mxu0 %v731
    %v1564 = vpop.f32.mrf.mxu0
    %v1565 = vadd.f32 %v1516, %v1564
    %v1566 = vpop.f32.mrf.mxu0
    %v1567 = vadd.f32 %v1518, %v1566
    %1568 = vmatmul.bf16.gmra.mxu0 %v740
    %v1569 = vpop.f32.mrf.mxu0
    %v1570 = vadd.f32 %v1521, %v1569
    %v1571 = vpop.f32.mrf.mxu0
    %v1572 = vadd.f32 %v1523, %v1571
    %1573 = vmatmul.bf16.gmra.mxu0 %v749
    %v1574 = vpop.f32.mrf.mxu0
    %v1575 = vadd.f32 %v1526, %v1574
    %v1576 = vpop.f32.mrf.mxu0
    %v1577 = vadd.f32 %v1528, %v1576
    %1578 = vdwg.mxu0
    %1579 = vmatpush.bf16.msra.mxu0 %v1237
    %1580 = vmatpush.bf16.msra.mxu0 %v1236
    %1581 = vmatpush.bf16.msra.mxu0 %v1235
    %1582 = vmatpush.bf16.msra.mxu0 %v1234
    %1583 = vmatpush.bf16.msra.mxu0 %v1233
    %1584 = vmatpush.bf16.msra.mxu0 %v1232
    %1585 = vmatpush.bf16.msra.mxu0 %v1231
    %1586 = vmatpush.bf16.msra.mxu0 %v1230
    %1587 = vmatmul.bf16.gmra.mxu0 %v687
    %v1588 = vpop.f32.mrf.mxu0
    %v1589 = vadd.f32 %v1540, %v1588
    %v1590 = vpop.f32.mrf.mxu0
    %v1591 = vadd.f32 %v1542, %v1590
    %1592 = vmatmul.bf16.gmra.mxu0 %v696
    %v1593 = vpop.f32.mrf.mxu0
    %v1594 = vadd.f32 %v1545, %v1593
    %v1595 = vpop.f32.mrf.mxu0
    %v1596 = vadd.f32 %v1547, %v1595
    %1597 = vmatmul.bf16.gmra.mxu0 %v705
    %v1598 = vpop.f32.mrf.mxu0
    %v1599 = vadd.f32 %v1550, %v1598
    %v1600 = vpop.f32.mrf.mxu0
    %v1601 = vadd.f32 %v1552, %v1600
    %1602 = vmatmul.bf16.gmra.mxu0 %v714
    %v1603 = vpop.f32.mrf.mxu0
    %v1604 = vadd.f32 %v1555, %v1603
    %v1605 = vpop.f32.mrf.mxu0
    %v1606 = vadd.f32 %v1557, %v1605
    %1607 = vmatmul.bf16.gmra.mxu0 %v723
    %v1608 = vpop.f32.mrf.mxu0
    %v1609 = vadd.f32 %v1560, %v1608
    %v1610 = vpop.f32.mrf.mxu0
    %v1611 = vadd.f32 %v1562, %v1610
    %1612 = vmatmul.bf16.gmra.mxu0 %v732
    %v1613 = vpop.f32.mrf.mxu0
    %v1614 = vadd.f32 %v1565, %v1613
    %v1615 = vpop.f32.mrf.mxu0
    %v1616 = vadd.f32 %v1567, %v1615
    %1617 = vmatmul.bf16.gmra.mxu0 %v741
    %v1618 = vpop.f32.mrf.mxu0
    %v1619 = vadd.f32 %v1570, %v1618
    %v1620 = vpop.f32.mrf.mxu0
    %v1621 = vadd.f32 %v1572, %v1620
    %1622 = vmatmul.bf16.gmra.mxu0 %v750
    %v1623 = vpop.f32.mrf.mxu0
    %v1624 = vadd.f32 %v1575, %v1623
    %v1625 = vpop.f32.mrf.mxu0
    %v1626 = vadd.f32 %v1577, %v1625
    %1627 = vdwg.mxu0
    %1628 = vmatpush.bf16.msra.mxu0 %v1245
    %1629 = vmatpush.bf16.msra.mxu0 %v1244
    %1630 = vmatpush.bf16.msra.mxu0 %v1243
    %1631 = vmatpush.bf16.msra.mxu0 %v1242
    %1632 = vmatpush.bf16.msra.mxu0 %v1241
    %1633 = vmatpush.bf16.msra.mxu0 %v1240
    %1634 = vmatpush.bf16.msra.mxu0 %v1239
    %1635 = vmatpush.bf16.msra.mxu0 %v1238
    %1636 = vmatmul.bf16.gmra.mxu0 %v688
    %v1637 = vpop.f32.mrf.mxu0
    %v1638 = vadd.f32 %v1589, %v1637
    %v1639 = vpop.f32.mrf.mxu0
    %v1640 = vadd.f32 %v1591, %v1639
    %1641 = vmatmul.bf16.gmra.mxu0 %v697
    %v1642 = vpop.f32.mrf.mxu0
    %v1643 = vadd.f32 %v1594, %v1642
    %v1644 = vpop.f32.mrf.mxu0
    %v1645 = vadd.f32 %v1596, %v1644
    %1646 = vmatmul.bf16.gmra.mxu0 %v706
    %v1647 = vpop.f32.mrf.mxu0
    %v1648 = vadd.f32 %v1599, %v1647
    %v1649 = vpop.f32.mrf.mxu0
    %v1650 = vadd.f32 %v1601, %v1649
    %1651 = vmatmul.bf16.gmra.mxu0 %v715
    %v1652 = vpop.f32.mrf.mxu0
    %v1653 = vadd.f32 %v1604, %v1652
    %v1654 = vpop.f32.mrf.mxu0
    %v1655 = vadd.f32 %v1606, %v1654
    %1656 = vmatmul.bf16.gmra.mxu0 %v724
    %v1657 = vpop.f32.mrf.mxu0
    %v1658 = vadd.f32 %v1609, %v1657
    %v1659 = vpop.f32.mrf.mxu0
    %v1660 = vadd.f32 %v1611, %v1659
    %1661 = vmatmul.bf16.gmra.mxu0 %v733
    %v1662 = vpop.f32.mrf.mxu0
    %v1663 = vadd.f32 %v1614, %v1662
    %v1664 = vpop.f32.mrf.mxu0
    %v1665 = vadd.f32 %v1616, %v1664
    %1666 = vmatmul.bf16.gmra.mxu0 %v742
    %v1667 = vpop.f32.mrf.mxu0
    %v1668 = vadd.f32 %v1619, %v1667
    %v1669 = vpop.f32.mrf.mxu0
    %v1670 = vadd.f32 %v1621, %v1669
    %1671 = vmatmul.bf16.gmra.mxu0 %v751
    %v1672 = vpop.f32.mrf.mxu0
    %v1673 = vadd.f32 %v1624, %v1672
    %v1674 = vpop.f32.mrf.mxu0
    %v1675 = vadd.f32 %v1626, %v1674
    %1676 = vdwg.mxu0
    %1677 = vmatpush.bf16.msra.mxu0 %v1253
    %1678 = vmatpush.bf16.msra.mxu0 %v1252
    %1679 = vmatpush.bf16.msra.mxu0 %v1251
    %1680 = vmatpush.bf16.msra.mxu0 %v1250
    %1681 = vmatpush.bf16.msra.mxu0 %v1249
    %1682 = vmatpush.bf16.msra.mxu0 %v1248
    %1683 = vmatpush.bf16.msra.mxu0 %v1247
    %1684 = vmatpush.bf16.msra.mxu0 %v1246
    %1685 = vmatmul.bf16.gmra.mxu0 %v689
    %v1686 = vpop.f32.mrf.mxu0
    %v1687 = vadd.f32 %v1638, %v1686
    %v1688 = vpop.f32.mrf.mxu0
    %v1689 = vadd.f32 %v1640, %v1688
    %1690 = vmatmul.bf16.gmra.mxu0 %v698
    %v1691 = vpop.f32.mrf.mxu0
    %v1692 = vadd.f32 %v1643, %v1691
    %v1693 = vpop.f32.mrf.mxu0
    %v1694 = vadd.f32 %v1645, %v1693
    %1695 = vmatmul.bf16.gmra.mxu0 %v707
    %v1696 = vpop.f32.mrf.mxu0
    %v1697 = vadd.f32 %v1648, %v1696
    %v1698 = vpop.f32.mrf.mxu0
    %v1699 = vadd.f32 %v1650, %v1698
    %1700 = vmatmul.bf16.gmra.mxu0 %v716
    %v1701 = vpop.f32.mrf.mxu0
    %v1702 = vadd.f32 %v1653, %v1701
    %v1703 = vpop.f32.mrf.mxu0
    %v1704 = vadd.f32 %v1655, %v1703
    %1705 = vmatmul.bf16.gmra.mxu0 %v725
    %v1706 = vpop.f32.mrf.mxu0
    %v1707 = vadd.f32 %v1658, %v1706
    %v1708 = vpop.f32.mrf.mxu0
    %v1709 = vadd.f32 %v1660, %v1708
    %1710 = vmatmul.bf16.gmra.mxu0 %v734
    %v1711 = vpop.f32.mrf.mxu0
    %v1712 = vadd.f32 %v1663, %v1711
    %v1713 = vpop.f32.mrf.mxu0
    %v1714 = vadd.f32 %v1665, %v1713
    %1715 = vmatmul.bf16.gmra.mxu0 %v743
    %v1716 = vpop.f32.mrf.mxu0
    %v1717 = vadd.f32 %v1668, %v1716
    %v1718 = vpop.f32.mrf.mxu0
    %v1719 = vadd.f32 %v1670, %v1718
    %1720 = vmatmul.bf16.gmra.mxu0 %v752
    %v1721 = vpop.f32.mrf.mxu0
    %v1722 = vadd.f32 %v1673, %v1721
    %v1723 = vpop.f32.mrf.mxu0
    %v1724 = vadd.f32 %v1675, %v1723
    %1725 = vdwg.mxu0
    %1726 = vmatpush.bf16.msra.mxu0 %v1261
    %1727 = vmatpush.bf16.msra.mxu0 %v1260
    %1728 = vmatpush.bf16.msra.mxu0 %v1259
    %1729 = vmatpush.bf16.msra.mxu0 %v1258
    %1730 = vmatpush.bf16.msra.mxu0 %v1257
    %1731 = vmatpush.bf16.msra.mxu0 %v1256
    %1732 = vmatpush.bf16.msra.mxu0 %v1255
    %1733 = vmatpush.bf16.msra.mxu0 %v1254
    %1734 = vmatmul.bf16.gmra.mxu0 %v690
    %v1735 = vpop.f32.mrf.mxu0
    %v1736 = vadd.f32 %v1687, %v1735
    %v1737 = vpop.f32.mrf.mxu0
    %v1738 = vadd.f32 %v1689, %v1737
    %1739 = vmatmul.bf16.gmra.mxu0 %v699
    %v1740 = vpop.f32.mrf.mxu0
    %v1741 = vadd.f32 %v1692, %v1740
    %v1742 = vpop.f32.mrf.mxu0
    %v1743 = vadd.f32 %v1694, %v1742
    %1744 = vmatmul.bf16.gmra.mxu0 %v708
    %v1745 = vpop.f32.mrf.mxu0
    %v1746 = vadd.f32 %v1697, %v1745
    %v1747 = vpop.f32.mrf.mxu0
    %v1748 = vadd.f32 %v1699, %v1747
    %1749 = vmatmul.bf16.gmra.mxu0 %v717
    %v1750 = vpop.f32.mrf.mxu0
    %v1751 = vadd.f32 %v1702, %v1750
    %v1752 = vpop.f32.mrf.mxu0
    %v1753 = vadd.f32 %v1704, %v1752
    %1754 = vmatmul.bf16.gmra.mxu0 %v726
    %v1755 = vpop.f32.mrf.mxu0
    %v1756 = vadd.f32 %v1707, %v1755
    %v1757 = vpop.f32.mrf.mxu0
    %v1758 = vadd.f32 %v1709, %v1757
    %1759 = vmatmul.bf16.gmra.mxu0 %v735
    %v1760 = vpop.f32.mrf.mxu0
    %v1761 = vadd.f32 %v1712, %v1760
    %v1762 = vpop.f32.mrf.mxu0
    %v1763 = vadd.f32 %v1714, %v1762
    %1764 = vmatmul.bf16.gmra.mxu0 %v744
    %v1765 = vpop.f32.mrf.mxu0
    %v1766 = vadd.f32 %v1717, %v1765
    %v1767 = vpop.f32.mrf.mxu0
    %v1768 = vadd.f32 %v1719, %v1767
    %1769 = vmatmul.bf16.gmra.mxu0 %v753
    %v1770 = vpop.f32.mrf.mxu0
    %v1771 = vadd.f32 %v1722, %v1770
    %v1772 = vpop.f32.mrf.mxu0
    %v1773 = vadd.f32 %v1724, %v1772
    %1774 = vdwg.mxu0
    %v1775 = vmul.f32 %v1736, 0.2
    %v1776 = vmul.f32 %v1738, 0.2
    %v1777 = vmul.f32 %v1741, 0.2
    %v1778 = vmul.f32 %v1743, 0.2
    %v1779 = vmul.f32 %v1746, 0.2
    %v1780 = vmul.f32 %v1748, 0.2
    %v1781 = vmul.f32 %v1751, 0.2
    %v1782 = vmul.f32 %v1753, 0.2
    %v1783 = vmul.f32 %v1756, 0.2
    %v1784 = vmul.f32 %v1758, 0.2
    %v1785 = vmul.f32 %v1761, 0.2
    %v1786 = vmul.f32 %v1763, 0.2
    %v1787 = vmul.f32 %v1766, 0.2
    %v1788 = vmul.f32 %v1768, 0.2
    %v1789 = vmul.f32 %v1771, 0.2
    %v1790 = vmul.f32 %v1773, 0.2
    %v1791 = vmax.f32 %v1736, %v1775
    %v1792 = vmax.f32 %v1738, %v1776
    %v1793 = vmax.f32 %v1741, %v1777
    %v1794 = vmax.f32 %v1743, %v1778
    %v1795 = vmax.f32 %v1746, %v1779
    %v1796 = vmax.f32 %v1748, %v1780
    %v1797 = vmax.f32 %v1751, %v1781
    %v1798 = vmax.f32 %v1753, %v1782
    %v1799 = vmax.f32 %v1756, %v1783
    %v1800 = vmax.f32 %v1758, %v1784
    %v1801 = vmax.f32 %v1761, %v1785
    %v1802 = vmax.f32 %v1763, %v1786
    %v1803 = vmax.f32 %v1766, %v1787
    %v1804 = vmax.f32 %v1768, %v1788
    %v1805 = vmax.f32 %v1771, %v1789
    %v1806 = vmax.f32 %v1773, %v1790
    %1807 = vst [vmem:[#allocation18] sm:$0xff] %v1791
    %1808 = vst [vmem:[#allocation18 + $0x8] sm:$0xff] %v1792
    %1809 = vst [vmem:[#allocation18 + $0x10] sm:$0xff] %v1793
    %1810 = vst [vmem:[#allocation18 + $0x18] sm:$0xff] %v1794
    %1811 = vst [vmem:[#allocation18 + $0x20] sm:$0xff] %v1795
    %1812 = vst [vmem:[#allocation18 + $0x28] sm:$0xff] %v1796
    %1813 = vst [vmem:[#allocation18 + $0x30] sm:$0xff] %v1797
    %1814 = vst [vmem:[#allocation18 + $0x38] sm:$0xff] %v1798
    %1815 = vst [vmem:[#allocation18 + $0x40] sm:$0xff] %v1799
    %1816 = vst [vmem:[#allocation18 + $0x48] sm:$0xff] %v1800
    %1817 = vst [vmem:[#allocation18 + $0x50] sm:$0xff] %v1801
    %1818 = vst [vmem:[#allocation18 + $0x58] sm:$0xff] %v1802
    %1819 = vst [vmem:[#allocation18 + $0x60] sm:$0xff] %v1803
    %1820 = vst [vmem:[#allocation18 + $0x68] sm:$0xff] %v1804
    %1821 = vst [vmem:[#allocation18 + $0x70] sm:$0xff] %v1805
    %1822 = vst [vmem:[#allocation18 + $0x78] sm:$0xff] %v1806
    %1823 = vst [vmem:[#allocation2] sm:$0xff] 0.0
    %1824 = vst [vmem:[#allocation2 + $0x8] sm:$0xff] 0.0
    %1825 = vst [vmem:[#allocation2 + $0x10] sm:$0xff] 0.0
    %1826 = vst [vmem:[#allocation2 + $0x18] sm:$0xff] 0.0
    %1827 = vst [vmem:[#allocation2 + $0x20] sm:$0xff] 0.0
    %1828 = vst [vmem:[#allocation2 + $0x28] sm:$0xff] 0.0
    %1829 = vst [vmem:[#allocation2 + $0x30] sm:$0xff] 0.0
    %1830 = vst [vmem:[#allocation2 + $0x38] sm:$0xff] 0.0
    %1831 = vst [vmem:[#allocation2 + $0x40] sm:$0xff] 0.0
    %1832 = vst [vmem:[#allocation2 + $0x48] sm:$0xff] 0.0
    %1833 = vst [vmem:[#allocation2 + $0x50] sm:$0xff] 0.0
    %1834 = vst [vmem:[#allocation2 + $0x58] sm:$0xff] 0.0
    %1835 = vst [vmem:[#allocation2 + $0x60] sm:$0xff] 0.0
    %1836 = vst [vmem:[#allocation2 + $0x68] sm:$0xff] 0.0
    %1837 = vst [vmem:[#allocation2 + $0x70] sm:$0xff] 0.0
    %1838 = vst [vmem:[#allocation2 + $0x78] sm:$0xff] 0.0
    %1839 = vst [vmem:[#allocation2 + $0x80] sm:$0xff] 0.0
    %1840 = vst [vmem:[#allocation2 + $0x88] sm:$0xff] 0.0
    %1841 = vst [vmem:[#allocation2 + $0x90] sm:$0xff] 0.0
    %1842 = vst [vmem:[#allocation2 + $0x98] sm:$0xff] 0.0
    %1843 = vst [vmem:[#allocation2 + $0xa0] sm:$0xff] 0.0
    %1844 = vst [vmem:[#allocation2 + $0xa8] sm:$0xff] 0.0
    %1845 = vst [vmem:[#allocation2 + $0xb0] sm:$0xff] 0.0
    %1846 = vst [vmem:[#allocation2 + $0xb8] sm:$0xff] 0.0
    %1847 = vst [vmem:[#allocation2 + $0xc0] sm:$0xff] 0.0
    %v1848 = vld [vmem:[#allocation18] sm:$0xff]
    %1849 = vst [vmem:[#allocation2 + $0xb] sm:$0xff] %v1848
    %v1850 = vld [vmem:[#allocation18 + $0x8] sm:$0xff]
    %1851 = vst [vmem:[#allocation2 + $0x15] sm:$0xff] %v1850
    %v1852 = vld [vmem:[#allocation18 + $0x10] sm:$0xff]
    %1853 = vst [vmem:[#allocation2 + $0x1f] sm:$0xff] %v1852
    %v1854 = vld [vmem:[#allocation18 + $0x18] sm:$0xff]
    %1855 = vst [vmem:[#allocation2 + $0x29] sm:$0xff] %v1854
    %v1856 = vld [vmem:[#allocation18 + $0x20] sm:$0xff]
    %1857 = vst [vmem:[#allocation2 + $0x33] sm:$0xff] %v1856
    %v1858 = vld [vmem:[#allocation18 + $0x28] sm:$0xff]
    %1859 = vst [vmem:[#allocation2 + $0x3d] sm:$0xff] %v1858
    %v1860 = vld [vmem:[#allocation18 + $0x30] sm:$0xff]
    %1861 = vst [vmem:[#allocation2 + $0x47] sm:$0xff] %v1860
    %v1862 = vld [vmem:[#allocation18 + $0x38] sm:$0xff]
    %1863 = vst [vmem:[#allocation2 + $0x51] sm:$0xff] %v1862
    %v1864 = vld [vmem:[#allocation18 + $0x40] sm:$0xff]
    %1865 = vst [vmem:[#allocation2 + $0x6f] sm:$0xff] %v1864
    %v1866 = vld [vmem:[#allocation18 + $0x48] sm:$0xff]
    %1867 = vst [vmem:[#allocation2 + $0x79] sm:$0xff] %v1866
    %v1868 = vld [vmem:[#allocation18 + $0x50] sm:$0xff]
    %1869 = vst [vmem:[#allocation2 + $0x83] sm:$0xff] %v1868
    %v1870 = vld [vmem:[#allocation18 + $0x58] sm:$0xff]
    %1871 = vst [vmem:[#allocation2 + $0x8d] sm:$0xff] %v1870
    %v1872 = vld [vmem:[#allocation18 + $0x60] sm:$0xff]
    %1873 = vst [vmem:[#allocation2 + $0x97] sm:$0xff] %v1872
    %v1874 = vld [vmem:[#allocation18 + $0x68] sm:$0xff]
    %1875 = vst [vmem:[#allocation2 + $0xa1] sm:$0xff] %v1874
    %v1876 = vld [vmem:[#allocation18 + $0x70] sm:$0xff]
    %1877 = vst [vmem:[#allocation2 + $0xab] sm:$0xff] %v1876
    %v1878 = vld [vmem:[#allocation18 + $0x78] sm:$0xff]
    %1879 = vst [vmem:[#allocation2 + $0xb5] sm:$0xff] %v1878
    %v1880 = vld [vmem:[#allocation2] ss:$2 sm:$0xf]
    %1881 = vst [vmem:[#allocation6] sm:$0xf] %v1880
    %s1882 = scalar_lea.vmem [#allocation2], 20
    %v1883 = vld [vmem:[%s1882] ss:$2 sm:$0xf]
    %v1885 = vrot.slane %v1883, 4
    %1887 = vst [vmem:[#allocation6] sm:$0xf0] %v1885
    %s1888 = scalar_lea.vmem [#allocation2], 40
    %v1889 = vld [vmem:[%s1888] ss:$2 sm:$0xf]
    %1890 = vst [vmem:[#allocation6 + $0x48] sm:$0xf] %v1889
    %s1891 = scalar_lea.vmem [#allocation2], 60
    %v1892 = vld [vmem:[%s1891] ss:$2 sm:$0xf]
    %v1894 = vrot.slane %v1892, 4
    %1896 = vst [vmem:[#allocation6 + $0x48] sm:$0xf0] %v1894
    %s1897 = scalar_lea.vmem [#allocation2], 100
    %v1898 = vld [vmem:[%s1897] ss:$2 sm:$0xf]
    %1899 = vst [vmem:[#allocation6 + $0x90] sm:$0xf] %v1898
    %s1900 = scalar_lea.vmem [#allocation2], 120
    %v1901 = vld [vmem:[%s1900] ss:$2 sm:$0xf]
    %v1903 = vrot.slane %v1901, 4
    %1905 = vst [vmem:[#allocation6 + $0x90] sm:$0xf0] %v1903
    %s1906 = scalar_lea.vmem [#allocation2], 140
    %v1907 = vld [vmem:[%s1906] ss:$2 sm:$0xf]
    %1908 = vst [vmem:[#allocation6 + $0xd8] sm:$0xf] %v1907
    %s1909 = scalar_lea.vmem [#allocation2], 160
    %v1910 = vld [vmem:[%s1909] ss:$2 sm:$0xf]
    %v1912 = vrot.slane %v1910, 4
    %1914 = vst [vmem:[#allocation6 + $0xd8] sm:$0xf0] %v1912
    %s1915 = scalar_lea.vmem [#allocation2], 1
    %v1916 = vld [vmem:[%s1915] ss:$2 sm:$0xf]
    %1917 = vst [vmem:[#allocation6 + $0x8] sm:$0xf] %v1916
    %s1918 = scalar_lea.vmem [#allocation2], 21
    %v1919 = vld [vmem:[%s1918] ss:$2 sm:$0xf]
    %v1921 = vrot.slane %v1919, 4
    %1923 = vst [vmem:[#allocation6 + $0x8] sm:$0xf0] %v1921
    %s1924 = scalar_lea.vmem [#allocation2], 41
    %v1925 = vld [vmem:[%s1924] ss:$2 sm:$0xf]
    %1926 = vst [vmem:[#allocation6 + $0x50] sm:$0xf] %v1925
    %s1927 = scalar_lea.vmem [#allocation2], 61
    %v1928 = vld [vmem:[%s1927] ss:$2 sm:$0xf]
    %v1930 = vrot.slane %v1928, 4
    %1932 = vst [vmem:[#allocation6 + $0x50] sm:$0xf0] %v1930
    %s1933 = scalar_lea.vmem [#allocation2], 101
    %v1934 = vld [vmem:[%s1933] ss:$2 sm:$0xf]
    %1935 = vst [vmem:[#allocation6 + $0x98] sm:$0xf] %v1934
    %s1936 = scalar_lea.vmem [#allocation2], 121
    %v1937 = vld [vmem:[%s1936] ss:$2 sm:$0xf]
    %v1939 = vrot.slane %v1937, 4
    %1941 = vst [vmem:[#allocation6 + $0x98] sm:$0xf0] %v1939
    %s1942 = scalar_lea.vmem [#allocation2], 141
    %v1943 = vld [vmem:[%s1942] ss:$2 sm:$0xf]
    %1944 = vst [vmem:[#allocation6 + $0xe0] sm:$0xf] %v1943
    %s1945 = scalar_lea.vmem [#allocation2], 161
    %v1946 = vld [vmem:[%s1945] ss:$2 sm:$0xf]
    %v1948 = vrot.slane %v1946, 4
    %1950 = vst [vmem:[#allocation6 + $0xe0] sm:$0xf0] %v1948
    %s1951 = scalar_lea.vmem [#allocation2], 2
    %v1952 = vld [vmem:[%s1951] ss:$2 sm:$0xf]
    %1953 = vst [vmem:[#allocation6 + $0x10] sm:$0xf] %v1952
    %s1954 = scalar_lea.vmem [#allocation2], 22
    %v1955 = vld [vmem:[%s1954] ss:$2 sm:$0xf]
    %v1957 = vrot.slane %v1955, 4
    %1959 = vst [vmem:[#allocation6 + $0x10] sm:$0xf0] %v1957
    %s1960 = scalar_lea.vmem [#allocation2], 42
    %v1961 = vld [vmem:[%s1960] ss:$2 sm:$0xf]
    %1962 = vst [vmem:[#allocation6 + $0x58] sm:$0xf] %v1961
    %s1963 = scalar_lea.vmem [#allocation2], 62
    %v1964 = vld [vmem:[%s1963] ss:$2 sm:$0xf]
    %v1966 = vrot.slane %v1964, 4
    %1968 = vst [vmem:[#allocation6 + $0x58] sm:$0xf0] %v1966
    %s1969 = scalar_lea.vmem [#allocation2], 102
    %v1970 = vld [vmem:[%s1969] ss:$2 sm:$0xf]
    %1971 = vst [vmem:[#allocation6 + $0xa0] sm:$0xf] %v1970
    %s1972 = scalar_lea.vmem [#allocation2], 122
    %v1973 = vld [vmem:[%s1972] ss:$2 sm:$0xf]
    %v1975 = vrot.slane %v1973, 4
    %1977 = vst [vmem:[#allocation6 + $0xa0] sm:$0xf0] %v1975
    %s1978 = scalar_lea.vmem [#allocation2], 142
    %v1979 = vld [vmem:[%s1978] ss:$2 sm:$0xf]
    %1980 = vst [vmem:[#allocation6 + $0xe8] sm:$0xf] %v1979
    %s1981 = scalar_lea.vmem [#allocation2], 162
    %v1982 = vld [vmem:[%s1981] ss:$2 sm:$0xf]
    %v1984 = vrot.slane %v1982, 4
    %1986 = vst [vmem:[#allocation6 + $0xe8] sm:$0xf0] %v1984
    %s1987 = scalar_lea.vmem [#allocation2], 10
    %v1988 = vld [vmem:[%s1987] ss:$2 sm:$0xf]
    %1989 = vst [vmem:[#allocation6 + $0x18] sm:$0xf] %v1988
    %s1990 = scalar_lea.vmem [#allocation2], 30
    %v1991 = vld [vmem:[%s1990] ss:$2 sm:$0xf]
    %v1993 = vrot.slane %v1991, 4
    %1995 = vst [vmem:[#allocation6 + $0x18] sm:$0xf0] %v1993
    %s1996 = scalar_lea.vmem [#allocation2], 50
    %v1997 = vld [vmem:[%s1996] ss:$2 sm:$0xf]
    %1998 = vst [vmem:[#allocation6 + $0x60] sm:$0xf] %v1997
    %s1999 = scalar_lea.vmem [#allocation2], 70
    %v2000 = vld [vmem:[%s1999] ss:$2 sm:$0xf]
    %v2002 = vrot.slane %v2000, 4
    %2004 = vst [vmem:[#allocation6 + $0x60] sm:$0xf0] %v2002
    %s2005 = scalar_lea.vmem [#allocation2], 110
    %v2006 = vld [vmem:[%s2005] ss:$2 sm:$0xf]
    %2007 = vst [vmem:[#allocation6 + $0xa8] sm:$0xf] %v2006
    %s2008 = scalar_lea.vmem [#allocation2], 130
    %v2009 = vld [vmem:[%s2008] ss:$2 sm:$0xf]
    %v2011 = vrot.slane %v2009, 4
    %2013 = vst [vmem:[#allocation6 + $0xa8] sm:$0xf0] %v2011
    %s2014 = scalar_lea.vmem [#allocation2], 150
    %v2015 = vld [vmem:[%s2014] ss:$2 sm:$0xf]
    %2016 = vst [vmem:[#allocation6 + $0xf0] sm:$0xf] %v2015
    %s2017 = scalar_lea.vmem [#allocation2], 170
    %v2018 = vld [vmem:[%s2017] ss:$2 sm:$0xf]
    %v2020 = vrot.slane %v2018, 4
    %2022 = vst [vmem:[#allocation6 + $0xf0] sm:$0xf0] %v2020
    %s2023 = scalar_lea.vmem [#allocation2], 11
    %v2024 = vld [vmem:[%s2023] ss:$2 sm:$0xf]
    %2025 = vst [vmem:[#allocation6 + $0x20] sm:$0xf] %v2024
    %s2026 = scalar_lea.vmem [#allocation2], 31
    %v2027 = vld [vmem:[%s2026] ss:$2 sm:$0xf]
    %v2029 = vrot.slane %v2027, 4
    %2031 = vst [vmem:[#allocation6 + $0x20] sm:$0xf0] %v2029
    %s2032 = scalar_lea.vmem [#allocation2], 51
    %v2033 = vld [vmem:[%s2032] ss:$2 sm:$0xf]
    %2034 = vst [vmem:[#allocation6 + $0x68] sm:$0xf] %v2033
    %s2035 = scalar_lea.vmem [#allocation2], 71
    %v2036 = vld [vmem:[%s2035] ss:$2 sm:$0xf]
    %v2038 = vrot.slane %v2036, 4
    %2040 = vst [vmem:[#allocation6 + $0x68] sm:$0xf0] %v2038
    %s2041 = scalar_lea.vmem [#allocation2], 111
    %v2042 = vld [vmem:[%s2041] ss:$2 sm:$0xf]
    %2043 = vst [vmem:[#allocation6 + $0xb0] sm:$0xf] %v2042
    %s2044 = scalar_lea.vmem [#allocation2], 131
    %v2045 = vld [vmem:[%s2044] ss:$2 sm:$0xf]
    %v2047 = vrot.slane %v2045, 4
    %2049 = vst [vmem:[#allocation6 + $0xb0] sm:$0xf0] %v2047
    %s2050 = scalar_lea.vmem [#allocation2], 151
    %v2051 = vld [vmem:[%s2050] ss:$2 sm:$0xf]
    %2052 = vst [vmem:[#allocation6 + $0xf8] sm:$0xf] %v2051
    %s2053 = scalar_lea.vmem [#allocation2], 171
    %v2054 = vld [vmem:[%s2053] ss:$2 sm:$0xf]
    %v2056 = vrot.slane %v2054, 4
    %2058 = vst [vmem:[#allocation6 + $0xf8] sm:$0xf0] %v2056
    %s2059 = scalar_lea.vmem [#allocation2], 12
    %v2060 = vld [vmem:[%s2059] ss:$2 sm:$0xf]
    %2061 = vst [vmem:[#allocation6 + $0x28] sm:$0xf] %v2060
    %s2062 = scalar_lea.vmem [#allocation2], 32
    %v2063 = vld [vmem:[%s2062] ss:$2 sm:$0xf]
    %v2065 = vrot.slane %v2063, 4
    %2067 = vst [vmem:[#allocation6 + $0x28] sm:$0xf0] %v2065
    %s2068 = scalar_lea.vmem [#allocation2], 52
    %v2069 = vld [vmem:[%s2068] ss:$2 sm:$0xf]
    %2070 = vst [vmem:[#allocation6 + $0x70] sm:$0xf] %v2069
    %s2071 = scalar_lea.vmem [#allocation2], 72
    %v2072 = vld [vmem:[%s2071] ss:$2 sm:$0xf]
    %v2074 = vrot.slane %v2072, 4
    %2076 = vst [vmem:[#allocation6 + $0x70] sm:$0xf0] %v2074
    %s2077 = scalar_lea.vmem [#allocation2], 112
    %v2078 = vld [vmem:[%s2077] ss:$2 sm:$0xf]
    %2079 = vst [vmem:[#allocation6 + $0xb8] sm:$0xf] %v2078
    %s2080 = scalar_lea.vmem [#allocation2], 132
    %v2081 = vld [vmem:[%s2080] ss:$2 sm:$0xf]
    %v2083 = vrot.slane %v2081, 4
    %2085 = vst [vmem:[#allocation6 + $0xb8] sm:$0xf0] %v2083
    %s2086 = scalar_lea.vmem [#allocation2], 152
    %v2087 = vld [vmem:[%s2086] ss:$2 sm:$0xf]
    %2088 = vst [vmem:[#allocation6 + $0x100] sm:$0xf] %v2087
    %s2089 = scalar_lea.vmem [#allocation2], 172
    %v2090 = vld [vmem:[%s2089] ss:$2 sm:$0xf]
    %v2092 = vrot.slane %v2090, 4
    %2094 = vst [vmem:[#allocation6 + $0x100] sm:$0xf0] %v2092
    %v2095 = vld [vmem:[%s1882] ss:$2 sm:$0xf]
    %2096 = vst [vmem:[#allocation6 + $0x30] sm:$0xf] %v2095
    %v2097 = vld [vmem:[%s1888] ss:$2 sm:$0xf]
    %v2099 = vrot.slane %v2097, 4
    %2101 = vst [vmem:[#allocation6 + $0x30] sm:$0xf0] %v2099
    %v2102 = vld [vmem:[%s1891] ss:$2 sm:$0xf]
    %2103 = vst [vmem:[#allocation6 + $0x78] sm:$0xf] %v2102
    %s2104 = scalar_lea.vmem [#allocation2], 80
    %v2105 = vld [vmem:[%s2104] ss:$2 sm:$0xf]
    %v2107 = vrot.slane %v2105, 4
    %2109 = vst [vmem:[#allocation6 + $0x78] sm:$0xf0] %v2107
    %v2110 = vld [vmem:[%s1900] ss:$2 sm:$0xf]
    %2111 = vst [vmem:[#allocation6 + $0xc0] sm:$0xf] %v2110
    %v2112 = vld [vmem:[%s1906] ss:$2 sm:$0xf]
    %v2114 = vrot.slane %v2112, 4
    %2116 = vst [vmem:[#allocation6 + $0xc0] sm:$0xf0] %v2114
    %v2117 = vld [vmem:[%s1909] ss:$2 sm:$0xf]
    %2118 = vst [vmem:[#allocation6 + $0x108] sm:$0xf] %v2117
    %s2119 = scalar_lea.vmem [#allocation2], 180
    %v2120 = vld [vmem:[%s2119] ss:$2 sm:$0xf]
    %v2122 = vrot.slane %v2120, 4
    %2124 = vst [vmem:[#allocation6 + $0x108] sm:$0xf0] %v2122
    %v2125 = vld [vmem:[%s1918] ss:$2 sm:$0xf]
    %2126 = vst [vmem:[#allocation6 + $0x38] sm:$0xf] %v2125
    %v2127 = vld [vmem:[%s1924] ss:$2 sm:$0xf]
    %v2129 = vrot.slane %v2127, 4
    %2131 = vst [vmem:[#allocation6 + $0x38] sm:$0xf0] %v2129
    %v2132 = vld [vmem:[%s1927] ss:$2 sm:$0xf]
    %2133 = vst [vmem:[#allocation6 + $0x80] sm:$0xf] %v2132
    %s2134 = scalar_lea.vmem [#allocation2], 81
    %v2135 = vld [vmem:[%s2134] ss:$2 sm:$0xf]
    %v2137 = vrot.slane %v2135, 4
    %2139 = vst [vmem:[#allocation6 + $0x80] sm:$0xf0] %v2137
    %v2140 = vld [vmem:[%s1936] ss:$2 sm:$0xf]
    %2141 = vst [vmem:[#allocation6 + $0xc8] sm:$0xf] %v2140
    %v2142 = vld [vmem:[%s1942] ss:$2 sm:$0xf]
    %v2144 = vrot.slane %v2142, 4
    %2146 = vst [vmem:[#allocation6 + $0xc8] sm:$0xf0] %v2144
    %v2147 = vld [vmem:[%s1945] ss:$2 sm:$0xf]
    %2148 = vst [vmem:[#allocation6 + $0x110] sm:$0xf] %v2147
    %s2149 = scalar_lea.vmem [#allocation2], 181
    %v2150 = vld [vmem:[%s2149] ss:$2 sm:$0xf]
    %v2152 = vrot.slane %v2150, 4
    %2154 = vst [vmem:[#allocation6 + $0x110] sm:$0xf0] %v2152
    %v2155 = vld [vmem:[%s1954] ss:$2 sm:$0xf]
    %2156 = vst [vmem:[#allocation6 + $0x40] sm:$0xf] %v2155
    %v2157 = vld [vmem:[%s1960] ss:$2 sm:$0xf]
    %v2159 = vrot.slane %v2157, 4
    %2161 = vst [vmem:[#allocation6 + $0x40] sm:$0xf0] %v2159
    %v2162 = vld [vmem:[%s1963] ss:$2 sm:$0xf]
    %2163 = vst [vmem:[#allocation6 + $0x88] sm:$0xf] %v2162
    %s2164 = scalar_lea.vmem [#allocation2], 82
    %v2165 = vld [vmem:[%s2164] ss:$2 sm:$0xf]
    %v2167 = vrot.slane %v2165, 4
    %2169 = vst [vmem:[#allocation6 + $0x88] sm:$0xf0] %v2167
    %v2170 = vld [vmem:[%s1972] ss:$2 sm:$0xf]
    %2171 = vst [vmem:[#allocation6 + $0xd0] sm:$0xf] %v2170
    %v2172 = vld [vmem:[%s1978] ss:$2 sm:$0xf]
    %v2174 = vrot.slane %v2172, 4
    %2176 = vst [vmem:[#allocation6 + $0xd0] sm:$0xf0] %v2174
    %v2177 = vld [vmem:[%s1981] ss:$2 sm:$0xf]
    %2178 = vst [vmem:[#allocation6 + $0x118] sm:$0xf] %v2177
    %s2179 = scalar_lea.vmem [#allocation2], 182
    %v2180 = vld [vmem:[%s2179] ss:$2 sm:$0xf]
    %v2182 = vrot.slane %v2180, 4
    %2184 = vst [vmem:[#allocation6 + $0x118] sm:$0xf0] %v2182
    %v2185 = vld [vmem:[#allocation6] sm:$0xff]
    %v2186 = vld [vmem:[#allocation6 + $0x8] sm:$0xff]
    %v2187 = vld [vmem:[#allocation6 + $0x10] sm:$0xff]
    %v2188 = vld [vmem:[#allocation6 + $0x18] sm:$0xff]
    %v2189 = vld [vmem:[#allocation6 + $0x20] sm:$0xff]
    %v2190 = vld [vmem:[#allocation6 + $0x28] sm:$0xff]
    %v2191 = vld [vmem:[#allocation6 + $0x30] sm:$0xff]
    %v2192 = vld [vmem:[#allocation6 + $0x38] sm:$0xff]
    %v2193 = vld [vmem:[#allocation6 + $0x40] sm:$0xff]
    %v2194 = vld [vmem:[#allocation6 + $0x48] sm:$0xff]
    %v2195 = vld [vmem:[#allocation6 + $0x50] sm:$0xff]
    %v2196 = vld [vmem:[#allocation6 + $0x58] sm:$0xff]
    %v2197 = vld [vmem:[#allocation6 + $0x60] sm:$0xff]
    %v2198 = vld [vmem:[#allocation6 + $0x68] sm:$0xff]
    %v2199 = vld [vmem:[#allocation6 + $0x70] sm:$0xff]
    %v2200 = vld [vmem:[#allocation6 + $0x78] sm:$0xff]
    %v2201 = vld [vmem:[#allocation6 + $0x80] sm:$0xff]
    %v2202 = vld [vmem:[#allocation6 + $0x88] sm:$0xff]
    %v2203 = vld [vmem:[#allocation6 + $0x90] sm:$0xff]
    %v2204 = vld [vmem:[#allocation6 + $0x98] sm:$0xff]
    %v2205 = vld [vmem:[#allocation6 + $0xa0] sm:$0xff]
    %v2206 = vld [vmem:[#allocation6 + $0xa8] sm:$0xff]
    %v2207 = vld [vmem:[#allocation6 + $0xb0] sm:$0xff]
    %v2208 = vld [vmem:[#allocation6 + $0xb8] sm:$0xff]
    %v2209 = vld [vmem:[#allocation6 + $0xc0] sm:$0xff]
    %v2210 = vld [vmem:[#allocation6 + $0xc8] sm:$0xff]
    %v2211 = vld [vmem:[#allocation6 + $0xd0] sm:$0xff]
    %v2212 = vld [vmem:[#allocation6 + $0xd8] sm:$0xff]
    %v2213 = vld [vmem:[#allocation6 + $0xe0] sm:$0xff]
    %v2214 = vld [vmem:[#allocation6 + $0xe8] sm:$0xff]
    %v2215 = vld [vmem:[#allocation6 + $0xf0] sm:$0xff]
    %v2216 = vld [vmem:[#allocation6 + $0xf8] sm:$0xff]
    %v2217 = vld [vmem:[#allocation6 + $0x100] sm:$0xff]
    %v2218 = vld [vmem:[#allocation6 + $0x108] sm:$0xff]
    %v2219 = vld [vmem:[#allocation6 + $0x110] sm:$0xff]
    %v2220 = vld [vmem:[#allocation6 + $0x118] sm:$0xff]
    %v2221 = vpack.c.bf16 %v2194, %v2185
    %v2222 = vpack.c.bf16 %v2195, %v2186
    %v2223 = vpack.c.bf16 %v2196, %v2187
    %v2224 = vpack.c.bf16 %v2197, %v2188
    %v2225 = vpack.c.bf16 %v2198, %v2189
    %v2226 = vpack.c.bf16 %v2199, %v2190
    %v2227 = vpack.c.bf16 %v2200, %v2191
    %v2228 = vpack.c.bf16 %v2201, %v2192
    %v2229 = vpack.c.bf16 %v2202, %v2193
    %v2230 = vpack.c.bf16 %v2212, %v2203
    %v2231 = vpack.c.bf16 %v2213, %v2204
    %v2232 = vpack.c.bf16 %v2214, %v2205
    %v2233 = vpack.c.bf16 %v2215, %v2206
    %v2234 = vpack.c.bf16 %v2216, %v2207
    %v2235 = vpack.c.bf16 %v2217, %v2208
    %v2236 = vpack.c.bf16 %v2218, %v2209
    %v2237 = vpack.c.bf16 %v2219, %v2210
    %v2238 = vpack.c.bf16 %v2220, %v2211
    %v2239 = vld [vmem:[#allocation12] sm:$0xf]
    %v2240 = vld [vmem:[#allocation12 + $0x4] sm:$0xf]
    %v2241 = vld [vmem:[#allocation12 + $0x8] sm:$0xf]
    %v2242 = vld [vmem:[#allocation12 + $0xc] sm:$0xf]
    %v2243 = vld [vmem:[#allocation12 + $0x10] sm:$0xf]
    %v2244 = vld [vmem:[#allocation12 + $0x14] sm:$0xf]
    %v2245 = vld [vmem:[#allocation12 + $0x18] sm:$0xf]
    %v2246 = vld [vmem:[#allocation12 + $0x1c] sm:$0xf]
    %v2247 = vld [vmem:[#allocation12 + $0x20] sm:$0xf]
    %v2248 = vld [vmem:[#allocation12 + $0x24] sm:$0xf]
    %v2249 = vld [vmem:[#allocation12 + $0x28] sm:$0xf]
    %v2250 = vld [vmem:[#allocation12 + $0x2c] sm:$0xf]
    %v2251 = vld [vmem:[#allocation12 + $0x30] sm:$0xf]
    %v2252 = vld [vmem:[#allocation12 + $0x34] sm:$0xf]
    %v2253 = vld [vmem:[#allocation12 + $0x38] sm:$0xf]
    %v2254 = vld [vmem:[#allocation12 + $0x3c] sm:$0xf]
    %v2255 = vld [vmem:[#allocation12 + $0x40] sm:$0xf]
    %v2256 = vld [vmem:[#allocation12 + $0x44] sm:$0xf]
    %v2257 = vld [vmem:[#allocation12 + $0x48] sm:$0xf]
    %v2258 = vld [vmem:[#allocation12 + $0x4c] sm:$0xf]
    %v2259 = vld [vmem:[#allocation12 + $0x50] sm:$0xf]
    %v2260 = vld [vmem:[#allocation12 + $0x54] sm:$0xf]
    %v2261 = vld [vmem:[#allocation12 + $0x58] sm:$0xf]
    %v2262 = vld [vmem:[#allocation12 + $0x5c] sm:$0xf]
    %v2263 = vld [vmem:[#allocation12 + $0x60] sm:$0xf]
    %v2264 = vld [vmem:[#allocation12 + $0x64] sm:$0xf]
    %v2265 = vld [vmem:[#allocation12 + $0x68] sm:$0xf]
    %v2266 = vld [vmem:[#allocation12 + $0x6c] sm:$0xf]
    %v2267 = vld [vmem:[#allocation12 + $0x70] sm:$0xf]
    %v2268 = vld [vmem:[#allocation12 + $0x74] sm:$0xf]
    %v2269 = vld [vmem:[#allocation12 + $0x78] sm:$0xf]
    %v2270 = vld [vmem:[#allocation12 + $0x7c] sm:$0xf]
    %v2271 = vld [vmem:[#allocation12 + $0x80] sm:$0xf]
    %v2272 = vld [vmem:[#allocation12 + $0x84] sm:$0xf]
    %v2273 = vld [vmem:[#allocation12 + $0x88] sm:$0xf]
    %v2274 = vld [vmem:[#allocation12 + $0x8c] sm:$0xf]
    %v2275 = vld [vmem:[#allocation12 + $0x90] sm:$0xf]
    %v2276 = vld [vmem:[#allocation12 + $0x94] sm:$0xf]
    %v2277 = vld [vmem:[#allocation12 + $0x98] sm:$0xf]
    %v2278 = vld [vmem:[#allocation12 + $0x9c] sm:$0xf]
    %v2279 = vld [vmem:[#allocation12 + $0xa0] sm:$0xf]
    %v2280 = vld [vmem:[#allocation12 + $0xa4] sm:$0xf]
    %v2281 = vld [vmem:[#allocation12 + $0xa8] sm:$0xf]
    %v2282 = vld [vmem:[#allocation12 + $0xac] sm:$0xf]
    %v2283 = vld [vmem:[#allocation12 + $0xb0] sm:$0xf]
    %v2284 = vld [vmem:[#allocation12 + $0xb4] sm:$0xf]
    %v2285 = vld [vmem:[#allocation12 + $0xb8] sm:$0xf]
    %v2286 = vld [vmem:[#allocation12 + $0xbc] sm:$0xf]
    %v2287 = vld [vmem:[#allocation12 + $0xc0] sm:$0xf]
    %v2288 = vld [vmem:[#allocation12 + $0xc4] sm:$0xf]
    %v2289 = vld [vmem:[#allocation12 + $0xc8] sm:$0xf]
    %v2290 = vld [vmem:[#allocation12 + $0xcc] sm:$0xf]
    %v2291 = vld [vmem:[#allocation12 + $0xd0] sm:$0xf]
    %v2292 = vld [vmem:[#allocation12 + $0xd4] sm:$0xf]
    %v2293 = vld [vmem:[#allocation12 + $0xd8] sm:$0xf]
    %v2294 = vld [vmem:[#allocation12 + $0xdc] sm:$0xf]
    %v2295 = vld [vmem:[#allocation12 + $0xe0] sm:$0xf]
    %v2296 = vld [vmem:[#allocation12 + $0xe4] sm:$0xf]
    %v2297 = vld [vmem:[#allocation12 + $0xe8] sm:$0xf]
    %v2298 = vld [vmem:[#allocation12 + $0xec] sm:$0xf]
    %v2299 = vld [vmem:[#allocation12 + $0xf0] sm:$0xf]
    %v2300 = vld [vmem:[#allocation12 + $0xf4] sm:$0xf]
    %v2301 = vld [vmem:[#allocation12 + $0xf8] sm:$0xf]
    %v2302 = vld [vmem:[#allocation12 + $0xfc] sm:$0xf]
    %v2303 = vld [vmem:[#allocation12 + $0x100] sm:$0xf]
    %v2304 = vld [vmem:[#allocation12 + $0x104] sm:$0xf]
    %v2305 = vld [vmem:[#allocation12 + $0x108] sm:$0xf]
    %v2306 = vld [vmem:[#allocation12 + $0x10c] sm:$0xf]
    %v2307 = vld [vmem:[#allocation12 + $0x110] sm:$0xf]
    %v2308 = vld [vmem:[#allocation12 + $0x114] sm:$0xf]
    %v2309 = vld [vmem:[#allocation12 + $0x118] sm:$0xf]
    %v2310 = vld [vmem:[#allocation12 + $0x11c] sm:$0xf]
    %v2311 = vld [vmem:[#allocation12 + $0x120] sm:$0xf]
    %v2312 = vld [vmem:[#allocation12 + $0x124] sm:$0xf]
    %v2313 = vld [vmem:[#allocation12 + $0x128] sm:$0xf]
    %v2314 = vld [vmem:[#allocation12 + $0x12c] sm:$0xf]
    %v2315 = vld [vmem:[#allocation12 + $0x130] sm:$0xf]
    %v2316 = vld [vmem:[#allocation12 + $0x134] sm:$0xf]
    %v2317 = vld [vmem:[#allocation12 + $0x138] sm:$0xf]
    %v2318 = vld [vmem:[#allocation12 + $0x13c] sm:$0xf]
    %v2319 = vld [vmem:[#allocation12 + $0x140] sm:$0xf]
    %v2320 = vld [vmem:[#allocation12 + $0x144] sm:$0xf]
    %v2321 = vld [vmem:[#allocation12 + $0x148] sm:$0xf]
    %v2322 = vld [vmem:[#allocation12 + $0x14c] sm:$0xf]
    %v2323 = vld [vmem:[#allocation12 + $0x150] sm:$0xf]
    %v2324 = vld [vmem:[#allocation12 + $0x154] sm:$0xf]
    %v2325 = vld [vmem:[#allocation12 + $0x158] sm:$0xf]
    %v2326 = vld [vmem:[#allocation12 + $0x15c] sm:$0xf]
    %v2327 = vld [vmem:[#allocation12 + $0x160] sm:$0xf]
    %v2328 = vld [vmem:[#allocation12 + $0x164] sm:$0xf]
    %v2329 = vld [vmem:[#allocation12 + $0x168] sm:$0xf]
    %v2330 = vld [vmem:[#allocation12 + $0x16c] sm:$0xf]
    %v2331 = vld [vmem:[#allocation12 + $0x170] sm:$0xf]
    %v2332 = vld [vmem:[#allocation12 + $0x174] sm:$0xf]
    %v2333 = vld [vmem:[#allocation12 + $0x178] sm:$0xf]
    %v2334 = vld [vmem:[#allocation12 + $0x17c] sm:$0xf]
    %v2335 = vld [vmem:[#allocation12 + $0x180] sm:$0xf]
    %v2336 = vld [vmem:[#allocation12 + $0x184] sm:$0xf]
    %v2337 = vld [vmem:[#allocation12 + $0x188] sm:$0xf]
    %v2338 = vld [vmem:[#allocation12 + $0x18c] sm:$0xf]
    %v2339 = vld [vmem:[#allocation12 + $0x190] sm:$0xf]
    %v2340 = vld [vmem:[#allocation12 + $0x194] sm:$0xf]
    %v2341 = vld [vmem:[#allocation12 + $0x198] sm:$0xf]
    %v2342 = vld [vmem:[#allocation12 + $0x19c] sm:$0xf]
    %v2343 = vld [vmem:[#allocation12 + $0x1a0] sm:$0xf]
    %v2344 = vld [vmem:[#allocation12 + $0x1a4] sm:$0xf]
    %v2345 = vld [vmem:[#allocation12 + $0x1a8] sm:$0xf]
    %v2346 = vld [vmem:[#allocation12 + $0x1ac] sm:$0xf]
    %v2347 = vld [vmem:[#allocation12 + $0x1b0] sm:$0xf]
    %v2348 = vld [vmem:[#allocation12 + $0x1b4] sm:$0xf]
    %v2349 = vld [vmem:[#allocation12 + $0x1b8] sm:$0xf]
    %v2350 = vld [vmem:[#allocation12 + $0x1bc] sm:$0xf]
    %v2351 = vld [vmem:[#allocation12 + $0x1c0] sm:$0xf]
    %v2352 = vld [vmem:[#allocation12 + $0x1c4] sm:$0xf]
    %v2353 = vld [vmem:[#allocation12 + $0x1c8] sm:$0xf]
    %v2354 = vld [vmem:[#allocation12 + $0x1cc] sm:$0xf]
    %v2355 = vld [vmem:[#allocation12 + $0x1d0] sm:$0xf]
    %v2356 = vld [vmem:[#allocation12 + $0x1d4] sm:$0xf]
    %v2357 = vld [vmem:[#allocation12 + $0x1d8] sm:$0xf]
    %v2358 = vld [vmem:[#allocation12 + $0x1dc] sm:$0xf]
    %v2359 = vld [vmem:[#allocation12 + $0x1e0] sm:$0xf]
    %v2360 = vld [vmem:[#allocation12 + $0x1e4] sm:$0xf]
    %v2361 = vld [vmem:[#allocation12 + $0x1e8] sm:$0xf]
    %v2362 = vld [vmem:[#allocation12 + $0x1ec] sm:$0xf]
    %v2363 = vld [vmem:[#allocation12 + $0x1f0] sm:$0xf]
    %v2364 = vld [vmem:[#allocation12 + $0x1f4] sm:$0xf]
    %v2365 = vld [vmem:[#allocation12 + $0x1f8] sm:$0xf]
    %v2366 = vld [vmem:[#allocation12 + $0x1fc] sm:$0xf]
    %v2367 = vld [vmem:[#allocation12 + $0x200] sm:$0xf]
    %v2368 = vld [vmem:[#allocation12 + $0x204] sm:$0xf]
    %v2369 = vld [vmem:[#allocation12 + $0x208] sm:$0xf]
    %v2370 = vld [vmem:[#allocation12 + $0x20c] sm:$0xf]
    %v2371 = vld [vmem:[#allocation12 + $0x210] sm:$0xf]
    %v2372 = vld [vmem:[#allocation12 + $0x214] sm:$0xf]
    %v2373 = vld [vmem:[#allocation12 + $0x218] sm:$0xf]
    %v2374 = vld [vmem:[#allocation12 + $0x21c] sm:$0xf]
    %v2375 = vld [vmem:[#allocation12 + $0x220] sm:$0xf]
    %v2376 = vld [vmem:[#allocation12 + $0x224] sm:$0xf]
    %v2377 = vld [vmem:[#allocation12 + $0x228] sm:$0xf]
    %v2378 = vld [vmem:[#allocation12 + $0x22c] sm:$0xf]
    %v2379 = vld [vmem:[#allocation12 + $0x230] sm:$0xf]
    %v2380 = vld [vmem:[#allocation12 + $0x234] sm:$0xf]
    %v2381 = vld [vmem:[#allocation12 + $0x238] sm:$0xf]
    %v2382 = vld [vmem:[#allocation12 + $0x23c] sm:$0xf]
    %v2527 = vunpack.c.l.b16 %v2239
    %v2528 = vunpack.c.l.b16 %v2240
    %v2529 = vunpack.c.l.b16 %v2241
    %v2530 = vunpack.c.l.b16 %v2242
    %v2531 = vunpack.c.l.b16 %v2243
    %v2532 = vunpack.c.l.b16 %v2244
    %v2533 = vunpack.c.l.b16 %v2245
    %v2534 = vunpack.c.l.b16 %v2246
    %v2535 = vunpack.c.l.b16 %v2247
    %v2536 = vunpack.c.l.b16 %v2248
    %v2537 = vunpack.c.l.b16 %v2249
    %v2538 = vunpack.c.l.b16 %v2250
    %v2539 = vunpack.c.l.b16 %v2251
    %v2540 = vunpack.c.l.b16 %v2252
    %v2541 = vunpack.c.l.b16 %v2253
    %v2542 = vunpack.c.l.b16 %v2254
    %v2543 = vunpack.c.l.b16 %v2255
    %v2544 = vunpack.c.l.b16 %v2256
    %v2545 = vunpack.c.l.b16 %v2257
    %v2546 = vunpack.c.l.b16 %v2258
    %v2547 = vunpack.c.l.b16 %v2259
    %v2548 = vunpack.c.l.b16 %v2260
    %v2549 = vunpack.c.l.b16 %v2261
    %v2550 = vunpack.c.l.b16 %v2262
    %v2551 = vunpack.c.l.b16 %v2263
    %v2552 = vunpack.c.l.b16 %v2264
    %v2553 = vunpack.c.l.b16 %v2265
    %v2554 = vunpack.c.l.b16 %v2266
    %v2555 = vunpack.c.l.b16 %v2267
    %v2556 = vunpack.c.l.b16 %v2268
    %v2557 = vunpack.c.l.b16 %v2269
    %v2558 = vunpack.c.l.b16 %v2270
    %v2559 = vunpack.c.l.b16 %v2271
    %v2560 = vunpack.c.l.b16 %v2272
    %v2561 = vunpack.c.l.b16 %v2273
    %v2562 = vunpack.c.l.b16 %v2274
    %v2563 = vunpack.c.l.b16 %v2275
    %v2564 = vunpack.c.l.b16 %v2276
    %v2565 = vunpack.c.l.b16 %v2277
    %v2566 = vunpack.c.l.b16 %v2278
    %v2567 = vunpack.c.l.b16 %v2279
    %v2568 = vunpack.c.l.b16 %v2280
    %v2569 = vunpack.c.l.b16 %v2281
    %v2570 = vunpack.c.l.b16 %v2282
    %v2571 = vunpack.c.l.b16 %v2283
    %v2572 = vunpack.c.l.b16 %v2284
    %v2573 = vunpack.c.l.b16 %v2285
    %v2574 = vunpack.c.l.b16 %v2286
    %v2575 = vunpack.c.l.b16 %v2287
    %v2576 = vunpack.c.l.b16 %v2288
    %v2577 = vunpack.c.l.b16 %v2289
    %v2578 = vunpack.c.l.b16 %v2290
    %v2579 = vunpack.c.l.b16 %v2291
    %v2580 = vunpack.c.l.b16 %v2292
    %v2581 = vunpack.c.l.b16 %v2293
    %v2582 = vunpack.c.l.b16 %v2294
    %v2583 = vunpack.c.l.b16 %v2295
    %v2584 = vunpack.c.l.b16 %v2296
    %v2585 = vunpack.c.l.b16 %v2297
    %v2586 = vunpack.c.l.b16 %v2298
    %v2587 = vunpack.c.l.b16 %v2299
    %v2588 = vunpack.c.l.b16 %v2300
    %v2589 = vunpack.c.l.b16 %v2301
    %v2590 = vunpack.c.l.b16 %v2302
    %v2591 = vunpack.c.l.b16 %v2303
    %v2592 = vunpack.c.l.b16 %v2304
    %v2593 = vunpack.c.l.b16 %v2305
    %v2594 = vunpack.c.l.b16 %v2306
    %v2595 = vunpack.c.l.b16 %v2307
    %v2596 = vunpack.c.l.b16 %v2308
    %v2597 = vunpack.c.l.b16 %v2309
    %v2598 = vunpack.c.l.b16 %v2310
    %v2599 = vunpack.c.l.b16 %v2311
    %v2600 = vunpack.c.l.b16 %v2312
    %v2601 = vunpack.c.l.b16 %v2313
    %v2602 = vunpack.c.l.b16 %v2314
    %v2603 = vunpack.c.l.b16 %v2315
    %v2604 = vunpack.c.l.b16 %v2316
    %v2605 = vunpack.c.l.b16 %v2317
    %v2606 = vunpack.c.l.b16 %v2318
    %v2607 = vunpack.c.l.b16 %v2319
    %v2608 = vunpack.c.l.b16 %v2320
    %v2609 = vunpack.c.l.b16 %v2321
    %v2610 = vunpack.c.l.b16 %v2322
    %v2611 = vunpack.c.l.b16 %v2323
    %v2612 = vunpack.c.l.b16 %v2324
    %v2613 = vunpack.c.l.b16 %v2325
    %v2614 = vunpack.c.l.b16 %v2326
    %v2615 = vunpack.c.l.b16 %v2327
    %v2616 = vunpack.c.l.b16 %v2328
    %v2617 = vunpack.c.l.b16 %v2329
    %v2618 = vunpack.c.l.b16 %v2330
    %v2619 = vunpack.c.l.b16 %v2331
    %v2620 = vunpack.c.l.b16 %v2332
    %v2621 = vunpack.c.l.b16 %v2333
    %v2622 = vunpack.c.l.b16 %v2334
    %v2623 = vunpack.c.l.b16 %v2335
    %v2624 = vunpack.c.l.b16 %v2336
    %v2625 = vunpack.c.l.b16 %v2337
    %v2626 = vunpack.c.l.b16 %v2338
    %v2627 = vunpack.c.l.b16 %v2339
    %v2628 = vunpack.c.l.b16 %v2340
    %v2629 = vunpack.c.l.b16 %v2341
    %v2630 = vunpack.c.l.b16 %v2342
    %v2631 = vunpack.c.l.b16 %v2343
    %v2632 = vunpack.c.l.b16 %v2344
    %v2633 = vunpack.c.l.b16 %v2345
    %v2634 = vunpack.c.l.b16 %v2346
    %v2635 = vunpack.c.l.b16 %v2347
    %v2636 = vunpack.c.l.b16 %v2348
    %v2637 = vunpack.c.l.b16 %v2349
    %v2638 = vunpack.c.l.b16 %v2350
    %v2639 = vunpack.c.l.b16 %v2351
    %v2640 = vunpack.c.l.b16 %v2352
    %v2641 = vunpack.c.l.b16 %v2353
    %v2642 = vunpack.c.l.b16 %v2354
    %v2643 = vunpack.c.l.b16 %v2355
    %v2644 = vunpack.c.l.b16 %v2356
    %v2645 = vunpack.c.l.b16 %v2357
    %v2646 = vunpack.c.l.b16 %v2358
    %v2647 = vunpack.c.l.b16 %v2359
    %v2648 = vunpack.c.l.b16 %v2360
    %v2649 = vunpack.c.l.b16 %v2361
    %v2650 = vunpack.c.l.b16 %v2362
    %v2651 = vunpack.c.l.b16 %v2363
    %v2652 = vunpack.c.l.b16 %v2364
    %v2653 = vunpack.c.l.b16 %v2365
    %v2654 = vunpack.c.l.b16 %v2366
    %v2655 = vunpack.c.l.b16 %v2367
    %v2656 = vunpack.c.l.b16 %v2368
    %v2657 = vunpack.c.l.b16 %v2369
    %v2658 = vunpack.c.l.b16 %v2370
    %v2659 = vunpack.c.l.b16 %v2371
    %v2660 = vunpack.c.l.b16 %v2372
    %v2661 = vunpack.c.l.b16 %v2373
    %v2662 = vunpack.c.l.b16 %v2374
    %v2663 = vunpack.c.l.b16 %v2375
    %v2664 = vunpack.c.l.b16 %v2376
    %v2665 = vunpack.c.l.b16 %v2377
    %v2666 = vunpack.c.l.b16 %v2378
    %v2667 = vunpack.c.l.b16 %v2379
    %v2668 = vunpack.c.l.b16 %v2380
    %v2669 = vunpack.c.l.b16 %v2381
    %v2670 = vunpack.c.l.b16 %v2382
    %v2671 = vpack.c.b16 %v2528, %v2527
    %v2672 = vpack.c.b16 %v2530, %v2529
    %v2673 = vpack.c.b16 %v2532, %v2531
    %v2674 = vpack.c.b16 %v2534, %v2533
    %v2675 = vpack.c.b16 %v2536, %v2535
    %v2676 = vpack.c.b16 %v2538, %v2537
    %v2677 = vpack.c.b16 %v2540, %v2539
    %v2678 = vpack.c.b16 %v2542, %v2541
    %v2679 = vpack.c.b16 %v2544, %v2543
    %v2680 = vpack.c.b16 %v2546, %v2545
    %v2681 = vpack.c.b16 %v2548, %v2547
    %v2682 = vpack.c.b16 %v2550, %v2549
    %v2683 = vpack.c.b16 %v2552, %v2551
    %v2684 = vpack.c.b16 %v2554, %v2553
    %v2685 = vpack.c.b16 %v2556, %v2555
    %v2686 = vpack.c.b16 %v2558, %v2557
    %v2687 = vpack.c.b16 %v2560, %v2559
    %v2688 = vpack.c.b16 %v2562, %v2561
    %v2689 = vpack.c.b16 %v2564, %v2563
    %v2690 = vpack.c.b16 %v2566, %v2565
    %v2691 = vpack.c.b16 %v2568, %v2567
    %v2692 = vpack.c.b16 %v2570, %v2569
    %v2693 = vpack.c.b16 %v2572, %v2571
    %v2694 = vpack.c.b16 %v2574, %v2573
    %v2695 = vpack.c.b16 %v2576, %v2575
    %v2696 = vpack.c.b16 %v2578, %v2577
    %v2697 = vpack.c.b16 %v2580, %v2579
    %v2698 = vpack.c.b16 %v2582, %v2581
    %v2699 = vpack.c.b16 %v2584, %v2583
    %v2700 = vpack.c.b16 %v2586, %v2585
    %v2701 = vpack.c.b16 %v2588, %v2587
    %v2702 = vpack.c.b16 %v2590, %v2589
    %v2703 = vpack.c.b16 %v2592, %v2591
    %v2704 = vpack.c.b16 %v2594, %v2593
    %v2705 = vpack.c.b16 %v2596, %v2595
    %v2706 = vpack.c.b16 %v2598, %v2597
    %v2707 = vpack.c.b16 %v2600, %v2599
    %v2708 = vpack.c.b16 %v2602, %v2601
    %v2709 = vpack.c.b16 %v2604, %v2603
    %v2710 = vpack.c.b16 %v2606, %v2605
    %v2711 = vpack.c.b16 %v2608, %v2607
    %v2712 = vpack.c.b16 %v2610, %v2609
    %v2713 = vpack.c.b16 %v2612, %v2611
    %v2714 = vpack.c.b16 %v2614, %v2613
    %v2715 = vpack.c.b16 %v2616, %v2615
    %v2716 = vpack.c.b16 %v2618, %v2617
    %v2717 = vpack.c.b16 %v2620, %v2619
    %v2718 = vpack.c.b16 %v2622, %v2621
    %v2719 = vpack.c.b16 %v2624, %v2623
    %v2720 = vpack.c.b16 %v2626, %v2625
    %v2721 = vpack.c.b16 %v2628, %v2627
    %v2722 = vpack.c.b16 %v2630, %v2629
    %v2723 = vpack.c.b16 %v2632, %v2631
    %v2724 = vpack.c.b16 %v2634, %v2633
    %v2725 = vpack.c.b16 %v2636, %v2635
    %v2726 = vpack.c.b16 %v2638, %v2637
    %v2727 = vpack.c.b16 %v2640, %v2639
    %v2728 = vpack.c.b16 %v2642, %v2641
    %v2729 = vpack.c.b16 %v2644, %v2643
    %v2730 = vpack.c.b16 %v2646, %v2645
    %v2731 = vpack.c.b16 %v2648, %v2647
    %v2732 = vpack.c.b16 %v2650, %v2649
    %v2733 = vpack.c.b16 %v2652, %v2651
    %v2734 = vpack.c.b16 %v2654, %v2653
    %v2735 = vpack.c.b16 %v2656, %v2655
    %v2736 = vpack.c.b16 %v2658, %v2657
    %v2737 = vpack.c.b16 %v2660, %v2659
    %v2738 = vpack.c.b16 %v2662, %v2661
    %v2739 = vpack.c.b16 %v2664, %v2663
    %v2740 = vpack.c.b16 %v2666, %v2665
    %v2741 = vpack.c.b16 %v2668, %v2667
    %v2742 = vpack.c.b16 %v2670, %v2669
    %2815 = vmatpush.bf16.msra.mxu0 %v2678
    %2816 = vmatpush.bf16.msra.mxu0 %v2677
    %2817 = vmatpush.bf16.msra.mxu0 %v2676
    %2818 = vmatpush.bf16.msra.mxu0 %v2675
    %2819 = vmatpush.bf16.msra.mxu0 %v2674
    %2820 = vmatpush.bf16.msra.mxu0 %v2673
    %2821 = vmatpush.bf16.msra.mxu0 %v2672
    %2822 = vmatpush.bf16.msra.mxu0 %v2671
    %2823 = vmatmul.bf16.gmra.mxu0 %v2221
    %v2824 = vpop.f32.mrf.mxu0
    %v2825 = vadd.f32 0.0, %v2824
    %v2826 = vpop.f32.mrf.mxu0
    %v2827 = vadd.f32 0.0, %v2826
    %2828 = vmatmul.bf16.gmra.mxu0 %v2230
    %v2829 = vpop.f32.mrf.mxu0
    %v2830 = vadd.f32 0.0, %v2829
    %v2831 = vpop.f32.mrf.mxu0
    %v2832 = vadd.f32 0.0, %v2831
    %2833 = vdwg.mxu0
    %2834 = vmatpush.bf16.msra.mxu0 %v2686
    %2835 = vmatpush.bf16.msra.mxu0 %v2685
    %2836 = vmatpush.bf16.msra.mxu0 %v2684
    %2837 = vmatpush.bf16.msra.mxu0 %v2683
    %2838 = vmatpush.bf16.msra.mxu0 %v2682
    %2839 = vmatpush.bf16.msra.mxu0 %v2681
    %2840 = vmatpush.bf16.msra.mxu0 %v2680
    %2841 = vmatpush.bf16.msra.mxu0 %v2679
    %2842 = vmatmul.bf16.gmra.mxu0 %v2222
    %v2843 = vpop.f32.mrf.mxu0
    %v2844 = vadd.f32 %v2825, %v2843
    %v2845 = vpop.f32.mrf.mxu0
    %v2846 = vadd.f32 %v2827, %v2845
    %2847 = vmatmul.bf16.gmra.mxu0 %v2231
    %v2848 = vpop.f32.mrf.mxu0
    %v2849 = vadd.f32 %v2830, %v2848
    %v2850 = vpop.f32.mrf.mxu0
    %v2851 = vadd.f32 %v2832, %v2850
    %2852 = vdwg.mxu0
    %2853 = vmatpush.bf16.msra.mxu0 %v2694
    %2854 = vmatpush.bf16.msra.mxu0 %v2693
    %2855 = vmatpush.bf16.msra.mxu0 %v2692
    %2856 = vmatpush.bf16.msra.mxu0 %v2691
    %2857 = vmatpush.bf16.msra.mxu0 %v2690
    %2858 = vmatpush.bf16.msra.mxu0 %v2689
    %2859 = vmatpush.bf16.msra.mxu0 %v2688
    %2860 = vmatpush.bf16.msra.mxu0 %v2687
    %2861 = vmatmul.bf16.gmra.mxu0 %v2223
    %v2862 = vpop.f32.mrf.mxu0
    %v2863 = vadd.f32 %v2844, %v2862
    %v2864 = vpop.f32.mrf.mxu0
    %v2865 = vadd.f32 %v2846, %v2864
    %2866 = vmatmul.bf16.gmra.mxu0 %v2232
    %v2867 = vpop.f32.mrf.mxu0
    %v2868 = vadd.f32 %v2849, %v2867
    %v2869 = vpop.f32.mrf.mxu0
    %v2870 = vadd.f32 %v2851, %v2869
    %2871 = vdwg.mxu0
    %2872 = vmatpush.bf16.msra.mxu0 %v2702
    %2873 = vmatpush.bf16.msra.mxu0 %v2701
    %2874 = vmatpush.bf16.msra.mxu0 %v2700
    %2875 = vmatpush.bf16.msra.mxu0 %v2699
    %2876 = vmatpush.bf16.msra.mxu0 %v2698
    %2877 = vmatpush.bf16.msra.mxu0 %v2697
    %2878 = vmatpush.bf16.msra.mxu0 %v2696
    %2879 = vmatpush.bf16.msra.mxu0 %v2695
    %2880 = vmatmul.bf16.gmra.mxu0 %v2224
    %v2881 = vpop.f32.mrf.mxu0
    %v2882 = vadd.f32 %v2863, %v2881
    %v2883 = vpop.f32.mrf.mxu0
    %v2884 = vadd.f32 %v2865, %v2883
    %2885 = vmatmul.bf16.gmra.mxu0 %v2233
    %v2886 = vpop.f32.mrf.mxu0
    %v2887 = vadd.f32 %v2868, %v2886
    %v2888 = vpop.f32.mrf.mxu0
    %v2889 = vadd.f32 %v2870, %v2888
    %2890 = vdwg.mxu0
    %2891 = vmatpush.bf16.msra.mxu0 %v2710
    %2892 = vmatpush.bf16.msra.mxu0 %v2709
    %2893 = vmatpush.bf16.msra.mxu0 %v2708
    %2894 = vmatpush.bf16.msra.mxu0 %v2707
    %2895 = vmatpush.bf16.msra.mxu0 %v2706
    %2896 = vmatpush.bf16.msra.mxu0 %v2705
    %2897 = vmatpush.bf16.msra.mxu0 %v2704
    %2898 = vmatpush.bf16.msra.mxu0 %v2703
    %2899 = vmatmul.bf16.gmra.mxu0 %v2225
    %v2900 = vpop.f32.mrf.mxu0
    %v2901 = vadd.f32 %v2882, %v2900
    %v2902 = vpop.f32.mrf.mxu0
    %v2903 = vadd.f32 %v2884, %v2902
    %2904 = vmatmul.bf16.gmra.mxu0 %v2234
    %v2905 = vpop.f32.mrf.mxu0
    %v2906 = vadd.f32 %v2887, %v2905
    %v2907 = vpop.f32.mrf.mxu0
    %v2908 = vadd.f32 %v2889, %v2907
    %2909 = vdwg.mxu0
    %2910 = vmatpush.bf16.msra.mxu0 %v2718
    %2911 = vmatpush.bf16.msra.mxu0 %v2717
    %2912 = vmatpush.bf16.msra.mxu0 %v2716
    %2913 = vmatpush.bf16.msra.mxu0 %v2715
    %2914 = vmatpush.bf16.msra.mxu0 %v2714
    %2915 = vmatpush.bf16.msra.mxu0 %v2713
    %2916 = vmatpush.bf16.msra.mxu0 %v2712
    %2917 = vmatpush.bf16.msra.mxu0 %v2711
    %2918 = vmatmul.bf16.gmra.mxu0 %v2226
    %v2919 = vpop.f32.mrf.mxu0
    %v2920 = vadd.f32 %v2901, %v2919
    %v2921 = vpop.f32.mrf.mxu0
    %v2922 = vadd.f32 %v2903, %v2921
    %2923 = vmatmul.bf16.gmra.mxu0 %v2235
    %v2924 = vpop.f32.mrf.mxu0
    %v2925 = vadd.f32 %v2906, %v2924
    %v2926 = vpop.f32.mrf.mxu0
    %v2927 = vadd.f32 %v2908, %v2926
    %2928 = vdwg.mxu0
    %2929 = vmatpush.bf16.msra.mxu0 %v2726
    %2930 = vmatpush.bf16.msra.mxu0 %v2725
    %2931 = vmatpush.bf16.msra.mxu0 %v2724
    %2932 = vmatpush.bf16.msra.mxu0 %v2723
    %2933 = vmatpush.bf16.msra.mxu0 %v2722
    %2934 = vmatpush.bf16.msra.mxu0 %v2721
    %2935 = vmatpush.bf16.msra.mxu0 %v2720
    %2936 = vmatpush.bf16.msra.mxu0 %v2719
    %2937 = vmatmul.bf16.gmra.mxu0 %v2227
    %v2938 = vpop.f32.mrf.mxu0
    %v2939 = vadd.f32 %v2920, %v2938
    %v2940 = vpop.f32.mrf.mxu0
    %v2941 = vadd.f32 %v2922, %v2940
    %2942 = vmatmul.bf16.gmra.mxu0 %v2236
    %v2943 = vpop.f32.mrf.mxu0
    %v2944 = vadd.f32 %v2925, %v2943
    %v2945 = vpop.f32.mrf.mxu0
    %v2946 = vadd.f32 %v2927, %v2945
    %2947 = vdwg.mxu0
    %2948 = vmatpush.bf16.msra.mxu0 %v2734
    %2949 = vmatpush.bf16.msra.mxu0 %v2733
    %2950 = vmatpush.bf16.msra.mxu0 %v2732
    %2951 = vmatpush.bf16.msra.mxu0 %v2731
    %2952 = vmatpush.bf16.msra.mxu0 %v2730
    %2953 = vmatpush.bf16.msra.mxu0 %v2729
    %2954 = vmatpush.bf16.msra.mxu0 %v2728
    %2955 = vmatpush.bf16.msra.mxu0 %v2727
    %2956 = vmatmul.bf16.gmra.mxu0 %v2228
    %v2957 = vpop.f32.mrf.mxu0
    %v2958 = vadd.f32 %v2939, %v2957
    %v2959 = vpop.f32.mrf.mxu0
    %v2960 = vadd.f32 %v2941, %v2959
    %2961 = vmatmul.bf16.gmra.mxu0 %v2237
    %v2962 = vpop.f32.mrf.mxu0
    %v2963 = vadd.f32 %v2944, %v2962
    %v2964 = vpop.f32.mrf.mxu0
    %v2965 = vadd.f32 %v2946, %v2964
    %2966 = vdwg.mxu0
    %2967 = vmatpush.bf16.msra.mxu0 %v2742
    %2968 = vmatpush.bf16.msra.mxu0 %v2741
    %2969 = vmatpush.bf16.msra.mxu0 %v2740
    %2970 = vmatpush.bf16.msra.mxu0 %v2739
    %2971 = vmatpush.bf16.msra.mxu0 %v2738
    %2972 = vmatpush.bf16.msra.mxu0 %v2737
    %2973 = vmatpush.bf16.msra.mxu0 %v2736
    %2974 = vmatpush.bf16.msra.mxu0 %v2735
    %2975 = vmatmul.bf16.gmra.mxu0 %v2229
    %v2976 = vpop.f32.mrf.mxu0
    %v2977 = vadd.f32 %v2958, %v2976
    %v2978 = vpop.f32.mrf.mxu0
    %v2979 = vadd.f32 %v2960, %v2978
    %2980 = vmatmul.bf16.gmra.mxu0 %v2238
    %v2981 = vpop.f32.mrf.mxu0
    %v2982 = vadd.f32 %v2963, %v2981
    %v2983 = vpop.f32.mrf.mxu0
    %v2984 = vadd.f32 %v2965, %v2983
    %2985 = vdwg.mxu0
    %v2986 = vadd.f32 %v2977, %v2979
    %v2987 = vadd.f32 %v2986, %v2982
    %v2988 = vadd.f32 %v2987, %v2984
    %v2989 = vrot.slane %v2988, 4
    %v2990 = vadd.f32 %v2988, %v2989
    %v2991 = vrot.slane %v2990, 2
    %v2992 = vadd.f32 %v2990, %v2991
    %v2993 = vrot.slane %v2992, 1
    %v2994 = vadd.f32 %v2992, %v2993
    %v2995 = vmul.f32 %v2994, 0.03125
    %v2996 = vsub.f32 %v2977, %v2995
    %v2997 = vsub.f32 %v2979, %v2995
    %v2998 = vsub.f32 %v2982, %v2995
    %v2999 = vsub.f32 %v2984, %v2995
    %v3000 = vmul.f32 %v2996, %v2996
    %v3001 = vmul.f32 %v2997, %v2997
    %v3002 = vmul.f32 %v2998, %v2998
    %v3003 = vmul.f32 %v2999, %v2999
    %v3004 = vadd.f32 %v3000, %v3001
    %v3005 = vadd.f32 %v3004, %v3002
    %v3006 = vadd.f32 %v3005, %v3003
    %v3007 = vrot.slane %v3006, 4
    %v3008 = vadd.f32 %v3006, %v3007
    %v3009 = vrot.slane %v3008, 2
    %v3010 = vadd.f32 %v3008, %v3009
    %v3011 = vrot.slane %v3010, 1
    %v3012 = vadd.f32 %v3010, %v3011
    %v3013 = vmul.f32 %v3012, 0.03125
    %v3014 = vmax.f32 %v3013, 0.0
    %v3015 = vadd.f32 %v3014, 1e-05
    %v3016 = vrsqrt.pop %v3015
    %v3017 = vmul.f32 %v3016, %v3015
    %v3018 = vmul.f32 %v3017, %v3016
    %v3019 = vmul.f32 0.5, %v3018
    %v3020 = vsub.f32 1.5, %v3019
    %v3021 = vmul.f32 %v3016, %v3020
    %vm3022 = vweird.f32 %v3015
    %vm3023 = vweird.f32 %v3016
    %vm3024 = vmor %vm3022, %vm3023
    %v3025 = vsel %vm3024, %v3016, %v3021
    %v3026 = vmul.f32 %v2996, %v3025
    %v3027 = vmul.f32 %v2997, %v3025
    %v3028 = vmul.f32 %v2998, %v3025
    %v3029 = vmul.f32 %v2999, %v3025
    %v3030 = vld [vmem:[%s7] sm:$0x1]
    %v3032 = vperm.slane %v3030, 0
    %v3034 = vmul.f32 %v3026, %v3032
    %v3035 = vmul.f32 %v3027, %v3032
    %v3036 = vmul.f32 %v3028, %v3032
    %v3037 = vmul.f32 %v3029, %v3032
    %v3038 = vld [vmem:[%s8] sm:$0x1]
    %v3040 = vperm.slane %v3038, 0
    %v3042 = vadd.f32 %v3034, %v3040
    %v3043 = vadd.f32 %v3035, %v3040
    %v3044 = vadd.f32 %v3036, %v3040
    %v3045 = vadd.f32 %v3037, %v3040
    %v3046 = vmul.f32 %v3042, 0.2
    %v3047 = vmul.f32 %v3043, 0.2
    %v3048 = vmul.f32 %v3044, 0.2
    %v3049 = vmul.f32 %v3045, 0.2
    %v3050 = vmax.f32 %v3042, %v3046
    %v3051 = vmax.f32 %v3043, %v3047
    %v3052 = vmax.f32 %v3044, %v3048
    %v3053 = vmax.f32 %v3045, %v3049
    %3054 = vst [vmem:[#allocation19] sm:$0xff] %v3050
    %3055 = vst [vmem:[#allocation19 + $0x8] sm:$0xff] %v3051
    %3056 = vst [vmem:[#allocation19 + $0x10] sm:$0xff] %v3052
    %3057 = vst [vmem:[#allocation19 + $0x18] sm:$0xff] %v3053
    %3058 = vst [vmem:[#allocation3] sm:$0xff] 0.0
    %3059 = vst [vmem:[#allocation3 + $0x8] sm:$0xff] 0.0
    %3060 = vst [vmem:[#allocation3 + $0x10] sm:$0xff] 0.0
    %3061 = vst [vmem:[#allocation3 + $0x18] sm:$0xff] 0.0
    %3062 = vst [vmem:[#allocation3 + $0x20] sm:$0xff] 0.0
    %3063 = vst [vmem:[#allocation3 + $0x28] sm:$0xff] 0.0
    %3064 = vst [vmem:[#allocation3 + $0x30] sm:$0xff] 0.0
    %3065 = vst [vmem:[#allocation3 + $0x38] sm:$0xff] 0.0
    %3066 = vst [vmem:[#allocation3 + $0x40] sm:$0xff] 0.0
    %v3067 = vld [vmem:[#allocation19] sm:$0xf]
    %3068 = vst [vmem:[#allocation3 + $0x7] sm:$0xf] %v3067
    %v3069 = vld [vmem:[#allocation19 + $0x4] sm:$0xf]
    %3070 = vst [vmem:[#allocation3 + $0xd] sm:$0xf] %v3069
    %v3071 = vld [vmem:[#allocation19 + $0x8] sm:$0xf]
    %3072 = vst [vmem:[#allocation3 + $0x13] sm:$0xf] %v3071
    %v3073 = vld [vmem:[#allocation19 + $0xc] sm:$0xf]
    %3074 = vst [vmem:[#allocation3 + $0x19] sm:$0xf] %v3073
    %v3075 = vld [vmem:[#allocation19 + $0x10] sm:$0xf]
    %3076 = vst [vmem:[#allocation3 + $0x2b] sm:$0xf] %v3075
    %v3077 = vld [vmem:[#allocation19 + $0x14] sm:$0xf]
    %3078 = vst [vmem:[#allocation3 + $0x31] sm:$0xf] %v3077
    %v3079 = vld [vmem:[#allocation19 + $0x18] sm:$0xf]
    %3080 = vst [vmem:[#allocation3 + $0x37] sm:$0xf] %v3079
    %v3081 = vld [vmem:[#allocation19 + $0x1c] sm:$0xf]
    %3082 = vst [vmem:[#allocation3 + $0x3d] sm:$0xf] %v3081
    %v3083 = vld [vmem:[#allocation3] ss:$2 sm:$0x3]
    %3084 = vst [vmem:[#allocation6] sm:$0x3] %v3083
    %s3085 = scalar_lea.vmem [#allocation3], 12
    %v3086 = vld [vmem:[%s3085] ss:$2 sm:$0x3]
    %v3088 = vrot.slane %v3086, 6
    %3090 = vst [vmem:[#allocation6] sm:$0xc] %v3088
    %s3091 = scalar_lea.vmem [#allocation3], 36
    %v3092 = vld [vmem:[%s3091] ss:$2 sm:$0x3]
    %v3094 = vrot.slane %v3092, 4
    %3096 = vst [vmem:[#allocation6] sm:$0x30] %v3094
    %s3097 = scalar_lea.vmem [#allocation3], 48
    %v3098 = vld [vmem:[%s3097] ss:$2 sm:$0x3]
    %v3100 = vrot.slane %v3098, 2
    %3102 = vst [vmem:[#allocation6] sm:$0xc0] %v3100
    %s3103 = scalar_lea.vmem [#allocation3], 1
    %v3104 = vld [vmem:[%s3103] ss:$2 sm:$0x3]
    %3105 = vst [vmem:[#allocation6 + $0x8] sm:$0x3] %v3104
    %s3106 = scalar_lea.vmem [#allocation3], 13
    %v3107 = vld [vmem:[%s3106] ss:$2 sm:$0x3]
    %v3109 = vrot.slane %v3107, 6
    %3111 = vst [vmem:[#allocation6 + $0x8] sm:$0xc] %v3109
    %s3112 = scalar_lea.vmem [#allocation3], 37
    %v3113 = vld [vmem:[%s3112] ss:$2 sm:$0x3]
    %v3115 = vrot.slane %v3113, 4
    %3117 = vst [vmem:[#allocation6 + $0x8] sm:$0x30] %v3115
    %s3118 = scalar_lea.vmem [#allocation3], 49
    %v3119 = vld [vmem:[%s3118] ss:$2 sm:$0x3]
    %v3121 = vrot.slane %v3119, 2
    %3123 = vst [vmem:[#allocation6 + $0x8] sm:$0xc0] %v3121
    %s3124 = scalar_lea.vmem [#allocation3], 2
    %v3125 = vld [vmem:[%s3124] ss:$2 sm:$0x3]
    %3126 = vst [vmem:[#allocation6 + $0x10] sm:$0x3] %v3125
    %s3127 = scalar_lea.vmem [#allocation3], 14
    %v3128 = vld [vmem:[%s3127] ss:$2 sm:$0x3]
    %v3130 = vrot.slane %v3128, 6
    %3132 = vst [vmem:[#allocation6 + $0x10] sm:$0xc] %v3130
    %s3133 = scalar_lea.vmem [#allocation3], 38
    %v3134 = vld [vmem:[%s3133] ss:$2 sm:$0x3]
    %v3136 = vrot.slane %v3134, 4
    %3138 = vst [vmem:[#allocation6 + $0x10] sm:$0x30] %v3136
    %s3139 = scalar_lea.vmem [#allocation3], 50
    %v3140 = vld [vmem:[%s3139] ss:$2 sm:$0x3]
    %v3142 = vrot.slane %v3140, 2
    %3144 = vst [vmem:[#allocation6 + $0x10] sm:$0xc0] %v3142
    %s3145 = scalar_lea.vmem [#allocation3], 6
    %v3146 = vld [vmem:[%s3145] ss:$2 sm:$0x3]
    %3147 = vst [vmem:[#allocation6 + $0x18] sm:$0x3] %v3146
    %s3148 = scalar_lea.vmem [#allocation3], 18
    %v3149 = vld [vmem:[%s3148] ss:$2 sm:$0x3]
    %v3151 = vrot.slane %v3149, 6
    %3153 = vst [vmem:[#allocation6 + $0x18] sm:$0xc] %v3151
    %s3154 = scalar_lea.vmem [#allocation3], 42
    %v3155 = vld [vmem:[%s3154] ss:$2 sm:$0x3]
    %v3157 = vrot.slane %v3155, 4
    %3159 = vst [vmem:[#allocation6 + $0x18] sm:$0x30] %v3157
    %s3160 = scalar_lea.vmem [#allocation3], 54
    %v3161 = vld [vmem:[%s3160] ss:$2 sm:$0x3]
    %v3163 = vrot.slane %v3161, 2
    %3165 = vst [vmem:[#allocation6 + $0x18] sm:$0xc0] %v3163
    %s3166 = scalar_lea.vmem [#allocation3], 7
    %v3167 = vld [vmem:[%s3166] ss:$2 sm:$0x3]
    %3168 = vst [vmem:[#allocation6 + $0x20] sm:$0x3] %v3167
    %s3169 = scalar_lea.vmem [#allocation3], 19
    %v3170 = vld [vmem:[%s3169] ss:$2 sm:$0x3]
    %v3172 = vrot.slane %v3170, 6
    %3174 = vst [vmem:[#allocation6 + $0x20] sm:$0xc] %v3172
    %s3175 = scalar_lea.vmem [#allocation3], 43
    %v3176 = vld [vmem:[%s3175] ss:$2 sm:$0x3]
    %v3178 = vrot.slane %v3176, 4
    %3180 = vst [vmem:[#allocation6 + $0x20] sm:$0x30] %v3178
    %s3181 = scalar_lea.vmem [#allocation3], 55
    %v3182 = vld [vmem:[%s3181] ss:$2 sm:$0x3]
    %v3184 = vrot.slane %v3182, 2
    %3186 = vst [vmem:[#allocation6 + $0x20] sm:$0xc0] %v3184
    %s3187 = scalar_lea.vmem [#allocation3], 8
    %v3188 = vld [vmem:[%s3187] ss:$2 sm:$0x3]
    %3189 = vst [vmem:[#allocation6 + $0x28] sm:$0x3] %v3188
    %s3190 = scalar_lea.vmem [#allocation3], 20
    %v3191 = vld [vmem:[%s3190] ss:$2 sm:$0x3]
    %v3193 = vrot.slane %v3191, 6
    %3195 = vst [vmem:[#allocation6 + $0x28] sm:$0xc] %v3193
    %s3196 = scalar_lea.vmem [#allocation3], 44
    %v3197 = vld [vmem:[%s3196] ss:$2 sm:$0x3]
    %v3199 = vrot.slane %v3197, 4
    %3201 = vst [vmem:[#allocation6 + $0x28] sm:$0x30] %v3199
    %s3202 = scalar_lea.vmem [#allocation3], 56
    %v3203 = vld [vmem:[%s3202] ss:$2 sm:$0x3]
    %v3205 = vrot.slane %v3203, 2
    %3207 = vst [vmem:[#allocation6 + $0x28] sm:$0xc0] %v3205
    %v3208 = vld [vmem:[%s3085] ss:$2 sm:$0x3]
    %3209 = vst [vmem:[#allocation6 + $0x30] sm:$0x3] %v3208
    %s3210 = scalar_lea.vmem [#allocation3], 24
    %v3211 = vld [vmem:[%s3210] ss:$2 sm:$0x3]
    %v3213 = vrot.slane %v3211, 6
    %3215 = vst [vmem:[#allocation6 + $0x30] sm:$0xc] %v3213
    %v3216 = vld [vmem:[%s3097] ss:$2 sm:$0x3]
    %v3218 = vrot.slane %v3216, 4
    %3220 = vst [vmem:[#allocation6 + $0x30] sm:$0x30] %v3218
    %s3221 = scalar_lea.vmem [#allocation3], 60
    %v3222 = vld [vmem:[%s3221] ss:$2 sm:$0x3]
    %v3224 = vrot.slane %v3222, 2
    %3226 = vst [vmem:[#allocation6 + $0x30] sm:$0xc0] %v3224
    %v3227 = vld [vmem:[%s3106] ss:$2 sm:$0x3]
    %3228 = vst [vmem:[#allocation6 + $0x38] sm:$0x3] %v3227
    %s3229 = scalar_lea.vmem [#allocation3], 25
    %v3230 = vld [vmem:[%s3229] ss:$2 sm:$0x3]
    %v3232 = vrot.slane %v3230, 6
    %3234 = vst [vmem:[#allocation6 + $0x38] sm:$0xc] %v3232
    %v3235 = vld [vmem:[%s3118] ss:$2 sm:$0x3]
    %v3237 = vrot.slane %v3235, 4
    %3239 = vst [vmem:[#allocation6 + $0x38] sm:$0x30] %v3237
    %s3240 = scalar_lea.vmem [#allocation3], 61
    %v3241 = vld [vmem:[%s3240] ss:$2 sm:$0x3]
    %v3243 = vrot.slane %v3241, 2
    %3245 = vst [vmem:[#allocation6 + $0x38] sm:$0xc0] %v3243
    %v3246 = vld [vmem:[%s3127] ss:$2 sm:$0x3]
    %3247 = vst [vmem:[#allocation6 + $0x40] sm:$0x3] %v3246
    %s3248 = scalar_lea.vmem [#allocation3], 26
    %v3249 = vld [vmem:[%s3248] ss:$2 sm:$0x3]
    %v3251 = vrot.slane %v3249, 6
    %3253 = vst [vmem:[#allocation6 + $0x40] sm:$0xc] %v3251
    %v3254 = vld [vmem:[%s3139] ss:$2 sm:$0x3]
    %v3256 = vrot.slane %v3254, 4
    %3258 = vst [vmem:[#allocation6 + $0x40] sm:$0x30] %v3256
    %s3259 = scalar_lea.vmem [#allocation3], 62
    %v3260 = vld [vmem:[%s3259] ss:$2 sm:$0x3]
    %v3262 = vrot.slane %v3260, 2
    %3264 = vst [vmem:[#allocation6 + $0x40] sm:$0xc0] %v3262
    %v3265 = vld [vmem:[#allocation6] sm:$0xff]
    %v3266 = vld [vmem:[#allocation6 + $0x8] sm:$0xff]
    %v3267 = vld [vmem:[#allocation6 + $0x10] sm:$0xff]
    %v3268 = vld [vmem:[#allocation6 + $0x18] sm:$0xff]
    %v3269 = vld [vmem:[#allocation6 + $0x20] sm:$0xff]
    %v3270 = vld [vmem:[#allocation6 + $0x28] sm:$0xff]
    %v3271 = vld [vmem:[#allocation6 + $0x30] sm:$0xff]
    %v3272 = vld [vmem:[#allocation6 + $0x38] sm:$0xff]
    %v3273 = vld [vmem:[#allocation6 + $0x40] sm:$0xff]
    %v3274 = vpack.c.bf16 %v3265, %v3265
    %v3275 = vpack.c.bf16 %v3266, %v3266
    %v3276 = vpack.c.bf16 %v3267, %v3267
    %v3277 = vpack.c.bf16 %v3268, %v3268
    %v3278 = vpack.c.bf16 %v3269, %v3269
    %v3279 = vpack.c.bf16 %v3270, %v3270
    %v3280 = vpack.c.bf16 %v3271, %v3271
    %v3281 = vpack.c.bf16 %v3272, %v3272
    %v3282 = vpack.c.bf16 %v3273, %v3273
    %v3283 = vld [vmem:[#allocation13] sm:$0xf]
    %v3284 = vld [vmem:[#allocation13 + $0x4] sm:$0xf]
    %v3285 = vld [vmem:[#allocation13 + $0x8] sm:$0xf]
    %v3286 = vld [vmem:[#allocation13 + $0xc] sm:$0xf]
    %v3287 = vld [vmem:[#allocation13 + $0x10] sm:$0xf]
    %v3288 = vld [vmem:[#allocation13 + $0x14] sm:$0xf]
    %v3289 = vld [vmem:[#allocation13 + $0x18] sm:$0xf]
    %v3290 = vld [vmem:[#allocation13 + $0x1c] sm:$0xf]
    %v3291 = vld [vmem:[#allocation13 + $0x20] sm:$0xf]
    %v3292 = vld [vmem:[#allocation13 + $0x24] sm:$0xf]
    %v3293 = vld [vmem:[#allocation13 + $0x28] sm:$0xf]
    %v3294 = vld [vmem:[#allocation13 + $0x2c] sm:$0xf]
    %v3295 = vld [vmem:[#allocation13 + $0x30] sm:$0xf]
    %v3296 = vld [vmem:[#allocation13 + $0x34] sm:$0xf]
    %v3297 = vld [vmem:[#allocation13 + $0x38] sm:$0xf]
    %v3298 = vld [vmem:[#allocation13 + $0x3c] sm:$0xf]
    %v3299 = vld [vmem:[#allocation13 + $0x40] sm:$0xf]
    %v3300 = vld [vmem:[#allocation13 + $0x44] sm:$0xf]
    %v3301 = vld [vmem:[#allocation13 + $0x48] sm:$0xf]
    %v3302 = vld [vmem:[#allocation13 + $0x4c] sm:$0xf]
    %v3303 = vld [vmem:[#allocation13 + $0x50] sm:$0xf]
    %v3304 = vld [vmem:[#allocation13 + $0x54] sm:$0xf]
    %v3305 = vld [vmem:[#allocation13 + $0x58] sm:$0xf]
    %v3306 = vld [vmem:[#allocation13 + $0x5c] sm:$0xf]
    %v3307 = vld [vmem:[#allocation13 + $0x60] sm:$0xf]
    %v3308 = vld [vmem:[#allocation13 + $0x64] sm:$0xf]
    %v3309 = vld [vmem:[#allocation13 + $0x68] sm:$0xf]
    %v3310 = vld [vmem:[#allocation13 + $0x6c] sm:$0xf]
    %v3311 = vld [vmem:[#allocation13 + $0x70] sm:$0xf]
    %v3312 = vld [vmem:[#allocation13 + $0x74] sm:$0xf]
    %v3313 = vld [vmem:[#allocation13 + $0x78] sm:$0xf]
    %v3314 = vld [vmem:[#allocation13 + $0x7c] sm:$0xf]
    %v3315 = vld [vmem:[#allocation13 + $0x80] sm:$0xf]
    %v3316 = vld [vmem:[#allocation13 + $0x84] sm:$0xf]
    %v3317 = vld [vmem:[#allocation13 + $0x88] sm:$0xf]
    %v3318 = vld [vmem:[#allocation13 + $0x8c] sm:$0xf]
    %v3319 = vld [vmem:[#allocation13 + $0x90] sm:$0xf]
    %v3320 = vld [vmem:[#allocation13 + $0x94] sm:$0xf]
    %v3321 = vld [vmem:[#allocation13 + $0x98] sm:$0xf]
    %v3322 = vld [vmem:[#allocation13 + $0x9c] sm:$0xf]
    %v3323 = vld [vmem:[#allocation13 + $0xa0] sm:$0xf]
    %v3324 = vld [vmem:[#allocation13 + $0xa4] sm:$0xf]
    %v3325 = vld [vmem:[#allocation13 + $0xa8] sm:$0xf]
    %v3326 = vld [vmem:[#allocation13 + $0xac] sm:$0xf]
    %v3327 = vld [vmem:[#allocation13 + $0xb0] sm:$0xf]
    %v3328 = vld [vmem:[#allocation13 + $0xb4] sm:$0xf]
    %v3329 = vld [vmem:[#allocation13 + $0xb8] sm:$0xf]
    %v3330 = vld [vmem:[#allocation13 + $0xbc] sm:$0xf]
    %v3331 = vld [vmem:[#allocation13 + $0xc0] sm:$0xf]
    %v3332 = vld [vmem:[#allocation13 + $0xc4] sm:$0xf]
    %v3333 = vld [vmem:[#allocation13 + $0xc8] sm:$0xf]
    %v3334 = vld [vmem:[#allocation13 + $0xcc] sm:$0xf]
    %v3335 = vld [vmem:[#allocation13 + $0xd0] sm:$0xf]
    %v3336 = vld [vmem:[#allocation13 + $0xd4] sm:$0xf]
    %v3337 = vld [vmem:[#allocation13 + $0xd8] sm:$0xf]
    %v3338 = vld [vmem:[#allocation13 + $0xdc] sm:$0xf]
    %v3339 = vld [vmem:[#allocation13 + $0xe0] sm:$0xf]
    %v3340 = vld [vmem:[#allocation13 + $0xe4] sm:$0xf]
    %v3341 = vld [vmem:[#allocation13 + $0xe8] sm:$0xf]
    %v3342 = vld [vmem:[#allocation13 + $0xec] sm:$0xf]
    %v3343 = vld [vmem:[#allocation13 + $0xf0] sm:$0xf]
    %v3344 = vld [vmem:[#allocation13 + $0xf4] sm:$0xf]
    %v3345 = vld [vmem:[#allocation13 + $0xf8] sm:$0xf]
    %v3346 = vld [vmem:[#allocation13 + $0xfc] sm:$0xf]
    %v3347 = vld [vmem:[#allocation13 + $0x100] sm:$0xf]
    %v3348 = vld [vmem:[#allocation13 + $0x104] sm:$0xf]
    %v3349 = vld [vmem:[#allocation13 + $0x108] sm:$0xf]
    %v3350 = vld [vmem:[#allocation13 + $0x10c] sm:$0xf]
    %v3351 = vld [vmem:[#allocation13 + $0x110] sm:$0xf]
    %v3352 = vld [vmem:[#allocation13 + $0x114] sm:$0xf]
    %v3353 = vld [vmem:[#allocation13 + $0x118] sm:$0xf]
    %v3354 = vld [vmem:[#allocation13 + $0x11c] sm:$0xf]
    %v3355 = vld [vmem:[#allocation13 + $0x120] sm:$0xf]
    %v3356 = vld [vmem:[#allocation13 + $0x124] sm:$0xf]
    %v3357 = vld [vmem:[#allocation13 + $0x128] sm:$0xf]
    %v3358 = vld [vmem:[#allocation13 + $0x12c] sm:$0xf]
    %v3359 = vld [vmem:[#allocation13 + $0x130] sm:$0xf]
    %v3360 = vld [vmem:[#allocation13 + $0x134] sm:$0xf]
    %v3361 = vld [vmem:[#allocation13 + $0x138] sm:$0xf]
    %v3362 = vld [vmem:[#allocation13 + $0x13c] sm:$0xf]
    %v3363 = vld [vmem:[#allocation13 + $0x140] sm:$0xf]
    %v3364 = vld [vmem:[#allocation13 + $0x144] sm:$0xf]
    %v3365 = vld [vmem:[#allocation13 + $0x148] sm:$0xf]
    %v3366 = vld [vmem:[#allocation13 + $0x14c] sm:$0xf]
    %v3367 = vld [vmem:[#allocation13 + $0x150] sm:$0xf]
    %v3368 = vld [vmem:[#allocation13 + $0x154] sm:$0xf]
    %v3369 = vld [vmem:[#allocation13 + $0x158] sm:$0xf]
    %v3370 = vld [vmem:[#allocation13 + $0x15c] sm:$0xf]
    %v3371 = vld [vmem:[#allocation13 + $0x160] sm:$0xf]
    %v3372 = vld [vmem:[#allocation13 + $0x164] sm:$0xf]
    %v3373 = vld [vmem:[#allocation13 + $0x168] sm:$0xf]
    %v3374 = vld [vmem:[#allocation13 + $0x16c] sm:$0xf]
    %v3375 = vld [vmem:[#allocation13 + $0x170] sm:$0xf]
    %v3376 = vld [vmem:[#allocation13 + $0x174] sm:$0xf]
    %v3377 = vld [vmem:[#allocation13 + $0x178] sm:$0xf]
    %v3378 = vld [vmem:[#allocation13 + $0x17c] sm:$0xf]
    %v3379 = vld [vmem:[#allocation13 + $0x180] sm:$0xf]
    %v3380 = vld [vmem:[#allocation13 + $0x184] sm:$0xf]
    %v3381 = vld [vmem:[#allocation13 + $0x188] sm:$0xf]
    %v3382 = vld [vmem:[#allocation13 + $0x18c] sm:$0xf]
    %v3383 = vld [vmem:[#allocation13 + $0x190] sm:$0xf]
    %v3384 = vld [vmem:[#allocation13 + $0x194] sm:$0xf]
    %v3385 = vld [vmem:[#allocation13 + $0x198] sm:$0xf]
    %v3386 = vld [vmem:[#allocation13 + $0x19c] sm:$0xf]
    %v3387 = vld [vmem:[#allocation13 + $0x1a0] sm:$0xf]
    %v3388 = vld [vmem:[#allocation13 + $0x1a4] sm:$0xf]
    %v3389 = vld [vmem:[#allocation13 + $0x1a8] sm:$0xf]
    %v3390 = vld [vmem:[#allocation13 + $0x1ac] sm:$0xf]
    %v3391 = vld [vmem:[#allocation13 + $0x1b0] sm:$0xf]
    %v3392 = vld [vmem:[#allocation13 + $0x1b4] sm:$0xf]
    %v3393 = vld [vmem:[#allocation13 + $0x1b8] sm:$0xf]
    %v3394 = vld [vmem:[#allocation13 + $0x1bc] sm:$0xf]
    %v3395 = vld [vmem:[#allocation13 + $0x1c0] sm:$0xf]
    %v3396 = vld [vmem:[#allocation13 + $0x1c4] sm:$0xf]
    %v3397 = vld [vmem:[#allocation13 + $0x1c8] sm:$0xf]
    %v3398 = vld [vmem:[#allocation13 + $0x1cc] sm:$0xf]
    %v3399 = vld [vmem:[#allocation13 + $0x1d0] sm:$0xf]
    %v3400 = vld [vmem:[#allocation13 + $0x1d4] sm:$0xf]
    %v3401 = vld [vmem:[#allocation13 + $0x1d8] sm:$0xf]
    %v3402 = vld [vmem:[#allocation13 + $0x1dc] sm:$0xf]
    %v3403 = vld [vmem:[#allocation13 + $0x1e0] sm:$0xf]
    %v3404 = vld [vmem:[#allocation13 + $0x1e4] sm:$0xf]
    %v3405 = vld [vmem:[#allocation13 + $0x1e8] sm:$0xf]
    %v3406 = vld [vmem:[#allocation13 + $0x1ec] sm:$0xf]
    %v3407 = vld [vmem:[#allocation13 + $0x1f0] sm:$0xf]
    %v3408 = vld [vmem:[#allocation13 + $0x1f4] sm:$0xf]
    %v3409 = vld [vmem:[#allocation13 + $0x1f8] sm:$0xf]
    %v3410 = vld [vmem:[#allocation13 + $0x1fc] sm:$0xf]
    %v3411 = vld [vmem:[#allocation13 + $0x200] sm:$0xf]
    %v3412 = vld [vmem:[#allocation13 + $0x204] sm:$0xf]
    %v3413 = vld [vmem:[#allocation13 + $0x208] sm:$0xf]
    %v3414 = vld [vmem:[#allocation13 + $0x20c] sm:$0xf]
    %v3415 = vld [vmem:[#allocation13 + $0x210] sm:$0xf]
    %v3416 = vld [vmem:[#allocation13 + $0x214] sm:$0xf]
    %v3417 = vld [vmem:[#allocation13 + $0x218] sm:$0xf]
    %v3418 = vld [vmem:[#allocation13 + $0x21c] sm:$0xf]
    %v3419 = vld [vmem:[#allocation13 + $0x220] sm:$0xf]
    %v3420 = vld [vmem:[#allocation13 + $0x224] sm:$0xf]
    %v3421 = vld [vmem:[#allocation13 + $0x228] sm:$0xf]
    %v3422 = vld [vmem:[#allocation13 + $0x22c] sm:$0xf]
    %v3423 = vld [vmem:[#allocation13 + $0x230] sm:$0xf]
    %v3424 = vld [vmem:[#allocation13 + $0x234] sm:$0xf]
    %v3425 = vld [vmem:[#allocation13 + $0x238] sm:$0xf]
    %v3426 = vld [vmem:[#allocation13 + $0x23c] sm:$0xf]
    %v3571 = vunpack.c.l.b16 %v3283
    %v3572 = vunpack.c.l.b16 %v3284
    %v3573 = vunpack.c.l.b16 %v3285
    %v3574 = vunpack.c.l.b16 %v3286
    %v3575 = vunpack.c.l.b16 %v3287
    %v3576 = vunpack.c.l.b16 %v3288
    %v3577 = vunpack.c.l.b16 %v3289
    %v3578 = vunpack.c.l.b16 %v3290
    %v3579 = vunpack.c.l.b16 %v3291
    %v3580 = vunpack.c.l.b16 %v3292
    %v3581 = vunpack.c.l.b16 %v3293
    %v3582 = vunpack.c.l.b16 %v3294
    %v3583 = vunpack.c.l.b16 %v3295
    %v3584 = vunpack.c.l.b16 %v3296
    %v3585 = vunpack.c.l.b16 %v3297
    %v3586 = vunpack.c.l.b16 %v3298
    %v3587 = vunpack.c.l.b16 %v3299
    %v3588 = vunpack.c.l.b16 %v3300
    %v3589 = vunpack.c.l.b16 %v3301
    %v3590 = vunpack.c.l.b16 %v3302
    %v3591 = vunpack.c.l.b16 %v3303
    %v3592 = vunpack.c.l.b16 %v3304
    %v3593 = vunpack.c.l.b16 %v3305
    %v3594 = vunpack.c.l.b16 %v3306
    %v3595 = vunpack.c.l.b16 %v3307
    %v3596 = vunpack.c.l.b16 %v3308
    %v3597 = vunpack.c.l.b16 %v3309
    %v3598 = vunpack.c.l.b16 %v3310
    %v3599 = vunpack.c.l.b16 %v3311
    %v3600 = vunpack.c.l.b16 %v3312
    %v3601 = vunpack.c.l.b16 %v3313
    %v3602 = vunpack.c.l.b16 %v3314
    %v3603 = vunpack.c.l.b16 %v3315
    %v3604 = vunpack.c.l.b16 %v3316
    %v3605 = vunpack.c.l.b16 %v3317
    %v3606 = vunpack.c.l.b16 %v3318
    %v3607 = vunpack.c.l.b16 %v3319
    %v3608 = vunpack.c.l.b16 %v3320
    %v3609 = vunpack.c.l.b16 %v3321
    %v3610 = vunpack.c.l.b16 %v3322
    %v3611 = vunpack.c.l.b16 %v3323
    %v3612 = vunpack.c.l.b16 %v3324
    %v3613 = vunpack.c.l.b16 %v3325
    %v3614 = vunpack.c.l.b16 %v3326
    %v3615 = vunpack.c.l.b16 %v3327
    %v3616 = vunpack.c.l.b16 %v3328
    %v3617 = vunpack.c.l.b16 %v3329
    %v3618 = vunpack.c.l.b16 %v3330
    %v3619 = vunpack.c.l.b16 %v3331
    %v3620 = vunpack.c.l.b16 %v3332
    %v3621 = vunpack.c.l.b16 %v3333
    %v3622 = vunpack.c.l.b16 %v3334
    %v3623 = vunpack.c.l.b16 %v3335
    %v3624 = vunpack.c.l.b16 %v3336
    %v3625 = vunpack.c.l.b16 %v3337
    %v3626 = vunpack.c.l.b16 %v3338
    %v3627 = vunpack.c.l.b16 %v3339
    %v3628 = vunpack.c.l.b16 %v3340
    %v3629 = vunpack.c.l.b16 %v3341
    %v3630 = vunpack.c.l.b16 %v3342
    %v3631 = vunpack.c.l.b16 %v3343
    %v3632 = vunpack.c.l.b16 %v3344
    %v3633 = vunpack.c.l.b16 %v3345
    %v3634 = vunpack.c.l.b16 %v3346
    %v3635 = vunpack.c.l.b16 %v3347
    %v3636 = vunpack.c.l.b16 %v3348
    %v3637 = vunpack.c.l.b16 %v3349
    %v3638 = vunpack.c.l.b16 %v3350
    %v3639 = vunpack.c.l.b16 %v3351
    %v3640 = vunpack.c.l.b16 %v3352
    %v3641 = vunpack.c.l.b16 %v3353
    %v3642 = vunpack.c.l.b16 %v3354
    %v3643 = vunpack.c.l.b16 %v3355
    %v3644 = vunpack.c.l.b16 %v3356
    %v3645 = vunpack.c.l.b16 %v3357
    %v3646 = vunpack.c.l.b16 %v3358
    %v3647 = vunpack.c.l.b16 %v3359
    %v3648 = vunpack.c.l.b16 %v3360
    %v3649 = vunpack.c.l.b16 %v3361
    %v3650 = vunpack.c.l.b16 %v3362
    %v3651 = vunpack.c.l.b16 %v3363
    %v3652 = vunpack.c.l.b16 %v3364
    %v3653 = vunpack.c.l.b16 %v3365
    %v3654 = vunpack.c.l.b16 %v3366
    %v3655 = vunpack.c.l.b16 %v3367
    %v3656 = vunpack.c.l.b16 %v3368
    %v3657 = vunpack.c.l.b16 %v3369
    %v3658 = vunpack.c.l.b16 %v3370
    %v3659 = vunpack.c.l.b16 %v3371
    %v3660 = vunpack.c.l.b16 %v3372
    %v3661 = vunpack.c.l.b16 %v3373
    %v3662 = vunpack.c.l.b16 %v3374
    %v3663 = vunpack.c.l.b16 %v3375
    %v3664 = vunpack.c.l.b16 %v3376
    %v3665 = vunpack.c.l.b16 %v3377
    %v3666 = vunpack.c.l.b16 %v3378
    %v3667 = vunpack.c.l.b16 %v3379
    %v3668 = vunpack.c.l.b16 %v3380
    %v3669 = vunpack.c.l.b16 %v3381
    %v3670 = vunpack.c.l.b16 %v3382
    %v3671 = vunpack.c.l.b16 %v3383
    %v3672 = vunpack.c.l.b16 %v3384
    %v3673 = vunpack.c.l.b16 %v3385
    %v3674 = vunpack.c.l.b16 %v3386
    %v3675 = vunpack.c.l.b16 %v3387
    %v3676 = vunpack.c.l.b16 %v3388
    %v3677 = vunpack.c.l.b16 %v3389
    %v3678 = vunpack.c.l.b16 %v3390
    %v3679 = vunpack.c.l.b16 %v3391
    %v3680 = vunpack.c.l.b16 %v3392
    %v3681 = vunpack.c.l.b16 %v3393
    %v3682 = vunpack.c.l.b16 %v3394
    %v3683 = vunpack.c.l.b16 %v3395
    %v3684 = vunpack.c.l.b16 %v3396
    %v3685 = vunpack.c.l.b16 %v3397
    %v3686 = vunpack.c.l.b16 %v3398
    %v3687 = vunpack.c.l.b16 %v3399
    %v3688 = vunpack.c.l.b16 %v3400
    %v3689 = vunpack.c.l.b16 %v3401
    %v3690 = vunpack.c.l.b16 %v3402
    %v3691 = vunpack.c.l.b16 %v3403
    %v3692 = vunpack.c.l.b16 %v3404
    %v3693 = vunpack.c.l.b16 %v3405
    %v3694 = vunpack.c.l.b16 %v3406
    %v3695 = vunpack.c.l.b16 %v3407
    %v3696 = vunpack.c.l.b16 %v3408
    %v3697 = vunpack.c.l.b16 %v3409
    %v3698 = vunpack.c.l.b16 %v3410
    %v3699 = vunpack.c.l.b16 %v3411
    %v3700 = vunpack.c.l.b16 %v3412
    %v3701 = vunpack.c.l.b16 %v3413
    %v3702 = vunpack.c.l.b16 %v3414
    %v3703 = vunpack.c.l.b16 %v3415
    %v3704 = vunpack.c.l.b16 %v3416
    %v3705 = vunpack.c.l.b16 %v3417
    %v3706 = vunpack.c.l.b16 %v3418
    %v3707 = vunpack.c.l.b16 %v3419
    %v3708 = vunpack.c.l.b16 %v3420
    %v3709 = vunpack.c.l.b16 %v3421
    %v3710 = vunpack.c.l.b16 %v3422
    %v3711 = vunpack.c.l.b16 %v3423
    %v3712 = vunpack.c.l.b16 %v3424
    %v3713 = vunpack.c.l.b16 %v3425
    %v3714 = vunpack.c.l.b16 %v3426
    %v3715 = vpack.c.b16 %v3572, %v3571
    %v3716 = vpack.c.b16 %v3574, %v3573
    %v3717 = vpack.c.b16 %v3576, %v3575
    %v3718 = vpack.c.b16 %v3578, %v3577
    %v3719 = vpack.c.b16 %v3580, %v3579
    %v3720 = vpack.c.b16 %v3582, %v3581
    %v3721 = vpack.c.b16 %v3584, %v3583
    %v3722 = vpack.c.b16 %v3586, %v3585
    %v3723 = vpack.c.b16 %v3588, %v3587
    %v3724 = vpack.c.b16 %v3590, %v3589
    %v3725 = vpack.c.b16 %v3592, %v3591
    %v3726 = vpack.c.b16 %v3594, %v3593
    %v3727 = vpack.c.b16 %v3596, %v3595
    %v3728 = vpack.c.b16 %v3598, %v3597
    %v3729 = vpack.c.b16 %v3600, %v3599
    %v3730 = vpack.c.b16 %v3602, %v3601
    %v3731 = vpack.c.b16 %v3604, %v3603
    %v3732 = vpack.c.b16 %v3606, %v3605
    %v3733 = vpack.c.b16 %v3608, %v3607
    %v3734 = vpack.c.b16 %v3610, %v3609
    %v3735 = vpack.c.b16 %v3612, %v3611
    %v3736 = vpack.c.b16 %v3614, %v3613
    %v3737 = vpack.c.b16 %v3616, %v3615
    %v3738 = vpack.c.b16 %v3618, %v3617
    %v3739 = vpack.c.b16 %v3620, %v3619
    %v3740 = vpack.c.b16 %v3622, %v3621
    %v3741 = vpack.c.b16 %v3624, %v3623
    %v3742 = vpack.c.b16 %v3626, %v3625
    %v3743 = vpack.c.b16 %v3628, %v3627
    %v3744 = vpack.c.b16 %v3630, %v3629
    %v3745 = vpack.c.b16 %v3632, %v3631
    %v3746 = vpack.c.b16 %v3634, %v3633
    %v3747 = vpack.c.b16 %v3636, %v3635
    %v3748 = vpack.c.b16 %v3638, %v3637
    %v3749 = vpack.c.b16 %v3640, %v3639
    %v3750 = vpack.c.b16 %v3642, %v3641
    %v3751 = vpack.c.b16 %v3644, %v3643
    %v3752 = vpack.c.b16 %v3646, %v3645
    %v3753 = vpack.c.b16 %v3648, %v3647
    %v3754 = vpack.c.b16 %v3650, %v3649
    %v3755 = vpack.c.b16 %v3652, %v3651
    %v3756 = vpack.c.b16 %v3654, %v3653
    %v3757 = vpack.c.b16 %v3656, %v3655
    %v3758 = vpack.c.b16 %v3658, %v3657
    %v3759 = vpack.c.b16 %v3660, %v3659
    %v3760 = vpack.c.b16 %v3662, %v3661
    %v3761 = vpack.c.b16 %v3664, %v3663
    %v3762 = vpack.c.b16 %v3666, %v3665
    %v3763 = vpack.c.b16 %v3668, %v3667
    %v3764 = vpack.c.b16 %v3670, %v3669
    %v3765 = vpack.c.b16 %v3672, %v3671
    %v3766 = vpack.c.b16 %v3674, %v3673
    %v3767 = vpack.c.b16 %v3676, %v3675
    %v3768 = vpack.c.b16 %v3678, %v3677
    %v3769 = vpack.c.b16 %v3680, %v3679
    %v3770 = vpack.c.b16 %v3682, %v3681
    %v3771 = vpack.c.b16 %v3684, %v3683
    %v3772 = vpack.c.b16 %v3686, %v3685
    %v3773 = vpack.c.b16 %v3688, %v3687
    %v3774 = vpack.c.b16 %v3690, %v3689
    %v3775 = vpack.c.b16 %v3692, %v3691
    %v3776 = vpack.c.b16 %v3694, %v3693
    %v3777 = vpack.c.b16 %v3696, %v3695
    %v3778 = vpack.c.b16 %v3698, %v3697
    %v3779 = vpack.c.b16 %v3700, %v3699
    %v3780 = vpack.c.b16 %v3702, %v3701
    %v3781 = vpack.c.b16 %v3704, %v3703
    %v3782 = vpack.c.b16 %v3706, %v3705
    %v3783 = vpack.c.b16 %v3708, %v3707
    %v3784 = vpack.c.b16 %v3710, %v3709
    %v3785 = vpack.c.b16 %v3712, %v3711
    %v3786 = vpack.c.b16 %v3714, %v3713
    %3859 = vmatpush.bf16.msra.mxu0 %v3722
    %3860 = vmatpush.bf16.msra.mxu0 %v3721
    %3861 = vmatpush.bf16.msra.mxu0 %v3720
    %3862 = vmatpush.bf16.msra.mxu0 %v3719
    %3863 = vmatpush.bf16.msra.mxu0 %v3718
    %3864 = vmatpush.bf16.msra.mxu0 %v3717
    %3865 = vmatpush.bf16.msra.mxu0 %v3716
    %3866 = vmatpush.bf16.msra.mxu0 %v3715
    %3867 = vmatmul.bf16.gmra.mxu0 %v3274
    %v3868 = vpop.f32.mrf.mxu0
    %v3869 = vadd.f32 0.0, %v3868
    %v3870 = vpop.f32.mrf.mxu0
    %3871 = vdwg.mxu0
    %3872 = vmatpush.bf16.msra.mxu0 %v3730
    %3873 = vmatpush.bf16.msra.mxu0 %v3729
    %3874 = vmatpush.bf16.msra.mxu0 %v3728
    %3875 = vmatpush.bf16.msra.mxu0 %v3727
    %3876 = vmatpush.bf16.msra.mxu0 %v3726
    %3877 = vmatpush.bf16.msra.mxu0 %v3725
    %3878 = vmatpush.bf16.msra.mxu0 %v3724
    %3879 = vmatpush.bf16.msra.mxu0 %v3723
    %3880 = vmatmul.bf16.gmra.mxu0 %v3275
    %v3881 = vpop.f32.mrf.mxu0
    %v3882 = vadd.f32 %v3869, %v3881
    %v3883 = vpop.f32.mrf.mxu0
    %3884 = vdwg.mxu0
    %3885 = vmatpush.bf16.msra.mxu0 %v3738
    %3886 = vmatpush.bf16.msra.mxu0 %v3737
    %3887 = vmatpush.bf16.msra.mxu0 %v3736
    %3888 = vmatpush.bf16.msra.mxu0 %v3735
    %3889 = vmatpush.bf16.msra.mxu0 %v3734
    %3890 = vmatpush.bf16.msra.mxu0 %v3733
    %3891 = vmatpush.bf16.msra.mxu0 %v3732
    %3892 = vmatpush.bf16.msra.mxu0 %v3731
    %3893 = vmatmul.bf16.gmra.mxu0 %v3276
    %v3894 = vpop.f32.mrf.mxu0
    %v3895 = vadd.f32 %v3882, %v3894
    %v3896 = vpop.f32.mrf.mxu0
    %3897 = vdwg.mxu0
    %3898 = vmatpush.bf16.msra.mxu0 %v3746
    %3899 = vmatpush.bf16.msra.mxu0 %v3745
    %3900 = vmatpush.bf16.msra.mxu0 %v3744
    %3901 = vmatpush.bf16.msra.mxu0 %v3743
    %3902 = vmatpush.bf16.msra.mxu0 %v3742
    %3903 = vmatpush.bf16.msra.mxu0 %v3741
    %3904 = vmatpush.bf16.msra.mxu0 %v3740
    %3905 = vmatpush.bf16.msra.mxu0 %v3739
    %3906 = vmatmul.bf16.gmra.mxu0 %v3277
    %v3907 = vpop.f32.mrf.mxu0
    %v3908 = vadd.f32 %v3895, %v3907
    %v3909 = vpop.f32.mrf.mxu0
    %3910 = vdwg.mxu0
    %3911 = vmatpush.bf16.msra.mxu0 %v3754
    %3912 = vmatpush.bf16.msra.mxu0 %v3753
    %3913 = vmatpush.bf16.msra.mxu0 %v3752
    %3914 = vmatpush.bf16.msra.mxu0 %v3751
    %3915 = vmatpush.bf16.msra.mxu0 %v3750
    %3916 = vmatpush.bf16.msra.mxu0 %v3749
    %3917 = vmatpush.bf16.msra.mxu0 %v3748
    %3918 = vmatpush.bf16.msra.mxu0 %v3747
    %3919 = vmatmul.bf16.gmra.mxu0 %v3278
    %v3920 = vpop.f32.mrf.mxu0
    %v3921 = vadd.f32 %v3908, %v3920
    %v3922 = vpop.f32.mrf.mxu0
    %3923 = vdwg.mxu0
    %3924 = vmatpush.bf16.msra.mxu0 %v3762
    %3925 = vmatpush.bf16.msra.mxu0 %v3761
    %3926 = vmatpush.bf16.msra.mxu0 %v3760
    %3927 = vmatpush.bf16.msra.mxu0 %v3759
    %3928 = vmatpush.bf16.msra.mxu0 %v3758
    %3929 = vmatpush.bf16.msra.mxu0 %v3757
    %3930 = vmatpush.bf16.msra.mxu0 %v3756
    %3931 = vmatpush.bf16.msra.mxu0 %v3755
    %3932 = vmatmul.bf16.gmra.mxu0 %v3279
    %v3933 = vpop.f32.mrf.mxu0
    %v3934 = vadd.f32 %v3921, %v3933
    %v3935 = vpop.f32.mrf.mxu0
    %3936 = vdwg.mxu0
    %3937 = vmatpush.bf16.msra.mxu0 %v3770
    %3938 = vmatpush.bf16.msra.mxu0 %v3769
    %3939 = vmatpush.bf16.msra.mxu0 %v3768
    %3940 = vmatpush.bf16.msra.mxu0 %v3767
    %3941 = vmatpush.bf16.msra.mxu0 %v3766
    %3942 = vmatpush.bf16.msra.mxu0 %v3765
    %3943 = vmatpush.bf16.msra.mxu0 %v3764
    %3944 = vmatpush.bf16.msra.mxu0 %v3763
    %3945 = vmatmul.bf16.gmra.mxu0 %v3280
    %v3946 = vpop.f32.mrf.mxu0
    %v3947 = vadd.f32 %v3934, %v3946
    %v3948 = vpop.f32.mrf.mxu0
    %3949 = vdwg.mxu0
    %3950 = vmatpush.bf16.msra.mxu0 %v3778
    %3951 = vmatpush.bf16.msra.mxu0 %v3777
    %3952 = vmatpush.bf16.msra.mxu0 %v3776
    %3953 = vmatpush.bf16.msra.mxu0 %v3775
    %3954 = vmatpush.bf16.msra.mxu0 %v3774
    %3955 = vmatpush.bf16.msra.mxu0 %v3773
    %3956 = vmatpush.bf16.msra.mxu0 %v3772
    %3957 = vmatpush.bf16.msra.mxu0 %v3771
    %3958 = vmatmul.bf16.gmra.mxu0 %v3281
    %v3959 = vpop.f32.mrf.mxu0
    %v3960 = vadd.f32 %v3947, %v3959
    %v3961 = vpop.f32.mrf.mxu0
    %3962 = vdwg.mxu0
    %3963 = vmatpush.bf16.msra.mxu0 %v3786
    %3964 = vmatpush.bf16.msra.mxu0 %v3785
    %3965 = vmatpush.bf16.msra.mxu0 %v3784
    %3966 = vmatpush.bf16.msra.mxu0 %v3783
    %3967 = vmatpush.bf16.msra.mxu0 %v3782
    %3968 = vmatpush.bf16.msra.mxu0 %v3781
    %3969 = vmatpush.bf16.msra.mxu0 %v3780
    %3970 = vmatpush.bf16.msra.mxu0 %v3779
    %3971 = vmatmul.bf16.gmra.mxu0 %v3282
    %v3972 = vpop.f32.mrf.mxu0
    %v3973 = vadd.f32 %v3960, %v3972
    %v3974 = vpop.f32.mrf.mxu0
    %3975 = vdwg.mxu0
    %v3976 = vrot.slane %v3973, 4
    %v3977 = vadd.f32 %v3973, %v3976
    %v3978 = vrot.slane %v3977, 2
    %v3979 = vadd.f32 %v3977, %v3978
    %v3980 = vrot.slane %v3979, 1
    %v3981 = vadd.f32 %v3979, %v3980
    %v3982 = vmul.f32 %v3981, 0.125
    %v3983 = vsub.f32 %v3973, %v3982
    %v3984 = vmul.f32 %v3983, %v3983
    %v3985 = vrot.slane %v3984, 4
    %v3986 = vadd.f32 %v3984, %v3985
    %v3987 = vrot.slane %v3986, 2
    %v3988 = vadd.f32 %v3986, %v3987
    %v3989 = vrot.slane %v3988, 1
    %v3990 = vadd.f32 %v3988, %v3989
    %v3991 = vmul.f32 %v3990, 0.125
    %v3992 = vmax.f32 %v3991, 0.0
    %v3993 = vadd.f32 %v3992, 1e-05
    %v3994 = vrsqrt.pop %v3993
    %v3995 = vmul.f32 %v3994, %v3993
    %v3996 = vmul.f32 %v3995, %v3994
    %v3997 = vmul.f32 0.5, %v3996
    %v3998 = vsub.f32 1.5, %v3997
    %v3999 = vmul.f32 %v3994, %v3998
    %vm4000 = vweird.f32 %v3993
    %vm4001 = vweird.f32 %v3994
    %vm4002 = vmor %vm4000, %vm4001
    %v4003 = vsel %vm4002, %v3994, %v3999
    %v4004 = vmul.f32 %v3983, %v4003
    %v4005 = vld [vmem:[%s9] sm:$0x1]
    %v4007 = vperm.slane %v4005, 0
    %v4009 = vmul.f32 %v4004, %v4007
    %v4010 = vld [vmem:[%s10] sm:$0x1]
    %v4012 = vperm.slane %v4010, 0
    %v4014 = vadd.f32 %v4009, %v4012
    %v4015 = vmul.f32 %v4014, 0.2
    %v4016 = vmax.f32 %v4014, %v4015
    %4017 = vst [vmem:[#allocation21] sm:$0xff] %v4016
    %4018 = vst [vmem:[#allocation4] sm:$0xff] 0.0
    %4019 = vst [vmem:[#allocation4 + $0x8] sm:$0xff] 0.0
    %4020 = vst [vmem:[#allocation4 + $0x10] sm:$0xff] 0.0
    %4021 = vst [vmem:[#allocation4 + $0x18] sm:$0xff] 0.0
    %v4022 = vld [vmem:[#allocation21] sm:$0x3]
    %4023 = vst [vmem:[#allocation4 + $0x5] sm:$0x3] %v4022
    %v4024 = vld [vmem:[#allocation21 + $0x2] sm:$0x3]
    %4025 = vst [vmem:[#allocation4 + $0x9] sm:$0x3] %v4024
    %v4026 = vld [vmem:[#allocation21 + $0x4] sm:$0x3]
    %4027 = vst [vmem:[#allocation4 + $0x15] sm:$0x3] %v4026
    %v4028 = vld [vmem:[#allocation21 + $0x6] sm:$0x3]
    %4029 = vst [vmem:[#allocation4 + $0x19] sm:$0x3] %v4028
    %v4030 = vld [vmem:[#allocation4] sm:$0x3]
    %4031 = vst [vmem:[#allocation6] sm:$0x3] %v4030
    %v4032 = vld [vmem:[#allocation4 + $0x4] sm:$0x3]
    %v4034 = vrot.slane %v4032, 6
    %4036 = vst [vmem:[#allocation6] sm:$0xc] %v4034
    %v4037 = vld [vmem:[#allocation4 + $0x10] sm:$0x3]
    %v4039 = vrot.slane %v4037, 4
    %4041 = vst [vmem:[#allocation6] sm:$0x30] %v4039
    %v4042 = vld [vmem:[#allocation4 + $0x14] sm:$0x3]
    %v4044 = vrot.slane %v4042, 2
    %4046 = vst [vmem:[#allocation6] sm:$0xc0] %v4044
    %v4047 = vld [vmem:[#allocation4 + $0x1] sm:$0x3]
    %4048 = vst [vmem:[#allocation6 + $0x8] sm:$0x3] %v4047
    %v4049 = vld [vmem:[#allocation4 + $0x5] sm:$0x3]
    %v4051 = vrot.slane %v4049, 6
    %4053 = vst [vmem:[#allocation6 + $0x8] sm:$0xc] %v4051
    %v4054 = vld [vmem:[#allocation4 + $0x11] sm:$0x3]
    %v4056 = vrot.slane %v4054, 4
    %4058 = vst [vmem:[#allocation6 + $0x8] sm:$0x30] %v4056
    %v4059 = vld [vmem:[#allocation4 + $0x15] sm:$0x3]
    %v4061 = vrot.slane %v4059, 2
    %4063 = vst [vmem:[#allocation6 + $0x8] sm:$0xc0] %v4061
    %v4064 = vld [vmem:[#allocation4 + $0x2] sm:$0x3]
    %4065 = vst [vmem:[#allocation6 + $0x10] sm:$0x3] %v4064
    %v4066 = vld [vmem:[#allocation4 + $0x6] sm:$0x3]
    %v4068 = vrot.slane %v4066, 6
    %4070 = vst [vmem:[#allocation6 + $0x10] sm:$0xc] %v4068
    %v4071 = vld [vmem:[#allocation4 + $0x12] sm:$0x3]
    %v4073 = vrot.slane %v4071, 4
    %4075 = vst [vmem:[#allocation6 + $0x10] sm:$0x30] %v4073
    %v4076 = vld [vmem:[#allocation4 + $0x16] sm:$0x3]
    %v4078 = vrot.slane %v4076, 2
    %4080 = vst [vmem:[#allocation6 + $0x10] sm:$0xc0] %v4078
    %v4081 = vld [vmem:[#allocation4 + $0x4] sm:$0x3]
    %4082 = vst [vmem:[#allocation6 + $0x18] sm:$0x3] %v4081
    %v4083 = vld [vmem:[#allocation4 + $0x8] sm:$0x3]
    %v4085 = vrot.slane %v4083, 6
    %4087 = vst [vmem:[#allocation6 + $0x18] sm:$0xc] %v4085
    %v4088 = vld [vmem:[#allocation4 + $0x14] sm:$0x3]
    %v4090 = vrot.slane %v4088, 4
    %4092 = vst [vmem:[#allocation6 + $0x18] sm:$0x30] %v4090
    %v4093 = vld [vmem:[#allocation4 + $0x18] sm:$0x3]
    %v4095 = vrot.slane %v4093, 2
    %4097 = vst [vmem:[#allocation6 + $0x18] sm:$0xc0] %v4095
    %v4098 = vld [vmem:[#allocation4 + $0x5] sm:$0x3]
    %4099 = vst [vmem:[#allocation6 + $0x20] sm:$0x3] %v4098
    %v4100 = vld [vmem:[#allocation4 + $0x9] sm:$0x3]
    %v4102 = vrot.slane %v4100, 6
    %4104 = vst [vmem:[#allocation6 + $0x20] sm:$0xc] %v4102
    %v4105 = vld [vmem:[#allocation4 + $0x15] sm:$0x3]
    %v4107 = vrot.slane %v4105, 4
    %4109 = vst [vmem:[#allocation6 + $0x20] sm:$0x30] %v4107
    %v4110 = vld [vmem:[#allocation4 + $0x19] sm:$0x3]
    %v4112 = vrot.slane %v4110, 2
    %4114 = vst [vmem:[#allocation6 + $0x20] sm:$0xc0] %v4112
    %v4115 = vld [vmem:[#allocation4 + $0x6] sm:$0x3]
    %4116 = vst [vmem:[#allocation6 + $0x28] sm:$0x3] %v4115
    %v4117 = vld [vmem:[#allocation4 + $0xa] sm:$0x3]
    %v4119 = vrot.slane %v4117, 6
    %4121 = vst [vmem:[#allocation6 + $0x28] sm:$0xc] %v4119
    %v4122 = vld [vmem:[#allocation4 + $0x16] sm:$0x3]
    %v4124 = vrot.slane %v4122, 4
    %4126 = vst [vmem:[#allocation6 + $0x28] sm:$0x30] %v4124
    %v4127 = vld [vmem:[#allocation4 + $0x1a] sm:$0x3]
    %v4129 = vrot.slane %v4127, 2
    %4131 = vst [vmem:[#allocation6 + $0x28] sm:$0xc0] %v4129
    %v4132 = vld [vmem:[#allocation4 + $0x8] sm:$0x3]
    %4133 = vst [vmem:[#allocation6 + $0x30] sm:$0x3] %v4132
    %v4134 = vld [vmem:[#allocation4 + $0xc] sm:$0x3]
    %v4136 = vrot.slane %v4134, 6
    %4138 = vst [vmem:[#allocation6 + $0x30] sm:$0xc] %v4136
    %v4139 = vld [vmem:[#allocation4 + $0x18] sm:$0x3]
    %v4141 = vrot.slane %v4139, 4
    %4143 = vst [vmem:[#allocation6 + $0x30] sm:$0x30] %v4141
    %v4144 = vld [vmem:[#allocation4 + $0x1c] sm:$0x3]
    %v4146 = vrot.slane %v4144, 2
    %4148 = vst [vmem:[#allocation6 + $0x30] sm:$0xc0] %v4146
    %v4149 = vld [vmem:[#allocation4 + $0x9] sm:$0x3]
    %4150 = vst [vmem:[#allocation6 + $0x38] sm:$0x3] %v4149
    %v4151 = vld [vmem:[#allocation4 + $0xd] sm:$0x3]
    %v4153 = vrot.slane %v4151, 6
    %4155 = vst [vmem:[#allocation6 + $0x38] sm:$0xc] %v4153
    %v4156 = vld [vmem:[#allocation4 + $0x19] sm:$0x3]
    %v4158 = vrot.slane %v4156, 4
    %4160 = vst [vmem:[#allocation6 + $0x38] sm:$0x30] %v4158
    %v4161 = vld [vmem:[#allocation4 + $0x1d] sm:$0x3]
    %v4163 = vrot.slane %v4161, 2
    %4165 = vst [vmem:[#allocation6 + $0x38] sm:$0xc0] %v4163
    %v4166 = vld [vmem:[#allocation4 + $0xa] sm:$0x3]
    %4167 = vst [vmem:[#allocation6 + $0x40] sm:$0x3] %v4166
    %v4168 = vld [vmem:[#allocation4 + $0xe] sm:$0x3]
    %v4170 = vrot.slane %v4168, 6
    %4172 = vst [vmem:[#allocation6 + $0x40] sm:$0xc] %v4170
    %v4173 = vld [vmem:[#allocation4 + $0x1a] sm:$0x3]
    %v4175 = vrot.slane %v4173, 4
    %4177 = vst [vmem:[#allocation6 + $0x40] sm:$0x30] %v4175
    %v4178 = vld [vmem:[#allocation4 + $0x1e] sm:$0x3]
    %v4180 = vrot.slane %v4178, 2
    %4182 = vst [vmem:[#allocation6 + $0x40] sm:$0xc0] %v4180
    %v4183 = vld [vmem:[#allocation6] sm:$0xff]
    %v4184 = vld [vmem:[#allocation6 + $0x8] sm:$0xff]
    %v4185 = vld [vmem:[#allocation6 + $0x10] sm:$0xff]
    %v4186 = vld [vmem:[#allocation6 + $0x18] sm:$0xff]
    %v4187 = vld [vmem:[#allocation6 + $0x20] sm:$0xff]
    %v4188 = vld [vmem:[#allocation6 + $0x28] sm:$0xff]
    %v4189 = vld [vmem:[#allocation6 + $0x30] sm:$0xff]
    %v4190 = vld [vmem:[#allocation6 + $0x38] sm:$0xff]
    %v4191 = vld [vmem:[#allocation6 + $0x40] sm:$0xff]
    %v4192 = vpack.c.bf16 %v4183, %v4183
    %v4193 = vpack.c.bf16 %v4184, %v4184
    %v4194 = vpack.c.bf16 %v4185, %v4185
    %v4195 = vpack.c.bf16 %v4186, %v4186
    %v4196 = vpack.c.bf16 %v4187, %v4187
    %v4197 = vpack.c.bf16 %v4188, %v4188
    %v4198 = vpack.c.bf16 %v4189, %v4189
    %v4199 = vpack.c.bf16 %v4190, %v4190
    %v4200 = vpack.c.bf16 %v4191, %v4191
    %v4201 = vld [vmem:[#allocation15] sm:$0xf]
    %v4202 = vld [vmem:[#allocation15 + $0x4] sm:$0xf]
    %v4203 = vld [vmem:[#allocation15 + $0x8] sm:$0xf]
    %v4204 = vld [vmem:[#allocation15 + $0xc] sm:$0xf]
    %v4205 = vld [vmem:[#allocation15 + $0x10] sm:$0xf]
    %v4206 = vld [vmem:[#allocation15 + $0x14] sm:$0xf]
    %v4207 = vld [vmem:[#allocation15 + $0x18] sm:$0xf]
    %v4208 = vld [vmem:[#allocation15 + $0x1c] sm:$0xf]
    %v4209 = vld [vmem:[#allocation15 + $0x20] sm:$0xf]
    %v4210 = vld [vmem:[#allocation15 + $0x24] sm:$0xf]
    %v4211 = vld [vmem:[#allocation15 + $0x28] sm:$0xf]
    %v4212 = vld [vmem:[#allocation15 + $0x2c] sm:$0xf]
    %v4213 = vld [vmem:[#allocation15 + $0x30] sm:$0xf]
    %v4214 = vld [vmem:[#allocation15 + $0x34] sm:$0xf]
    %v4215 = vld [vmem:[#allocation15 + $0x38] sm:$0xf]
    %v4216 = vld [vmem:[#allocation15 + $0x3c] sm:$0xf]
    %v4217 = vld [vmem:[#allocation15 + $0x40] sm:$0xf]
    %v4218 = vld [vmem:[#allocation15 + $0x44] sm:$0xf]
    %v4219 = vld [vmem:[#allocation15 + $0x48] sm:$0xf]
    %v4220 = vld [vmem:[#allocation15 + $0x4c] sm:$0xf]
    %v4221 = vld [vmem:[#allocation15 + $0x50] sm:$0xf]
    %v4222 = vld [vmem:[#allocation15 + $0x54] sm:$0xf]
    %v4223 = vld [vmem:[#allocation15 + $0x58] sm:$0xf]
    %v4224 = vld [vmem:[#allocation15 + $0x5c] sm:$0xf]
    %v4225 = vld [vmem:[#allocation15 + $0x60] sm:$0xf]
    %v4226 = vld [vmem:[#allocation15 + $0x64] sm:$0xf]
    %v4227 = vld [vmem:[#allocation15 + $0x68] sm:$0xf]
    %v4228 = vld [vmem:[#allocation15 + $0x6c] sm:$0xf]
    %v4229 = vld [vmem:[#allocation15 + $0x70] sm:$0xf]
    %v4230 = vld [vmem:[#allocation15 + $0x74] sm:$0xf]
    %v4231 = vld [vmem:[#allocation15 + $0x78] sm:$0xf]
    %v4232 = vld [vmem:[#allocation15 + $0x7c] sm:$0xf]
    %v4233 = vld [vmem:[#allocation15 + $0x80] sm:$0xf]
    %v4234 = vld [vmem:[#allocation15 + $0x84] sm:$0xf]
    %v4235 = vld [vmem:[#allocation15 + $0x88] sm:$0xf]
    %v4236 = vld [vmem:[#allocation15 + $0x8c] sm:$0xf]
    %v4237 = vld [vmem:[#allocation15 + $0x90] sm:$0xf]
    %v4238 = vld [vmem:[#allocation15 + $0x94] sm:$0xf]
    %v4239 = vld [vmem:[#allocation15 + $0x98] sm:$0xf]
    %v4240 = vld [vmem:[#allocation15 + $0x9c] sm:$0xf]
    %v4241 = vld [vmem:[#allocation15 + $0xa0] sm:$0xf]
    %v4242 = vld [vmem:[#allocation15 + $0xa4] sm:$0xf]
    %v4243 = vld [vmem:[#allocation15 + $0xa8] sm:$0xf]
    %v4244 = vld [vmem:[#allocation15 + $0xac] sm:$0xf]
    %v4245 = vld [vmem:[#allocation15 + $0xb0] sm:$0xf]
    %v4246 = vld [vmem:[#allocation15 + $0xb4] sm:$0xf]
    %v4247 = vld [vmem:[#allocation15 + $0xb8] sm:$0xf]
    %v4248 = vld [vmem:[#allocation15 + $0xbc] sm:$0xf]
    %v4249 = vld [vmem:[#allocation15 + $0xc0] sm:$0xf]
    %v4250 = vld [vmem:[#allocation15 + $0xc4] sm:$0xf]
    %v4251 = vld [vmem:[#allocation15 + $0xc8] sm:$0xf]
    %v4252 = vld [vmem:[#allocation15 + $0xcc] sm:$0xf]
    %v4253 = vld [vmem:[#allocation15 + $0xd0] sm:$0xf]
    %v4254 = vld [vmem:[#allocation15 + $0xd4] sm:$0xf]
    %v4255 = vld [vmem:[#allocation15 + $0xd8] sm:$0xf]
    %v4256 = vld [vmem:[#allocation15 + $0xdc] sm:$0xf]
    %v4257 = vld [vmem:[#allocation15 + $0xe0] sm:$0xf]
    %v4258 = vld [vmem:[#allocation15 + $0xe4] sm:$0xf]
    %v4259 = vld [vmem:[#allocation15 + $0xe8] sm:$0xf]
    %v4260 = vld [vmem:[#allocation15 + $0xec] sm:$0xf]
    %v4261 = vld [vmem:[#allocation15 + $0xf0] sm:$0xf]
    %v4262 = vld [vmem:[#allocation15 + $0xf4] sm:$0xf]
    %v4263 = vld [vmem:[#allocation15 + $0xf8] sm:$0xf]
    %v4264 = vld [vmem:[#allocation15 + $0xfc] sm:$0xf]
    %v4265 = vld [vmem:[#allocation15 + $0x100] sm:$0xf]
    %v4266 = vld [vmem:[#allocation15 + $0x104] sm:$0xf]
    %v4267 = vld [vmem:[#allocation15 + $0x108] sm:$0xf]
    %v4268 = vld [vmem:[#allocation15 + $0x10c] sm:$0xf]
    %v4269 = vld [vmem:[#allocation15 + $0x110] sm:$0xf]
    %v4270 = vld [vmem:[#allocation15 + $0x114] sm:$0xf]
    %v4271 = vld [vmem:[#allocation15 + $0x118] sm:$0xf]
    %v4272 = vld [vmem:[#allocation15 + $0x11c] sm:$0xf]
    %v4273 = vld [vmem:[#allocation15 + $0x120] sm:$0xf]
    %v4274 = vld [vmem:[#allocation15 + $0x124] sm:$0xf]
    %v4275 = vld [vmem:[#allocation15 + $0x128] sm:$0xf]
    %v4276 = vld [vmem:[#allocation15 + $0x12c] sm:$0xf]
    %v4277 = vld [vmem:[#allocation15 + $0x130] sm:$0xf]
    %v4278 = vld [vmem:[#allocation15 + $0x134] sm:$0xf]
    %v4279 = vld [vmem:[#allocation15 + $0x138] sm:$0xf]
    %v4280 = vld [vmem:[#allocation15 + $0x13c] sm:$0xf]
    %v4281 = vld [vmem:[#allocation15 + $0x140] sm:$0xf]
    %v4282 = vld [vmem:[#allocation15 + $0x144] sm:$0xf]
    %v4283 = vld [vmem:[#allocation15 + $0x148] sm:$0xf]
    %v4284 = vld [vmem:[#allocation15 + $0x14c] sm:$0xf]
    %v4285 = vld [vmem:[#allocation15 + $0x150] sm:$0xf]
    %v4286 = vld [vmem:[#allocation15 + $0x154] sm:$0xf]
    %v4287 = vld [vmem:[#allocation15 + $0x158] sm:$0xf]
    %v4288 = vld [vmem:[#allocation15 + $0x15c] sm:$0xf]
    %v4289 = vld [vmem:[#allocation15 + $0x160] sm:$0xf]
    %v4290 = vld [vmem:[#allocation15 + $0x164] sm:$0xf]
    %v4291 = vld [vmem:[#allocation15 + $0x168] sm:$0xf]
    %v4292 = vld [vmem:[#allocation15 + $0x16c] sm:$0xf]
    %v4293 = vld [vmem:[#allocation15 + $0x170] sm:$0xf]
    %v4294 = vld [vmem:[#allocation15 + $0x174] sm:$0xf]
    %v4295 = vld [vmem:[#allocation15 + $0x178] sm:$0xf]
    %v4296 = vld [vmem:[#allocation15 + $0x17c] sm:$0xf]
    %v4297 = vld [vmem:[#allocation15 + $0x180] sm:$0xf]
    %v4298 = vld [vmem:[#allocation15 + $0x184] sm:$0xf]
    %v4299 = vld [vmem:[#allocation15 + $0x188] sm:$0xf]
    %v4300 = vld [vmem:[#allocation15 + $0x18c] sm:$0xf]
    %v4301 = vld [vmem:[#allocation15 + $0x190] sm:$0xf]
    %v4302 = vld [vmem:[#allocation15 + $0x194] sm:$0xf]
    %v4303 = vld [vmem:[#allocation15 + $0x198] sm:$0xf]
    %v4304 = vld [vmem:[#allocation15 + $0x19c] sm:$0xf]
    %v4305 = vld [vmem:[#allocation15 + $0x1a0] sm:$0xf]
    %v4306 = vld [vmem:[#allocation15 + $0x1a4] sm:$0xf]
    %v4307 = vld [vmem:[#allocation15 + $0x1a8] sm:$0xf]
    %v4308 = vld [vmem:[#allocation15 + $0x1ac] sm:$0xf]
    %v4309 = vld [vmem:[#allocation15 + $0x1b0] sm:$0xf]
    %v4310 = vld [vmem:[#allocation15 + $0x1b4] sm:$0xf]
    %v4311 = vld [vmem:[#allocation15 + $0x1b8] sm:$0xf]
    %v4312 = vld [vmem:[#allocation15 + $0x1bc] sm:$0xf]
    %v4313 = vld [vmem:[#allocation15 + $0x1c0] sm:$0xf]
    %v4314 = vld [vmem:[#allocation15 + $0x1c4] sm:$0xf]
    %v4315 = vld [vmem:[#allocation15 + $0x1c8] sm:$0xf]
    %v4316 = vld [vmem:[#allocation15 + $0x1cc] sm:$0xf]
    %v4317 = vld [vmem:[#allocation15 + $0x1d0] sm:$0xf]
    %v4318 = vld [vmem:[#allocation15 + $0x1d4] sm:$0xf]
    %v4319 = vld [vmem:[#allocation15 + $0x1d8] sm:$0xf]
    %v4320 = vld [vmem:[#allocation15 + $0x1dc] sm:$0xf]
    %v4321 = vld [vmem:[#allocation15 + $0x1e0] sm:$0xf]
    %v4322 = vld [vmem:[#allocation15 + $0x1e4] sm:$0xf]
    %v4323 = vld [vmem:[#allocation15 + $0x1e8] sm:$0xf]
    %v4324 = vld [vmem:[#allocation15 + $0x1ec] sm:$0xf]
    %v4325 = vld [vmem:[#allocation15 + $0x1f0] sm:$0xf]
    %v4326 = vld [vmem:[#allocation15 + $0x1f4] sm:$0xf]
    %v4327 = vld [vmem:[#allocation15 + $0x1f8] sm:$0xf]
    %v4328 = vld [vmem:[#allocation15 + $0x1fc] sm:$0xf]
    %v4329 = vld [vmem:[#allocation15 + $0x200] sm:$0xf]
    %v4330 = vld [vmem:[#allocation15 + $0x204] sm:$0xf]
    %v4331 = vld [vmem:[#allocation15 + $0x208] sm:$0xf]
    %v4332 = vld [vmem:[#allocation15 + $0x20c] sm:$0xf]
    %v4333 = vld [vmem:[#allocation15 + $0x210] sm:$0xf]
    %v4334 = vld [vmem:[#allocation15 + $0x214] sm:$0xf]
    %v4335 = vld [vmem:[#allocation15 + $0x218] sm:$0xf]
    %v4336 = vld [vmem:[#allocation15 + $0x21c] sm:$0xf]
    %v4337 = vld [vmem:[#allocation15 + $0x220] sm:$0xf]
    %v4338 = vld [vmem:[#allocation15 + $0x224] sm:$0xf]
    %v4339 = vld [vmem:[#allocation15 + $0x228] sm:$0xf]
    %v4340 = vld [vmem:[#allocation15 + $0x22c] sm:$0xf]
    %v4341 = vld [vmem:[#allocation15 + $0x230] sm:$0xf]
    %v4342 = vld [vmem:[#allocation15 + $0x234] sm:$0xf]
    %v4343 = vld [vmem:[#allocation15 + $0x238] sm:$0xf]
    %v4344 = vld [vmem:[#allocation15 + $0x23c] sm:$0xf]
    %v4489 = vunpack.c.l.b16 %v4201
    %v4490 = vunpack.c.l.b16 %v4202
    %v4491 = vunpack.c.l.b16 %v4203
    %v4492 = vunpack.c.l.b16 %v4204
    %v4493 = vunpack.c.l.b16 %v4205
    %v4494 = vunpack.c.l.b16 %v4206
    %v4495 = vunpack.c.l.b16 %v4207
    %v4496 = vunpack.c.l.b16 %v4208
    %v4497 = vunpack.c.l.b16 %v4209
    %v4498 = vunpack.c.l.b16 %v4210
    %v4499 = vunpack.c.l.b16 %v4211
    %v4500 = vunpack.c.l.b16 %v4212
    %v4501 = vunpack.c.l.b16 %v4213
    %v4502 = vunpack.c.l.b16 %v4214
    %v4503 = vunpack.c.l.b16 %v4215
    %v4504 = vunpack.c.l.b16 %v4216
    %v4505 = vunpack.c.l.b16 %v4217
    %v4506 = vunpack.c.l.b16 %v4218
    %v4507 = vunpack.c.l.b16 %v4219
    %v4508 = vunpack.c.l.b16 %v4220
    %v4509 = vunpack.c.l.b16 %v4221
    %v4510 = vunpack.c.l.b16 %v4222
    %v4511 = vunpack.c.l.b16 %v4223
    %v4512 = vunpack.c.l.b16 %v4224
    %v4513 = vunpack.c.l.b16 %v4225
    %v4514 = vunpack.c.l.b16 %v4226
    %v4515 = vunpack.c.l.b16 %v4227
    %v4516 = vunpack.c.l.b16 %v4228
    %v4517 = vunpack.c.l.b16 %v4229
    %v4518 = vunpack.c.l.b16 %v4230
    %v4519 = vunpack.c.l.b16 %v4231
    %v4520 = vunpack.c.l.b16 %v4232
    %v4521 = vunpack.c.l.b16 %v4233
    %v4522 = vunpack.c.l.b16 %v4234
    %v4523 = vunpack.c.l.b16 %v4235
    %v4524 = vunpack.c.l.b16 %v4236
    %v4525 = vunpack.c.l.b16 %v4237
    %v4526 = vunpack.c.l.b16 %v4238
    %v4527 = vunpack.c.l.b16 %v4239
    %v4528 = vunpack.c.l.b16 %v4240
    %v4529 = vunpack.c.l.b16 %v4241
    %v4530 = vunpack.c.l.b16 %v4242
    %v4531 = vunpack.c.l.b16 %v4243
    %v4532 = vunpack.c.l.b16 %v4244
    %v4533 = vunpack.c.l.b16 %v4245
    %v4534 = vunpack.c.l.b16 %v4246
    %v4535 = vunpack.c.l.b16 %v4247
    %v4536 = vunpack.c.l.b16 %v4248
    %v4537 = vunpack.c.l.b16 %v4249
    %v4538 = vunpack.c.l.b16 %v4250
    %v4539 = vunpack.c.l.b16 %v4251
    %v4540 = vunpack.c.l.b16 %v4252
    %v4541 = vunpack.c.l.b16 %v4253
    %v4542 = vunpack.c.l.b16 %v4254
    %v4543 = vunpack.c.l.b16 %v4255
    %v4544 = vunpack.c.l.b16 %v4256
    %v4545 = vunpack.c.l.b16 %v4257
    %v4546 = vunpack.c.l.b16 %v4258
    %v4547 = vunpack.c.l.b16 %v4259
    %v4548 = vunpack.c.l.b16 %v4260
    %v4549 = vunpack.c.l.b16 %v4261
    %v4550 = vunpack.c.l.b16 %v4262
    %v4551 = vunpack.c.l.b16 %v4263
    %v4552 = vunpack.c.l.b16 %v4264
    %v4553 = vunpack.c.l.b16 %v4265
    %v4554 = vunpack.c.l.b16 %v4266
    %v4555 = vunpack.c.l.b16 %v4267
    %v4556 = vunpack.c.l.b16 %v4268
    %v4557 = vunpack.c.l.b16 %v4269
    %v4558 = vunpack.c.l.b16 %v4270
    %v4559 = vunpack.c.l.b16 %v4271
    %v4560 = vunpack.c.l.b16 %v4272
    %v4561 = vunpack.c.l.b16 %v4273
    %v4562 = vunpack.c.l.b16 %v4274
    %v4563 = vunpack.c.l.b16 %v4275
    %v4564 = vunpack.c.l.b16 %v4276
    %v4565 = vunpack.c.l.b16 %v4277
    %v4566 = vunpack.c.l.b16 %v4278
    %v4567 = vunpack.c.l.b16 %v4279
    %v4568 = vunpack.c.l.b16 %v4280
    %v4569 = vunpack.c.l.b16 %v4281
    %v4570 = vunpack.c.l.b16 %v4282
    %v4571 = vunpack.c.l.b16 %v4283
    %v4572 = vunpack.c.l.b16 %v4284
    %v4573 = vunpack.c.l.b16 %v4285
    %v4574 = vunpack.c.l.b16 %v4286
    %v4575 = vunpack.c.l.b16 %v4287
    %v4576 = vunpack.c.l.b16 %v4288
    %v4577 = vunpack.c.l.b16 %v4289
    %v4578 = vunpack.c.l.b16 %v4290
    %v4579 = vunpack.c.l.b16 %v4291
    %v4580 = vunpack.c.l.b16 %v4292
    %v4581 = vunpack.c.l.b16 %v4293
    %v4582 = vunpack.c.l.b16 %v4294
    %v4583 = vunpack.c.l.b16 %v4295
    %v4584 = vunpack.c.l.b16 %v4296
    %v4585 = vunpack.c.l.b16 %v4297
    %v4586 = vunpack.c.l.b16 %v4298
    %v4587 = vunpack.c.l.b16 %v4299
    %v4588 = vunpack.c.l.b16 %v4300
    %v4589 = vunpack.c.l.b16 %v4301
    %v4590 = vunpack.c.l.b16 %v4302
    %v4591 = vunpack.c.l.b16 %v4303
    %v4592 = vunpack.c.l.b16 %v4304
    %v4593 = vunpack.c.l.b16 %v4305
    %v4594 = vunpack.c.l.b16 %v4306
    %v4595 = vunpack.c.l.b16 %v4307
    %v4596 = vunpack.c.l.b16 %v4308
    %v4597 = vunpack.c.l.b16 %v4309
    %v4598 = vunpack.c.l.b16 %v4310
    %v4599 = vunpack.c.l.b16 %v4311
    %v4600 = vunpack.c.l.b16 %v4312
    %v4601 = vunpack.c.l.b16 %v4313
    %v4602 = vunpack.c.l.b16 %v4314
    %v4603 = vunpack.c.l.b16 %v4315
    %v4604 = vunpack.c.l.b16 %v4316
    %v4605 = vunpack.c.l.b16 %v4317
    %v4606 = vunpack.c.l.b16 %v4318
    %v4607 = vunpack.c.l.b16 %v4319
    %v4608 = vunpack.c.l.b16 %v4320
    %v4609 = vunpack.c.l.b16 %v4321
    %v4610 = vunpack.c.l.b16 %v4322
    %v4611 = vunpack.c.l.b16 %v4323
    %v4612 = vunpack.c.l.b16 %v4324
    %v4613 = vunpack.c.l.b16 %v4325
    %v4614 = vunpack.c.l.b16 %v4326
    %v4615 = vunpack.c.l.b16 %v4327
    %v4616 = vunpack.c.l.b16 %v4328
    %v4617 = vunpack.c.l.b16 %v4329
    %v4618 = vunpack.c.l.b16 %v4330
    %v4619 = vunpack.c.l.b16 %v4331
    %v4620 = vunpack.c.l.b16 %v4332
    %v4621 = vunpack.c.l.b16 %v4333
    %v4622 = vunpack.c.l.b16 %v4334
    %v4623 = vunpack.c.l.b16 %v4335
    %v4624 = vunpack.c.l.b16 %v4336
    %v4625 = vunpack.c.l.b16 %v4337
    %v4626 = vunpack.c.l.b16 %v4338
    %v4627 = vunpack.c.l.b16 %v4339
    %v4628 = vunpack.c.l.b16 %v4340
    %v4629 = vunpack.c.l.b16 %v4341
    %v4630 = vunpack.c.l.b16 %v4342
    %v4631 = vunpack.c.l.b16 %v4343
    %v4632 = vunpack.c.l.b16 %v4344
    %v4633 = vpack.c.b16 %v4490, %v4489
    %v4634 = vpack.c.b16 %v4492, %v4491
    %v4635 = vpack.c.b16 %v4494, %v4493
    %v4636 = vpack.c.b16 %v4496, %v4495
    %v4637 = vpack.c.b16 %v4498, %v4497
    %v4638 = vpack.c.b16 %v4500, %v4499
    %v4639 = vpack.c.b16 %v4502, %v4501
    %v4640 = vpack.c.b16 %v4504, %v4503
    %v4641 = vpack.c.b16 %v4506, %v4505
    %v4642 = vpack.c.b16 %v4508, %v4507
    %v4643 = vpack.c.b16 %v4510, %v4509
    %v4644 = vpack.c.b16 %v4512, %v4511
    %v4645 = vpack.c.b16 %v4514, %v4513
    %v4646 = vpack.c.b16 %v4516, %v4515
    %v4647 = vpack.c.b16 %v4518, %v4517
    %v4648 = vpack.c.b16 %v4520, %v4519
    %v4649 = vpack.c.b16 %v4522, %v4521
    %v4650 = vpack.c.b16 %v4524, %v4523
    %v4651 = vpack.c.b16 %v4526, %v4525
    %v4652 = vpack.c.b16 %v4528, %v4527
    %v4653 = vpack.c.b16 %v4530, %v4529
    %v4654 = vpack.c.b16 %v4532, %v4531
    %v4655 = vpack.c.b16 %v4534, %v4533
    %v4656 = vpack.c.b16 %v4536, %v4535
    %v4657 = vpack.c.b16 %v4538, %v4537
    %v4658 = vpack.c.b16 %v4540, %v4539
    %v4659 = vpack.c.b16 %v4542, %v4541
    %v4660 = vpack.c.b16 %v4544, %v4543
    %v4661 = vpack.c.b16 %v4546, %v4545
    %v4662 = vpack.c.b16 %v4548, %v4547
    %v4663 = vpack.c.b16 %v4550, %v4549
    %v4664 = vpack.c.b16 %v4552, %v4551
    %v4665 = vpack.c.b16 %v4554, %v4553
    %v4666 = vpack.c.b16 %v4556, %v4555
    %v4667 = vpack.c.b16 %v4558, %v4557
    %v4668 = vpack.c.b16 %v4560, %v4559
    %v4669 = vpack.c.b16 %v4562, %v4561
    %v4670 = vpack.c.b16 %v4564, %v4563
    %v4671 = vpack.c.b16 %v4566, %v4565
    %v4672 = vpack.c.b16 %v4568, %v4567
    %v4673 = vpack.c.b16 %v4570, %v4569
    %v4674 = vpack.c.b16 %v4572, %v4571
    %v4675 = vpack.c.b16 %v4574, %v4573
    %v4676 = vpack.c.b16 %v4576, %v4575
    %v4677 = vpack.c.b16 %v4578, %v4577
    %v4678 = vpack.c.b16 %v4580, %v4579
    %v4679 = vpack.c.b16 %v4582, %v4581
    %v4680 = vpack.c.b16 %v4584, %v4583
    %v4681 = vpack.c.b16 %v4586, %v4585
    %v4682 = vpack.c.b16 %v4588, %v4587
    %v4683 = vpack.c.b16 %v4590, %v4589
    %v4684 = vpack.c.b16 %v4592, %v4591
    %v4685 = vpack.c.b16 %v4594, %v4593
    %v4686 = vpack.c.b16 %v4596, %v4595
    %v4687 = vpack.c.b16 %v4598, %v4597
    %v4688 = vpack.c.b16 %v4600, %v4599
    %v4689 = vpack.c.b16 %v4602, %v4601
    %v4690 = vpack.c.b16 %v4604, %v4603
    %v4691 = vpack.c.b16 %v4606, %v4605
    %v4692 = vpack.c.b16 %v4608, %v4607
    %v4693 = vpack.c.b16 %v4610, %v4609
    %v4694 = vpack.c.b16 %v4612, %v4611
    %v4695 = vpack.c.b16 %v4614, %v4613
    %v4696 = vpack.c.b16 %v4616, %v4615
    %v4697 = vpack.c.b16 %v4618, %v4617
    %v4698 = vpack.c.b16 %v4620, %v4619
    %v4699 = vpack.c.b16 %v4622, %v4621
    %v4700 = vpack.c.b16 %v4624, %v4623
    %v4701 = vpack.c.b16 %v4626, %v4625
    %v4702 = vpack.c.b16 %v4628, %v4627
    %v4703 = vpack.c.b16 %v4630, %v4629
    %v4704 = vpack.c.b16 %v4632, %v4631
    %4777 = vmatpush.bf16.msra.mxu0 %v4640
    %4778 = vmatpush.bf16.msra.mxu0 %v4639
    %4779 = vmatpush.bf16.msra.mxu0 %v4638
    %4780 = vmatpush.bf16.msra.mxu0 %v4637
    %4781 = vmatpush.bf16.msra.mxu0 %v4636
    %4782 = vmatpush.bf16.msra.mxu0 %v4635
    %4783 = vmatpush.bf16.msra.mxu0 %v4634
    %4784 = vmatpush.bf16.msra.mxu0 %v4633
    %4785 = vmatmul.bf16.gmra.mxu0 %v4192
    %v4786 = vpop.f32.mrf.mxu0
    %v4787 = vadd.f32 0.0, %v4786
    %v4788 = vpop.f32.mrf.mxu0
    %4789 = vdwg.mxu0
    %4790 = vmatpush.bf16.msra.mxu0 %v4648
    %4791 = vmatpush.bf16.msra.mxu0 %v4647
    %4792 = vmatpush.bf16.msra.mxu0 %v4646
    %4793 = vmatpush.bf16.msra.mxu0 %v4645
    %4794 = vmatpush.bf16.msra.mxu0 %v4644
    %4795 = vmatpush.bf16.msra.mxu0 %v4643
    %4796 = vmatpush.bf16.msra.mxu0 %v4642
    %4797 = vmatpush.bf16.msra.mxu0 %v4641
    %4798 = vmatmul.bf16.gmra.mxu0 %v4193
    %v4799 = vpop.f32.mrf.mxu0
    %v4800 = vadd.f32 %v4787, %v4799
    %v4801 = vpop.f32.mrf.mxu0
    %4802 = vdwg.mxu0
    %4803 = vmatpush.bf16.msra.mxu0 %v4656
    %4804 = vmatpush.bf16.msra.mxu0 %v4655
    %4805 = vmatpush.bf16.msra.mxu0 %v4654
    %4806 = vmatpush.bf16.msra.mxu0 %v4653
    %4807 = vmatpush.bf16.msra.mxu0 %v4652
    %4808 = vmatpush.bf16.msra.mxu0 %v4651
    %4809 = vmatpush.bf16.msra.mxu0 %v4650
    %4810 = vmatpush.bf16.msra.mxu0 %v4649
    %4811 = vmatmul.bf16.gmra.mxu0 %v4194
    %v4812 = vpop.f32.mrf.mxu0
    %v4813 = vadd.f32 %v4800, %v4812
    %v4814 = vpop.f32.mrf.mxu0
    %4815 = vdwg.mxu0
    %4816 = vmatpush.bf16.msra.mxu0 %v4664
    %4817 = vmatpush.bf16.msra.mxu0 %v4663
    %4818 = vmatpush.bf16.msra.mxu0 %v4662
    %4819 = vmatpush.bf16.msra.mxu0 %v4661
    %4820 = vmatpush.bf16.msra.mxu0 %v4660
    %4821 = vmatpush.bf16.msra.mxu0 %v4659
    %4822 = vmatpush.bf16.msra.mxu0 %v4658
    %4823 = vmatpush.bf16.msra.mxu0 %v4657
    %4824 = vmatmul.bf16.gmra.mxu0 %v4195
    %v4825 = vpop.f32.mrf.mxu0
    %v4826 = vadd.f32 %v4813, %v4825
    %v4827 = vpop.f32.mrf.mxu0
    %4828 = vdwg.mxu0
    %4829 = vmatpush.bf16.msra.mxu0 %v4672
    %4830 = vmatpush.bf16.msra.mxu0 %v4671
    %4831 = vmatpush.bf16.msra.mxu0 %v4670
    %4832 = vmatpush.bf16.msra.mxu0 %v4669
    %4833 = vmatpush.bf16.msra.mxu0 %v4668
    %4834 = vmatpush.bf16.msra.mxu0 %v4667
    %4835 = vmatpush.bf16.msra.mxu0 %v4666
    %4836 = vmatpush.bf16.msra.mxu0 %v4665
    %4837 = vmatmul.bf16.gmra.mxu0 %v4196
    %v4838 = vpop.f32.mrf.mxu0
    %v4839 = vadd.f32 %v4826, %v4838
    %v4840 = vpop.f32.mrf.mxu0
    %4841 = vdwg.mxu0
    %4842 = vmatpush.bf16.msra.mxu0 %v4680
    %4843 = vmatpush.bf16.msra.mxu0 %v4679
    %4844 = vmatpush.bf16.msra.mxu0 %v4678
    %4845 = vmatpush.bf16.msra.mxu0 %v4677
    %4846 = vmatpush.bf16.msra.mxu0 %v4676
    %4847 = vmatpush.bf16.msra.mxu0 %v4675
    %4848 = vmatpush.bf16.msra.mxu0 %v4674
    %4849 = vmatpush.bf16.msra.mxu0 %v4673
    %4850 = vmatmul.bf16.gmra.mxu0 %v4197
    %v4851 = vpop.f32.mrf.mxu0
    %v4852 = vadd.f32 %v4839, %v4851
    %v4853 = vpop.f32.mrf.mxu0
    %4854 = vdwg.mxu0
    %4855 = vmatpush.bf16.msra.mxu0 %v4688
    %4856 = vmatpush.bf16.msra.mxu0 %v4687
    %4857 = vmatpush.bf16.msra.mxu0 %v4686
    %4858 = vmatpush.bf16.msra.mxu0 %v4685
    %4859 = vmatpush.bf16.msra.mxu0 %v4684
    %4860 = vmatpush.bf16.msra.mxu0 %v4683
    %4861 = vmatpush.bf16.msra.mxu0 %v4682
    %4862 = vmatpush.bf16.msra.mxu0 %v4681
    %4863 = vmatmul.bf16.gmra.mxu0 %v4198
    %v4864 = vpop.f32.mrf.mxu0
    %v4865 = vadd.f32 %v4852, %v4864
    %v4866 = vpop.f32.mrf.mxu0
    %4867 = vdwg.mxu0
    %4868 = vmatpush.bf16.msra.mxu0 %v4696
    %4869 = vmatpush.bf16.msra.mxu0 %v4695
    %4870 = vmatpush.bf16.msra.mxu0 %v4694
    %4871 = vmatpush.bf16.msra.mxu0 %v4693
    %4872 = vmatpush.bf16.msra.mxu0 %v4692
    %4873 = vmatpush.bf16.msra.mxu0 %v4691
    %4874 = vmatpush.bf16.msra.mxu0 %v4690
    %4875 = vmatpush.bf16.msra.mxu0 %v4689
    %4876 = vmatmul.bf16.gmra.mxu0 %v4199
    %v4877 = vpop.f32.mrf.mxu0
    %v4878 = vadd.f32 %v4865, %v4877
    %v4879 = vpop.f32.mrf.mxu0
    %4880 = vdwg.mxu0
    %4881 = vmatpush.bf16.msra.mxu0 %v4704
    %4882 = vmatpush.bf16.msra.mxu0 %v4703
    %4883 = vmatpush.bf16.msra.mxu0 %v4702
    %4884 = vmatpush.bf16.msra.mxu0 %v4701
    %4885 = vmatpush.bf16.msra.mxu0 %v4700
    %4886 = vmatpush.bf16.msra.mxu0 %v4699
    %4887 = vmatpush.bf16.msra.mxu0 %v4698
    %4888 = vmatpush.bf16.msra.mxu0 %v4697
    %4889 = vmatmul.bf16.gmra.mxu0 %v4200
    %v4890 = vpop.f32.mrf.mxu0
    %v4891 = vadd.f32 %v4878, %v4890
    %v4892 = vpop.f32.mrf.mxu0
    %4893 = vdwg.mxu0
    %v4894 = vrot.slane %v4891, 4
    %v4895 = vadd.f32 %v4891, %v4894
    %v4896 = vrot.slane %v4895, 2
    %v4897 = vadd.f32 %v4895, %v4896
    %v4898 = vrot.slane %v4897, 1
    %v4899 = vadd.f32 %v4897, %v4898
    %v4900 = vmul.f32 %v4899, 0.125
    %v4901 = vsub.f32 %v4891, %v4900
    %v4902 = vmul.f32 %v4901, %v4901
    %v4903 = vrot.slane %v4902, 4
    %v4904 = vadd.f32 %v4902, %v4903
    %v4905 = vrot.slane %v4904, 2
    %v4906 = vadd.f32 %v4904, %v4905
    %v4907 = vrot.slane %v4906, 1
    %v4908 = vadd.f32 %v4906, %v4907
    %v4909 = vmul.f32 %v4908, 0.125
    %v4910 = vmax.f32 %v4909, 0.0
    %v4911 = vadd.f32 %v4910, 1e-05
    %v4912 = vrsqrt.pop %v4911
    %v4913 = vmul.f32 %v4912, %v4911
    %v4914 = vmul.f32 %v4913, %v4912
    %v4915 = vmul.f32 0.5, %v4914
    %v4916 = vsub.f32 1.5, %v4915
    %v4917 = vmul.f32 %v4912, %v4916
    %vm4918 = vweird.f32 %v4911
    %vm4919 = vweird.f32 %v4912
    %vm4920 = vmor %vm4918, %vm4919
    %v4921 = vsel %vm4920, %v4912, %v4917
    %v4922 = vmul.f32 %v4901, %v4921
    %v4923 = vld [vmem:[%s11] sm:$0x1]
    %v4925 = vperm.slane %v4923, 0
    %v4927 = vmul.f32 %v4922, %v4925
    %v4928 = vld [vmem:[%s12] sm:$0x1]
    %v4930 = vperm.slane %v4928, 0
    %v4932 = vadd.f32 %v4927, %v4930
    %v4933 = vmul.f32 %v4932, 0.2
    %v4934 = vmax.f32 %v4932, %v4933
    %4935 = vst [vmem:[#allocation22] sm:$0xff] %v4934
    %4936 = vst [vmem:[#allocation5] sm:$0xff] 0.0
    %4937 = vst [vmem:[#allocation5 + $0x8] sm:$0xff] 0.0
    %4938 = vst [vmem:[#allocation5 + $0x10] sm:$0xff] 0.0
    %4939 = vst [vmem:[#allocation5 + $0x18] sm:$0xff] 0.0
    %v4940 = vld [vmem:[#allocation22] sm:$0x3]
    %4941 = vst [vmem:[#allocation5 + $0x5] sm:$0x3] %v4940
    %v4942 = vld [vmem:[#allocation22 + $0x2] sm:$0x3]
    %4943 = vst [vmem:[#allocation5 + $0x9] sm:$0x3] %v4942
    %v4944 = vld [vmem:[#allocation22 + $0x4] sm:$0x3]
    %4945 = vst [vmem:[#allocation5 + $0x15] sm:$0x3] %v4944
    %v4946 = vld [vmem:[#allocation22 + $0x6] sm:$0x3]
    %4947 = vst [vmem:[#allocation5 + $0x19] sm:$0x3] %v4946
    %v4948 = vld [vmem:[#allocation5] sm:$0x3]
    %4949 = vst [vmem:[#allocation6] sm:$0x3] %v4948
    %v4950 = vld [vmem:[#allocation5 + $0x4] sm:$0x3]
    %v4952 = vrot.slane %v4950, 6
    %4954 = vst [vmem:[#allocation6] sm:$0xc] %v4952
    %v4955 = vld [vmem:[#allocation5 + $0x10] sm:$0x3]
    %v4957 = vrot.slane %v4955, 4
    %4959 = vst [vmem:[#allocation6] sm:$0x30] %v4957
    %v4960 = vld [vmem:[#allocation5 + $0x14] sm:$0x3]
    %v4962 = vrot.slane %v4960, 2
    %4964 = vst [vmem:[#allocation6] sm:$0xc0] %v4962
    %v4965 = vld [vmem:[#allocation5 + $0x1] sm:$0x3]
    %4966 = vst [vmem:[#allocation6 + $0x8] sm:$0x3] %v4965
    %v4967 = vld [vmem:[#allocation5 + $0x5] sm:$0x3]
    %v4969 = vrot.slane %v4967, 6
    %4971 = vst [vmem:[#allocation6 + $0x8] sm:$0xc] %v4969
    %v4972 = vld [vmem:[#allocation5 + $0x11] sm:$0x3]
    %v4974 = vrot.slane %v4972, 4
    %4976 = vst [vmem:[#allocation6 + $0x8] sm:$0x30] %v4974
    %v4977 = vld [vmem:[#allocation5 + $0x15] sm:$0x3]
    %v4979 = vrot.slane %v4977, 2
    %4981 = vst [vmem:[#allocation6 + $0x8] sm:$0xc0] %v4979
    %v4982 = vld [vmem:[#allocation5 + $0x2] sm:$0x3]
    %4983 = vst [vmem:[#allocation6 + $0x10] sm:$0x3] %v4982
    %v4984 = vld [vmem:[#allocation5 + $0x6] sm:$0x3]
    %v4986 = vrot.slane %v4984, 6
    %4988 = vst [vmem:[#allocation6 + $0x10] sm:$0xc] %v4986
    %v4989 = vld [vmem:[#allocation5 + $0x12] sm:$0x3]
    %v4991 = vrot.slane %v4989, 4
    %4993 = vst [vmem:[#allocation6 + $0x10] sm:$0x30] %v4991
    %v4994 = vld [vmem:[#allocation5 + $0x16] sm:$0x3]
    %v4996 = vrot.slane %v4994, 2
    %4998 = vst [vmem:[#allocation6 + $0x10] sm:$0xc0] %v4996
    %v4999 = vld [vmem:[#allocation5 + $0x4] sm:$0x3]
    %5000 = vst [vmem:[#allocation6 + $0x18] sm:$0x3] %v4999
    %v5001 = vld [vmem:[#allocation5 + $0x8] sm:$0x3]
    %v5003 = vrot.slane %v5001, 6
    %5005 = vst [vmem:[#allocation6 + $0x18] sm:$0xc] %v5003
    %v5006 = vld [vmem:[#allocation5 + $0x14] sm:$0x3]
    %v5008 = vrot.slane %v5006, 4
    %5010 = vst [vmem:[#allocation6 + $0x18] sm:$0x30] %v5008
    %v5011 = vld [vmem:[#allocation5 + $0x18] sm:$0x3]
    %v5013 = vrot.slane %v5011, 2
    %5015 = vst [vmem:[#allocation6 + $0x18] sm:$0xc0] %v5013
    %v5016 = vld [vmem:[#allocation5 + $0x5] sm:$0x3]
    %5017 = vst [vmem:[#allocation6 + $0x20] sm:$0x3] %v5016
    %v5018 = vld [vmem:[#allocation5 + $0x9] sm:$0x3]
    %v5020 = vrot.slane %v5018, 6
    %5022 = vst [vmem:[#allocation6 + $0x20] sm:$0xc] %v5020
    %v5023 = vld [vmem:[#allocation5 + $0x15] sm:$0x3]
    %v5025 = vrot.slane %v5023, 4
    %5027 = vst [vmem:[#allocation6 + $0x20] sm:$0x30] %v5025
    %v5028 = vld [vmem:[#allocation5 + $0x19] sm:$0x3]
    %v5030 = vrot.slane %v5028, 2
    %5032 = vst [vmem:[#allocation6 + $0x20] sm:$0xc0] %v5030
    %v5033 = vld [vmem:[#allocation5 + $0x6] sm:$0x3]
    %5034 = vst [vmem:[#allocation6 + $0x28] sm:$0x3] %v5033
    %v5035 = vld [vmem:[#allocation5 + $0xa] sm:$0x3]
    %v5037 = vrot.slane %v5035, 6
    %5039 = vst [vmem:[#allocation6 + $0x28] sm:$0xc] %v5037
    %v5040 = vld [vmem:[#allocation5 + $0x16] sm:$0x3]
    %v5042 = vrot.slane %v5040, 4
    %5044 = vst [vmem:[#allocation6 + $0x28] sm:$0x30] %v5042
    %v5045 = vld [vmem:[#allocation5 + $0x1a] sm:$0x3]
    %v5047 = vrot.slane %v5045, 2
    %5049 = vst [vmem:[#allocation6 + $0x28] sm:$0xc0] %v5047
    %v5050 = vld [vmem:[#allocation5 + $0x8] sm:$0x3]
    %5051 = vst [vmem:[#allocation6 + $0x30] sm:$0x3] %v5050
    %v5052 = vld [vmem:[#allocation5 + $0xc] sm:$0x3]
    %v5054 = vrot.slane %v5052, 6
    %5056 = vst [vmem:[#allocation6 + $0x30] sm:$0xc] %v5054
    %v5057 = vld [vmem:[#allocation5 + $0x18] sm:$0x3]
    %v5059 = vrot.slane %v5057, 4
    %5061 = vst [vmem:[#allocation6 + $0x30] sm:$0x30] %v5059
    %v5062 = vld [vmem:[#allocation5 + $0x1c] sm:$0x3]
    %v5064 = vrot.slane %v5062, 2
    %5066 = vst [vmem:[#allocation6 + $0x30] sm:$0xc0] %v5064
    %v5067 = vld [vmem:[#allocation5 + $0x9] sm:$0x3]
    %5068 = vst [vmem:[#allocation6 + $0x38] sm:$0x3] %v5067
    %v5069 = vld [vmem:[#allocation5 + $0xd] sm:$0x3]
    %v5071 = vrot.slane %v5069, 6
    %5073 = vst [vmem:[#allocation6 + $0x38] sm:$0xc] %v5071
    %v5074 = vld [vmem:[#allocation5 + $0x19] sm:$0x3]
    %v5076 = vrot.slane %v5074, 4
    %5078 = vst [vmem:[#allocation6 + $0x38] sm:$0x30] %v5076
    %v5079 = vld [vmem:[#allocation5 + $0x1d] sm:$0x3]
    %v5081 = vrot.slane %v5079, 2
    %5083 = vst [vmem:[#allocation6 + $0x38] sm:$0xc0] %v5081
    %v5084 = vld [vmem:[#allocation5 + $0xa] sm:$0x3]
    %5085 = vst [vmem:[#allocation6 + $0x40] sm:$0x3] %v5084
    %v5086 = vld [vmem:[#allocation5 + $0xe] sm:$0x3]
    %v5088 = vrot.slane %v5086, 6
    %5090 = vst [vmem:[#allocation6 + $0x40] sm:$0xc] %v5088
    %v5091 = vld [vmem:[#allocation5 + $0x1a] sm:$0x3]
    %v5093 = vrot.slane %v5091, 4
    %5095 = vst [vmem:[#allocation6 + $0x40] sm:$0x30] %v5093
    %v5096 = vld [vmem:[#allocation5 + $0x1e] sm:$0x3]
    %v5098 = vrot.slane %v5096, 2
    %5100 = vst [vmem:[#allocation6 + $0x40] sm:$0xc0] %v5098
    %v5101 = vld [vmem:[#allocation6] sm:$0xff]
    %v5102 = vld [vmem:[#allocation6 + $0x8] sm:$0xff]
    %v5103 = vld [vmem:[#allocation6 + $0x10] sm:$0xff]
    %v5104 = vld [vmem:[#allocation6 + $0x18] sm:$0xff]
    %v5105 = vld [vmem:[#allocation6 + $0x20] sm:$0xff]
    %v5106 = vld [vmem:[#allocation6 + $0x28] sm:$0xff]
    %v5107 = vld [vmem:[#allocation6 + $0x30] sm:$0xff]
    %v5108 = vld [vmem:[#allocation6 + $0x38] sm:$0xff]
    %v5109 = vld [vmem:[#allocation6 + $0x40] sm:$0xff]
    %v5110 = vpack.c.bf16 %v5101, %v5101
    %v5111 = vpack.c.bf16 %v5102, %v5102
    %v5112 = vpack.c.bf16 %v5103, %v5103
    %v5113 = vpack.c.bf16 %v5104, %v5104
    %v5114 = vpack.c.bf16 %v5105, %v5105
    %v5115 = vpack.c.bf16 %v5106, %v5106
    %v5116 = vpack.c.bf16 %v5107, %v5107
    %v5117 = vpack.c.bf16 %v5108, %v5108
    %v5118 = vpack.c.bf16 %v5109, %v5109
    %v5119 = vld [vmem:[#allocation16] sm:$0xf]
    %v5120 = vld [vmem:[#allocation16 + $0x4] sm:$0xf]
    %v5121 = vld [vmem:[#allocation16 + $0x8] sm:$0xf]
    %v5122 = vld [vmem:[#allocation16 + $0xc] sm:$0xf]
    %v5123 = vld [vmem:[#allocation16 + $0x10] sm:$0xf]
    %v5124 = vld [vmem:[#allocation16 + $0x14] sm:$0xf]
    %v5125 = vld [vmem:[#allocation16 + $0x18] sm:$0xf]
    %v5126 = vld [vmem:[#allocation16 + $0x1c] sm:$0xf]
    %v5127 = vld [vmem:[#allocation16 + $0x20] sm:$0xf]
    %v5128 = vld [vmem:[#allocation16 + $0x24] sm:$0xf]
    %v5129 = vld [vmem:[#allocation16 + $0x28] sm:$0xf]
    %v5130 = vld [vmem:[#allocation16 + $0x2c] sm:$0xf]
    %v5131 = vld [vmem:[#allocation16 + $0x30] sm:$0xf]
    %v5132 = vld [vmem:[#allocation16 + $0x34] sm:$0xf]
    %v5133 = vld [vmem:[#allocation16 + $0x38] sm:$0xf]
    %v5134 = vld [vmem:[#allocation16 + $0x3c] sm:$0xf]
    %v5135 = vld [vmem:[#allocation16 + $0x40] sm:$0xf]
    %v5136 = vld [vmem:[#allocation16 + $0x44] sm:$0xf]
    %v5137 = vld [vmem:[#allocation16 + $0x48] sm:$0xf]
    %v5138 = vld [vmem:[#allocation16 + $0x4c] sm:$0xf]
    %v5139 = vld [vmem:[#allocation16 + $0x50] sm:$0xf]
    %v5140 = vld [vmem:[#allocation16 + $0x54] sm:$0xf]
    %v5141 = vld [vmem:[#allocation16 + $0x58] sm:$0xf]
    %v5142 = vld [vmem:[#allocation16 + $0x5c] sm:$0xf]
    %v5143 = vld [vmem:[#allocation16 + $0x60] sm:$0xf]
    %v5144 = vld [vmem:[#allocation16 + $0x64] sm:$0xf]
    %v5145 = vld [vmem:[#allocation16 + $0x68] sm:$0xf]
    %v5146 = vld [vmem:[#allocation16 + $0x6c] sm:$0xf]
    %v5147 = vld [vmem:[#allocation16 + $0x70] sm:$0xf]
    %v5148 = vld [vmem:[#allocation16 + $0x74] sm:$0xf]
    %v5149 = vld [vmem:[#allocation16 + $0x78] sm:$0xf]
    %v5150 = vld [vmem:[#allocation16 + $0x7c] sm:$0xf]
    %v5151 = vld [vmem:[#allocation16 + $0x80] sm:$0xf]
    %v5152 = vld [vmem:[#allocation16 + $0x84] sm:$0xf]
    %v5153 = vld [vmem:[#allocation16 + $0x88] sm:$0xf]
    %v5154 = vld [vmem:[#allocation16 + $0x8c] sm:$0xf]
    %v5155 = vld [vmem:[#allocation16 + $0x90] sm:$0xf]
    %v5156 = vld [vmem:[#allocation16 + $0x94] sm:$0xf]
    %v5157 = vld [vmem:[#allocation16 + $0x98] sm:$0xf]
    %v5158 = vld [vmem:[#allocation16 + $0x9c] sm:$0xf]
    %v5159 = vld [vmem:[#allocation16 + $0xa0] sm:$0xf]
    %v5160 = vld [vmem:[#allocation16 + $0xa4] sm:$0xf]
    %v5161 = vld [vmem:[#allocation16 + $0xa8] sm:$0xf]
    %v5162 = vld [vmem:[#allocation16 + $0xac] sm:$0xf]
    %v5163 = vld [vmem:[#allocation16 + $0xb0] sm:$0xf]
    %v5164 = vld [vmem:[#allocation16 + $0xb4] sm:$0xf]
    %v5165 = vld [vmem:[#allocation16 + $0xb8] sm:$0xf]
    %v5166 = vld [vmem:[#allocation16 + $0xbc] sm:$0xf]
    %v5167 = vld [vmem:[#allocation16 + $0xc0] sm:$0xf]
    %v5168 = vld [vmem:[#allocation16 + $0xc4] sm:$0xf]
    %v5169 = vld [vmem:[#allocation16 + $0xc8] sm:$0xf]
    %v5170 = vld [vmem:[#allocation16 + $0xcc] sm:$0xf]
    %v5171 = vld [vmem:[#allocation16 + $0xd0] sm:$0xf]
    %v5172 = vld [vmem:[#allocation16 + $0xd4] sm:$0xf]
    %v5173 = vld [vmem:[#allocation16 + $0xd8] sm:$0xf]
    %v5174 = vld [vmem:[#allocation16 + $0xdc] sm:$0xf]
    %v5175 = vld [vmem:[#allocation16 + $0xe0] sm:$0xf]
    %v5176 = vld [vmem:[#allocation16 + $0xe4] sm:$0xf]
    %v5177 = vld [vmem:[#allocation16 + $0xe8] sm:$0xf]
    %v5178 = vld [vmem:[#allocation16 + $0xec] sm:$0xf]
    %v5179 = vld [vmem:[#allocation16 + $0xf0] sm:$0xf]
    %v5180 = vld [vmem:[#allocation16 + $0xf4] sm:$0xf]
    %v5181 = vld [vmem:[#allocation16 + $0xf8] sm:$0xf]
    %v5182 = vld [vmem:[#allocation16 + $0xfc] sm:$0xf]
    %v5183 = vld [vmem:[#allocation16 + $0x100] sm:$0xf]
    %v5184 = vld [vmem:[#allocation16 + $0x104] sm:$0xf]
    %v5185 = vld [vmem:[#allocation16 + $0x108] sm:$0xf]
    %v5186 = vld [vmem:[#allocation16 + $0x10c] sm:$0xf]
    %v5187 = vld [vmem:[#allocation16 + $0x110] sm:$0xf]
    %v5188 = vld [vmem:[#allocation16 + $0x114] sm:$0xf]
    %v5189 = vld [vmem:[#allocation16 + $0x118] sm:$0xf]
    %v5190 = vld [vmem:[#allocation16 + $0x11c] sm:$0xf]
    %v5191 = vld [vmem:[#allocation16 + $0x120] sm:$0xf]
    %v5192 = vld [vmem:[#allocation16 + $0x124] sm:$0xf]
    %v5193 = vld [vmem:[#allocation16 + $0x128] sm:$0xf]
    %v5194 = vld [vmem:[#allocation16 + $0x12c] sm:$0xf]
    %v5195 = vld [vmem:[#allocation16 + $0x130] sm:$0xf]
    %v5196 = vld [vmem:[#allocation16 + $0x134] sm:$0xf]
    %v5197 = vld [vmem:[#allocation16 + $0x138] sm:$0xf]
    %v5198 = vld [vmem:[#allocation16 + $0x13c] sm:$0xf]
    %v5199 = vld [vmem:[#allocation16 + $0x140] sm:$0xf]
    %v5200 = vld [vmem:[#allocation16 + $0x144] sm:$0xf]
    %v5201 = vld [vmem:[#allocation16 + $0x148] sm:$0xf]
    %v5202 = vld [vmem:[#allocation16 + $0x14c] sm:$0xf]
    %v5203 = vld [vmem:[#allocation16 + $0x150] sm:$0xf]
    %v5204 = vld [vmem:[#allocation16 + $0x154] sm:$0xf]
    %v5205 = vld [vmem:[#allocation16 + $0x158] sm:$0xf]
    %v5206 = vld [vmem:[#allocation16 + $0x15c] sm:$0xf]
    %v5207 = vld [vmem:[#allocation16 + $0x160] sm:$0xf]
    %v5208 = vld [vmem:[#allocation16 + $0x164] sm:$0xf]
    %v5209 = vld [vmem:[#allocation16 + $0x168] sm:$0xf]
    %v5210 = vld [vmem:[#allocation16 + $0x16c] sm:$0xf]
    %v5211 = vld [vmem:[#allocation16 + $0x170] sm:$0xf]
    %v5212 = vld [vmem:[#allocation16 + $0x174] sm:$0xf]
    %v5213 = vld [vmem:[#allocation16 + $0x178] sm:$0xf]
    %v5214 = vld [vmem:[#allocation16 + $0x17c] sm:$0xf]
    %v5215 = vld [vmem:[#allocation16 + $0x180] sm:$0xf]
    %v5216 = vld [vmem:[#allocation16 + $0x184] sm:$0xf]
    %v5217 = vld [vmem:[#allocation16 + $0x188] sm:$0xf]
    %v5218 = vld [vmem:[#allocation16 + $0x18c] sm:$0xf]
    %v5219 = vld [vmem:[#allocation16 + $0x190] sm:$0xf]
    %v5220 = vld [vmem:[#allocation16 + $0x194] sm:$0xf]
    %v5221 = vld [vmem:[#allocation16 + $0x198] sm:$0xf]
    %v5222 = vld [vmem:[#allocation16 + $0x19c] sm:$0xf]
    %v5223 = vld [vmem:[#allocation16 + $0x1a0] sm:$0xf]
    %v5224 = vld [vmem:[#allocation16 + $0x1a4] sm:$0xf]
    %v5225 = vld [vmem:[#allocation16 + $0x1a8] sm:$0xf]
    %v5226 = vld [vmem:[#allocation16 + $0x1ac] sm:$0xf]
    %v5227 = vld [vmem:[#allocation16 + $0x1b0] sm:$0xf]
    %v5228 = vld [vmem:[#allocation16 + $0x1b4] sm:$0xf]
    %v5229 = vld [vmem:[#allocation16 + $0x1b8] sm:$0xf]
    %v5230 = vld [vmem:[#allocation16 + $0x1bc] sm:$0xf]
    %v5231 = vld [vmem:[#allocation16 + $0x1c0] sm:$0xf]
    %v5232 = vld [vmem:[#allocation16 + $0x1c4] sm:$0xf]
    %v5233 = vld [vmem:[#allocation16 + $0x1c8] sm:$0xf]
    %v5234 = vld [vmem:[#allocation16 + $0x1cc] sm:$0xf]
    %v5235 = vld [vmem:[#allocation16 + $0x1d0] sm:$0xf]
    %v5236 = vld [vmem:[#allocation16 + $0x1d4] sm:$0xf]
    %v5237 = vld [vmem:[#allocation16 + $0x1d8] sm:$0xf]
    %v5238 = vld [vmem:[#allocation16 + $0x1dc] sm:$0xf]
    %v5239 = vld [vmem:[#allocation16 + $0x1e0] sm:$0xf]
    %v5240 = vld [vmem:[#allocation16 + $0x1e4] sm:$0xf]
    %v5241 = vld [vmem:[#allocation16 + $0x1e8] sm:$0xf]
    %v5242 = vld [vmem:[#allocation16 + $0x1ec] sm:$0xf]
    %v5243 = vld [vmem:[#allocation16 + $0x1f0] sm:$0xf]
    %v5244 = vld [vmem:[#allocation16 + $0x1f4] sm:$0xf]
    %v5245 = vld [vmem:[#allocation16 + $0x1f8] sm:$0xf]
    %v5246 = vld [vmem:[#allocation16 + $0x1fc] sm:$0xf]
    %v5247 = vld [vmem:[#allocation16 + $0x200] sm:$0xf]
    %v5248 = vld [vmem:[#allocation16 + $0x204] sm:$0xf]
    %v5249 = vld [vmem:[#allocation16 + $0x208] sm:$0xf]
    %v5250 = vld [vmem:[#allocation16 + $0x20c] sm:$0xf]
    %v5251 = vld [vmem:[#allocation16 + $0x210] sm:$0xf]
    %v5252 = vld [vmem:[#allocation16 + $0x214] sm:$0xf]
    %v5253 = vld [vmem:[#allocation16 + $0x218] sm:$0xf]
    %v5254 = vld [vmem:[#allocation16 + $0x21c] sm:$0xf]
    %v5255 = vld [vmem:[#allocation16 + $0x220] sm:$0xf]
    %v5256 = vld [vmem:[#allocation16 + $0x224] sm:$0xf]
    %v5257 = vld [vmem:[#allocation16 + $0x228] sm:$0xf]
    %v5258 = vld [vmem:[#allocation16 + $0x22c] sm:$0xf]
    %v5259 = vld [vmem:[#allocation16 + $0x230] sm:$0xf]
    %v5260 = vld [vmem:[#allocation16 + $0x234] sm:$0xf]
    %v5261 = vld [vmem:[#allocation16 + $0x238] sm:$0xf]
    %v5262 = vld [vmem:[#allocation16 + $0x23c] sm:$0xf]
    %v5263 = vld [vmem:[%s13] sm:$0x1]
    %v5265 = vperm.slane %v5263, 0
    %v5411 = vunpack.c.l.b16 %v5119
    %v5412 = vunpack.c.l.b16 %v5120
    %v5413 = vunpack.c.l.b16 %v5121
    %v5414 = vunpack.c.l.b16 %v5122
    %v5415 = vunpack.c.l.b16 %v5123
    %v5416 = vunpack.c.l.b16 %v5124
    %v5417 = vunpack.c.l.b16 %v5125
    %v5418 = vunpack.c.l.b16 %v5126
    %v5419 = vunpack.c.l.b16 %v5127
    %v5420 = vunpack.c.l.b16 %v5128
    %v5421 = vunpack.c.l.b16 %v5129
    %v5422 = vunpack.c.l.b16 %v5130
    %v5423 = vunpack.c.l.b16 %v5131
    %v5424 = vunpack.c.l.b16 %v5132
    %v5425 = vunpack.c.l.b16 %v5133
    %v5426 = vunpack.c.l.b16 %v5134
    %v5427 = vunpack.c.l.b16 %v5135
    %v5428 = vunpack.c.l.b16 %v5136
    %v5429 = vunpack.c.l.b16 %v5137
    %v5430 = vunpack.c.l.b16 %v5138
    %v5431 = vunpack.c.l.b16 %v5139
    %v5432 = vunpack.c.l.b16 %v5140
    %v5433 = vunpack.c.l.b16 %v5141
    %v5434 = vunpack.c.l.b16 %v5142
    %v5435 = vunpack.c.l.b16 %v5143
    %v5436 = vunpack.c.l.b16 %v5144
    %v5437 = vunpack.c.l.b16 %v5145
    %v5438 = vunpack.c.l.b16 %v5146
    %v5439 = vunpack.c.l.b16 %v5147
    %v5440 = vunpack.c.l.b16 %v5148
    %v5441 = vunpack.c.l.b16 %v5149
    %v5442 = vunpack.c.l.b16 %v5150
    %v5443 = vunpack.c.l.b16 %v5151
    %v5444 = vunpack.c.l.b16 %v5152
    %v5445 = vunpack.c.l.b16 %v5153
    %v5446 = vunpack.c.l.b16 %v5154
    %v5447 = vunpack.c.l.b16 %v5155
    %v5448 = vunpack.c.l.b16 %v5156
    %v5449 = vunpack.c.l.b16 %v5157
    %v5450 = vunpack.c.l.b16 %v5158
    %v5451 = vunpack.c.l.b16 %v5159
    %v5452 = vunpack.c.l.b16 %v5160
    %v5453 = vunpack.c.l.b16 %v5161
    %v5454 = vunpack.c.l.b16 %v5162
    %v5455 = vunpack.c.l.b16 %v5163
    %v5456 = vunpack.c.l.b16 %v5164
    %v5457 = vunpack.c.l.b16 %v5165
    %v5458 = vunpack.c.l.b16 %v5166
    %v5459 = vunpack.c.l.b16 %v5167
    %v5460 = vunpack.c.l.b16 %v5168
    %v5461 = vunpack.c.l.b16 %v5169
    %v5462 = vunpack.c.l.b16 %v5170
    %v5463 = vunpack.c.l.b16 %v5171
    %v5464 = vunpack.c.l.b16 %v5172
    %v5465 = vunpack.c.l.b16 %v5173
    %v5466 = vunpack.c.l.b16 %v5174
    %v5467 = vunpack.c.l.b16 %v5175
    %v5468 = vunpack.c.l.b16 %v5176
    %v5469 = vunpack.c.l.b16 %v5177
    %v5470 = vunpack.c.l.b16 %v5178
    %v5471 = vunpack.c.l.b16 %v5179
    %v5472 = vunpack.c.l.b16 %v5180
    %v5473 = vunpack.c.l.b16 %v5181
    %v5474 = vunpack.c.l.b16 %v5182
    %v5475 = vunpack.c.l.b16 %v5183
    %v5476 = vunpack.c.l.b16 %v5184
    %v5477 = vunpack.c.l.b16 %v5185
    %v5478 = vunpack.c.l.b16 %v5186
    %v5479 = vunpack.c.l.b16 %v5187
    %v5480 = vunpack.c.l.b16 %v5188
    %v5481 = vunpack.c.l.b16 %v5189
    %v5482 = vunpack.c.l.b16 %v5190
    %v5483 = vunpack.c.l.b16 %v5191
    %v5484 = vunpack.c.l.b16 %v5192
    %v5485 = vunpack.c.l.b16 %v5193
    %v5486 = vunpack.c.l.b16 %v5194
    %v5487 = vunpack.c.l.b16 %v5195
    %v5488 = vunpack.c.l.b16 %v5196
    %v5489 = vunpack.c.l.b16 %v5197
    %v5490 = vunpack.c.l.b16 %v5198
    %v5491 = vunpack.c.l.b16 %v5199
    %v5492 = vunpack.c.l.b16 %v5200
    %v5493 = vunpack.c.l.b16 %v5201
    %v5494 = vunpack.c.l.b16 %v5202
    %v5495 = vunpack.c.l.b16 %v5203
    %v5496 = vunpack.c.l.b16 %v5204
    %v5497 = vunpack.c.l.b16 %v5205
    %v5498 = vunpack.c.l.b16 %v5206
    %v5499 = vunpack.c.l.b16 %v5207
    %v5500 = vunpack.c.l.b16 %v5208
    %v5501 = vunpack.c.l.b16 %v5209
    %v5502 = vunpack.c.l.b16 %v5210
    %v5503 = vunpack.c.l.b16 %v5211
    %v5504 = vunpack.c.l.b16 %v5212
    %v5505 = vunpack.c.l.b16 %v5213
    %v5506 = vunpack.c.l.b16 %v5214
    %v5507 = vunpack.c.l.b16 %v5215
    %v5508 = vunpack.c.l.b16 %v5216
    %v5509 = vunpack.c.l.b16 %v5217
    %v5510 = vunpack.c.l.b16 %v5218
    %v5511 = vunpack.c.l.b16 %v5219
    %v5512 = vunpack.c.l.b16 %v5220
    %v5513 = vunpack.c.l.b16 %v5221
    %v5514 = vunpack.c.l.b16 %v5222
    %v5515 = vunpack.c.l.b16 %v5223
    %v5516 = vunpack.c.l.b16 %v5224
    %v5517 = vunpack.c.l.b16 %v5225
    %v5518 = vunpack.c.l.b16 %v5226
    %v5519 = vunpack.c.l.b16 %v5227
    %v5520 = vunpack.c.l.b16 %v5228
    %v5521 = vunpack.c.l.b16 %v5229
    %v5522 = vunpack.c.l.b16 %v5230
    %v5523 = vunpack.c.l.b16 %v5231
    %v5524 = vunpack.c.l.b16 %v5232
    %v5525 = vunpack.c.l.b16 %v5233
    %v5526 = vunpack.c.l.b16 %v5234
    %v5527 = vunpack.c.l.b16 %v5235
    %v5528 = vunpack.c.l.b16 %v5236
    %v5529 = vunpack.c.l.b16 %v5237
    %v5530 = vunpack.c.l.b16 %v5238
    %v5531 = vunpack.c.l.b16 %v5239
    %v5532 = vunpack.c.l.b16 %v5240
    %v5533 = vunpack.c.l.b16 %v5241
    %v5534 = vunpack.c.l.b16 %v5242
    %v5535 = vunpack.c.l.b16 %v5243
    %v5536 = vunpack.c.l.b16 %v5244
    %v5537 = vunpack.c.l.b16 %v5245
    %v5538 = vunpack.c.l.b16 %v5246
    %v5539 = vunpack.c.l.b16 %v5247
    %v5540 = vunpack.c.l.b16 %v5248
    %v5541 = vunpack.c.l.b16 %v5249
    %v5542 = vunpack.c.l.b16 %v5250
    %v5543 = vunpack.c.l.b16 %v5251
    %v5544 = vunpack.c.l.b16 %v5252
    %v5545 = vunpack.c.l.b16 %v5253
    %v5546 = vunpack.c.l.b16 %v5254
    %v5547 = vunpack.c.l.b16 %v5255
    %v5548 = vunpack.c.l.b16 %v5256
    %v5549 = vunpack.c.l.b16 %v5257
    %v5550 = vunpack.c.l.b16 %v5258
    %v5551 = vunpack.c.l.b16 %v5259
    %v5552 = vunpack.c.l.b16 %v5260
    %v5553 = vunpack.c.l.b16 %v5261
    %v5554 = vunpack.c.l.b16 %v5262
    %v5555 = vpack.c.b16 %v5412, %v5411
    %v5556 = vpack.c.b16 %v5414, %v5413
    %v5557 = vpack.c.b16 %v5416, %v5415
    %v5558 = vpack.c.b16 %v5418, %v5417
    %v5559 = vpack.c.b16 %v5420, %v5419
    %v5560 = vpack.c.b16 %v5422, %v5421
    %v5561 = vpack.c.b16 %v5424, %v5423
    %v5562 = vpack.c.b16 %v5426, %v5425
    %v5563 = vpack.c.b16 %v5428, %v5427
    %v5564 = vpack.c.b16 %v5430, %v5429
    %v5565 = vpack.c.b16 %v5432, %v5431
    %v5566 = vpack.c.b16 %v5434, %v5433
    %v5567 = vpack.c.b16 %v5436, %v5435
    %v5568 = vpack.c.b16 %v5438, %v5437
    %v5569 = vpack.c.b16 %v5440, %v5439
    %v5570 = vpack.c.b16 %v5442, %v5441
    %v5571 = vpack.c.b16 %v5444, %v5443
    %v5572 = vpack.c.b16 %v5446, %v5445
    %v5573 = vpack.c.b16 %v5448, %v5447
    %v5574 = vpack.c.b16 %v5450, %v5449
    %v5575 = vpack.c.b16 %v5452, %v5451
    %v5576 = vpack.c.b16 %v5454, %v5453
    %v5577 = vpack.c.b16 %v5456, %v5455
    %v5578 = vpack.c.b16 %v5458, %v5457
    %v5579 = vpack.c.b16 %v5460, %v5459
    %v5580 = vpack.c.b16 %v5462, %v5461
    %v5581 = vpack.c.b16 %v5464, %v5463
    %v5582 = vpack.c.b16 %v5466, %v5465
    %v5583 = vpack.c.b16 %v5468, %v5467
    %v5584 = vpack.c.b16 %v5470, %v5469
    %v5585 = vpack.c.b16 %v5472, %v5471
    %v5586 = vpack.c.b16 %v5474, %v5473
    %v5587 = vpack.c.b16 %v5476, %v5475
    %v5588 = vpack.c.b16 %v5478, %v5477
    %v5589 = vpack.c.b16 %v5480, %v5479
    %v5590 = vpack.c.b16 %v5482, %v5481
    %v5591 = vpack.c.b16 %v5484, %v5483
    %v5592 = vpack.c.b16 %v5486, %v5485
    %v5593 = vpack.c.b16 %v5488, %v5487
    %v5594 = vpack.c.b16 %v5490, %v5489
    %v5595 = vpack.c.b16 %v5492, %v5491
    %v5596 = vpack.c.b16 %v5494, %v5493
    %v5597 = vpack.c.b16 %v5496, %v5495
    %v5598 = vpack.c.b16 %v5498, %v5497
    %v5599 = vpack.c.b16 %v5500, %v5499
    %v5600 = vpack.c.b16 %v5502, %v5501
    %v5601 = vpack.c.b16 %v5504, %v5503
    %v5602 = vpack.c.b16 %v5506, %v5505
    %v5603 = vpack.c.b16 %v5508, %v5507
    %v5604 = vpack.c.b16 %v5510, %v5509
    %v5605 = vpack.c.b16 %v5512, %v5511
    %v5606 = vpack.c.b16 %v5514, %v5513
    %v5607 = vpack.c.b16 %v5516, %v5515
    %v5608 = vpack.c.b16 %v5518, %v5517
    %v5609 = vpack.c.b16 %v5520, %v5519
    %v5610 = vpack.c.b16 %v5522, %v5521
    %v5611 = vpack.c.b16 %v5524, %v5523
    %v5612 = vpack.c.b16 %v5526, %v5525
    %v5613 = vpack.c.b16 %v5528, %v5527
    %v5614 = vpack.c.b16 %v5530, %v5529
    %v5615 = vpack.c.b16 %v5532, %v5531
    %v5616 = vpack.c.b16 %v5534, %v5533
    %v5617 = vpack.c.b16 %v5536, %v5535
    %v5618 = vpack.c.b16 %v5538, %v5537
    %v5619 = vpack.c.b16 %v5540, %v5539
    %v5620 = vpack.c.b16 %v5542, %v5541
    %v5621 = vpack.c.b16 %v5544, %v5543
    %v5622 = vpack.c.b16 %v5546, %v5545
    %v5623 = vpack.c.b16 %v5548, %v5547
    %v5624 = vpack.c.b16 %v5550, %v5549
    %v5625 = vpack.c.b16 %v5552, %v5551
    %v5626 = vpack.c.b16 %v5554, %v5553
    %5699 = vmatpush.bf16.msra.mxu0 %v5562
    %5700 = vmatpush.bf16.msra.mxu0 %v5561
    %5701 = vmatpush.bf16.msra.mxu0 %v5560
    %5702 = vmatpush.bf16.msra.mxu0 %v5559
    %5703 = vmatpush.bf16.msra.mxu0 %v5558
    %5704 = vmatpush.bf16.msra.mxu0 %v5557
    %5705 = vmatpush.bf16.msra.mxu0 %v5556
    %5706 = vmatpush.bf16.msra.mxu0 %v5555
    %5707 = vmatmul.bf16.gmra.mxu0 %v5110
    %v5708 = vpop.f32.mrf.mxu0
    %v5709 = vadd.f32 %v5265, %v5708
    %v5710 = vpop.f32.mrf.mxu0
    %5711 = vdwg.mxu0
    %5712 = vmatpush.bf16.msra.mxu0 %v5570
    %5713 = vmatpush.bf16.msra.mxu0 %v5569
    %5714 = vmatpush.bf16.msra.mxu0 %v5568
    %5715 = vmatpush.bf16.msra.mxu0 %v5567
    %5716 = vmatpush.bf16.msra.mxu0 %v5566
    %5717 = vmatpush.bf16.msra.mxu0 %v5565
    %5718 = vmatpush.bf16.msra.mxu0 %v5564
    %5719 = vmatpush.bf16.msra.mxu0 %v5563
    %5720 = vmatmul.bf16.gmra.mxu0 %v5111
    %v5721 = vpop.f32.mrf.mxu0
    %v5722 = vadd.f32 %v5709, %v5721
    %v5723 = vpop.f32.mrf.mxu0
    %5724 = vdwg.mxu0
    %5725 = vmatpush.bf16.msra.mxu0 %v5578
    %5726 = vmatpush.bf16.msra.mxu0 %v5577
    %5727 = vmatpush.bf16.msra.mxu0 %v5576
    %5728 = vmatpush.bf16.msra.mxu0 %v5575
    %5729 = vmatpush.bf16.msra.mxu0 %v5574
    %5730 = vmatpush.bf16.msra.mxu0 %v5573
    %5731 = vmatpush.bf16.msra.mxu0 %v5572
    %5732 = vmatpush.bf16.msra.mxu0 %v5571
    %5733 = vmatmul.bf16.gmra.mxu0 %v5112
    %v5734 = vpop.f32.mrf.mxu0
    %v5735 = vadd.f32 %v5722, %v5734
    %v5736 = vpop.f32.mrf.mxu0
    %5737 = vdwg.mxu0
    %5738 = vmatpush.bf16.msra.mxu0 %v5586
    %5739 = vmatpush.bf16.msra.mxu0 %v5585
    %5740 = vmatpush.bf16.msra.mxu0 %v5584
    %5741 = vmatpush.bf16.msra.mxu0 %v5583
    %5742 = vmatpush.bf16.msra.mxu0 %v5582
    %5743 = vmatpush.bf16.msra.mxu0 %v5581
    %5744 = vmatpush.bf16.msra.mxu0 %v5580
    %5745 = vmatpush.bf16.msra.mxu0 %v5579
    %5746 = vmatmul.bf16.gmra.mxu0 %v5113
    %v5747 = vpop.f32.mrf.mxu0
    %v5748 = vadd.f32 %v5735, %v5747
    %v5749 = vpop.f32.mrf.mxu0
    %5750 = vdwg.mxu0
    %5751 = vmatpush.bf16.msra.mxu0 %v5594
    %5752 = vmatpush.bf16.msra.mxu0 %v5593
    %5753 = vmatpush.bf16.msra.mxu0 %v5592
    %5754 = vmatpush.bf16.msra.mxu0 %v5591
    %5755 = vmatpush.bf16.msra.mxu0 %v5590
    %5756 = vmatpush.bf16.msra.mxu0 %v5589
    %5757 = vmatpush.bf16.msra.mxu0 %v5588
    %5758 = vmatpush.bf16.msra.mxu0 %v5587
    %5759 = vmatmul.bf16.gmra.mxu0 %v5114
    %v5760 = vpop.f32.mrf.mxu0
    %v5761 = vadd.f32 %v5748, %v5760
    %v5762 = vpop.f32.mrf.mxu0
    %5763 = vdwg.mxu0
    %5764 = vmatpush.bf16.msra.mxu0 %v5602
    %5765 = vmatpush.bf16.msra.mxu0 %v5601
    %5766 = vmatpush.bf16.msra.mxu0 %v5600
    %5767 = vmatpush.bf16.msra.mxu0 %v5599
    %5768 = vmatpush.bf16.msra.mxu0 %v5598
    %5769 = vmatpush.bf16.msra.mxu0 %v5597
    %5770 = vmatpush.bf16.msra.mxu0 %v5596
    %5771 = vmatpush.bf16.msra.mxu0 %v5595
    %5772 = vmatmul.bf16.gmra.mxu0 %v5115
    %v5773 = vpop.f32.mrf.mxu0
    %v5774 = vadd.f32 %v5761, %v5773
    %v5775 = vpop.f32.mrf.mxu0
    %5776 = vdwg.mxu0
    %5777 = vmatpush.bf16.msra.mxu0 %v5610
    %5778 = vmatpush.bf16.msra.mxu0 %v5609
    %5779 = vmatpush.bf16.msra.mxu0 %v5608
    %5780 = vmatpush.bf16.msra.mxu0 %v5607
    %5781 = vmatpush.bf16.msra.mxu0 %v5606
    %5782 = vmatpush.bf16.msra.mxu0 %v5605
    %5783 = vmatpush.bf16.msra.mxu0 %v5604
    %5784 = vmatpush.bf16.msra.mxu0 %v5603
    %5785 = vmatmul.bf16.gmra.mxu0 %v5116
    %v5786 = vpop.f32.mrf.mxu0
    %v5787 = vadd.f32 %v5774, %v5786
    %v5788 = vpop.f32.mrf.mxu0
    %5789 = vdwg.mxu0
    %5790 = vmatpush.bf16.msra.mxu0 %v5618
    %5791 = vmatpush.bf16.msra.mxu0 %v5617
    %5792 = vmatpush.bf16.msra.mxu0 %v5616
    %5793 = vmatpush.bf16.msra.mxu0 %v5615
    %5794 = vmatpush.bf16.msra.mxu0 %v5614
    %5795 = vmatpush.bf16.msra.mxu0 %v5613
    %5796 = vmatpush.bf16.msra.mxu0 %v5612
    %5797 = vmatpush.bf16.msra.mxu0 %v5611
    %5798 = vmatmul.bf16.gmra.mxu0 %v5117
    %v5799 = vpop.f32.mrf.mxu0
    %v5800 = vadd.f32 %v5787, %v5799
    %v5801 = vpop.f32.mrf.mxu0
    %5802 = vdwg.mxu0
    %5803 = vmatpush.bf16.msra.mxu0 %v5626
    %5804 = vmatpush.bf16.msra.mxu0 %v5625
    %5805 = vmatpush.bf16.msra.mxu0 %v5624
    %5806 = vmatpush.bf16.msra.mxu0 %v5623
    %5807 = vmatpush.bf16.msra.mxu0 %v5622
    %5808 = vmatpush.bf16.msra.mxu0 %v5621
    %5809 = vmatpush.bf16.msra.mxu0 %v5620
    %5810 = vmatpush.bf16.msra.mxu0 %v5619
    %5811 = vmatmul.bf16.gmra.mxu0 %v5118
    %v5812 = vpop.f32.mrf.mxu0
    %v5813 = vadd.f32 %v5800, %v5812
    %v5814 = vpop.f32.mrf.mxu0
    %5815 = vdwg.mxu0
    %5816 = vst [vmem:[#allocation24] sm:$0xff] %v5813
    // Predicated region
    $region82: #{tpu_custom_call.1} parent=1 // pred_check
      _
    $region83: #{tpu_custom_call.1} parent=1 // pred_check_branch
      %5818 = sbr.rel (0) target = $region85
    $region84: #{tpu_custom_call.1} parent=1 // pred_region
      %5820 = vsyncadd [#allocation9], 0
      %s5821 = sshll.u32 [#allocation18], 4
      %s5822 = int_to_ptr.vmem [resolvable:$true] %s5821
      %s5823 = sshll.u32 %s14, 4
      %s5824 = int_to_ptr.hbm [resolvable:$true] %s5823
      %5829 = dma.vmem_to_hbm [thread:$0]  %s5822, 2048, %s5824, [#allocation9], 128, 128, 8
    $region85: #{tpu_custom_call.1} parent=1 // pred_fallthru
      _
    // Predicated region
    $region86: #{tpu_custom_call.1} parent=1 // pred_check
      _
    $region87: #{tpu_custom_call.1} parent=1 // pred_check_branch
      %5831 = sbr.rel (0) target = $region89
    $region88: #{tpu_custom_call.1} parent=1 // pred_region
      %5833 = vsyncadd [#allocation20], 0
      %s5834 = sshll.u32 [#allocation19], 4
      %s5835 = int_to_ptr.vmem [resolvable:$true] %s5834
      %s5836 = sshll.u32 %s15, 4
      %s5837 = int_to_ptr.hbm [resolvable:$true] %s5836
      %5842 = dma.vmem_to_hbm [thread:$0]  %s5835, 512, %s5837, [#allocation20], 128, 128, 8
    $region89: #{tpu_custom_call.1} parent=1 // pred_fallthru
      _
    // Predicated region
    $region90: #{tpu_custom_call.1} parent=1 // pred_check
      _
    $region91: #{tpu_custom_call.1} parent=1 // pred_check_branch
      %5844 = sbr.rel (0) target = $region93
    $region92: #{tpu_custom_call.1} parent=1 // pred_region
      %5846 = vsyncadd [#allocation20], 0
      %s5848 = sshll.u32 [#allocation21], 4
      %s5849 = int_to_ptr.vmem [resolvable:$true] %s5848
      %s5850 = sshll.u32 %s16, 4
      %s5851 = int_to_ptr.hbm [resolvable:$true] %s5850
      %5853 = dma.vmem_to_hbm [thread:$0]  %s5849, 128, %s5851, [#allocation20]
    $region93: #{tpu_custom_call.1} parent=1 // pred_fallthru
      _
    // Predicated region
    $region94: #{tpu_custom_call.1} parent=1 // pred_check
      _
    $region95: #{tpu_custom_call.1} parent=1 // pred_check_branch
      %5855 = sbr.rel (0) target = $region97
    $region96: #{tpu_custom_call.1} parent=1 // pred_region
      %5857 = vsyncadd [#allocation23], 0
      %s5859 = sshll.u32 [#allocation22], 4
      %s5860 = int_to_ptr.vmem [resolvable:$true] %s5859
      %s5861 = sshll.u32 %s17, 4
      %s5862 = int_to_ptr.hbm [resolvable:$true] %s5861
      %5864 = dma.vmem_to_hbm [thread:$0]  %s5860, 128, %s5862, [#allocation23]
    $region97: #{tpu_custom_call.1} parent=1 // pred_fallthru
      _
    // Predicated region
    $region98: #{tpu_custom_call.1} parent=1 // pred_check
      _
    $region99: #{tpu_custom_call.1} parent=1 // pred_check_branch
      %5866 = sbr.rel (0) target = $region101
    $region100: #{tpu_custom_call.1} parent=1 // pred_region
      %5868 = vsyncadd [#allocation23], 0
      %s5870 = sshll.u32 [#allocation24], 4
      %s5871 = int_to_ptr.vmem [resolvable:$true] %s5870
      %s5872 = sshll.u32 %s18, 4
      %s5873 = int_to_ptr.hbm [resolvable:$true] %s5872
      %5875 = dma.vmem_to_hbm [thread:$0]  %s5871, 128, %s5873, [#allocation23]
    $region101: #{tpu_custom_call.1} parent=1 // pred_fallthru
      _
    // Predicated region
    $region102: #{tpu_custom_call.1} parent=1 // pred_check
      _
    $region103: #{tpu_custom_call.1} parent=1 // pred_check_branch
      %5877 = sbr.rel (0) target = $region105
    $region104: #{tpu_custom_call.1} parent=1 // pred_region
      %5879 = dma.done [#allocation9], 2048
    $region105: #{tpu_custom_call.1} parent=1 // pred_fallthru
      _
    // Predicated region
    $region106: #{tpu_custom_call.1} parent=1 // pred_check
      _
    $region107: #{tpu_custom_call.1} parent=1 // pred_check_branch
      %5881 = sbr.rel (0) target = $region109
    $region108: #{tpu_custom_call.1} parent=1 // pred_region
      %5883 = dma.done [#allocation20], 512
    $region109: #{tpu_custom_call.1} parent=1 // pred_fallthru
      _
    // Predicated region
    $region110: #{tpu_custom_call.1} parent=1 // pred_check
      _
    $region111: #{tpu_custom_call.1} parent=1 // pred_check_branch
      %5885 = sbr.rel (0) target = $region113
    $region112: #{tpu_custom_call.1} parent=1 // pred_region
      %5887 = dma.done [#allocation20], 128
    $region113: #{tpu_custom_call.1} parent=1 // pred_fallthru
      _
    // Predicated region
    $region114: #{tpu_custom_call.1} parent=1 // pred_check
      _
    $region115: #{tpu_custom_call.1} parent=1 // pred_check_branch
      %5889 = sbr.rel (0) target = $region117
    $region116: #{tpu_custom_call.1} parent=1 // pred_region
      %5891 = dma.done [#allocation23], 128
    $region117: #{tpu_custom_call.1} parent=1 // pred_fallthru
      _
    // Predicated region
    $region118: #{tpu_custom_call.1} parent=1 // pred_check
      _
    $region119: #{tpu_custom_call.1} parent=1 // pred_check_branch
      %5893 = sbr.rel (0) target = $region121
    $region120: #{tpu_custom_call.1} parent=1 // pred_region
      %5895 = dma.done [#allocation23], 128
    $region121: #{tpu_custom_call.1} parent=1 // pred_fallthru
      _
    %5896 = vsyncpa [#allocation8], 1
    %5897 = vsyncpa [#allocation11], 1
    %5898 = vsyncpa [#allocation14], 1
    %5899 = vsyncpa [#allocation17], 1
    %5900 = vsyncpa [#allocation9], 1
    %5901 = vsyncpa [#allocation20], 1
    %5902 = vsyncpa [#allocation23], 1

</llo_original>
